<compile_context>
chip_gen: v6e
topology: v6e:2x2x1
jax: 0.10.0
libtpu: 0.0.40
codegen_flags: <defaults>
</compile_context>

<pallas_src>
import functools

import jax
import jax.numpy as jnp
from jax.experimental import pallas as pl
from jax.experimental.pallas import tpu as pltpu

L = 1024          # fc_size[0]
D = 256           # fc_size[1]
N_CLASSES = 2
TILE_N = 1024     # instance-axis tile (multiple of 128)

_SMEM = pl.BlockSpec(memory_space=pltpu.MemorySpace.SMEM)


# ---------------------------------------------------------------------------
# Fused kernel: both gated-attention heads, streamed over the instance axis
# with an online softmax, MXU pooling and the classifier folded into finalize.
# ---------------------------------------------------------------------------
def _make_joint_abmil_kernel(n_total, tile_n):
    def kernel(x_ref, fx_ref, wab_ref, bab_ref, wc_ref, wcls_ref, bc_ref,   # in
               score_ref, plog_ref,                                         # out
               m_sc, l_sc, acc_sc):                                         # scratch
        h = pl.program_id(0)          # attention head (0 = path, 1 = fixed)
        t = pl.program_id(1)          # instance tile

        @pl.when(t == 0)
        def _init():
            m_sc[...] = jnp.full_like(m_sc, -jnp.inf)
            l_sc[...] = jnp.zeros_like(l_sc)
            acc_sc[...] = jnp.zeros_like(acc_sc)

        def process(xin_ref):
            x = xin_ref[...]                                               # (TN, L) f32
            xb = x.astype(jnp.bfloat16)                                    # cast in-kernel
            # fused gating projection: one bf16 MXU pass over x for [Wa | Wb]
            hab = (jnp.dot(xb, wab_ref[...], preferred_element_type=jnp.float32)
                   + bab_ref[...])                                         # (TN, 2D) f32
            a = jnp.tanh(hab[:, :D])
            b = 0.5 * (1.0 + jnp.tanh(0.5 * hab[:, D:]))                   # sigmoid via tanh
            g = a * b                                                      # (TN, D)
            s_col = (jnp.dot(g, wc_ref[...], preferred_element_type=jnp.float32)
                     + bc_ref[h, 0])                                       # (TN, 1)
            s_row = jnp.transpose(s_col, (1, 0))                           # (1, TN) lane-major
            score_ref[...] = s_row                                         # raw A (padded tail
                                                                           #  sliced off outside)

            # mask padded tail columns so they contribute nothing downstream
            col = t * tile_n + jax.lax.broadcasted_iota(jnp.int32, (1, tile_n), 1)
            s_m = jnp.where(col < n_total, s_row, -1e30)

            # flash-style online softmax + MXU attention-weighted pooling
            m_prev = m_sc[...]
            m_new = jnp.maximum(m_prev, jnp.max(s_m, axis=1, keepdims=True))
            corr = jnp.exp(m_prev - m_new)
            p = jnp.exp(s_m - m_new)                                       # (1, TN) f32
            l_sc[...] = corr * l_sc[...] + jnp.sum(p, axis=1, keepdims=True)
            acc_sc[...] = corr * acc_sc[...] + jnp.dot(
                p, x, preferred_element_type=jnp.float32)                  # (1, L) f32 MXU
            m_sc[...] = m_new

        @pl.when(h == 0)
        def _head0():
            process(x_ref)

        @pl.when(h == 1)
        def _head1():
            process(fx_ref)

        @pl.when(t == pl.num_programs(1) - 1)
        def _finalize():
            m_row = acc_sc[...] / l_sc[...]                                # (1, L) pooled M
            # per-head partial logits (classifier concat folded into two dots,
            # summed + bias added in the wrapper)
            plog_ref[...] = jnp.dot(m_row, wcls_ref[...],
                                    preferred_element_type=jnp.float32)    # (1, C)

    return kernel


def joint_gated_attn_pool(x, fx, w_ab, b_ab, wc, w_cls, bc, *, n_total, tile_n):
    """x, fx: (n_pad, L) f32. Returns raw scores (2, 1, n_pad) and per-head
    partial logits (2, 1, N_CLASSES)."""
    n_pad = x.shape[0]
    num_tiles = n_pad // tile_n
    kernel = _make_joint_abmil_kernel(n_total, tile_n)

    scores, plog = pl.pallas_call(
        kernel,
        out_shape=(jax.ShapeDtypeStruct((2, 1, n_pad), jnp.float32),
                   jax.ShapeDtypeStruct((2, 1, N_CLASSES), jnp.float32)),
        grid=(2, num_tiles),
        in_specs=[
            # active head streams its tensor; the other stays pinned at block 0
            pl.BlockSpec((tile_n, L), lambda h, t: (t * (1 - h), 0)),
            pl.BlockSpec((tile_n, L), lambda h, t: (t * h, 0)),
            # resident weights: constant block index over tiles -> single buffer
            pl.BlockSpec((None, L, 2 * D), lambda h, t: (h, 0, 0),
                         pipeline_mode=pl.Buffered(1)),
            pl.BlockSpec((None, 1, 2 * D), lambda h, t: (h, 0, 0),
                         pipeline_mode=pl.Buffered(1)),
            pl.BlockSpec((None, D, 1), lambda h, t: (h, 0, 0),
                         pipeline_mode=pl.Buffered(1)),
            pl.BlockSpec((None, L, N_CLASSES), lambda h, t: (h, 0, 0),
                         pipeline_mode=pl.Buffered(1)),
            _SMEM,                                                        # bc scalars
        ],
        out_specs=(
            pl.BlockSpec((None, 1, tile_n), lambda h, t: (h, 0, t)),      # lane-dense scores
            pl.BlockSpec((None, 1, N_CLASSES), lambda h, t: (h, 0, 0)),   # partial logits
        ),
        scratch_shapes=[
            pltpu.VMEM((1, 1), jnp.float32),    # running max
            pltpu.VMEM((1, 1), jnp.float32),    # running sum
            pltpu.VMEM((1, L), jnp.float32),    # pooled accumulator
        ],
        compiler_params=pltpu.CompilerParams(
            dimension_semantics=("parallel", "arbitrary"),
            vmem_limit_bytes=48 * 1024 * 1024,
        ),
    )(x, fx, w_ab, b_ab, wc, w_cls, bc)
    return scores, plog


# ---------------------------------------------------------------------------
# Parameter init (deterministic, PyTorch-Linear-style uniform bounds)
# ---------------------------------------------------------------------------
def _linear_params(key, fan_in, fan_out):
    kw, kb = jax.random.split(key)
    bound = 1.0 / (fan_in ** 0.5)
    w = jax.random.uniform(kw, (fan_in, fan_out), jnp.float32, -bound, bound)
    b = jax.random.uniform(kb, (fan_out,), jnp.float32, -bound, bound)
    return w, b


def init_params(key):
    ks = jax.random.split(key, 7)

    def attn_head(k3):
        ka, kb_, kc = k3
        wa, ba = _linear_params(ka, L, D)        # attention_a Linear(L, D)
        wb, bb = _linear_params(kb_, L, D)       # attention_b Linear(L, D)
        wc_col, bc = _linear_params(kc, D, 1)    # attention_c Linear(D, 1)
        w_ab = jnp.concatenate([wa, wb], axis=1)             # (L, 2D)
        b_ab = jnp.concatenate([ba, bb], axis=0)[None, :]    # (1, 2D)
        return w_ab, b_ab, wc_col, bc

    h0 = attn_head(ks[0:3])
    h1 = attn_head(ks[3:6])
    wcls, bcls = _linear_params(ks[6], 2 * L, N_CLASSES)     # classifiers Linear(2L, C)

    return dict(
        w_ab=jnp.stack([h0[0], h1[0]], axis=0).astype(jnp.bfloat16),   # (2, L, 2D) bf16
        b_ab=jnp.stack([h0[1], h1[1]], axis=0),                        # (2, 1, 2D) f32
        wc=jnp.stack([h0[2], h1[2]], axis=0),                          # (2, D, 1)  f32
        bc=jnp.stack([h0[3], h1[3]], axis=0),                          # (2, 1)     f32
        w_cls=jnp.stack([wcls[:L, :], wcls[L:, :]], axis=0),           # (2, L, C)  f32
        bcls=bcls[None, :],                                            # (1, C)
    )


# ---------------------------------------------------------------------------
# Full Joint_ABMIL forward
# ---------------------------------------------------------------------------
def _round_up(x, m):
    return ((x + m - 1) // m) * m


def joint_abmil_forward(params, wsi_h, fixed_wsi_h, tile_n=TILE_N):
    x = wsi_h[0]                                   # squeeze(0) -> (N, L)
    fx = fixed_wsi_h[0]
    n = x.shape[0]

    tile = min(tile_n, _round_up(n, 128))
    num_tiles = -(-n // tile)
    n_pad = num_tiles * tile
    if n_pad != n:
        x = jnp.pad(x, ((0, n_pad - n), (0, 0)))
        fx = jnp.pad(fx, ((0, n_pad - n), (0, 0)))

    scores, plog = joint_gated_attn_pool(
        x, fx, params["w_ab"], params["b_ab"], params["wc"], params["w_cls"],
        params["bc"], n_total=n, tile_n=tile)

    logits = plog[0] + plog[1] + params["bcls"]    # (1, C)

    # Global normalisation of the returned attention maps (identical math to
    # the kernel's internal online softmax). Padded tail is sliced off.
    attn2 = jax.nn.softmax(scores[:, 0, :n], axis=-1)     # (2, N)
    return logits, attn2[0:1, :], attn2[1:2, :]


# ---------------------------------------------------------------------------
# Pure-JAX reference (mirrors the kernel's bf16 gating projection)
# ---------------------------------------------------------------------------
def _reference_forward(params, wsi_h, fixed_wsi_h):
    xs = (wsi_h[0], fixed_wsi_h[0])
    partial, attns = [], []
    for i in range(2):
        x = xs[i]
        xb = x.astype(jnp.bfloat16)
        hab = (jnp.dot(xb, params["w_ab"][i], preferred_element_type=jnp.float32)
               + params["b_ab"][i])
        g = jnp.tanh(hab[:, :D]) * jax.nn.sigmoid(hab[:, D:])
        s = jnp.dot(g, params["wc"][i])[:, 0] + params["bc"][i, 0]
        p = jax.nn.softmax(s)
        m = jnp.dot(p[None, :], x)                 # f32 pooling, matches kernel
        partial.append(jnp.dot(m, params["w_cls"][i]))
        attns.append(p[None, :])
    logits = partial[0] + partial[1] + params["bcls"]
    return logits, attns[0], attns[1]


if __name__ == "__main__":
    key = jax.random.PRNGKey(0)
    kp, kx, kfx, kx2, kfx2 = jax.random.split(key, 5)

    params = init_params(kp)
    fwd = jax.jit(joint_abmil_forward)

    # --- small bag: exercises tail masking (N=8 << tile) --------------------
    N = 8
    wsi_h = jax.random.normal(kx, (1, N, L), jnp.float32)
    fixed_wsi_h = jax.random.normal(kfx, (1, N, L), jnp.float32)
    logits, attn, fattn = fwd(params, wsi_h, fixed_wsi_h)
    jax.block_until_ready((logits, attn, fattn))

    assert logits.shape == (1, N_CLASSES)
    assert attn.shape == (1, N) and fattn.shape == (1, N)
    assert abs(float(jnp.sum(attn)) - 1.0) < 1e-4
    assert abs(float(jnp.sum(fattn)) - 1.0) < 1e-4

    rl, ra, rf = _reference_forward(params, wsi_h, fixed_wsi_h)
    assert jnp.allclose(logits, rl, atol=2e-2, rtol=2e-2)
    assert jnp.allclose(attn, ra, atol=2e-2, rtol=2e-2)
    assert jnp.allclose(fattn, rf, atol=2e-2, rtol=2e-2)

    # --- multi-tile bag: exercises streaming + online softmax across tiles --
    N2 = 600
    wsi_h2 = jax.random.normal(kx2, (1, N2, L), jnp.float32)
    fixed_wsi_h2 = jax.random.normal(kfx2, (1, N2, L), jnp.float32)
    fwd_small_tile = jax.jit(functools.partial(joint_abmil_forward, tile_n=128))
    logits2, attn2, fattn2 = fwd_small_tile(params, wsi_h2, fixed_wsi_h2)
    jax.block_until_ready((logits2, attn2, fattn2))

    rl2, ra2, rf2 = _reference_forward(params, wsi_h2, fixed_wsi_h2)
    assert jnp.allclose(logits2, rl2, atol=2e-2, rtol=2e-2)
    assert jnp.allclose(attn2, ra2, atol=2e-2, rtol=2e-2)
    assert jnp.allclose(fattn2, rf2, atol=2e-2, rtol=2e-2)
    assert abs(float(jnp.sum(attn2)) - 1.0) < 1e-3

    print("KERNEL_OK")
</pallas_src>

<mosaic_0001>
module attributes {stable_mosaic.version = 11 : i64} {
  func.func @kernel(%arg0: i32, %arg1: i32, %arg2: memref<128x1024xf32, #tpu.memory_space<vmem>>, %arg3: memref<128x1024xf32, #tpu.memory_space<vmem>>, %arg4: memref<1x1024x512xbf16, #tpu.memory_space<vmem>>, %arg5: memref<1x1x512xf32, #tpu.memory_space<vmem>>, %arg6: memref<1x256x1xf32, #tpu.memory_space<vmem>>, %arg7: memref<1x1024x2xf32, #tpu.memory_space<vmem>>, %arg8: memref<2x1xf32, #tpu.memory_space<smem>>, %arg9: memref<1x1x128xf32, #tpu.memory_space<vmem>>, %arg10: memref<1x1x2xf32, #tpu.memory_space<vmem>>, %arg11: memref<1x1xf32, #tpu.memory_space<vmem>>, %arg12: memref<1x1xf32, #tpu.memory_space<vmem>>, %arg13: memref<1x1024xf32, #tpu.memory_space<vmem>>) attributes {dimension_semantics = [#tpu.dimension_semantics<parallel>, #tpu.dimension_semantics<arbitrary>], iteration_bounds = array<i64: 2, 1>, scalar_prefetch = 0 : i64, scratch_operands = 3 : i64, tpu.core_type = #tpu.core_type<tc>, window_params = [{transform_indices = @transform_0, window_bounds = array<i64: 128, 1024>}, {transform_indices = @transform_1, window_bounds = array<i64: 128, 1024>}, {pipeline_mode = #tpu.pipeline_mode<synchronous>, transform_indices = @transform_2, window_bounds = array<i64: 1, 1024, 512>}, {pipeline_mode = #tpu.pipeline_mode<synchronous>, transform_indices = @transform_3, window_bounds = array<i64: 1, 1, 512>}, {pipeline_mode = #tpu.pipeline_mode<synchronous>, transform_indices = @transform_4, window_bounds = array<i64: 1, 256, 1>}, {pipeline_mode = #tpu.pipeline_mode<synchronous>, transform_indices = @transform_5, window_bounds = array<i64: 1, 1024, 2>}, {transform_indices = @transform_6, window_bounds = array<i64: 2, 1>}, {transform_indices = @transform_7, window_bounds = array<i64: 1, 1, 128>}, {transform_indices = @transform_8, window_bounds = array<i64: 1, 1, 2>}]} {
    %c0_i32 = arith.constant 0 : i32
    %0 = arith.cmpi eq, %arg1, %c0_i32 : i32
    %1 = arith.extui %0 : i1 to i32
    %c0_i32_0 = arith.constant 0 : i32
    %2 = arith.cmpi ne, %1, %c0_i32_0 : i32
    scf.if %2 {
      %cst = arith.constant 0xFF800000 : f32
      %12 = vector.broadcast %cst : f32 to vector<1x1xf32>
      %c0 = arith.constant 0 : index
      %c0_6 = arith.constant 0 : index
      %13 = vector.load %arg11[%c0, %c0_6] : memref<1x1xf32, #tpu.memory_space<vmem>>, vector<1x1xf32>
      tpu.vector_store %arg11[%c0, %c0_6], %12 {strides = array<i32>} : memref<1x1xf32, #tpu.memory_space<vmem>>, vector<1x1xf32>,
      %cst_7 = arith.constant 0.000000e+00 : f32
      %14 = vector.broadcast %cst_7 : f32 to vector<1x1xf32>
      %c0_8 = arith.constant 0 : index
      %c0_9 = arith.constant 0 : index
      %15 = vector.load %arg12[%c0_8, %c0_9] : memref<1x1xf32, #tpu.memory_space<vmem>>, vector<1x1xf32>
      tpu.vector_store %arg12[%c0_8, %c0_9], %14 {strides = array<i32>} : memref<1x1xf32, #tpu.memory_space<vmem>>, vector<1x1xf32>,
      %cst_10 = arith.constant 0.000000e+00 : f32
      %16 = vector.broadcast %cst_10 : f32 to vector<1x1024xf32>
      %c0_11 = arith.constant 0 : index
      %c0_12 = arith.constant 0 : index
      %17 = vector.load %arg13[%c0_11, %c0_12] : memref<1x1024xf32, #tpu.memory_space<vmem>>, vector<1x1024xf32>
      tpu.vector_store %arg13[%c0_11, %c0_12], %16 {strides = array<i32>} : memref<1x1024xf32, #tpu.memory_space<vmem>>, vector<1x1024xf32>,
    } else {
    }
    %c0_i32_1 = arith.constant 0 : i32
    %3 = arith.cmpi eq, %arg0, %c0_i32_1 : i32
    %4 = arith.extui %3 : i1 to i32
    %c0_i32_2 = arith.constant 0 : i32
    %5 = arith.cmpi ne, %4, %c0_i32_2 : i32
    scf.if %5 {
      %c0 = arith.constant 0 : index
      %c0_6 = arith.constant 0 : index
      %12 = vector.load %arg2[%c0, %c0_6] : memref<128x1024xf32, #tpu.memory_space<vmem>>, vector<128x1024xf32>
      %13 = arith.truncf %12 : vector<128x1024xf32> to vector<128x1024xbf16>
      %c0_7 = arith.constant 0 : index
      %c0_8 = arith.constant 0 : index
      %c0_9 = arith.constant 0 : index
      %14 = vector.load %arg4[%c0_7, %c0_8, %c0_9] : memref<1x1024x512xbf16, #tpu.memory_space<vmem>>, vector<1x1024x512xbf16>
      %15 = vector.shape_cast %14 : vector<1x1024x512xbf16> to vector<1024x512xbf16>
      %cst = arith.constant dense<0.000000e+00> : vector<128x512xf32>
      %16 = tpu.matmul %13, %15, %cst {dimension_numbers = #tpu.dot_dimension_numbers<[1], [0], [0], [1], [0, 0, 1, 1], [], []>} : vector<128x1024xbf16>, vector<1024x512xbf16>, vector<128x512xf32> -> vector<128x512xf32>
      %c0_10 = arith.constant 0 : index
      %c0_11 = arith.constant 0 : index
      %c0_12 = arith.constant 0 : index
      %17 = vector.load %arg5[%c0_10, %c0_11, %c0_12] : memref<1x1x512xf32, #tpu.memory_space<vmem>>, vector<1x1x512xf32>
      %18 = vector.shape_cast %17 : vector<1x1x512xf32> to vector<1x512xf32>
      %19 = vector.broadcast %18 : vector<1x512xf32> to vector<128x512xf32>
      %20 = arith.addf %16, %19 : vector<128x512xf32>
      %21 = vector.extract_strided_slice %20 {offsets = [0, 0], sizes = [128, 256], strides = [1, 1]} : vector<128x512xf32> to vector<128x256xf32>
      %22 = math.tanh %21 : vector<128x256xf32>
      %23 = vector.extract_strided_slice %20 {offsets = [0, 256], sizes = [128, 256], strides = [1, 1]} : vector<128x512xf32> to vector<128x256xf32>
      %cst_13 = arith.constant 5.000000e-01 : f32
      %24 = vector.broadcast %cst_13 : f32 to vector<128x256xf32>
      %25 = arith.mulf %24, %23 : vector<128x256xf32>
      %26 = math.tanh %25 : vector<128x256xf32>
      %cst_14 = arith.constant 1.000000e+00 : f32
      %27 = vector.broadcast %cst_14 : f32 to vector<128x256xf32>
      %28 = arith.addf %27, %26 : vector<128x256xf32>
      %cst_15 = arith.constant 5.000000e-01 : f32
      %29 = vector.broadcast %cst_15 : f32 to vector<128x256xf32>
      %30 = arith.mulf %29, %28 : vector<128x256xf32>
      %31 = arith.mulf %22, %30 : vector<128x256xf32>
      %c0_16 = arith.constant 0 : index
      %c0_17 = arith.constant 0 : index
      %c0_18 = arith.constant 0 : index
      %32 = vector.load %arg6[%c0_16, %c0_17, %c0_18] : memref<1x256x1xf32, #tpu.memory_space<vmem>>, vector<1x256x1xf32>
      %33 = vector.shape_cast %32 : vector<1x256x1xf32> to vector<256x1xf32>
      %cst_19 = arith.constant dense<0.000000e+00> : vector<128x1xf32>
      %34 = tpu.matmul %31, %33, %cst_19 {dimension_numbers = #tpu.dot_dimension_numbers<[1], [0], [0], [1], [0, 0, 1, 1], [], []>} : vector<128x256xf32>, vector<256x1xf32>, vector<128x1xf32> -> vector<128x1xf32>
      %35 = arith.index_cast %arg0 : i32 to index
      %c0_20 = arith.constant 0 : index
      %36 = memref.load %arg8[%35, %c0_20] : memref<2x1xf32, #tpu.memory_space<smem>>
      %37 = vector.broadcast %36 : f32 to vector<128x1xf32>
      %38 = arith.addf %34, %37 : vector<128x1xf32>
      %39 = tpu.transpose %38, [1, 0] : vector<128x1xf32> -> vector<1x128xf32>
      %c0_21 = arith.constant 0 : index
      %c0_22 = arith.constant 0 : index
      %c0_23 = arith.constant 0 : index
      %40 = vector.load %arg9[%c0_21, %c0_22, %c0_23] : memref<1x1x128xf32, #tpu.memory_space<vmem>>, vector<1x1x128xf32>
      %41 = vector.shape_cast %40 : vector<1x1x128xf32> to vector<1x128xf32>
      %42 = vector.shape_cast %39 : vector<1x128xf32> to vector<1x1x128xf32>
      tpu.vector_store %arg9[%c0_21, %c0_22, %c0_23], %42 {strides = array<i32>} : memref<1x1x128xf32, #tpu.memory_space<vmem>>, vector<1x1x128xf32>,
      %c128_i32 = arith.constant 128 : i32
      %43 = arith.muli %arg1, %c128_i32 : i32
      %44 = tpu.iota {dimensions = array<i32: 1>} : vector<1x128xi32>
      %45 = vector.broadcast %43 : i32 to vector<1x128xi32>
      %46 = arith.addi %45, %44 : vector<1x128xi32>
      %c8_i32 = arith.constant 8 : i32
      %47 = vector.broadcast %c8_i32 : i32 to vector<1x128xi32>
      %48 = arith.cmpi slt, %46, %47 : vector<1x128xi32>
      %cst_24 = arith.constant -1.000000e+30 : f32
      %49 = vector.broadcast %cst_24 : f32 to vector<1x128xf32>
      %50 = arith.select %48, %39, %49 : vector<1x128xi1>, vector<1x128xf32>
      %c0_25 = arith.constant 0 : index
      %c0_26 = arith.constant 0 : index
      %51 = vector.load %arg11[%c0_25, %c0_26] : memref<1x1xf32, #tpu.memory_space<vmem>>, vector<1x1xf32>
      %cst_27 = arith.constant dense<0xFF800000> : vector<1xf32>
      %52 = vector.multi_reduction <maximumf>, %50, %cst_27 [1] : vector<1x128xf32> to vector<1xf32>
      %53 = vector.shape_cast %52 : vector<1xf32> to vector<1x1xf32>
      %54 = arith.maximumf %51, %53 : vector<1x1xf32>
      %55 = arith.subf %51, %54 : vector<1x1xf32>
      %56 = math.exp %55 : vector<1x1xf32>
      %57 = vector.broadcast %54 : vector<1x1xf32> to vector<1x128xf32>
      %58 = arith.subf %50, %57 : vector<1x128xf32>
      %59 = math.exp %58 : vector<1x128xf32>
      %c0_28 = arith.constant 0 : index
      %c0_29 = arith.constant 0 : index
      %60 = vector.load %arg12[%c0_28, %c0_29] : memref<1x1xf32, #tpu.memory_space<vmem>>, vector<1x1xf32>
      %61 = arith.mulf %56, %60 : vector<1x1xf32>
      %cst_30 = arith.constant dense<0.000000e+00> : vector<1xf32>
      %62 = vector.multi_reduction <add>, %59, %cst_30 [1] : vector<1x128xf32> to vector<1xf32>
      %63 = vector.shape_cast %62 : vector<1xf32> to vector<1x1xf32>
      %64 = arith.addf %61, %63 : vector<1x1xf32>
      %c0_31 = arith.constant 0 : index
      %c0_32 = arith.constant 0 : index
      %65 = vector.load %arg12[%c0_31, %c0_32] : memref<1x1xf32, #tpu.memory_space<vmem>>, vector<1x1xf32>
      tpu.vector_store %arg12[%c0_31, %c0_32], %64 {strides = array<i32>} : memref<1x1xf32, #tpu.memory_space<vmem>>, vector<1x1xf32>,
      %c0_33 = arith.constant 0 : index
      %c0_34 = arith.constant 0 : index
      %66 = vector.load %arg13[%c0_33, %c0_34] : memref<1x1024xf32, #tpu.memory_space<vmem>>, vector<1x1024xf32>
      %67 = vector.broadcast %56 : vector<1x1xf32> to vector<1x1024xf32>
      %68 = arith.mulf %67, %66 : vector<1x1024xf32>
      %cst_35 = arith.constant dense<0.000000e+00> : vector<1x1024xf32>
      %69 = tpu.matmul %59, %12, %cst_35 {dimension_numbers = #tpu.dot_dimension_numbers<[1], [0], [0], [1], [0, 0, 1, 1], [], []>} : vector<1x128xf32>, vector<128x1024xf32>, vector<1x1024xf32> -> vector<1x1024xf32>
      %70 = arith.addf %68, %69 : vector<1x1024xf32>
      %c0_36 = arith.constant 0 : index
      %c0_37 = arith.constant 0 : index
      %71 = vector.load %arg13[%c0_36, %c0_37] : memref<1x1024xf32, #tpu.memory_space<vmem>>, vector<1x1024xf32>
      tpu.vector_store %arg13[%c0_36, %c0_37], %70 {strides = array<i32>} : memref<1x1024xf32, #tpu.memory_space<vmem>>, vector<1x1024xf32>,
      %c0_38 = arith.constant 0 : index
      %c0_39 = arith.constant 0 : index
      %72 = vector.load %arg11[%c0_38, %c0_39] : memref<1x1xf32, #tpu.memory_space<vmem>>, vector<1x1xf32>
      tpu.vector_store %arg11[%c0_38, %c0_39], %54 {strides = array<i32>} : memref<1x1xf32, #tpu.memory_space<vmem>>, vector<1x1xf32>,
    } else {
    }
    %c1_i32 = arith.constant 1 : i32
    %6 = arith.cmpi eq, %arg0, %c1_i32 : i32
    %7 = arith.extui %6 : i1 to i32
    %c0_i32_3 = arith.constant 0 : i32
    %8 = arith.cmpi ne, %7, %c0_i32_3 : i32
    scf.if %8 {
      %c0 = arith.constant 0 : index
      %c0_6 = arith.constant 0 : index
      %12 = vector.load %arg3[%c0, %c0_6] : memref<128x1024xf32, #tpu.memory_space<vmem>>, vector<128x1024xf32>
      %13 = arith.truncf %12 : vector<128x1024xf32> to vector<128x1024xbf16>
      %c0_7 = arith.constant 0 : index
      %c0_8 = arith.constant 0 : index
      %c0_9 = arith.constant 0 : index
      %14 = vector.load %arg4[%c0_7, %c0_8, %c0_9] : memref<1x1024x512xbf16, #tpu.memory_space<vmem>>, vector<1x1024x512xbf16>
      %15 = vector.shape_cast %14 : vector<1x1024x512xbf16> to vector<1024x512xbf16>
      %cst = arith.constant dense<0.000000e+00> : vector<128x512xf32>
      %16 = tpu.matmul %13, %15, %cst {dimension_numbers = #tpu.dot_dimension_numbers<[1], [0], [0], [1], [0, 0, 1, 1], [], []>} : vector<128x1024xbf16>, vector<1024x512xbf16>, vector<128x512xf32> -> vector<128x512xf32>
      %c0_10 = arith.constant 0 : index
      %c0_11 = arith.constant 0 : index
      %c0_12 = arith.constant 0 : index
      %17 = vector.load %arg5[%c0_10, %c0_11, %c0_12] : memref<1x1x512xf32, #tpu.memory_space<vmem>>, vector<1x1x512xf32>
      %18 = vector.shape_cast %17 : vector<1x1x512xf32> to vector<1x512xf32>
      %19 = vector.broadcast %18 : vector<1x512xf32> to vector<128x512xf32>
      %20 = arith.addf %16, %19 : vector<128x512xf32>
      %21 = vector.extract_strided_slice %20 {offsets = [0, 0], sizes = [128, 256], strides = [1, 1]} : vector<128x512xf32> to vector<128x256xf32>
      %22 = math.tanh %21 : vector<128x256xf32>
      %23 = vector.extract_strided_slice %20 {offsets = [0, 256], sizes = [128, 256], strides = [1, 1]} : vector<128x512xf32> to vector<128x256xf32>
      %cst_13 = arith.constant 5.000000e-01 : f32
      %24 = vector.broadcast %cst_13 : f32 to vector<128x256xf32>
      %25 = arith.mulf %24, %23 : vector<128x256xf32>
      %26 = math.tanh %25 : vector<128x256xf32>
      %cst_14 = arith.constant 1.000000e+00 : f32
      %27 = vector.broadcast %cst_14 : f32 to vector<128x256xf32>
      %28 = arith.addf %27, %26 : vector<128x256xf32>
      %cst_15 = arith.constant 5.000000e-01 : f32
      %29 = vector.broadcast %cst_15 : f32 to vector<128x256xf32>
      %30 = arith.mulf %29, %28 : vector<128x256xf32>
      %31 = arith.mulf %22, %30 : vector<128x256xf32>
      %c0_16 = arith.constant 0 : index
      %c0_17 = arith.constant 0 : index
      %c0_18 = arith.constant 0 : index
      %32 = vector.load %arg6[%c0_16, %c0_17, %c0_18] : memref<1x256x1xf32, #tpu.memory_space<vmem>>, vector<1x256x1xf32>
      %33 = vector.shape_cast %32 : vector<1x256x1xf32> to vector<256x1xf32>
      %cst_19 = arith.constant dense<0.000000e+00> : vector<128x1xf32>
      %34 = tpu.matmul %31, %33, %cst_19 {dimension_numbers = #tpu.dot_dimension_numbers<[1], [0], [0], [1], [0, 0, 1, 1], [], []>} : vector<128x256xf32>, vector<256x1xf32>, vector<128x1xf32> -> vector<128x1xf32>
      %35 = arith.index_cast %arg0 : i32 to index
      %c0_20 = arith.constant 0 : index
      %36 = memref.load %arg8[%35, %c0_20] : memref<2x1xf32, #tpu.memory_space<smem>>
      %37 = vector.broadcast %36 : f32 to vector<128x1xf32>
      %38 = arith.addf %34, %37 : vector<128x1xf32>
      %39 = tpu.transpose %38, [1, 0] : vector<128x1xf32> -> vector<1x128xf32>
      %c0_21 = arith.constant 0 : index
      %c0_22 = arith.constant 0 : index
      %c0_23 = arith.constant 0 : index
      %40 = vector.load %arg9[%c0_21, %c0_22, %c0_23] : memref<1x1x128xf32, #tpu.memory_space<vmem>>, vector<1x1x128xf32>
      %41 = vector.shape_cast %40 : vector<1x1x128xf32> to vector<1x128xf32>
      %42 = vector.shape_cast %39 : vector<1x128xf32> to vector<1x1x128xf32>
      tpu.vector_store %arg9[%c0_21, %c0_22, %c0_23], %42 {strides = array<i32>} : memref<1x1x128xf32, #tpu.memory_space<vmem>>, vector<1x1x128xf32>,
      %c128_i32 = arith.constant 128 : i32
      %43 = arith.muli %arg1, %c128_i32 : i32
      %44 = tpu.iota {dimensions = array<i32: 1>} : vector<1x128xi32>
      %45 = vector.broadcast %43 : i32 to vector<1x128xi32>
      %46 = arith.addi %45, %44 : vector<1x128xi32>
      %c8_i32 = arith.constant 8 : i32
      %47 = vector.broadcast %c8_i32 : i32 to vector<1x128xi32>
      %48 = arith.cmpi slt, %46, %47 : vector<1x128xi32>
      %cst_24 = arith.constant -1.000000e+30 : f32
      %49 = vector.broadcast %cst_24 : f32 to vector<1x128xf32>
      %50 = arith.select %48, %39, %49 : vector<1x128xi1>, vector<1x128xf32>
      %c0_25 = arith.constant 0 : index
      %c0_26 = arith.constant 0 : index
      %51 = vector.load %arg11[%c0_25, %c0_26] : memref<1x1xf32, #tpu.memory_space<vmem>>, vector<1x1xf32>
      %cst_27 = arith.constant dense<0xFF800000> : vector<1xf32>
      %52 = vector.multi_reduction <maximumf>, %50, %cst_27 [1] : vector<1x128xf32> to vector<1xf32>
      %53 = vector.shape_cast %52 : vector<1xf32> to vector<1x1xf32>
      %54 = arith.maximumf %51, %53 : vector<1x1xf32>
      %55 = arith.subf %51, %54 : vector<1x1xf32>
      %56 = math.exp %55 : vector<1x1xf32>
      %57 = vector.broadcast %54 : vector<1x1xf32> to vector<1x128xf32>
      %58 = arith.subf %50, %57 : vector<1x128xf32>
      %59 = math.exp %58 : vector<1x128xf32>
      %c0_28 = arith.constant 0 : index
      %c0_29 = arith.constant 0 : index
      %60 = vector.load %arg12[%c0_28, %c0_29] : memref<1x1xf32, #tpu.memory_space<vmem>>, vector<1x1xf32>
      %61 = arith.mulf %56, %60 : vector<1x1xf32>
      %cst_30 = arith.constant dense<0.000000e+00> : vector<1xf32>
      %62 = vector.multi_reduction <add>, %59, %cst_30 [1] : vector<1x128xf32> to vector<1xf32>
      %63 = vector.shape_cast %62 : vector<1xf32> to vector<1x1xf32>
      %64 = arith.addf %61, %63 : vector<1x1xf32>
      %c0_31 = arith.constant 0 : index
      %c0_32 = arith.constant 0 : index
      %65 = vector.load %arg12[%c0_31, %c0_32] : memref<1x1xf32, #tpu.memory_space<vmem>>, vector<1x1xf32>
      tpu.vector_store %arg12[%c0_31, %c0_32], %64 {strides = array<i32>} : memref<1x1xf32, #tpu.memory_space<vmem>>, vector<1x1xf32>,
      %c0_33 = arith.constant 0 : index
      %c0_34 = arith.constant 0 : index
      %66 = vector.load %arg13[%c0_33, %c0_34] : memref<1x1024xf32, #tpu.memory_space<vmem>>, vector<1x1024xf32>
      %67 = vector.broadcast %56 : vector<1x1xf32> to vector<1x1024xf32>
      %68 = arith.mulf %67, %66 : vector<1x1024xf32>
      %cst_35 = arith.constant dense<0.000000e+00> : vector<1x1024xf32>
      %69 = tpu.matmul %59, %12, %cst_35 {dimension_numbers = #tpu.dot_dimension_numbers<[1], [0], [0], [1], [0, 0, 1, 1], [], []>} : vector<1x128xf32>, vector<128x1024xf32>, vector<1x1024xf32> -> vector<1x1024xf32>
      %70 = arith.addf %68, %69 : vector<1x1024xf32>
      %c0_36 = arith.constant 0 : index
      %c0_37 = arith.constant 0 : index
      %71 = vector.load %arg13[%c0_36, %c0_37] : memref<1x1024xf32, #tpu.memory_space<vmem>>, vector<1x1024xf32>
      tpu.vector_store %arg13[%c0_36, %c0_37], %70 {strides = array<i32>} : memref<1x1024xf32, #tpu.memory_space<vmem>>, vector<1x1024xf32>,
      %c0_38 = arith.constant 0 : index
      %c0_39 = arith.constant 0 : index
      %72 = vector.load %arg11[%c0_38, %c0_39] : memref<1x1xf32, #tpu.memory_space<vmem>>, vector<1x1xf32>
      tpu.vector_store %arg11[%c0_38, %c0_39], %54 {strides = array<i32>} : memref<1x1xf32, #tpu.memory_space<vmem>>, vector<1x1xf32>,
    } else {
    }
    %c0_i32_4 = arith.constant 0 : i32
    %9 = arith.cmpi eq, %arg1, %c0_i32_4 : i32
    %10 = arith.extui %9 : i1 to i32
    %c0_i32_5 = arith.constant 0 : i32
    %11 = arith.cmpi ne, %10, %c0_i32_5 : i32
    scf.if %11 {
      %c0 = arith.constant 0 : index
      %c0_6 = arith.constant 0 : index
      %12 = vector.load %arg13[%c0, %c0_6] : memref<1x1024xf32, #tpu.memory_space<vmem>>, vector<1x1024xf32>
      %c0_7 = arith.constant 0 : index
      %c0_8 = arith.constant 0 : index
      %13 = vector.load %arg12[%c0_7, %c0_8] : memref<1x1xf32, #tpu.memory_space<vmem>>, vector<1x1xf32>
      %14 = vector.broadcast %13 : vector<1x1xf32> to vector<1x1024xf32>
      %15 = arith.divf %12, %14 : vector<1x1024xf32>
      %c0_9 = arith.constant 0 : index
      %c0_10 = arith.constant 0 : index
      %c0_11 = arith.constant 0 : index
      %16 = vector.load %arg7[%c0_9, %c0_10, %c0_11] : memref<1x1024x2xf32, #tpu.memory_space<vmem>>, vector<1x1024x2xf32>
      %17 = vector.shape_cast %16 : vector<1x1024x2xf32> to vector<1024x2xf32>
      %cst = arith.constant dense<0.000000e+00> : vector<1x2xf32>
      %18 = tpu.matmul %15, %17, %cst {dimension_numbers = #tpu.dot_dimension_numbers<[1], [0], [0], [1], [0, 0, 1, 1], [], []>} : vector<1x1024xf32>, vector<1024x2xf32>, vector<1x2xf32> -> vector<1x2xf32>
      %c0_12 = arith.constant 0 : index
      %c0_13 = arith.constant 0 : index
      %c0_14 = arith.constant 0 : index
      %19 = vector.load %arg10[%c0_12, %c0_13, %c0_14] : memref<1x1x2xf32, #tpu.memory_space<vmem>>, vector<1x1x2xf32>
      %20 = vector.shape_cast %19 : vector<1x1x2xf32> to vector<1x2xf32>
      %21 = vector.shape_cast %18 : vector<1x2xf32> to vector<1x1x2xf32>
      tpu.vector_store %arg10[%c0_12, %c0_13, %c0_14], %21 {strides = array<i32>} : memref<1x1x2xf32, #tpu.memory_space<vmem>>, vector<1x1x2xf32>,
    } else {
    }
    return
  }
  func.func @transform_0(%arg0: i32, %arg1: i32) -> (i32, i32) {
    %c1_i32 = arith.constant 1 : i32
    %0 = arith.subi %c1_i32, %arg0 : i32
    %1 = arith.muli %arg1, %0 : i32
    %c0_i32 = arith.constant 0 : i32
    %c0_i32_0 = arith.constant 0 : i32
    return %1, %c0_i32 : i32, i32
  }
  func.func @transform_1(%arg0: i32, %arg1: i32) -> (i32, i32) {
    %0 = arith.muli %arg1, %arg0 : i32
    %c0_i32 = arith.constant 0 : i32
    %c0_i32_0 = arith.constant 0 : i32
    return %0, %c0_i32 : i32, i32
  }
  func.func @transform_2(%arg0: i32, %arg1: i32) -> (i32, i32, i32) {
    %c0_i32 = arith.constant 0 : i32
    %c0_i32_0 = arith.constant 0 : i32
    %c0_i32_1 = arith.constant 0 : i32
    return %arg0, %c0_i32, %c0_i32_0 : i32, i32, i32
  }
  func.func @transform_3(%arg0: i32, %arg1: i32) -> (i32, i32, i32) {
    %c0_i32 = arith.constant 0 : i32
    %c0_i32_0 = arith.constant 0 : i32
    %c0_i32_1 = arith.constant 0 : i32
    return %arg0, %c0_i32, %c0_i32_0 : i32, i32, i32
  }
  func.func @transform_4(%arg0: i32, %arg1: i32) -> (i32, i32, i32) {
    %c0_i32 = arith.constant 0 : i32
    %c0_i32_0 = arith.constant 0 : i32
    %c0_i32_1 = arith.constant 0 : i32
    return %arg0, %c0_i32, %c0_i32_0 : i32, i32, i32
  }
  func.func @transform_5(%arg0: i32, %arg1: i32) -> (i32, i32, i32) {
    %c0_i32 = arith.constant 0 : i32
    %c0_i32_0 = arith.constant 0 : i32
    %c0_i32_1 = arith.constant 0 : i32
    return %arg0, %c0_i32, %c0_i32_0 : i32, i32, i32
  }
  func.func @transform_6(%arg0: i32, %arg1: i32) -> (i32, i32) {
    %c0_i32 = arith.constant 0 : i32
    %c0_i32_0 = arith.constant 0 : i32
    %c0_i32_1 = arith.constant 0 : i32
    return %c0_i32, %c0_i32_0 : i32, i32
  }
  func.func @transform_7(%arg0: i32, %arg1: i32) -> (i32, i32, i32) {
    %c0_i32 = arith.constant 0 : i32
    %c0_i32_0 = arith.constant 0 : i32
    return %arg0, %c0_i32, %arg1 : i32, i32, i32
  }
  func.func @transform_8(%arg0: i32, %arg1: i32) -> (i32, i32, i32) {
    %c0_i32 = arith.constant 0 : i32
    %c0_i32_0 = arith.constant 0 : i32
    %c0_i32_1 = arith.constant 0 : i32
    return %arg0, %c0_i32, %c0_i32_0 : i32, i32, i32
  }
}

</mosaic_0001>

<llo_original>
// kernel: joint_abmil_forward.1
$region0: #{joint_abmil_forward.1}
  #allocation0 [shape = 'u32[]', space=smem, size = 0x4, offset = 0x4, fixed_abs, tag = 'smem constant byte address 0x4 - core index']
  #allocation1 [shape = 'u32[144,128]{1,0:T(1,128)}', space=vmem, size = 0x12000, scoped, tag = 'internal scratch']
  #allocation2 [shape = 'f32[1,1]{1,0:T(1,128)}', space=vmem, size = 0x200, scoped, tag = 'scratch operand']
  #allocation3 [shape = 'f32[1,1]{1,0:T(1,128)}', space=vmem, size = 0x200, scoped, tag = 'scratch operand']
  #allocation4 [shape = 'f32[1,1024]{1,0:T(1,128)}', space=vmem, size = 0x1000, scoped, tag = 'scratch operand']
  %s0 = inlined_call_operand.vmem [shape: f32[128,1024], index: 0, kind: input, shape index: {}]
  %s1 = inlined_call_operand.vmem [shape: f32[128,1024], index: 1, kind: input, shape index: {}]
  %s2 = inlined_call_operand.vmem [shape: bf16[2,1024,512], index: 2, kind: input, shape index: {}]
  %s3 = inlined_call_operand.vmem [shape: f32[2,1,512], index: 3, kind: input, shape index: {}]
  %s4 = inlined_call_operand.vmem [shape: f32[2,256,1], index: 4, kind: input, shape index: {}]
  %s5 = inlined_call_operand.vmem [shape: f32[2,1024,2], index: 5, kind: input, shape index: {}]
  %s6 = inlined_call_operand.vmem [shape: f32[2,1], index: 6, kind: input, shape index: {}]
  %s7 = inlined_call_operand.vmem [shape: f32[2,1,128], index: 7, kind: output, shape index: {0}]
  %s8 = inlined_call_operand.vmem [shape: f32[2,1,2], index: 8, kind: output, shape index: {1}]
  %9 = xla_tuple %s7, %s8
  %s10 = sld [smem:[#allocation0]]
  $region89: #{joint_abmil_forward.1} parent=0
    _
  %s12 = ssub.s32 1, %s10
  %s13 = scalar_select 0, %s12, %s10
  $region1: #{joint_abmil_forward.1} parent=0
    #allocation5 [shape = 'u8[1024]{0}', space=smem, size = 0x400, scoped, tag = 'input window, operand 6, single buffered']
    #allocation6 [shape = 's32[2]{0}', space=sflag, size = 0x8, scoped, tag = 'scoped memory for joint_abmil_forward.1']
    %14 = vsyncpa [#allocation6], 0
    loop: start=0, step=1, limit=4
    $region2: #{joint_abmil_forward.1} parent=1 // loop_pre_header
      _
    $region3: #{joint_abmil_forward.1} parent=1 // loop_header
      %s16 = sphi 0, %s20
      %p17 = scmp.ge.s32.totalorder %s16, 4
      %s23 = sphi 0, %s35
      %s24 = sphi 0, %s31
      %s25 = sphi 0, %s23
      %s26 = sphi 0, %s24
      %s27 = sphi 0, %s25
      %s28 = sphi 0, %s26
      %s42 = sphi 0, %s44
      %s45 = sphi 0, %s42
      %s46 = sphi 0, %s45
      %s62 = sphi 0, %s46
      %s70 = sphi 0, %s72
      %s73 = sphi 0, %s70
      %s74 = sphi 0, %s73
      %s90 = sphi 0, %s74
      %s96 = sphi 0, %s98
      %s99 = sphi 0, %s96
      %s100 = sphi 0, %s99
      %s116 = sphi 0, %s100
      %s122 = sphi 0, %s124
      %s125 = sphi 0, %s122
      %s126 = sphi 0, %s125
      %s142 = sphi 0, %s126
      %s148 = sphi 0, %s150
      %s151 = sphi 0, %s148
      %s152 = sphi 0, %s151
      %s168 = sphi 0, %s152
      %s174 = sphi 0, %s176
      %s177 = sphi 0, %s174
      %s178 = sphi 0, %s177
      %s194 = sphi 0, %s178
      %s198 = sphi 0, %s198
      %s200 = sphi 0, %s198
      %s201 = sphi 0, %s200
      %s215 = sphi 0, %s201
      %s223 = sphi 0, %s225
      %s226 = sphi 0, %s223
      %s227 = sphi 0, %s226
      %s243 = sphi 0, %s227
      %s249 = sphi 0, %s251
      %s252 = sphi 0, %s249
      %s253 = sphi 0, %s252
      %s269 = sphi 0, %s253
    $region4: #{joint_abmil_forward.1} parent=1 // loop_header_branch
      %19 = sbr.rel (%p17) target = $region8
    $region5: #{joint_abmil_forward.1} parent=1 // loop_body
      %s21 = ssub.s32 %s16, 1
      %s22 = ssub.s32 %s16, 2
      %s29 = sadd.s32 1, %s24
      %p30 = scmp.ge.s32.totalorder %s29, 1
      %s31 = scalar_select %p30, 0, %s29
      %s32 = sadd.s32 1, %s23
      %s33 = scalar_select %p30, %s32, %s23
      %p34 = scmp.ge.s32.totalorder %s33, 2
      %s35 = scalar_select %p34, 0, %s33
      %s36 = ssub.s32 1, %s23
      %s37 = smul.u32 %s24, %s36
      %s38 = ssub.s32 1, %s35
      %s39 = smul.u32 %s31, %s38
      %s40 = ssub.s32 %s37, %s39
      %p41 = scmp.eq.s32.totalorder %s40, 0
      %s43 = sadd.s32 %s42, 1
      %s44 = scalar_select %p41, %s42, %s43
      %p47 = pneg %p41
      %p48 = scmp.eq.s32.totalorder %s16, 1
      %p49 = por %p47, %p48
      %p50 = scmp.ne.s32.totalorder %s42, %s45
      %p51 = scmp.eq.s32.totalorder %s16, 0
      %p52 = por %p50, %p51
      %p53 = scmp.ne.s32.totalorder %s42, %s45
      %p54 = scmp.eq.s32.totalorder %s21, 1
      %p55 = por %p53, %p54
      %p56 = scmp.ne.s32.totalorder %s45, %s46
      %p57 = scmp.eq.s32.totalorder %s21, 0
      %p58 = por %p56, %p57
      %p59 = scmp.ne.s32.totalorder %s45, %s46
      %p60 = scmp.eq.s32.totalorder %s22, 1
      %p61 = por %p59, %p60
      %p63 = scmp.ne.s32.totalorder %s46, %s62
      %p64 = scmp.eq.s32.totalorder %s22, 0
      %p65 = por %p63, %p64
      %s66 = smul.u32 %s24, %s23
      %s67 = smul.u32 %s31, %s35
      %s68 = ssub.s32 %s66, %s67
      %p69 = scmp.eq.s32.totalorder %s68, 0
      %s71 = sadd.s32 %s70, 1
      %s72 = scalar_select %p69, %s70, %s71
      %p75 = pneg %p69
      %p76 = scmp.eq.s32.totalorder %s16, 1
      %p77 = por %p75, %p76
      %p78 = scmp.ne.s32.totalorder %s70, %s73
      %p79 = scmp.eq.s32.totalorder %s16, 0
      %p80 = por %p78, %p79
      %p81 = scmp.ne.s32.totalorder %s70, %s73
      %p82 = scmp.eq.s32.totalorder %s21, 1
      %p83 = por %p81, %p82
      %p84 = scmp.ne.s32.totalorder %s73, %s74
      %p85 = scmp.eq.s32.totalorder %s21, 0
      %p86 = por %p84, %p85
      %p87 = scmp.ne.s32.totalorder %s73, %s74
      %p88 = scmp.eq.s32.totalorder %s22, 1
      %p89 = por %p87, %p88
      %p91 = scmp.ne.s32.totalorder %s74, %s90
      %p92 = scmp.eq.s32.totalorder %s22, 0
      %p93 = por %p91, %p92
      %s94 = ssub.s32 %s23, %s35
      %p95 = scmp.eq.s32.totalorder %s94, 0
      %s97 = sadd.s32 %s96, 1
      %s98 = scalar_select %p95, %s96, %s97
      %p101 = pneg %p95
      %p102 = scmp.eq.s32.totalorder %s16, 1
      %p103 = por %p101, %p102
      %p104 = scmp.ne.s32.totalorder %s96, %s99
      %p105 = scmp.eq.s32.totalorder %s16, 0
      %p106 = por %p104, %p105
      %p107 = scmp.ne.s32.totalorder %s96, %s99
      %p108 = scmp.eq.s32.totalorder %s21, 1
      %p109 = por %p107, %p108
      %p110 = scmp.ne.s32.totalorder %s99, %s100
      %p111 = scmp.eq.s32.totalorder %s21, 0
      %p112 = por %p110, %p111
      %p113 = scmp.ne.s32.totalorder %s99, %s100
      %p114 = scmp.eq.s32.totalorder %s22, 1
      %p115 = por %p113, %p114
      %p117 = scmp.ne.s32.totalorder %s100, %s116
      %p118 = scmp.eq.s32.totalorder %s22, 0
      %p119 = por %p117, %p118
      %s120 = ssub.s32 %s23, %s35
      %p121 = scmp.eq.s32.totalorder %s120, 0
      %s123 = sadd.s32 %s122, 1
      %s124 = scalar_select %p121, %s122, %s123
      %p127 = pneg %p121
      %p128 = scmp.eq.s32.totalorder %s16, 1
      %p129 = por %p127, %p128
      %p130 = scmp.ne.s32.totalorder %s122, %s125
      %p131 = scmp.eq.s32.totalorder %s16, 0
      %p132 = por %p130, %p131
      %p133 = scmp.ne.s32.totalorder %s122, %s125
      %p134 = scmp.eq.s32.totalorder %s21, 1
      %p135 = por %p133, %p134
      %p136 = scmp.ne.s32.totalorder %s125, %s126
      %p137 = scmp.eq.s32.totalorder %s21, 0
      %p138 = por %p136, %p137
      %p139 = scmp.ne.s32.totalorder %s125, %s126
      %p140 = scmp.eq.s32.totalorder %s22, 1
      %p141 = por %p139, %p140
      %p143 = scmp.ne.s32.totalorder %s126, %s142
      %p144 = scmp.eq.s32.totalorder %s22, 0
      %p145 = por %p143, %p144
      %s146 = ssub.s32 %s23, %s35
      %p147 = scmp.eq.s32.totalorder %s146, 0
      %s149 = sadd.s32 %s148, 1
      %s150 = scalar_select %p147, %s148, %s149
      %p153 = pneg %p147
      %p154 = scmp.eq.s32.totalorder %s16, 1
      %p155 = por %p153, %p154
      %p156 = scmp.ne.s32.totalorder %s148, %s151
      %p157 = scmp.eq.s32.totalorder %s16, 0
      %p158 = por %p156, %p157
      %p159 = scmp.ne.s32.totalorder %s148, %s151
      %p160 = scmp.eq.s32.totalorder %s21, 1
      %p161 = por %p159, %p160
      %p162 = scmp.ne.s32.totalorder %s151, %s152
      %p163 = scmp.eq.s32.totalorder %s21, 0
      %p164 = por %p162, %p163
      %p165 = scmp.ne.s32.totalorder %s151, %s152
      %p166 = scmp.eq.s32.totalorder %s22, 1
      %p167 = por %p165, %p166
      %p169 = scmp.ne.s32.totalorder %s152, %s168
      %p170 = scmp.eq.s32.totalorder %s22, 0
      %p171 = por %p169, %p170
      %s172 = ssub.s32 %s23, %s35
      %p173 = scmp.eq.s32.totalorder %s172, 0
      %s175 = sadd.s32 %s174, 1
      %s176 = scalar_select %p173, %s174, %s175
      %p179 = pneg %p173
      %p180 = scmp.eq.s32.totalorder %s16, 1
      %p181 = por %p179, %p180
      %p182 = scmp.ne.s32.totalorder %s174, %s177
      %p183 = scmp.eq.s32.totalorder %s16, 0
      %p184 = por %p182, %p183
      %p185 = scmp.ne.s32.totalorder %s174, %s177
      %p186 = scmp.eq.s32.totalorder %s21, 1
      %p187 = por %p185, %p186
      %p188 = scmp.ne.s32.totalorder %s177, %s178
      %p189 = scmp.eq.s32.totalorder %s21, 0
      %p190 = por %p188, %p189
      %p191 = scmp.ne.s32.totalorder %s177, %s178
      %p192 = scmp.eq.s32.totalorder %s22, 1
      %p193 = por %p191, %p192
      %p195 = scmp.ne.s32.totalorder %s178, %s194
      %p196 = scmp.eq.s32.totalorder %s22, 0
      %p197 = por %p195, %p196
      %s199 = sadd.s32 %s198, 1
      %p202 = scmp.eq.s32.totalorder %s16, 1
      %p203 = scmp.ne.s32.totalorder %s198, %s200
      %p204 = scmp.eq.s32.totalorder %s16, 0
      %p205 = por %p203, %p204
      %p206 = scmp.ne.s32.totalorder %s198, %s200
      %p207 = scmp.eq.s32.totalorder %s21, 1
      %p208 = por %p206, %p207
      %p209 = scmp.ne.s32.totalorder %s200, %s201
      %p210 = scmp.eq.s32.totalorder %s21, 0
      %p211 = por %p209, %p210
      %p212 = scmp.ne.s32.totalorder %s200, %s201
      %p213 = scmp.eq.s32.totalorder %s22, 1
      %p214 = por %p212, %p213
      %p216 = scmp.ne.s32.totalorder %s201, %s215
      %p217 = scmp.eq.s32.totalorder %s22, 0
      %p218 = por %p216, %p217
      %s219 = ssub.s32 %s23, %s35
      %s220 = ssub.s32 %s24, %s31
      %s221 = sor.u32 %s219, %s220
      %p222 = scmp.eq.s32.totalorder %s221, 0
      %s224 = sadd.s32 %s223, 1
      %s225 = scalar_select %p222, %s223, %s224
      %p228 = pneg %p222
      %p229 = scmp.eq.s32.totalorder %s16, 1
      %p230 = por %p228, %p229
      %p231 = scmp.ne.s32.totalorder %s223, %s226
      %p232 = scmp.eq.s32.totalorder %s16, 0
      %p233 = por %p231, %p232
      %p234 = scmp.ne.s32.totalorder %s223, %s226
      %p235 = scmp.eq.s32.totalorder %s21, 1
      %p236 = por %p234, %p235
      %p237 = scmp.ne.s32.totalorder %s226, %s227
      %p238 = scmp.eq.s32.totalorder %s21, 0
      %p239 = por %p237, %p238
      %p240 = scmp.ne.s32.totalorder %s226, %s227
      %p241 = scmp.eq.s32.totalorder %s22, 1
      %p242 = por %p240, %p241
      %p244 = scmp.ne.s32.totalorder %s227, %s243
      %p245 = scmp.eq.s32.totalorder %s22, 0
      %p246 = por %p244, %p245
      %s247 = ssub.s32 %s23, %s35
      %p248 = scmp.eq.s32.totalorder %s247, 0
      %s250 = sadd.s32 %s249, 1
      %s251 = scalar_select %p248, %s249, %s250
      %p254 = pneg %p248
      %p255 = scmp.eq.s32.totalorder %s16, 1
      %p256 = por %p254, %p255
      %p257 = scmp.ne.s32.totalorder %s249, %s252
      %p258 = scmp.eq.s32.totalorder %s16, 0
      %p259 = por %p257, %p258
      %p260 = scmp.ne.s32.totalorder %s249, %s252
      %p261 = scmp.eq.s32.totalorder %s21, 1
      %p262 = por %p260, %p261
      %p263 = scmp.ne.s32.totalorder %s252, %s253
      %p264 = scmp.eq.s32.totalorder %s21, 0
      %p265 = por %p263, %p264
      %p266 = scmp.ne.s32.totalorder %s252, %s253
      %p267 = scmp.eq.s32.totalorder %s22, 1
      %p268 = por %p266, %p267
      %p270 = scmp.ne.s32.totalorder %s253, %s269
      %p271 = scmp.eq.s32.totalorder %s22, 0
      %p272 = por %p270, %p271
      %p273 = scmp.le.s32.totalorder 1, %s16
      %p274 = scmp.lt.s32.totalorder %s16, 3
      %p275 = pnand %p273, %p274
      %p276 = pneg %p275
      // Predicated region
      $region9: #{joint_abmil_forward.1} parent=5 // pred_check
        _
      $region10: #{joint_abmil_forward.1} parent=5 // pred_check_branch
        %278 = sbr.rel (%p275) target = $region12
      $region11: #{joint_abmil_forward.1} parent=5 // pred_region
        %s279 = ssub.s32 %s16, 1
        // Predicated region
        $region13: #{joint_abmil_forward.1} parent=11 // pred_check
          %p280 = pneg %p112
        $region14: #{joint_abmil_forward.1} parent=11 // pred_check_branch
          %282 = sbr.rel (%p280) target = $region16
        $region15: #{joint_abmil_forward.1} parent=11 // pred_region
          %p283 = scmp.lt.s32.totalorder %s25, 1
          %s284 = scalar_select %p283, %s25, 1
          %s285 = smul.addr %s284, 512
          %s286 = smul.addr %s285, 4
          %s287 = scalar_lea.vmem %s2, %s286
        $region16: #{joint_abmil_forward.1} parent=11 // pred_fallthru
          _
        // Predicated region
        $region17: #{joint_abmil_forward.1} parent=11 // pred_check
          %p288 = pneg %p138
        $region18: #{joint_abmil_forward.1} parent=11 // pred_check_branch
          %290 = sbr.rel (%p288) target = $region20
        $region19: #{joint_abmil_forward.1} parent=11 // pred_region
          %p291 = scmp.lt.s32.totalorder %s25, 1
          %s292 = scalar_select %p291, %s25, 1
          %s293 = smul.addr %s292, 4
          %s294 = scalar_lea.vmem %s3, %s293
        $region20: #{joint_abmil_forward.1} parent=11 // pred_fallthru
          _
        // Predicated region
        $region21: #{joint_abmil_forward.1} parent=11 // pred_check
          %p295 = pneg %p164
        $region22: #{joint_abmil_forward.1} parent=11 // pred_check_branch
          %297 = sbr.rel (%p295) target = $region24
        $region23: #{joint_abmil_forward.1} parent=11 // pred_region
          %p298 = scmp.lt.s32.totalorder %s25, 1
          %s299 = scalar_select %p298, %s25, 1
          %s300 = smul.addr %s299, 32
          %s301 = smul.addr %s300, 8
          %s302 = scalar_lea.vmem %s4, %s301
        $region24: #{joint_abmil_forward.1} parent=11 // pred_fallthru
          _
        // Predicated region
        $region25: #{joint_abmil_forward.1} parent=11 // pred_check
          %p303 = pneg %p190
        $region26: #{joint_abmil_forward.1} parent=11 // pred_check_branch
          %305 = sbr.rel (%p303) target = $region28
        $region27: #{joint_abmil_forward.1} parent=11 // pred_region
          %p306 = scmp.lt.s32.totalorder %s25, 1
          %s307 = scalar_select %p306, %s25, 1
          %s308 = smul.addr %s307, 128
          %s309 = smul.addr %s308, 8
          %s310 = scalar_lea.vmem %s5, %s309
        $region28: #{joint_abmil_forward.1} parent=11 // pred_fallthru
          _
        // Predicated region
        $region29: #{joint_abmil_forward.1} parent=11 // pred_check
          %p311 = pneg %p211
        $region30: #{joint_abmil_forward.1} parent=11 // pred_check_branch
          %313 = sbr.rel (%p311) target = $region32
        $region31: #{joint_abmil_forward.1} parent=11 // pred_region
          %s315 = ssub.s32 32, 32
          %316 = vsyncadd [#allocation6], %s315
          %s318 = sshll.u32 %s6, 4
          %s319 = int_to_ptr.vmem [resolvable:$true] %s318
          %321 = dma.vmem_to_smem %s319, 32, [#allocation5], [#allocation6]
        $region32: #{joint_abmil_forward.1} parent=11 // pred_fallthru
          _
      $region12: #{joint_abmil_forward.1} parent=5 // pred_fallthru
        _
      %p322 = scmp.lt.s32.totalorder %s16, 2
      // Predicated region
      $region33: #{joint_abmil_forward.1} parent=5 // pred_check
        %p323 = pneg %p322
      $region34: #{joint_abmil_forward.1} parent=5 // pred_check_branch
        %325 = sbr.rel (%p323) target = $region36
      $region35: #{joint_abmil_forward.1} parent=5 // pred_region
        // Predicated region
        $region37: #{joint_abmil_forward.1} parent=35 // pred_check
          %p326 = pneg %p52
        $region38: #{joint_abmil_forward.1} parent=35 // pred_check_branch
          %328 = sbr.rel (%p326) target = $region40
        $region39: #{joint_abmil_forward.1} parent=35 // pred_region
          %s329 = ssub.s32 1, %s23
          %s330 = smul.u32 %s24, %s329
          %s331 = smul.u32 16, %s330
          %p332 = scmp.lt.s32.totalorder %s331, 15
          %s333 = scalar_select %p332, %s331, 15
          %s334 = smul.addr %s333, 8
          %s335 = smul.addr %s334, 8
          %s336 = scalar_lea.vmem %s0, %s335
          %s337 = ssub.s32 1, %s23
          %s338 = smul.u32 %s24, %s337
          %s339 = smul.u32 16, %s338
        $region40: #{joint_abmil_forward.1} parent=35 // pred_fallthru
          _
        // Predicated region
        $region41: #{joint_abmil_forward.1} parent=35 // pred_check
          %p340 = pneg %p80
        $region42: #{joint_abmil_forward.1} parent=35 // pred_check_branch
          %342 = sbr.rel (%p340) target = $region44
        $region43: #{joint_abmil_forward.1} parent=35 // pred_region
          %s343 = smul.u32 %s24, %s23
          %s344 = smul.u32 16, %s343
          %p345 = scmp.lt.s32.totalorder %s344, 15
          %s346 = scalar_select %p345, %s344, 15
          %s347 = smul.addr %s346, 8
          %s348 = smul.addr %s347, 8
          %s349 = scalar_lea.vmem %s1, %s348
          %s350 = smul.u32 %s24, %s23
          %s351 = smul.u32 16, %s350
        $region44: #{joint_abmil_forward.1} parent=35 // pred_fallthru
          _
      $region36: #{joint_abmil_forward.1} parent=5 // pred_fallthru
        _
      %p352 = scmp.le.s32.totalorder 1, %s16
      %p353 = scmp.lt.s32.totalorder %s16, 3
      %p354 = pnand %p352, %p353
      %p355 = pneg %p354
      // Predicated region
      $region45: #{joint_abmil_forward.1} parent=5 // pred_check
        _
      $region46: #{joint_abmil_forward.1} parent=5 // pred_check_branch
        %357 = sbr.rel (%p354) target = $region48
      $region47: #{joint_abmil_forward.1} parent=5 // pred_region
        %s358 = ssub.s32 %s16, 1
        // Predicated region
        $region49: #{joint_abmil_forward.1} parent=47 // pred_check
          %p359 = pneg %p211
        $region50: #{joint_abmil_forward.1} parent=47 // pred_check_branch
          %361 = sbr.rel (%p359) target = $region52
        $region51: #{joint_abmil_forward.1} parent=47 // pred_region
          %362 = dma.done [#allocation6], 32
        $region52: #{joint_abmil_forward.1} parent=47 // pred_fallthru
          _
        %363 = sfence
        %s364 = ssub.s32 1, %s25
        %s365 = smul.u32 %s26, %s364
        %s366 = smul.u32 16, %s365
        %p367 = scmp.lt.s32.totalorder %s366, 15
        %s368 = scalar_select %p367, %s366, 15
        %s369 = smul.addr %s368, 8
        %s370 = smul.addr %s369, 8
        %s371 = scalar_lea.vmem %s0, %s370
        %p372 = pneg %p58
        %p373 = pneg %p55
        %s374 = smul.u32 %s26, %s25
        %s375 = smul.u32 16, %s374
        %p376 = scmp.lt.s32.totalorder %s375, 15
        %s377 = scalar_select %p376, %s375, 15
        %s378 = smul.addr %s377, 8
        %s379 = smul.addr %s378, 8
        %s380 = scalar_lea.vmem %s1, %s379
        %p381 = pneg %p86
        %p382 = pneg %p83
        %p383 = scmp.lt.s32.totalorder %s25, 1
        %s384 = scalar_select %p383, %s25, 1
        %s385 = smul.addr %s384, 512
        %s386 = smul.addr %s385, 4
        %s387 = scalar_lea.vmem %s2, %s386
        %p388 = pneg %p112
        %p389 = pneg %p109
        %p390 = scmp.lt.s32.totalorder %s25, 1
        %s391 = scalar_select %p390, %s25, 1
        %s392 = smul.addr %s391, 4
        %s393 = scalar_lea.vmem %s3, %s392
        %p394 = pneg %p138
        %p395 = pneg %p135
        %p396 = scmp.lt.s32.totalorder %s25, 1
        %s397 = scalar_select %p396, %s25, 1
        %s398 = smul.addr %s397, 32
        %s399 = smul.addr %s398, 8
        %s400 = scalar_lea.vmem %s4, %s399
        %p401 = pneg %p164
        %p402 = pneg %p161
        %p403 = scmp.lt.s32.totalorder %s25, 1
        %s404 = scalar_select %p403, %s25, 1
        %s405 = smul.addr %s404, 128
        %s406 = smul.addr %s405, 8
        %s407 = scalar_lea.vmem %s5, %s406
        %p408 = pneg %p190
        %p409 = pneg %p187
        %p410 = pneg %p211
        %p411 = pneg %p208
        %p412 = pneg %p239
        %p413 = pneg %p236
        %p414 = scmp.lt.s32.totalorder %s25, 1
        %s415 = scalar_select %p414, %s25, 1
        %p416 = scmp.lt.s32.totalorder %s26, 0
        %s417 = scalar_select %p416, %s26, 0
        %s418 = sadd.s32 %s417, %s415
        %s419 = scalar_lea.vmem %s7, %s418
        %p420 = pneg %p265
        %p421 = pneg %p262
        %p422 = scmp.lt.s32.totalorder %s25, 1
        %s423 = scalar_select %p422, %s25, 1
        %s424 = scalar_lea.vmem %s8, %s423
        %s425 = ssub.s32 1, %s25
        %s426 = smul.u32 %s26, %s425
        %s427 = smul.u32 16, %s426
        %p428 = scmp.lt.s32.totalorder %s427, 15
        %s429 = scalar_select %p428, %s427, 15
        %s430 = smul.addr %s429, 8
        %s431 = smul.addr %s430, 8
        %s432 = scalar_lea.vmem %s0, %s431
        %s433 = ssub.s32 1, %s25
        %s434 = smul.u32 %s26, %s433
        %s435 = smul.u32 16, %s434
        %s436 = smul.u32 %s26, %s25
        %s437 = smul.u32 16, %s436
        %p438 = scmp.lt.s32.totalorder %s437, 15
        %s439 = scalar_select %p438, %s437, 15
        %s440 = smul.addr %s439, 8
        %s441 = smul.addr %s440, 8
        %s442 = scalar_lea.vmem %s1, %s441
        %s443 = smul.u32 %s26, %s25
        %s444 = smul.u32 16, %s443
        %p445 = scmp.lt.s32.totalorder %s25, 1
        %s446 = scalar_select %p445, %s25, 1
        %s447 = smul.addr %s446, 512
        %s448 = smul.addr %s447, 4
        %s449 = scalar_lea.vmem %s2, %s448
        %p450 = scmp.lt.s32.totalorder %s25, 1
        %s451 = scalar_select %p450, %s25, 1
        %s452 = smul.addr %s451, 4
        %s453 = scalar_lea.vmem %s3, %s452
        %p454 = scmp.lt.s32.totalorder %s25, 1
        %s455 = scalar_select %p454, %s25, 1
        %s456 = smul.addr %s455, 32
        %s457 = smul.addr %s456, 8
        %s458 = scalar_lea.vmem %s4, %s457
        %p459 = scmp.lt.s32.totalorder %s25, 1
        %s460 = scalar_select %p459, %s25, 1
        %s461 = smul.addr %s460, 128
        %s462 = smul.addr %s461, 8
        %s463 = scalar_lea.vmem %s5, %s462
        %p464 = scmp.lt.s32.totalorder %s25, 1
        %s465 = scalar_select %p464, %s25, 1
        %p466 = scmp.lt.s32.totalorder %s26, 0
        %s467 = scalar_select %p466, %s26, 0
        %s468 = sadd.s32 %s467, %s465
        %s469 = scalar_lea.vmem %s7, %s468
        %p470 = scmp.lt.s32.totalorder %s25, 1
        %s471 = scalar_select %p470, %s25, 1
        %s472 = scalar_lea.vmem %s8, %s471
        %p473 = scmp.eq.s32.totalorder %s26, 0
        // Predicated region
        $region53: #{joint_abmil_forward.1} parent=47 // pred_check
          %p474 = pneg %p473
        $region54: #{joint_abmil_forward.1} parent=47 // pred_check_branch
          %476 = sbr.rel (%p474) target = $region56
        $region55: #{joint_abmil_forward.1} parent=47 // pred_region
          %vm477 = vcmask 0
          %478 = vst.msk [vmem:[#allocation2] sm:$0x1] %vm477, -inf
          %479 = vst.msk [vmem:[#allocation3] sm:$0x1] %vm477, 0.0
          %480 = vst [vmem:[#allocation4] sm:$0xff] 0.0
        $region56: #{joint_abmil_forward.1} parent=47 // pred_fallthru
          _
        %p481 = scmp.eq.s32.totalorder %s25, 0
        // Predicated region
        $region57: #{joint_abmil_forward.1} parent=47 // pred_check
          %p482 = pneg %p481
        $region58: #{joint_abmil_forward.1} parent=47 // pred_check_branch
          %484 = sbr.rel (%p482) target = $region60
        $region59: #{joint_abmil_forward.1} parent=47 // pred_region
          %v485 = vld [vmem:[%s432] sm:$0xff]
          %v486 = vld [vmem:[%s432 + $0x8] sm:$0xff]
          %v487 = vld [vmem:[%s432 + $0x10] sm:$0xff]
          %v488 = vld [vmem:[%s432 + $0x18] sm:$0xff]
          %v489 = vld [vmem:[%s432 + $0x20] sm:$0xff]
          %v490 = vld [vmem:[%s432 + $0x28] sm:$0xff]
          %v491 = vld [vmem:[%s432 + $0x30] sm:$0xff]
          %v492 = vld [vmem:[%s432 + $0x38] sm:$0xff]
          %v493 = vld [vmem:[%s432 + $0x40] sm:$0xff]
          %v494 = vld [vmem:[%s432 + $0x48] sm:$0xff]
          %v495 = vld [vmem:[%s432 + $0x50] sm:$0xff]
          %v496 = vld [vmem:[%s432 + $0x58] sm:$0xff]
          %v497 = vld [vmem:[%s432 + $0x60] sm:$0xff]
          %v498 = vld [vmem:[%s432 + $0x68] sm:$0xff]
          %v499 = vld [vmem:[%s432 + $0x70] sm:$0xff]
          %v500 = vld [vmem:[%s432 + $0x78] sm:$0xff]
          %v501 = vld [vmem:[%s432 + $0x80] sm:$0xff]
          %v502 = vld [vmem:[%s432 + $0x88] sm:$0xff]
          %v503 = vld [vmem:[%s432 + $0x90] sm:$0xff]
          %v504 = vld [vmem:[%s432 + $0x98] sm:$0xff]
          %v505 = vld [vmem:[%s432 + $0xa0] sm:$0xff]
          %v506 = vld [vmem:[%s432 + $0xa8] sm:$0xff]
          %v507 = vld [vmem:[%s432 + $0xb0] sm:$0xff]
          %v508 = vld [vmem:[%s432 + $0xb8] sm:$0xff]
          %v509 = vld [vmem:[%s432 + $0xc0] sm:$0xff]
          %v510 = vld [vmem:[%s432 + $0xc8] sm:$0xff]
          %v511 = vld [vmem:[%s432 + $0xd0] sm:$0xff]
          %v512 = vld [vmem:[%s432 + $0xd8] sm:$0xff]
          %v513 = vld [vmem:[%s432 + $0xe0] sm:$0xff]
          %v514 = vld [vmem:[%s432 + $0xe8] sm:$0xff]
          %v515 = vld [vmem:[%s432 + $0xf0] sm:$0xff]
          %v516 = vld [vmem:[%s432 + $0xf8] sm:$0xff]
          %v517 = vld [vmem:[%s432 + $0x100] sm:$0xff]
          %v518 = vld [vmem:[%s432 + $0x108] sm:$0xff]
          %v519 = vld [vmem:[%s432 + $0x110] sm:$0xff]
          %v520 = vld [vmem:[%s432 + $0x118] sm:$0xff]
          %v521 = vld [vmem:[%s432 + $0x120] sm:$0xff]
          %v522 = vld [vmem:[%s432 + $0x128] sm:$0xff]
          %v523 = vld [vmem:[%s432 + $0x130] sm:$0xff]
          %v524 = vld [vmem:[%s432 + $0x138] sm:$0xff]
          %v525 = vld [vmem:[%s432 + $0x140] sm:$0xff]
          %v526 = vld [vmem:[%s432 + $0x148] sm:$0xff]
          %v527 = vld [vmem:[%s432 + $0x150] sm:$0xff]
          %v528 = vld [vmem:[%s432 + $0x158] sm:$0xff]
          %v529 = vld [vmem:[%s432 + $0x160] sm:$0xff]
          %v530 = vld [vmem:[%s432 + $0x168] sm:$0xff]
          %v531 = vld [vmem:[%s432 + $0x170] sm:$0xff]
          %v532 = vld [vmem:[%s432 + $0x178] sm:$0xff]
          %v533 = vld [vmem:[%s432 + $0x180] sm:$0xff]
          %v534 = vld [vmem:[%s432 + $0x188] sm:$0xff]
          %v535 = vld [vmem:[%s432 + $0x190] sm:$0xff]
          %v536 = vld [vmem:[%s432 + $0x198] sm:$0xff]
          %v537 = vld [vmem:[%s432 + $0x1a0] sm:$0xff]
          %v538 = vld [vmem:[%s432 + $0x1a8] sm:$0xff]
          %v539 = vld [vmem:[%s432 + $0x1b0] sm:$0xff]
          %v540 = vld [vmem:[%s432 + $0x1b8] sm:$0xff]
          %v541 = vld [vmem:[%s432 + $0x1c0] sm:$0xff]
          %v542 = vld [vmem:[%s432 + $0x1c8] sm:$0xff]
          %v543 = vld [vmem:[%s432 + $0x1d0] sm:$0xff]
          %v544 = vld [vmem:[%s432 + $0x1d8] sm:$0xff]
          %v545 = vld [vmem:[%s432 + $0x1e0] sm:$0xff]
          %v546 = vld [vmem:[%s432 + $0x1e8] sm:$0xff]
          %v547 = vld [vmem:[%s432 + $0x1f0] sm:$0xff]
          %v548 = vld [vmem:[%s432 + $0x1f8] sm:$0xff]
          %v549 = vld [vmem:[%s432 + $0x200] sm:$0xff]
          %v550 = vld [vmem:[%s432 + $0x208] sm:$0xff]
          %v551 = vld [vmem:[%s432 + $0x210] sm:$0xff]
          %v552 = vld [vmem:[%s432 + $0x218] sm:$0xff]
          %v553 = vld [vmem:[%s432 + $0x220] sm:$0xff]
          %v554 = vld [vmem:[%s432 + $0x228] sm:$0xff]
          %v555 = vld [vmem:[%s432 + $0x230] sm:$0xff]
          %v556 = vld [vmem:[%s432 + $0x238] sm:$0xff]
          %v557 = vld [vmem:[%s432 + $0x240] sm:$0xff]
          %v558 = vld [vmem:[%s432 + $0x248] sm:$0xff]
          %v559 = vld [vmem:[%s432 + $0x250] sm:$0xff]
          %v560 = vld [vmem:[%s432 + $0x258] sm:$0xff]
          %v561 = vld [vmem:[%s432 + $0x260] sm:$0xff]
          %v562 = vld [vmem:[%s432 + $0x268] sm:$0xff]
          %v563 = vld [vmem:[%s432 + $0x270] sm:$0xff]
          %v564 = vld [vmem:[%s432 + $0x278] sm:$0xff]
          %v565 = vld [vmem:[%s432 + $0x280] sm:$0xff]
          %v566 = vld [vmem:[%s432 + $0x288] sm:$0xff]
          %v567 = vld [vmem:[%s432 + $0x290] sm:$0xff]
          %v568 = vld [vmem:[%s432 + $0x298] sm:$0xff]
          %v569 = vld [vmem:[%s432 + $0x2a0] sm:$0xff]
          %v570 = vld [vmem:[%s432 + $0x2a8] sm:$0xff]
          %v571 = vld [vmem:[%s432 + $0x2b0] sm:$0xff]
          %v572 = vld [vmem:[%s432 + $0x2b8] sm:$0xff]
          %v573 = vld [vmem:[%s432 + $0x2c0] sm:$0xff]
          %v574 = vld [vmem:[%s432 + $0x2c8] sm:$0xff]
          %v575 = vld [vmem:[%s432 + $0x2d0] sm:$0xff]
          %v576 = vld [vmem:[%s432 + $0x2d8] sm:$0xff]
          %v577 = vld [vmem:[%s432 + $0x2e0] sm:$0xff]
          %v578 = vld [vmem:[%s432 + $0x2e8] sm:$0xff]
          %v579 = vld [vmem:[%s432 + $0x2f0] sm:$0xff]
          %v580 = vld [vmem:[%s432 + $0x2f8] sm:$0xff]
          %v581 = vld [vmem:[%s432 + $0x300] sm:$0xff]
          %v582 = vld [vmem:[%s432 + $0x308] sm:$0xff]
          %v583 = vld [vmem:[%s432 + $0x310] sm:$0xff]
          %v584 = vld [vmem:[%s432 + $0x318] sm:$0xff]
          %v585 = vld [vmem:[%s432 + $0x320] sm:$0xff]
          %v586 = vld [vmem:[%s432 + $0x328] sm:$0xff]
          %v587 = vld [vmem:[%s432 + $0x330] sm:$0xff]
          %v588 = vld [vmem:[%s432 + $0x338] sm:$0xff]
          %v589 = vld [vmem:[%s432 + $0x340] sm:$0xff]
          %v590 = vld [vmem:[%s432 + $0x348] sm:$0xff]
          %v591 = vld [vmem:[%s432 + $0x350] sm:$0xff]
          %v592 = vld [vmem:[%s432 + $0x358] sm:$0xff]
          %v593 = vld [vmem:[%s432 + $0x360] sm:$0xff]
          %v594 = vld [vmem:[%s432 + $0x368] sm:$0xff]
          %v595 = vld [vmem:[%s432 + $0x370] sm:$0xff]
          %v596 = vld [vmem:[%s432 + $0x378] sm:$0xff]
          %v597 = vld [vmem:[%s432 + $0x380] sm:$0xff]
          %v598 = vld [vmem:[%s432 + $0x388] sm:$0xff]
          %v599 = vld [vmem:[%s432 + $0x390] sm:$0xff]
          %v600 = vld [vmem:[%s432 + $0x398] sm:$0xff]
          %v601 = vld [vmem:[%s432 + $0x3a0] sm:$0xff]
          %v602 = vld [vmem:[%s432 + $0x3a8] sm:$0xff]
          %v603 = vld [vmem:[%s432 + $0x3b0] sm:$0xff]
          %v604 = vld [vmem:[%s432 + $0x3b8] sm:$0xff]
          %v605 = vld [vmem:[%s432 + $0x3c0] sm:$0xff]
          %v606 = vld [vmem:[%s432 + $0x3c8] sm:$0xff]
          %v607 = vld [vmem:[%s432 + $0x3d0] sm:$0xff]
          %v608 = vld [vmem:[%s432 + $0x3d8] sm:$0xff]
          %v609 = vld [vmem:[%s432 + $0x3e0] sm:$0xff]
          %v610 = vld [vmem:[%s432 + $0x3e8] sm:$0xff]
          %v611 = vld [vmem:[%s432 + $0x3f0] sm:$0xff]
          %v612 = vld [vmem:[%s432 + $0x3f8] sm:$0xff]
          %v613 = vpack.c.bf16 %v493, %v485
          %v614 = vpack.c.bf16 %v494, %v486
          %v615 = vpack.c.bf16 %v495, %v487
          %v616 = vpack.c.bf16 %v496, %v488
          %v617 = vpack.c.bf16 %v497, %v489
          %v618 = vpack.c.bf16 %v498, %v490
          %v619 = vpack.c.bf16 %v499, %v491
          %v620 = vpack.c.bf16 %v500, %v492
          %v621 = vpack.c.bf16 %v509, %v501
          %v622 = vpack.c.bf16 %v510, %v502
          %v623 = vpack.c.bf16 %v511, %v503
          %v624 = vpack.c.bf16 %v512, %v504
          %v625 = vpack.c.bf16 %v513, %v505
          %v626 = vpack.c.bf16 %v514, %v506
          %v627 = vpack.c.bf16 %v515, %v507
          %v628 = vpack.c.bf16 %v516, %v508
          %v629 = vpack.c.bf16 %v525, %v517
          %v630 = vpack.c.bf16 %v526, %v518
          %v631 = vpack.c.bf16 %v527, %v519
          %v632 = vpack.c.bf16 %v528, %v520
          %v633 = vpack.c.bf16 %v529, %v521
          %v634 = vpack.c.bf16 %v530, %v522
          %v635 = vpack.c.bf16 %v531, %v523
          %v636 = vpack.c.bf16 %v532, %v524
          %v637 = vpack.c.bf16 %v541, %v533
          %v638 = vpack.c.bf16 %v542, %v534
          %v639 = vpack.c.bf16 %v543, %v535
          %v640 = vpack.c.bf16 %v544, %v536
          %v641 = vpack.c.bf16 %v545, %v537
          %v642 = vpack.c.bf16 %v546, %v538
          %v643 = vpack.c.bf16 %v547, %v539
          %v644 = vpack.c.bf16 %v548, %v540
          %v645 = vpack.c.bf16 %v557, %v549
          %v646 = vpack.c.bf16 %v558, %v550
          %v647 = vpack.c.bf16 %v559, %v551
          %v648 = vpack.c.bf16 %v560, %v552
          %v649 = vpack.c.bf16 %v561, %v553
          %v650 = vpack.c.bf16 %v562, %v554
          %v651 = vpack.c.bf16 %v563, %v555
          %v652 = vpack.c.bf16 %v564, %v556
          %v653 = vpack.c.bf16 %v573, %v565
          %v654 = vpack.c.bf16 %v574, %v566
          %v655 = vpack.c.bf16 %v575, %v567
          %v656 = vpack.c.bf16 %v576, %v568
          %v657 = vpack.c.bf16 %v577, %v569
          %v658 = vpack.c.bf16 %v578, %v570
          %v659 = vpack.c.bf16 %v579, %v571
          %v660 = vpack.c.bf16 %v580, %v572
          %v661 = vpack.c.bf16 %v589, %v581
          %v662 = vpack.c.bf16 %v590, %v582
          %v663 = vpack.c.bf16 %v591, %v583
          %v664 = vpack.c.bf16 %v592, %v584
          %v665 = vpack.c.bf16 %v593, %v585
          %v666 = vpack.c.bf16 %v594, %v586
          %v667 = vpack.c.bf16 %v595, %v587
          %v668 = vpack.c.bf16 %v596, %v588
          %v669 = vpack.c.bf16 %v605, %v597
          %v670 = vpack.c.bf16 %v606, %v598
          %v671 = vpack.c.bf16 %v607, %v599
          %v672 = vpack.c.bf16 %v608, %v600
          %v673 = vpack.c.bf16 %v609, %v601
          %v674 = vpack.c.bf16 %v610, %v602
          %v675 = vpack.c.bf16 %v611, %v603
          %v676 = vpack.c.bf16 %v612, %v604
          %v677 = vld [vmem:[%s449] sm:$0xff]
          %v678 = vld [vmem:[%s449 + $0x8] sm:$0xff]
          %v679 = vld [vmem:[%s449 + $0x10] sm:$0xff]
          %v680 = vld [vmem:[%s449 + $0x18] sm:$0xff]
          %v681 = vld [vmem:[%s449 + $0x20] sm:$0xff]
          %v682 = vld [vmem:[%s449 + $0x28] sm:$0xff]
          %v683 = vld [vmem:[%s449 + $0x30] sm:$0xff]
          %v684 = vld [vmem:[%s449 + $0x38] sm:$0xff]
          %v685 = vld [vmem:[%s449 + $0x40] sm:$0xff]
          %v686 = vld [vmem:[%s449 + $0x48] sm:$0xff]
          %v687 = vld [vmem:[%s449 + $0x50] sm:$0xff]
          %v688 = vld [vmem:[%s449 + $0x58] sm:$0xff]
          %v689 = vld [vmem:[%s449 + $0x60] sm:$0xff]
          %v690 = vld [vmem:[%s449 + $0x68] sm:$0xff]
          %v691 = vld [vmem:[%s449 + $0x70] sm:$0xff]
          %v692 = vld [vmem:[%s449 + $0x78] sm:$0xff]
          %v693 = vld [vmem:[%s449 + $0x80] sm:$0xff]
          %v694 = vld [vmem:[%s449 + $0x88] sm:$0xff]
          %v695 = vld [vmem:[%s449 + $0x90] sm:$0xff]
          %v696 = vld [vmem:[%s449 + $0x98] sm:$0xff]
          %v697 = vld [vmem:[%s449 + $0xa0] sm:$0xff]
          %v698 = vld [vmem:[%s449 + $0xa8] sm:$0xff]
          %v699 = vld [vmem:[%s449 + $0xb0] sm:$0xff]
          %v700 = vld [vmem:[%s449 + $0xb8] sm:$0xff]
          %v701 = vld [vmem:[%s449 + $0xc0] sm:$0xff]
          %v702 = vld [vmem:[%s449 + $0xc8] sm:$0xff]
          %v703 = vld [vmem:[%s449 + $0xd0] sm:$0xff]
          %v704 = vld [vmem:[%s449 + $0xd8] sm:$0xff]
          %v705 = vld [vmem:[%s449 + $0xe0] sm:$0xff]
          %v706 = vld [vmem:[%s449 + $0xe8] sm:$0xff]
          %v707 = vld [vmem:[%s449 + $0xf0] sm:$0xff]
          %v708 = vld [vmem:[%s449 + $0xf8] sm:$0xff]
          %v709 = vld [vmem:[%s449 + $0x100] sm:$0xff]
          %v710 = vld [vmem:[%s449 + $0x108] sm:$0xff]
          %v711 = vld [vmem:[%s449 + $0x110] sm:$0xff]
          %v712 = vld [vmem:[%s449 + $0x118] sm:$0xff]
          %v713 = vld [vmem:[%s449 + $0x120] sm:$0xff]
          %v714 = vld [vmem:[%s449 + $0x128] sm:$0xff]
          %v715 = vld [vmem:[%s449 + $0x130] sm:$0xff]
          %v716 = vld [vmem:[%s449 + $0x138] sm:$0xff]
          %v717 = vld [vmem:[%s449 + $0x140] sm:$0xff]
          %v718 = vld [vmem:[%s449 + $0x148] sm:$0xff]
          %v719 = vld [vmem:[%s449 + $0x150] sm:$0xff]
          %v720 = vld [vmem:[%s449 + $0x158] sm:$0xff]
          %v721 = vld [vmem:[%s449 + $0x160] sm:$0xff]
          %v722 = vld [vmem:[%s449 + $0x168] sm:$0xff]
          %v723 = vld [vmem:[%s449 + $0x170] sm:$0xff]
          %v724 = vld [vmem:[%s449 + $0x178] sm:$0xff]
          %v725 = vld [vmem:[%s449 + $0x180] sm:$0xff]
          %v726 = vld [vmem:[%s449 + $0x188] sm:$0xff]
          %v727 = vld [vmem:[%s449 + $0x190] sm:$0xff]
          %v728 = vld [vmem:[%s449 + $0x198] sm:$0xff]
          %v729 = vld [vmem:[%s449 + $0x1a0] sm:$0xff]
          %v730 = vld [vmem:[%s449 + $0x1a8] sm:$0xff]
          %v731 = vld [vmem:[%s449 + $0x1b0] sm:$0xff]
          %v732 = vld [vmem:[%s449 + $0x1b8] sm:$0xff]
          %v733 = vld [vmem:[%s449 + $0x1c0] sm:$0xff]
          %v734 = vld [vmem:[%s449 + $0x1c8] sm:$0xff]
          %v735 = vld [vmem:[%s449 + $0x1d0] sm:$0xff]
          %v736 = vld [vmem:[%s449 + $0x1d8] sm:$0xff]
          %v737 = vld [vmem:[%s449 + $0x1e0] sm:$0xff]
          %v738 = vld [vmem:[%s449 + $0x1e8] sm:$0xff]
          %v739 = vld [vmem:[%s449 + $0x1f0] sm:$0xff]
          %v740 = vld [vmem:[%s449 + $0x1f8] sm:$0xff]
          %v741 = vld [vmem:[%s449 + $0x200] sm:$0xff]
          %v742 = vld [vmem:[%s449 + $0x208] sm:$0xff]
          %v743 = vld [vmem:[%s449 + $0x210] sm:$0xff]
          %v744 = vld [vmem:[%s449 + $0x218] sm:$0xff]
          %v745 = vld [vmem:[%s449 + $0x220] sm:$0xff]
          %v746 = vld [vmem:[%s449 + $0x228] sm:$0xff]
          %v747 = vld [vmem:[%s449 + $0x230] sm:$0xff]
          %v748 = vld [vmem:[%s449 + $0x238] sm:$0xff]
          %v749 = vld [vmem:[%s449 + $0x240] sm:$0xff]
          %v750 = vld [vmem:[%s449 + $0x248] sm:$0xff]
          %v751 = vld [vmem:[%s449 + $0x250] sm:$0xff]
          %v752 = vld [vmem:[%s449 + $0x258] sm:$0xff]
          %v753 = vld [vmem:[%s449 + $0x260] sm:$0xff]
          %v754 = vld [vmem:[%s449 + $0x268] sm:$0xff]
          %v755 = vld [vmem:[%s449 + $0x270] sm:$0xff]
          %v756 = vld [vmem:[%s449 + $0x278] sm:$0xff]
          %v757 = vld [vmem:[%s449 + $0x280] sm:$0xff]
          %v758 = vld [vmem:[%s449 + $0x288] sm:$0xff]
          %v759 = vld [vmem:[%s449 + $0x290] sm:$0xff]
          %v760 = vld [vmem:[%s449 + $0x298] sm:$0xff]
          %v761 = vld [vmem:[%s449 + $0x2a0] sm:$0xff]
          %v762 = vld [vmem:[%s449 + $0x2a8] sm:$0xff]
          %v763 = vld [vmem:[%s449 + $0x2b0] sm:$0xff]
          %v764 = vld [vmem:[%s449 + $0x2b8] sm:$0xff]
          %v765 = vld [vmem:[%s449 + $0x2c0] sm:$0xff]
          %v766 = vld [vmem:[%s449 + $0x2c8] sm:$0xff]
          %v767 = vld [vmem:[%s449 + $0x2d0] sm:$0xff]
          %v768 = vld [vmem:[%s449 + $0x2d8] sm:$0xff]
          %v769 = vld [vmem:[%s449 + $0x2e0] sm:$0xff]
          %v770 = vld [vmem:[%s449 + $0x2e8] sm:$0xff]
          %v771 = vld [vmem:[%s449 + $0x2f0] sm:$0xff]
          %v772 = vld [vmem:[%s449 + $0x2f8] sm:$0xff]
          %v773 = vld [vmem:[%s449 + $0x300] sm:$0xff]
          %v774 = vld [vmem:[%s449 + $0x308] sm:$0xff]
          %v775 = vld [vmem:[%s449 + $0x310] sm:$0xff]
          %v776 = vld [vmem:[%s449 + $0x318] sm:$0xff]
          %v777 = vld [vmem:[%s449 + $0x320] sm:$0xff]
          %v778 = vld [vmem:[%s449 + $0x328] sm:$0xff]
          %v779 = vld [vmem:[%s449 + $0x330] sm:$0xff]
          %v780 = vld [vmem:[%s449 + $0x338] sm:$0xff]
          %v781 = vld [vmem:[%s449 + $0x340] sm:$0xff]
          %v782 = vld [vmem:[%s449 + $0x348] sm:$0xff]
          %v783 = vld [vmem:[%s449 + $0x350] sm:$0xff]
          %v784 = vld [vmem:[%s449 + $0x358] sm:$0xff]
          %v785 = vld [vmem:[%s449 + $0x360] sm:$0xff]
          %v786 = vld [vmem:[%s449 + $0x368] sm:$0xff]
          %v787 = vld [vmem:[%s449 + $0x370] sm:$0xff]
          %v788 = vld [vmem:[%s449 + $0x378] sm:$0xff]
          %v789 = vld [vmem:[%s449 + $0x380] sm:$0xff]
          %v790 = vld [vmem:[%s449 + $0x388] sm:$0xff]
          %v791 = vld [vmem:[%s449 + $0x390] sm:$0xff]
          %v792 = vld [vmem:[%s449 + $0x398] sm:$0xff]
          %v793 = vld [vmem:[%s449 + $0x3a0] sm:$0xff]
          %v794 = vld [vmem:[%s449 + $0x3a8] sm:$0xff]
          %v795 = vld [vmem:[%s449 + $0x3b0] sm:$0xff]
          %v796 = vld [vmem:[%s449 + $0x3b8] sm:$0xff]
          %v797 = vld [vmem:[%s449 + $0x3c0] sm:$0xff]
          %v798 = vld [vmem:[%s449 + $0x3c8] sm:$0xff]
          %v799 = vld [vmem:[%s449 + $0x3d0] sm:$0xff]
          %v800 = vld [vmem:[%s449 + $0x3d8] sm:$0xff]
          %v801 = vld [vmem:[%s449 + $0x3e0] sm:$0xff]
          %v802 = vld [vmem:[%s449 + $0x3e8] sm:$0xff]
          %v803 = vld [vmem:[%s449 + $0x3f0] sm:$0xff]
          %v804 = vld [vmem:[%s449 + $0x3f8] sm:$0xff]
          %v805 = vld [vmem:[%s449 + $0x400] sm:$0xff]
          %v806 = vld [vmem:[%s449 + $0x408] sm:$0xff]
          %v807 = vld [vmem:[%s449 + $0x410] sm:$0xff]
          %v808 = vld [vmem:[%s449 + $0x418] sm:$0xff]
          %v809 = vld [vmem:[%s449 + $0x420] sm:$0xff]
          %v810 = vld [vmem:[%s449 + $0x428] sm:$0xff]
          %v811 = vld [vmem:[%s449 + $0x430] sm:$0xff]
          %v812 = vld [vmem:[%s449 + $0x438] sm:$0xff]
          %v813 = vld [vmem:[%s449 + $0x440] sm:$0xff]
          %v814 = vld [vmem:[%s449 + $0x448] sm:$0xff]
          %v815 = vld [vmem:[%s449 + $0x450] sm:$0xff]
          %v816 = vld [vmem:[%s449 + $0x458] sm:$0xff]
          %v817 = vld [vmem:[%s449 + $0x460] sm:$0xff]
          %v818 = vld [vmem:[%s449 + $0x468] sm:$0xff]
          %v819 = vld [vmem:[%s449 + $0x470] sm:$0xff]
          %v820 = vld [vmem:[%s449 + $0x478] sm:$0xff]
          %v821 = vld [vmem:[%s449 + $0x480] sm:$0xff]
          %v822 = vld [vmem:[%s449 + $0x488] sm:$0xff]
          %v823 = vld [vmem:[%s449 + $0x490] sm:$0xff]
          %v824 = vld [vmem:[%s449 + $0x498] sm:$0xff]
          %v825 = vld [vmem:[%s449 + $0x4a0] sm:$0xff]
          %v826 = vld [vmem:[%s449 + $0x4a8] sm:$0xff]
          %v827 = vld [vmem:[%s449 + $0x4b0] sm:$0xff]
          %v828 = vld [vmem:[%s449 + $0x4b8] sm:$0xff]
          %v829 = vld [vmem:[%s449 + $0x4c0] sm:$0xff]
          %v830 = vld [vmem:[%s449 + $0x4c8] sm:$0xff]
          %v831 = vld [vmem:[%s449 + $0x4d0] sm:$0xff]
          %v832 = vld [vmem:[%s449 + $0x4d8] sm:$0xff]
          %v833 = vld [vmem:[%s449 + $0x4e0] sm:$0xff]
          %v834 = vld [vmem:[%s449 + $0x4e8] sm:$0xff]
          %v835 = vld [vmem:[%s449 + $0x4f0] sm:$0xff]
          %v836 = vld [vmem:[%s449 + $0x4f8] sm:$0xff]
          %v837 = vld [vmem:[%s449 + $0x500] sm:$0xff]
          %v838 = vld [vmem:[%s449 + $0x508] sm:$0xff]
          %v839 = vld [vmem:[%s449 + $0x510] sm:$0xff]
          %v840 = vld [vmem:[%s449 + $0x518] sm:$0xff]
          %v841 = vld [vmem:[%s449 + $0x520] sm:$0xff]
          %v842 = vld [vmem:[%s449 + $0x528] sm:$0xff]
          %v843 = vld [vmem:[%s449 + $0x530] sm:$0xff]
          %v844 = vld [vmem:[%s449 + $0x538] sm:$0xff]
          %v845 = vld [vmem:[%s449 + $0x540] sm:$0xff]
          %v846 = vld [vmem:[%s449 + $0x548] sm:$0xff]
          %v847 = vld [vmem:[%s449 + $0x550] sm:$0xff]
          %v848 = vld [vmem:[%s449 + $0x558] sm:$0xff]
          %v849 = vld [vmem:[%s449 + $0x560] sm:$0xff]
          %v850 = vld [vmem:[%s449 + $0x568] sm:$0xff]
          %v851 = vld [vmem:[%s449 + $0x570] sm:$0xff]
          %v852 = vld [vmem:[%s449 + $0x578] sm:$0xff]
          %v853 = vld [vmem:[%s449 + $0x580] sm:$0xff]
          %v854 = vld [vmem:[%s449 + $0x588] sm:$0xff]
          %v855 = vld [vmem:[%s449 + $0x590] sm:$0xff]
          %v856 = vld [vmem:[%s449 + $0x598] sm:$0xff]
          %v857 = vld [vmem:[%s449 + $0x5a0] sm:$0xff]
          %v858 = vld [vmem:[%s449 + $0x5a8] sm:$0xff]
          %v859 = vld [vmem:[%s449 + $0x5b0] sm:$0xff]
          %v860 = vld [vmem:[%s449 + $0x5b8] sm:$0xff]
          %v861 = vld [vmem:[%s449 + $0x5c0] sm:$0xff]
          %v862 = vld [vmem:[%s449 + $0x5c8] sm:$0xff]
          %v863 = vld [vmem:[%s449 + $0x5d0] sm:$0xff]
          %v864 = vld [vmem:[%s449 + $0x5d8] sm:$0xff]
          %v865 = vld [vmem:[%s449 + $0x5e0] sm:$0xff]
          %v866 = vld [vmem:[%s449 + $0x5e8] sm:$0xff]
          %v867 = vld [vmem:[%s449 + $0x5f0] sm:$0xff]
          %v868 = vld [vmem:[%s449 + $0x5f8] sm:$0xff]
          %v869 = vld [vmem:[%s449 + $0x600] sm:$0xff]
          %v870 = vld [vmem:[%s449 + $0x608] sm:$0xff]
          %v871 = vld [vmem:[%s449 + $0x610] sm:$0xff]
          %v872 = vld [vmem:[%s449 + $0x618] sm:$0xff]
          %v873 = vld [vmem:[%s449 + $0x620] sm:$0xff]
          %v874 = vld [vmem:[%s449 + $0x628] sm:$0xff]
          %v875 = vld [vmem:[%s449 + $0x630] sm:$0xff]
          %v876 = vld [vmem:[%s449 + $0x638] sm:$0xff]
          %v877 = vld [vmem:[%s449 + $0x640] sm:$0xff]
          %v878 = vld [vmem:[%s449 + $0x648] sm:$0xff]
          %v879 = vld [vmem:[%s449 + $0x650] sm:$0xff]
          %v880 = vld [vmem:[%s449 + $0x658] sm:$0xff]
          %v881 = vld [vmem:[%s449 + $0x660] sm:$0xff]
          %v882 = vld [vmem:[%s449 + $0x668] sm:$0xff]
          %v883 = vld [vmem:[%s449 + $0x670] sm:$0xff]
          %v884 = vld [vmem:[%s449 + $0x678] sm:$0xff]
          %v885 = vld [vmem:[%s449 + $0x680] sm:$0xff]
          %v886 = vld [vmem:[%s449 + $0x688] sm:$0xff]
          %v887 = vld [vmem:[%s449 + $0x690] sm:$0xff]
          %v888 = vld [vmem:[%s449 + $0x698] sm:$0xff]
          %v889 = vld [vmem:[%s449 + $0x6a0] sm:$0xff]
          %v890 = vld [vmem:[%s449 + $0x6a8] sm:$0xff]
          %v891 = vld [vmem:[%s449 + $0x6b0] sm:$0xff]
          %v892 = vld [vmem:[%s449 + $0x6b8] sm:$0xff]
          %v893 = vld [vmem:[%s449 + $0x6c0] sm:$0xff]
          %v894 = vld [vmem:[%s449 + $0x6c8] sm:$0xff]
          %v895 = vld [vmem:[%s449 + $0x6d0] sm:$0xff]
          %v896 = vld [vmem:[%s449 + $0x6d8] sm:$0xff]
          %v897 = vld [vmem:[%s449 + $0x6e0] sm:$0xff]
          %v898 = vld [vmem:[%s449 + $0x6e8] sm:$0xff]
          %v899 = vld [vmem:[%s449 + $0x6f0] sm:$0xff]
          %v900 = vld [vmem:[%s449 + $0x6f8] sm:$0xff]
          %v901 = vld [vmem:[%s449 + $0x700] sm:$0xff]
          %v902 = vld [vmem:[%s449 + $0x708] sm:$0xff]
          %v903 = vld [vmem:[%s449 + $0x710] sm:$0xff]
          %v904 = vld [vmem:[%s449 + $0x718] sm:$0xff]
          %v905 = vld [vmem:[%s449 + $0x720] sm:$0xff]
          %v906 = vld [vmem:[%s449 + $0x728] sm:$0xff]
          %v907 = vld [vmem:[%s449 + $0x730] sm:$0xff]
          %v908 = vld [vmem:[%s449 + $0x738] sm:$0xff]
          %v909 = vld [vmem:[%s449 + $0x740] sm:$0xff]
          %v910 = vld [vmem:[%s449 + $0x748] sm:$0xff]
          %v911 = vld [vmem:[%s449 + $0x750] sm:$0xff]
          %v912 = vld [vmem:[%s449 + $0x758] sm:$0xff]
          %v913 = vld [vmem:[%s449 + $0x760] sm:$0xff]
          %v914 = vld [vmem:[%s449 + $0x768] sm:$0xff]
          %v915 = vld [vmem:[%s449 + $0x770] sm:$0xff]
          %v916 = vld [vmem:[%s449 + $0x778] sm:$0xff]
          %v917 = vld [vmem:[%s449 + $0x780] sm:$0xff]
          %v918 = vld [vmem:[%s449 + $0x788] sm:$0xff]
          %v919 = vld [vmem:[%s449 + $0x790] sm:$0xff]
          %v920 = vld [vmem:[%s449 + $0x798] sm:$0xff]
          %v921 = vld [vmem:[%s449 + $0x7a0] sm:$0xff]
          %v922 = vld [vmem:[%s449 + $0x7a8] sm:$0xff]
          %v923 = vld [vmem:[%s449 + $0x7b0] sm:$0xff]
          %v924 = vld [vmem:[%s449 + $0x7b8] sm:$0xff]
          %v925 = vld [vmem:[%s449 + $0x7c0] sm:$0xff]
          %v926 = vld [vmem:[%s449 + $0x7c8] sm:$0xff]
          %v927 = vld [vmem:[%s449 + $0x7d0] sm:$0xff]
          %v928 = vld [vmem:[%s449 + $0x7d8] sm:$0xff]
          %v929 = vld [vmem:[%s449 + $0x7e0] sm:$0xff]
          %v930 = vld [vmem:[%s449 + $0x7e8] sm:$0xff]
          %v931 = vld [vmem:[%s449 + $0x7f0] sm:$0xff]
          %v932 = vld [vmem:[%s449 + $0x7f8] sm:$0xff]
          %v933 = vld [vmem:[%s453] sm:$0xf]
          %v935 = vlaneseq
          %v936 = vshrl.u32 %v935, 7
          %v937 = vsub.s32 0, %v936
          %v938 = vrot.slane %v933, %v937
          %v939 = vlaneseq
          %v940 = vshrl.u32 %v939, 7
          %v941 = vsub.s32 1, %v940
          %v942 = vrot.slane %v933, %v941
          %v943 = vlaneseq
          %v944 = vshrl.u32 %v943, 7
          %v945 = vsub.s32 2, %v944
          %v946 = vrot.slane %v933, %v945
          %v947 = vlaneseq
          %v948 = vshrl.u32 %v947, 7
          %v949 = vsub.s32 3, %v948
          %v950 = vrot.slane %v933, %v949
          %v1211 = vunpack.c.l.b16 %v677
          %v1212 = vunpack.c.h.b16 %v677
          %v1213 = vunpack.c.l.b16 %v678
          %v1214 = vunpack.c.h.b16 %v678
          %v1215 = vunpack.c.l.b16 %v679
          %v1216 = vunpack.c.h.b16 %v679
          %v1217 = vunpack.c.l.b16 %v680
          %v1218 = vunpack.c.h.b16 %v680
          %v1219 = vunpack.c.l.b16 %v681
          %v1220 = vunpack.c.h.b16 %v681
          %v1221 = vunpack.c.l.b16 %v682
          %v1222 = vunpack.c.h.b16 %v682
          %v1223 = vunpack.c.l.b16 %v683
          %v1224 = vunpack.c.h.b16 %v683
          %v1225 = vunpack.c.l.b16 %v684
          %v1226 = vunpack.c.h.b16 %v684
          %v1227 = vunpack.c.l.b16 %v685
          %v1228 = vunpack.c.h.b16 %v685
          %v1229 = vunpack.c.l.b16 %v686
          %v1230 = vunpack.c.h.b16 %v686
          %v1231 = vunpack.c.l.b16 %v687
          %v1232 = vunpack.c.h.b16 %v687
          %v1233 = vunpack.c.l.b16 %v688
          %v1234 = vunpack.c.h.b16 %v688
          %v1235 = vunpack.c.l.b16 %v689
          %v1236 = vunpack.c.h.b16 %v689
          %v1237 = vunpack.c.l.b16 %v690
          %v1238 = vunpack.c.h.b16 %v690
          %v1239 = vunpack.c.l.b16 %v691
          %v1240 = vunpack.c.h.b16 %v691
          %v1241 = vunpack.c.l.b16 %v692
          %v1242 = vunpack.c.h.b16 %v692
          %v1243 = vunpack.c.l.b16 %v693
          %v1244 = vunpack.c.h.b16 %v693
          %v1245 = vunpack.c.l.b16 %v694
          %v1246 = vunpack.c.h.b16 %v694
          %v1247 = vunpack.c.l.b16 %v695
          %v1248 = vunpack.c.h.b16 %v695
          %v1249 = vunpack.c.l.b16 %v696
          %v1250 = vunpack.c.h.b16 %v696
          %v1251 = vunpack.c.l.b16 %v697
          %v1252 = vunpack.c.h.b16 %v697
          %v1253 = vunpack.c.l.b16 %v698
          %v1254 = vunpack.c.h.b16 %v698
          %v1255 = vunpack.c.l.b16 %v699
          %v1256 = vunpack.c.h.b16 %v699
          %v1257 = vunpack.c.l.b16 %v700
          %v1258 = vunpack.c.h.b16 %v700
          %v1259 = vunpack.c.l.b16 %v701
          %v1260 = vunpack.c.h.b16 %v701
          %v1261 = vunpack.c.l.b16 %v702
          %v1262 = vunpack.c.h.b16 %v702
          %v1263 = vunpack.c.l.b16 %v703
          %v1264 = vunpack.c.h.b16 %v703
          %v1265 = vunpack.c.l.b16 %v704
          %v1266 = vunpack.c.h.b16 %v704
          %v1267 = vunpack.c.l.b16 %v705
          %v1268 = vunpack.c.h.b16 %v705
          %v1269 = vunpack.c.l.b16 %v706
          %v1270 = vunpack.c.h.b16 %v706
          %v1271 = vunpack.c.l.b16 %v707
          %v1272 = vunpack.c.h.b16 %v707
          %v1273 = vunpack.c.l.b16 %v708
          %v1274 = vunpack.c.h.b16 %v708
          %v1275 = vunpack.c.l.b16 %v709
          %v1276 = vunpack.c.h.b16 %v709
          %v1277 = vunpack.c.l.b16 %v710
          %v1278 = vunpack.c.h.b16 %v710
          %v1279 = vunpack.c.l.b16 %v711
          %v1280 = vunpack.c.h.b16 %v711
          %v1281 = vunpack.c.l.b16 %v712
          %v1282 = vunpack.c.h.b16 %v712
          %v1283 = vunpack.c.l.b16 %v713
          %v1284 = vunpack.c.h.b16 %v713
          %v1285 = vunpack.c.l.b16 %v714
          %v1286 = vunpack.c.h.b16 %v714
          %v1287 = vunpack.c.l.b16 %v715
          %v1288 = vunpack.c.h.b16 %v715
          %v1289 = vunpack.c.l.b16 %v716
          %v1290 = vunpack.c.h.b16 %v716
          %v1291 = vunpack.c.l.b16 %v717
          %v1292 = vunpack.c.h.b16 %v717
          %v1293 = vunpack.c.l.b16 %v718
          %v1294 = vunpack.c.h.b16 %v718
          %v1295 = vunpack.c.l.b16 %v719
          %v1296 = vunpack.c.h.b16 %v719
          %v1297 = vunpack.c.l.b16 %v720
          %v1298 = vunpack.c.h.b16 %v720
          %v1299 = vunpack.c.l.b16 %v721
          %v1300 = vunpack.c.h.b16 %v721
          %v1301 = vunpack.c.l.b16 %v722
          %v1302 = vunpack.c.h.b16 %v722
          %v1303 = vunpack.c.l.b16 %v723
          %v1304 = vunpack.c.h.b16 %v723
          %v1305 = vunpack.c.l.b16 %v724
          %v1306 = vunpack.c.h.b16 %v724
          %v1307 = vunpack.c.l.b16 %v725
          %v1308 = vunpack.c.h.b16 %v725
          %v1309 = vunpack.c.l.b16 %v726
          %v1310 = vunpack.c.h.b16 %v726
          %v1311 = vunpack.c.l.b16 %v727
          %v1312 = vunpack.c.h.b16 %v727
          %v1313 = vunpack.c.l.b16 %v728
          %v1314 = vunpack.c.h.b16 %v728
          %v1315 = vunpack.c.l.b16 %v729
          %v1316 = vunpack.c.h.b16 %v729
          %v1317 = vunpack.c.l.b16 %v730
          %v1318 = vunpack.c.h.b16 %v730
          %v1319 = vunpack.c.l.b16 %v731
          %v1320 = vunpack.c.h.b16 %v731
          %v1321 = vunpack.c.l.b16 %v732
          %v1322 = vunpack.c.h.b16 %v732
          %v1323 = vunpack.c.l.b16 %v733
          %v1324 = vunpack.c.h.b16 %v733
          %v1325 = vunpack.c.l.b16 %v734
          %v1326 = vunpack.c.h.b16 %v734
          %v1327 = vunpack.c.l.b16 %v735
          %v1328 = vunpack.c.h.b16 %v735
          %v1329 = vunpack.c.l.b16 %v736
          %v1330 = vunpack.c.h.b16 %v736
          %v1331 = vunpack.c.l.b16 %v737
          %v1332 = vunpack.c.h.b16 %v737
          %v1333 = vunpack.c.l.b16 %v738
          %v1334 = vunpack.c.h.b16 %v738
          %v1335 = vunpack.c.l.b16 %v739
          %v1336 = vunpack.c.h.b16 %v739
          %v1337 = vunpack.c.l.b16 %v740
          %v1338 = vunpack.c.h.b16 %v740
          %v1339 = vunpack.c.l.b16 %v741
          %v1340 = vunpack.c.h.b16 %v741
          %v1341 = vunpack.c.l.b16 %v742
          %v1342 = vunpack.c.h.b16 %v742
          %v1343 = vunpack.c.l.b16 %v743
          %v1344 = vunpack.c.h.b16 %v743
          %v1345 = vunpack.c.l.b16 %v744
          %v1346 = vunpack.c.h.b16 %v744
          %v1347 = vunpack.c.l.b16 %v745
          %v1348 = vunpack.c.h.b16 %v745
          %v1349 = vunpack.c.l.b16 %v746
          %v1350 = vunpack.c.h.b16 %v746
          %v1351 = vunpack.c.l.b16 %v747
          %v1352 = vunpack.c.h.b16 %v747
          %v1353 = vunpack.c.l.b16 %v748
          %v1354 = vunpack.c.h.b16 %v748
          %v1355 = vunpack.c.l.b16 %v749
          %v1356 = vunpack.c.h.b16 %v749
          %v1357 = vunpack.c.l.b16 %v750
          %v1358 = vunpack.c.h.b16 %v750
          %v1359 = vunpack.c.l.b16 %v751
          %v1360 = vunpack.c.h.b16 %v751
          %v1361 = vunpack.c.l.b16 %v752
          %v1362 = vunpack.c.h.b16 %v752
          %v1363 = vunpack.c.l.b16 %v753
          %v1364 = vunpack.c.h.b16 %v753
          %v1365 = vunpack.c.l.b16 %v754
          %v1366 = vunpack.c.h.b16 %v754
          %v1367 = vunpack.c.l.b16 %v755
          %v1368 = vunpack.c.h.b16 %v755
          %v1369 = vunpack.c.l.b16 %v756
          %v1370 = vunpack.c.h.b16 %v756
          %v1371 = vunpack.c.l.b16 %v757
          %v1372 = vunpack.c.h.b16 %v757
          %v1373 = vunpack.c.l.b16 %v758
          %v1374 = vunpack.c.h.b16 %v758
          %v1375 = vunpack.c.l.b16 %v759
          %v1376 = vunpack.c.h.b16 %v759
          %v1377 = vunpack.c.l.b16 %v760
          %v1378 = vunpack.c.h.b16 %v760
          %v1379 = vunpack.c.l.b16 %v761
          %v1380 = vunpack.c.h.b16 %v761
          %v1381 = vunpack.c.l.b16 %v762
          %v1382 = vunpack.c.h.b16 %v762
          %v1383 = vunpack.c.l.b16 %v763
          %v1384 = vunpack.c.h.b16 %v763
          %v1385 = vunpack.c.l.b16 %v764
          %v1386 = vunpack.c.h.b16 %v764
          %v1387 = vunpack.c.l.b16 %v765
          %v1388 = vunpack.c.h.b16 %v765
          %v1389 = vunpack.c.l.b16 %v766
          %v1390 = vunpack.c.h.b16 %v766
          %v1391 = vunpack.c.l.b16 %v767
          %v1392 = vunpack.c.h.b16 %v767
          %v1393 = vunpack.c.l.b16 %v768
          %v1394 = vunpack.c.h.b16 %v768
          %v1395 = vunpack.c.l.b16 %v769
          %v1396 = vunpack.c.h.b16 %v769
          %v1397 = vunpack.c.l.b16 %v770
          %v1398 = vunpack.c.h.b16 %v770
          %v1399 = vunpack.c.l.b16 %v771
          %v1400 = vunpack.c.h.b16 %v771
          %v1401 = vunpack.c.l.b16 %v772
          %v1402 = vunpack.c.h.b16 %v772
          %v1403 = vunpack.c.l.b16 %v773
          %v1404 = vunpack.c.h.b16 %v773
          %v1405 = vunpack.c.l.b16 %v774
          %v1406 = vunpack.c.h.b16 %v774
          %v1407 = vunpack.c.l.b16 %v775
          %v1408 = vunpack.c.h.b16 %v775
          %v1409 = vunpack.c.l.b16 %v776
          %v1410 = vunpack.c.h.b16 %v776
          %v1411 = vunpack.c.l.b16 %v777
          %v1412 = vunpack.c.h.b16 %v777
          %v1413 = vunpack.c.l.b16 %v778
          %v1414 = vunpack.c.h.b16 %v778
          %v1415 = vunpack.c.l.b16 %v779
          %v1416 = vunpack.c.h.b16 %v779
          %v1417 = vunpack.c.l.b16 %v780
          %v1418 = vunpack.c.h.b16 %v780
          %v1419 = vunpack.c.l.b16 %v781
          %v1420 = vunpack.c.h.b16 %v781
          %v1421 = vunpack.c.l.b16 %v782
          %v1422 = vunpack.c.h.b16 %v782
          %v1423 = vunpack.c.l.b16 %v783
          %v1424 = vunpack.c.h.b16 %v783
          %v1425 = vunpack.c.l.b16 %v784
          %v1426 = vunpack.c.h.b16 %v784
          %v1427 = vunpack.c.l.b16 %v785
          %v1428 = vunpack.c.h.b16 %v785
          %v1429 = vunpack.c.l.b16 %v786
          %v1430 = vunpack.c.h.b16 %v786
          %v1431 = vunpack.c.l.b16 %v787
          %v1432 = vunpack.c.h.b16 %v787
          %v1433 = vunpack.c.l.b16 %v788
          %v1434 = vunpack.c.h.b16 %v788
          %v1435 = vunpack.c.l.b16 %v789
          %v1436 = vunpack.c.h.b16 %v789
          %v1437 = vunpack.c.l.b16 %v790
          %v1438 = vunpack.c.h.b16 %v790
          %v1439 = vunpack.c.l.b16 %v791
          %v1440 = vunpack.c.h.b16 %v791
          %v1441 = vunpack.c.l.b16 %v792
          %v1442 = vunpack.c.h.b16 %v792
          %v1443 = vunpack.c.l.b16 %v793
          %v1444 = vunpack.c.h.b16 %v793
          %v1445 = vunpack.c.l.b16 %v794
          %v1446 = vunpack.c.h.b16 %v794
          %v1447 = vunpack.c.l.b16 %v795
          %v1448 = vunpack.c.h.b16 %v795
          %v1449 = vunpack.c.l.b16 %v796
          %v1450 = vunpack.c.h.b16 %v796
          %v1451 = vunpack.c.l.b16 %v797
          %v1452 = vunpack.c.h.b16 %v797
          %v1453 = vunpack.c.l.b16 %v798
          %v1454 = vunpack.c.h.b16 %v798
          %v1455 = vunpack.c.l.b16 %v799
          %v1456 = vunpack.c.h.b16 %v799
          %v1457 = vunpack.c.l.b16 %v800
          %v1458 = vunpack.c.h.b16 %v800
          %v1459 = vunpack.c.l.b16 %v801
          %v1460 = vunpack.c.h.b16 %v801
          %v1461 = vunpack.c.l.b16 %v802
          %v1462 = vunpack.c.h.b16 %v802
          %v1463 = vunpack.c.l.b16 %v803
          %v1464 = vunpack.c.h.b16 %v803
          %v1465 = vunpack.c.l.b16 %v804
          %v1466 = vunpack.c.h.b16 %v804
          %v1467 = vunpack.c.l.b16 %v805
          %v1468 = vunpack.c.h.b16 %v805
          %v1469 = vunpack.c.l.b16 %v806
          %v1470 = vunpack.c.h.b16 %v806
          %v1471 = vunpack.c.l.b16 %v807
          %v1472 = vunpack.c.h.b16 %v807
          %v1473 = vunpack.c.l.b16 %v808
          %v1474 = vunpack.c.h.b16 %v808
          %v1475 = vunpack.c.l.b16 %v809
          %v1476 = vunpack.c.h.b16 %v809
          %v1477 = vunpack.c.l.b16 %v810
          %v1478 = vunpack.c.h.b16 %v810
          %v1479 = vunpack.c.l.b16 %v811
          %v1480 = vunpack.c.h.b16 %v811
          %v1481 = vunpack.c.l.b16 %v812
          %v1482 = vunpack.c.h.b16 %v812
          %v1483 = vunpack.c.l.b16 %v813
          %v1484 = vunpack.c.h.b16 %v813
          %v1485 = vunpack.c.l.b16 %v814
          %v1486 = vunpack.c.h.b16 %v814
          %v1487 = vunpack.c.l.b16 %v815
          %v1488 = vunpack.c.h.b16 %v815
          %v1489 = vunpack.c.l.b16 %v816
          %v1490 = vunpack.c.h.b16 %v816
          %v1491 = vunpack.c.l.b16 %v817
          %v1492 = vunpack.c.h.b16 %v817
          %v1493 = vunpack.c.l.b16 %v818
          %v1494 = vunpack.c.h.b16 %v818
          %v1495 = vunpack.c.l.b16 %v819
          %v1496 = vunpack.c.h.b16 %v819
          %v1497 = vunpack.c.l.b16 %v820
          %v1498 = vunpack.c.h.b16 %v820
          %v1499 = vunpack.c.l.b16 %v821
          %v1500 = vunpack.c.h.b16 %v821
          %v1501 = vunpack.c.l.b16 %v822
          %v1502 = vunpack.c.h.b16 %v822
          %v1503 = vunpack.c.l.b16 %v823
          %v1504 = vunpack.c.h.b16 %v823
          %v1505 = vunpack.c.l.b16 %v824
          %v1506 = vunpack.c.h.b16 %v824
          %v1507 = vunpack.c.l.b16 %v825
          %v1508 = vunpack.c.h.b16 %v825
          %v1509 = vunpack.c.l.b16 %v826
          %v1510 = vunpack.c.h.b16 %v826
          %v1511 = vunpack.c.l.b16 %v827
          %v1512 = vunpack.c.h.b16 %v827
          %v1513 = vunpack.c.l.b16 %v828
          %v1514 = vunpack.c.h.b16 %v828
          %v1515 = vunpack.c.l.b16 %v829
          %v1516 = vunpack.c.h.b16 %v829
          %v1517 = vunpack.c.l.b16 %v830
          %v1518 = vunpack.c.h.b16 %v830
          %v1519 = vunpack.c.l.b16 %v831
          %v1520 = vunpack.c.h.b16 %v831
          %v1521 = vunpack.c.l.b16 %v832
          %v1522 = vunpack.c.h.b16 %v832
          %v1523 = vunpack.c.l.b16 %v833
          %v1524 = vunpack.c.h.b16 %v833
          %v1525 = vunpack.c.l.b16 %v834
          %v1526 = vunpack.c.h.b16 %v834
          %v1527 = vunpack.c.l.b16 %v835
          %v1528 = vunpack.c.h.b16 %v835
          %v1529 = vunpack.c.l.b16 %v836
          %v1530 = vunpack.c.h.b16 %v836
          %v1531 = vunpack.c.l.b16 %v837
          %v1532 = vunpack.c.h.b16 %v837
          %v1533 = vunpack.c.l.b16 %v838
          %v1534 = vunpack.c.h.b16 %v838
          %v1535 = vunpack.c.l.b16 %v839
          %v1536 = vunpack.c.h.b16 %v839
          %v1537 = vunpack.c.l.b16 %v840
          %v1538 = vunpack.c.h.b16 %v840
          %v1539 = vunpack.c.l.b16 %v841
          %v1540 = vunpack.c.h.b16 %v841
          %v1541 = vunpack.c.l.b16 %v842
          %v1542 = vunpack.c.h.b16 %v842
          %v1543 = vunpack.c.l.b16 %v843
          %v1544 = vunpack.c.h.b16 %v843
          %v1545 = vunpack.c.l.b16 %v844
          %v1546 = vunpack.c.h.b16 %v844
          %v1547 = vunpack.c.l.b16 %v845
          %v1548 = vunpack.c.h.b16 %v845
          %v1549 = vunpack.c.l.b16 %v846
          %v1550 = vunpack.c.h.b16 %v846
          %v1551 = vunpack.c.l.b16 %v847
          %v1552 = vunpack.c.h.b16 %v847
          %v1553 = vunpack.c.l.b16 %v848
          %v1554 = vunpack.c.h.b16 %v848
          %v1555 = vunpack.c.l.b16 %v849
          %v1556 = vunpack.c.h.b16 %v849
          %v1557 = vunpack.c.l.b16 %v850
          %v1558 = vunpack.c.h.b16 %v850
          %v1559 = vunpack.c.l.b16 %v851
          %v1560 = vunpack.c.h.b16 %v851
          %v1561 = vunpack.c.l.b16 %v852
          %v1562 = vunpack.c.h.b16 %v852
          %v1563 = vunpack.c.l.b16 %v853
          %v1564 = vunpack.c.h.b16 %v853
          %v1565 = vunpack.c.l.b16 %v854
          %v1566 = vunpack.c.h.b16 %v854
          %v1567 = vunpack.c.l.b16 %v855
          %v1568 = vunpack.c.h.b16 %v855
          %v1569 = vunpack.c.l.b16 %v856
          %v1570 = vunpack.c.h.b16 %v856
          %v1571 = vunpack.c.l.b16 %v857
          %v1572 = vunpack.c.h.b16 %v857
          %v1573 = vunpack.c.l.b16 %v858
          %v1574 = vunpack.c.h.b16 %v858
          %v1575 = vunpack.c.l.b16 %v859
          %v1576 = vunpack.c.h.b16 %v859
          %v1577 = vunpack.c.l.b16 %v860
          %v1578 = vunpack.c.h.b16 %v860
          %v1579 = vunpack.c.l.b16 %v861
          %v1580 = vunpack.c.h.b16 %v861
          %v1581 = vunpack.c.l.b16 %v862
          %v1582 = vunpack.c.h.b16 %v862
          %v1583 = vunpack.c.l.b16 %v863
          %v1584 = vunpack.c.h.b16 %v863
          %v1585 = vunpack.c.l.b16 %v864
          %v1586 = vunpack.c.h.b16 %v864
          %v1587 = vunpack.c.l.b16 %v865
          %v1588 = vunpack.c.h.b16 %v865
          %v1589 = vunpack.c.l.b16 %v866
          %v1590 = vunpack.c.h.b16 %v866
          %v1591 = vunpack.c.l.b16 %v867
          %v1592 = vunpack.c.h.b16 %v867
          %v1593 = vunpack.c.l.b16 %v868
          %v1594 = vunpack.c.h.b16 %v868
          %v1595 = vunpack.c.l.b16 %v869
          %v1596 = vunpack.c.h.b16 %v869
          %v1597 = vunpack.c.l.b16 %v870
          %v1598 = vunpack.c.h.b16 %v870
          %v1599 = vunpack.c.l.b16 %v871
          %v1600 = vunpack.c.h.b16 %v871
          %v1601 = vunpack.c.l.b16 %v872
          %v1602 = vunpack.c.h.b16 %v872
          %v1603 = vunpack.c.l.b16 %v873
          %v1604 = vunpack.c.h.b16 %v873
          %v1605 = vunpack.c.l.b16 %v874
          %v1606 = vunpack.c.h.b16 %v874
          %v1607 = vunpack.c.l.b16 %v875
          %v1608 = vunpack.c.h.b16 %v875
          %v1609 = vunpack.c.l.b16 %v876
          %v1610 = vunpack.c.h.b16 %v876
          %v1611 = vunpack.c.l.b16 %v877
          %v1612 = vunpack.c.h.b16 %v877
          %v1613 = vunpack.c.l.b16 %v878
          %v1614 = vunpack.c.h.b16 %v878
          %v1615 = vunpack.c.l.b16 %v879
          %v1616 = vunpack.c.h.b16 %v879
          %v1617 = vunpack.c.l.b16 %v880
          %v1618 = vunpack.c.h.b16 %v880
          %v1619 = vunpack.c.l.b16 %v881
          %v1620 = vunpack.c.h.b16 %v881
          %v1621 = vunpack.c.l.b16 %v882
          %v1622 = vunpack.c.h.b16 %v882
          %v1623 = vunpack.c.l.b16 %v883
          %v1624 = vunpack.c.h.b16 %v883
          %v1625 = vunpack.c.l.b16 %v884
          %v1626 = vunpack.c.h.b16 %v884
          %v1627 = vunpack.c.l.b16 %v885
          %v1628 = vunpack.c.h.b16 %v885
          %v1629 = vunpack.c.l.b16 %v886
          %v1630 = vunpack.c.h.b16 %v886
          %v1631 = vunpack.c.l.b16 %v887
          %v1632 = vunpack.c.h.b16 %v887
          %v1633 = vunpack.c.l.b16 %v888
          %v1634 = vunpack.c.h.b16 %v888
          %v1635 = vunpack.c.l.b16 %v889
          %v1636 = vunpack.c.h.b16 %v889
          %v1637 = vunpack.c.l.b16 %v890
          %v1638 = vunpack.c.h.b16 %v890
          %v1639 = vunpack.c.l.b16 %v891
          %v1640 = vunpack.c.h.b16 %v891
          %v1641 = vunpack.c.l.b16 %v892
          %v1642 = vunpack.c.h.b16 %v892
          %v1643 = vunpack.c.l.b16 %v893
          %v1644 = vunpack.c.h.b16 %v893
          %v1645 = vunpack.c.l.b16 %v894
          %v1646 = vunpack.c.h.b16 %v894
          %v1647 = vunpack.c.l.b16 %v895
          %v1648 = vunpack.c.h.b16 %v895
          %v1649 = vunpack.c.l.b16 %v896
          %v1650 = vunpack.c.h.b16 %v896
          %v1651 = vunpack.c.l.b16 %v897
          %v1652 = vunpack.c.h.b16 %v897
          %v1653 = vunpack.c.l.b16 %v898
          %v1654 = vunpack.c.h.b16 %v898
          %v1655 = vunpack.c.l.b16 %v899
          %v1656 = vunpack.c.h.b16 %v899
          %v1657 = vunpack.c.l.b16 %v900
          %v1658 = vunpack.c.h.b16 %v900
          %v1659 = vunpack.c.l.b16 %v901
          %v1660 = vunpack.c.h.b16 %v901
          %v1661 = vunpack.c.l.b16 %v902
          %v1662 = vunpack.c.h.b16 %v902
          %v1663 = vunpack.c.l.b16 %v903
          %v1664 = vunpack.c.h.b16 %v903
          %v1665 = vunpack.c.l.b16 %v904
          %v1666 = vunpack.c.h.b16 %v904
          %v1667 = vunpack.c.l.b16 %v905
          %v1668 = vunpack.c.h.b16 %v905
          %v1669 = vunpack.c.l.b16 %v906
          %v1670 = vunpack.c.h.b16 %v906
          %v1671 = vunpack.c.l.b16 %v907
          %v1672 = vunpack.c.h.b16 %v907
          %v1673 = vunpack.c.l.b16 %v908
          %v1674 = vunpack.c.h.b16 %v908
          %v1675 = vunpack.c.l.b16 %v909
          %v1676 = vunpack.c.h.b16 %v909
          %v1677 = vunpack.c.l.b16 %v910
          %v1678 = vunpack.c.h.b16 %v910
          %v1679 = vunpack.c.l.b16 %v911
          %v1680 = vunpack.c.h.b16 %v911
          %v1681 = vunpack.c.l.b16 %v912
          %v1682 = vunpack.c.h.b16 %v912
          %v1683 = vunpack.c.l.b16 %v913
          %v1684 = vunpack.c.h.b16 %v913
          %v1685 = vunpack.c.l.b16 %v914
          %v1686 = vunpack.c.h.b16 %v914
          %v1687 = vunpack.c.l.b16 %v915
          %v1688 = vunpack.c.h.b16 %v915
          %v1689 = vunpack.c.l.b16 %v916
          %v1690 = vunpack.c.h.b16 %v916
          %v1691 = vunpack.c.l.b16 %v917
          %v1692 = vunpack.c.h.b16 %v917
          %v1693 = vunpack.c.l.b16 %v918
          %v1694 = vunpack.c.h.b16 %v918
          %v1695 = vunpack.c.l.b16 %v919
          %v1696 = vunpack.c.h.b16 %v919
          %v1697 = vunpack.c.l.b16 %v920
          %v1698 = vunpack.c.h.b16 %v920
          %v1699 = vunpack.c.l.b16 %v921
          %v1700 = vunpack.c.h.b16 %v921
          %v1701 = vunpack.c.l.b16 %v922
          %v1702 = vunpack.c.h.b16 %v922
          %v1703 = vunpack.c.l.b16 %v923
          %v1704 = vunpack.c.h.b16 %v923
          %v1705 = vunpack.c.l.b16 %v924
          %v1706 = vunpack.c.h.b16 %v924
          %v1707 = vunpack.c.l.b16 %v925
          %v1708 = vunpack.c.h.b16 %v925
          %v1709 = vunpack.c.l.b16 %v926
          %v1710 = vunpack.c.h.b16 %v926
          %v1711 = vunpack.c.l.b16 %v927
          %v1712 = vunpack.c.h.b16 %v927
          %v1713 = vunpack.c.l.b16 %v928
          %v1714 = vunpack.c.h.b16 %v928
          %v1715 = vunpack.c.l.b16 %v929
          %v1716 = vunpack.c.h.b16 %v929
          %v1717 = vunpack.c.l.b16 %v930
          %v1718 = vunpack.c.h.b16 %v930
          %v1719 = vunpack.c.l.b16 %v931
          %v1720 = vunpack.c.h.b16 %v931
          %v1721 = vunpack.c.l.b16 %v932
          %v1722 = vunpack.c.h.b16 %v932
          %v1723 = vpack.c.b16 %v1215, %v1211
          %v1724 = vpack.c.b16 %v1216, %v1212
          %v1725 = vpack.c.b16 %v1217, %v1213
          %v1726 = vpack.c.b16 %v1218, %v1214
          %v1727 = vpack.c.b16 %v1223, %v1219
          %v1728 = vpack.c.b16 %v1224, %v1220
          %v1729 = vpack.c.b16 %v1225, %v1221
          %v1730 = vpack.c.b16 %v1226, %v1222
          %v1731 = vpack.c.b16 %v1231, %v1227
          %v1732 = vpack.c.b16 %v1232, %v1228
          %v1733 = vpack.c.b16 %v1233, %v1229
          %v1734 = vpack.c.b16 %v1234, %v1230
          %v1735 = vpack.c.b16 %v1239, %v1235
          %v1736 = vpack.c.b16 %v1240, %v1236
          %v1737 = vpack.c.b16 %v1241, %v1237
          %v1738 = vpack.c.b16 %v1242, %v1238
          %v1739 = vpack.c.b16 %v1247, %v1243
          %v1740 = vpack.c.b16 %v1248, %v1244
          %v1741 = vpack.c.b16 %v1249, %v1245
          %v1742 = vpack.c.b16 %v1250, %v1246
          %v1743 = vpack.c.b16 %v1255, %v1251
          %v1744 = vpack.c.b16 %v1256, %v1252
          %v1745 = vpack.c.b16 %v1257, %v1253
          %v1746 = vpack.c.b16 %v1258, %v1254
          %v1747 = vpack.c.b16 %v1263, %v1259
          %v1748 = vpack.c.b16 %v1264, %v1260
          %v1749 = vpack.c.b16 %v1265, %v1261
          %v1750 = vpack.c.b16 %v1266, %v1262
          %v1751 = vpack.c.b16 %v1271, %v1267
          %v1752 = vpack.c.b16 %v1272, %v1268
          %v1753 = vpack.c.b16 %v1273, %v1269
          %v1754 = vpack.c.b16 %v1274, %v1270
          %v1755 = vpack.c.b16 %v1279, %v1275
          %v1756 = vpack.c.b16 %v1280, %v1276
          %v1757 = vpack.c.b16 %v1281, %v1277
          %v1758 = vpack.c.b16 %v1282, %v1278
          %v1759 = vpack.c.b16 %v1287, %v1283
          %v1760 = vpack.c.b16 %v1288, %v1284
          %v1761 = vpack.c.b16 %v1289, %v1285
          %v1762 = vpack.c.b16 %v1290, %v1286
          %v1763 = vpack.c.b16 %v1295, %v1291
          %v1764 = vpack.c.b16 %v1296, %v1292
          %v1765 = vpack.c.b16 %v1297, %v1293
          %v1766 = vpack.c.b16 %v1298, %v1294
          %v1767 = vpack.c.b16 %v1303, %v1299
          %v1768 = vpack.c.b16 %v1304, %v1300
          %v1769 = vpack.c.b16 %v1305, %v1301
          %v1770 = vpack.c.b16 %v1306, %v1302
          %v1771 = vpack.c.b16 %v1311, %v1307
          %v1772 = vpack.c.b16 %v1312, %v1308
          %v1773 = vpack.c.b16 %v1313, %v1309
          %v1774 = vpack.c.b16 %v1314, %v1310
          %v1775 = vpack.c.b16 %v1319, %v1315
          %v1776 = vpack.c.b16 %v1320, %v1316
          %v1777 = vpack.c.b16 %v1321, %v1317
          %v1778 = vpack.c.b16 %v1322, %v1318
          %v1779 = vpack.c.b16 %v1327, %v1323
          %v1780 = vpack.c.b16 %v1328, %v1324
          %v1781 = vpack.c.b16 %v1329, %v1325
          %v1782 = vpack.c.b16 %v1330, %v1326
          %v1783 = vpack.c.b16 %v1335, %v1331
          %v1784 = vpack.c.b16 %v1336, %v1332
          %v1785 = vpack.c.b16 %v1337, %v1333
          %v1786 = vpack.c.b16 %v1338, %v1334
          %v1787 = vpack.c.b16 %v1343, %v1339
          %v1788 = vpack.c.b16 %v1344, %v1340
          %v1789 = vpack.c.b16 %v1345, %v1341
          %v1790 = vpack.c.b16 %v1346, %v1342
          %v1791 = vpack.c.b16 %v1351, %v1347
          %v1792 = vpack.c.b16 %v1352, %v1348
          %v1793 = vpack.c.b16 %v1353, %v1349
          %v1794 = vpack.c.b16 %v1354, %v1350
          %v1795 = vpack.c.b16 %v1359, %v1355
          %v1796 = vpack.c.b16 %v1360, %v1356
          %v1797 = vpack.c.b16 %v1361, %v1357
          %v1798 = vpack.c.b16 %v1362, %v1358
          %v1799 = vpack.c.b16 %v1367, %v1363
          %v1800 = vpack.c.b16 %v1368, %v1364
          %v1801 = vpack.c.b16 %v1369, %v1365
          %v1802 = vpack.c.b16 %v1370, %v1366
          %v1803 = vpack.c.b16 %v1375, %v1371
          %v1804 = vpack.c.b16 %v1376, %v1372
          %v1805 = vpack.c.b16 %v1377, %v1373
          %v1806 = vpack.c.b16 %v1378, %v1374
          %v1807 = vpack.c.b16 %v1383, %v1379
          %v1808 = vpack.c.b16 %v1384, %v1380
          %v1809 = vpack.c.b16 %v1385, %v1381
          %v1810 = vpack.c.b16 %v1386, %v1382
          %v1811 = vpack.c.b16 %v1391, %v1387
          %v1812 = vpack.c.b16 %v1392, %v1388
          %v1813 = vpack.c.b16 %v1393, %v1389
          %v1814 = vpack.c.b16 %v1394, %v1390
          %v1815 = vpack.c.b16 %v1399, %v1395
          %v1816 = vpack.c.b16 %v1400, %v1396
          %v1817 = vpack.c.b16 %v1401, %v1397
          %v1818 = vpack.c.b16 %v1402, %v1398
          %v1819 = vpack.c.b16 %v1407, %v1403
          %v1820 = vpack.c.b16 %v1408, %v1404
          %v1821 = vpack.c.b16 %v1409, %v1405
          %v1822 = vpack.c.b16 %v1410, %v1406
          %v1823 = vpack.c.b16 %v1415, %v1411
          %v1824 = vpack.c.b16 %v1416, %v1412
          %v1825 = vpack.c.b16 %v1417, %v1413
          %v1826 = vpack.c.b16 %v1418, %v1414
          %v1827 = vpack.c.b16 %v1423, %v1419
          %v1828 = vpack.c.b16 %v1424, %v1420
          %v1829 = vpack.c.b16 %v1425, %v1421
          %v1830 = vpack.c.b16 %v1426, %v1422
          %v1831 = vpack.c.b16 %v1431, %v1427
          %v1832 = vpack.c.b16 %v1432, %v1428
          %v1833 = vpack.c.b16 %v1433, %v1429
          %v1834 = vpack.c.b16 %v1434, %v1430
          %v1835 = vpack.c.b16 %v1439, %v1435
          %v1836 = vpack.c.b16 %v1440, %v1436
          %v1837 = vpack.c.b16 %v1441, %v1437
          %v1838 = vpack.c.b16 %v1442, %v1438
          %v1839 = vpack.c.b16 %v1447, %v1443
          %v1840 = vpack.c.b16 %v1448, %v1444
          %v1841 = vpack.c.b16 %v1449, %v1445
          %v1842 = vpack.c.b16 %v1450, %v1446
          %v1843 = vpack.c.b16 %v1455, %v1451
          %v1844 = vpack.c.b16 %v1456, %v1452
          %v1845 = vpack.c.b16 %v1457, %v1453
          %v1846 = vpack.c.b16 %v1458, %v1454
          %v1847 = vpack.c.b16 %v1463, %v1459
          %v1848 = vpack.c.b16 %v1464, %v1460
          %v1849 = vpack.c.b16 %v1465, %v1461
          %v1850 = vpack.c.b16 %v1466, %v1462
          %v1851 = vpack.c.b16 %v1471, %v1467
          %v1852 = vpack.c.b16 %v1472, %v1468
          %v1853 = vpack.c.b16 %v1473, %v1469
          %v1854 = vpack.c.b16 %v1474, %v1470
          %v1855 = vpack.c.b16 %v1479, %v1475
          %v1856 = vpack.c.b16 %v1480, %v1476
          %v1857 = vpack.c.b16 %v1481, %v1477
          %v1858 = vpack.c.b16 %v1482, %v1478
          %v1859 = vpack.c.b16 %v1487, %v1483
          %v1860 = vpack.c.b16 %v1488, %v1484
          %v1861 = vpack.c.b16 %v1489, %v1485
          %v1862 = vpack.c.b16 %v1490, %v1486
          %v1863 = vpack.c.b16 %v1495, %v1491
          %v1864 = vpack.c.b16 %v1496, %v1492
          %v1865 = vpack.c.b16 %v1497, %v1493
          %v1866 = vpack.c.b16 %v1498, %v1494
          %v1867 = vpack.c.b16 %v1503, %v1499
          %v1868 = vpack.c.b16 %v1504, %v1500
          %v1869 = vpack.c.b16 %v1505, %v1501
          %v1870 = vpack.c.b16 %v1506, %v1502
          %v1871 = vpack.c.b16 %v1511, %v1507
          %v1872 = vpack.c.b16 %v1512, %v1508
          %v1873 = vpack.c.b16 %v1513, %v1509
          %v1874 = vpack.c.b16 %v1514, %v1510
          %v1875 = vpack.c.b16 %v1519, %v1515
          %v1876 = vpack.c.b16 %v1520, %v1516
          %v1877 = vpack.c.b16 %v1521, %v1517
          %v1878 = vpack.c.b16 %v1522, %v1518
          %v1879 = vpack.c.b16 %v1527, %v1523
          %v1880 = vpack.c.b16 %v1528, %v1524
          %v1881 = vpack.c.b16 %v1529, %v1525
          %v1882 = vpack.c.b16 %v1530, %v1526
          %v1883 = vpack.c.b16 %v1535, %v1531
          %v1884 = vpack.c.b16 %v1536, %v1532
          %v1885 = vpack.c.b16 %v1537, %v1533
          %v1886 = vpack.c.b16 %v1538, %v1534
          %v1887 = vpack.c.b16 %v1543, %v1539
          %v1888 = vpack.c.b16 %v1544, %v1540
          %v1889 = vpack.c.b16 %v1545, %v1541
          %v1890 = vpack.c.b16 %v1546, %v1542
          %v1891 = vpack.c.b16 %v1551, %v1547
          %v1892 = vpack.c.b16 %v1552, %v1548
          %v1893 = vpack.c.b16 %v1553, %v1549
          %v1894 = vpack.c.b16 %v1554, %v1550
          %v1895 = vpack.c.b16 %v1559, %v1555
          %v1896 = vpack.c.b16 %v1560, %v1556
          %v1897 = vpack.c.b16 %v1561, %v1557
          %v1898 = vpack.c.b16 %v1562, %v1558
          %v1899 = vpack.c.b16 %v1567, %v1563
          %v1900 = vpack.c.b16 %v1568, %v1564
          %v1901 = vpack.c.b16 %v1569, %v1565
          %v1902 = vpack.c.b16 %v1570, %v1566
          %v1903 = vpack.c.b16 %v1575, %v1571
          %v1904 = vpack.c.b16 %v1576, %v1572
          %v1905 = vpack.c.b16 %v1577, %v1573
          %v1906 = vpack.c.b16 %v1578, %v1574
          %v1907 = vpack.c.b16 %v1583, %v1579
          %v1908 = vpack.c.b16 %v1584, %v1580
          %v1909 = vpack.c.b16 %v1585, %v1581
          %v1910 = vpack.c.b16 %v1586, %v1582
          %v1911 = vpack.c.b16 %v1591, %v1587
          %v1912 = vpack.c.b16 %v1592, %v1588
          %v1913 = vpack.c.b16 %v1593, %v1589
          %v1914 = vpack.c.b16 %v1594, %v1590
          %v1915 = vpack.c.b16 %v1599, %v1595
          %v1916 = vpack.c.b16 %v1600, %v1596
          %v1917 = vpack.c.b16 %v1601, %v1597
          %v1918 = vpack.c.b16 %v1602, %v1598
          %v1919 = vpack.c.b16 %v1607, %v1603
          %v1920 = vpack.c.b16 %v1608, %v1604
          %v1921 = vpack.c.b16 %v1609, %v1605
          %v1922 = vpack.c.b16 %v1610, %v1606
          %v1923 = vpack.c.b16 %v1615, %v1611
          %v1924 = vpack.c.b16 %v1616, %v1612
          %v1925 = vpack.c.b16 %v1617, %v1613
          %v1926 = vpack.c.b16 %v1618, %v1614
          %v1927 = vpack.c.b16 %v1623, %v1619
          %v1928 = vpack.c.b16 %v1624, %v1620
          %v1929 = vpack.c.b16 %v1625, %v1621
          %v1930 = vpack.c.b16 %v1626, %v1622
          %v1931 = vpack.c.b16 %v1631, %v1627
          %v1932 = vpack.c.b16 %v1632, %v1628
          %v1933 = vpack.c.b16 %v1633, %v1629
          %v1934 = vpack.c.b16 %v1634, %v1630
          %v1935 = vpack.c.b16 %v1639, %v1635
          %v1936 = vpack.c.b16 %v1640, %v1636
          %v1937 = vpack.c.b16 %v1641, %v1637
          %v1938 = vpack.c.b16 %v1642, %v1638
          %v1939 = vpack.c.b16 %v1647, %v1643
          %v1940 = vpack.c.b16 %v1648, %v1644
          %v1941 = vpack.c.b16 %v1649, %v1645
          %v1942 = vpack.c.b16 %v1650, %v1646
          %v1943 = vpack.c.b16 %v1655, %v1651
          %v1944 = vpack.c.b16 %v1656, %v1652
          %v1945 = vpack.c.b16 %v1657, %v1653
          %v1946 = vpack.c.b16 %v1658, %v1654
          %v1947 = vpack.c.b16 %v1663, %v1659
          %v1948 = vpack.c.b16 %v1664, %v1660
          %v1949 = vpack.c.b16 %v1665, %v1661
          %v1950 = vpack.c.b16 %v1666, %v1662
          %v1951 = vpack.c.b16 %v1671, %v1667
          %v1952 = vpack.c.b16 %v1672, %v1668
          %v1953 = vpack.c.b16 %v1673, %v1669
          %v1954 = vpack.c.b16 %v1674, %v1670
          %v1955 = vpack.c.b16 %v1679, %v1675
          %v1956 = vpack.c.b16 %v1680, %v1676
          %v1957 = vpack.c.b16 %v1681, %v1677
          %v1958 = vpack.c.b16 %v1682, %v1678
          %v1959 = vpack.c.b16 %v1687, %v1683
          %v1960 = vpack.c.b16 %v1688, %v1684
          %v1961 = vpack.c.b16 %v1689, %v1685
          %v1962 = vpack.c.b16 %v1690, %v1686
          %v1963 = vpack.c.b16 %v1695, %v1691
          %v1964 = vpack.c.b16 %v1696, %v1692
          %v1965 = vpack.c.b16 %v1697, %v1693
          %v1966 = vpack.c.b16 %v1698, %v1694
          %v1967 = vpack.c.b16 %v1703, %v1699
          %v1968 = vpack.c.b16 %v1704, %v1700
          %v1969 = vpack.c.b16 %v1705, %v1701
          %v1970 = vpack.c.b16 %v1706, %v1702
          %v1971 = vpack.c.b16 %v1711, %v1707
          %v1972 = vpack.c.b16 %v1712, %v1708
          %v1973 = vpack.c.b16 %v1713, %v1709
          %v1974 = vpack.c.b16 %v1714, %v1710
          %v1975 = vpack.c.b16 %v1719, %v1715
          %v1976 = vpack.c.b16 %v1720, %v1716
          %v1977 = vpack.c.b16 %v1721, %v1717
          %v1978 = vpack.c.b16 %v1722, %v1718
          %2235 = vmatprep.subr.bf16.mxu0 %v1752
          %2236 = vmatpush1.bf16.msra.mxu0 %v1751
          %2237 = vmatprep.subr.bf16.mxu0 %v1748
          %2238 = vmatpush1.bf16.msra.mxu0 %v1747
          %2239 = vmatprep.subr.bf16.mxu0 %v1744
          %2240 = vmatpush1.bf16.msra.mxu0 %v1743
          %2241 = vmatprep.subr.bf16.mxu0 %v1740
          %2242 = vmatpush1.bf16.msra.mxu0 %v1739
          %2243 = vmatprep.subr.bf16.mxu0 %v1736
          %2244 = vmatpush1.bf16.msra.mxu0 %v1735
          %2245 = vmatprep.subr.bf16.mxu0 %v1732
          %2246 = vmatpush1.bf16.msra.mxu0 %v1731
          %2247 = vmatprep.subr.bf16.mxu0 %v1728
          %2248 = vmatpush1.bf16.msra.mxu0 %v1727
          %2249 = vmatprep.subr.bf16.mxu0 %v1724
          %2250 = vmatpush1.bf16.msra.mxu0 %v1723
          %2251 = vmatprep.subr.bf16.mxu0 %v1784
          %2252 = vmatpush2.bf16.msra.mxu0 %v1783
          %2253 = vmatprep.subr.bf16.mxu0 %v1780
          %2254 = vmatpush2.bf16.msra.mxu0 %v1779
          %2255 = vmatprep.subr.bf16.mxu0 %v1776
          %2256 = vmatpush2.bf16.msra.mxu0 %v1775
          %2257 = vmatprep.subr.bf16.mxu0 %v1772
          %2258 = vmatpush2.bf16.msra.mxu0 %v1771
          %2259 = vmatprep.subr.bf16.mxu0 %v1768
          %2260 = vmatpush2.bf16.msra.mxu0 %v1767
          %2261 = vmatprep.subr.bf16.mxu0 %v1764
          %2262 = vmatpush2.bf16.msra.mxu0 %v1763
          %2263 = vmatprep.subr.bf16.mxu0 %v1760
          %2264 = vmatpush2.bf16.msra.mxu0 %v1759
          %2265 = vmatprep.subr.bf16.mxu0 %v1756
          %2266 = vmatpush2.bf16.msra.mxu0 %v1755
          %2267 = vmatprep.mubr.bf16.mxu0 %v614
          %2268 = vmatmul.mubr.bf16.gmra.mxu0 %v613
          %v2269 = vpop.f32.mrf.mxu0
          %v2270 = vadd.f32 %v938, %v2269
          %v2271 = vpop.f32.mrf.mxu0
          %v2272 = vadd.f32 %v942, %v2271
          %v2273 = vpop.f32.mrf.mxu0
          %v2274 = vadd.f32 %v938, %v2273
          %v2275 = vpop.f32.mrf.mxu0
          %v2276 = vadd.f32 %v942, %v2275
          %2277 = vmatprep.mubr.bf16.mxu0 %v622
          %2278 = vmatmul.mubr.bf16.gmra.mxu0 %v621
          %v2279 = vpop.f32.mrf.mxu0
          %v2280 = vadd.f32 %v938, %v2279
          %v2281 = vpop.f32.mrf.mxu0
          %v2282 = vadd.f32 %v942, %v2281
          %v2283 = vpop.f32.mrf.mxu0
          %v2284 = vadd.f32 %v938, %v2283
          %v2285 = vpop.f32.mrf.mxu0
          %v2286 = vadd.f32 %v942, %v2285
          %2287 = vmatprep.mubr.bf16.mxu0 %v630
          %2288 = vmatmul.mubr.bf16.gmra.mxu0 %v629
          %v2289 = vpop.f32.mrf.mxu0
          %v2290 = vadd.f32 %v938, %v2289
          %v2291 = vpop.f32.mrf.mxu0
          %v2292 = vadd.f32 %v942, %v2291
          %v2293 = vpop.f32.mrf.mxu0
          %v2294 = vadd.f32 %v938, %v2293
          %v2295 = vpop.f32.mrf.mxu0
          %v2296 = vadd.f32 %v942, %v2295
          %2297 = vmatprep.mubr.bf16.mxu0 %v638
          %2298 = vmatmul.mubr.bf16.gmra.mxu0 %v637
          %v2299 = vpop.f32.mrf.mxu0
          %v2300 = vadd.f32 %v938, %v2299
          %v2301 = vpop.f32.mrf.mxu0
          %v2302 = vadd.f32 %v942, %v2301
          %v2303 = vpop.f32.mrf.mxu0
          %v2304 = vadd.f32 %v938, %v2303
          %v2305 = vpop.f32.mrf.mxu0
          %v2306 = vadd.f32 %v942, %v2305
          %2307 = vmatprep.mubr.bf16.mxu0 %v646
          %2308 = vmatmul.mubr.bf16.gmra.mxu0 %v645
          %v2309 = vpop.f32.mrf.mxu0
          %v2310 = vadd.f32 %v938, %v2309
          %v2311 = vpop.f32.mrf.mxu0
          %v2312 = vadd.f32 %v942, %v2311
          %v2313 = vpop.f32.mrf.mxu0
          %v2314 = vadd.f32 %v938, %v2313
          %v2315 = vpop.f32.mrf.mxu0
          %v2316 = vadd.f32 %v942, %v2315
          %2317 = vmatprep.mubr.bf16.mxu0 %v654
          %2318 = vmatmul.mubr.bf16.gmra.mxu0 %v653
          %v2319 = vpop.f32.mrf.mxu0
          %v2320 = vadd.f32 %v938, %v2319
          %v2321 = vpop.f32.mrf.mxu0
          %v2322 = vadd.f32 %v942, %v2321
          %v2323 = vpop.f32.mrf.mxu0
          %v2324 = vadd.f32 %v938, %v2323
          %v2325 = vpop.f32.mrf.mxu0
          %v2326 = vadd.f32 %v942, %v2325
          %2327 = vmatprep.mubr.bf16.mxu0 %v662
          %2328 = vmatmul.mubr.bf16.gmra.mxu0 %v661
          %v2329 = vpop.f32.mrf.mxu0
          %v2330 = vadd.f32 %v938, %v2329
          %v2331 = vpop.f32.mrf.mxu0
          %v2332 = vadd.f32 %v942, %v2331
          %v2333 = vpop.f32.mrf.mxu0
          %v2334 = vadd.f32 %v938, %v2333
          %v2335 = vpop.f32.mrf.mxu0
          %v2336 = vadd.f32 %v942, %v2335
          %2337 = vmatprep.mubr.bf16.mxu0 %v670
          %2338 = vmatmul.mubr.bf16.gmra.mxu0 %v669
          %v2339 = vpop.f32.mrf.mxu0
          %v2340 = vadd.f32 %v938, %v2339
          %v2341 = vpop.f32.mrf.mxu0
          %v2342 = vadd.f32 %v942, %v2341
          %v2343 = vpop.f32.mrf.mxu0
          %v2344 = vadd.f32 %v938, %v2343
          %v2345 = vpop.f32.mrf.mxu0
          %v2346 = vadd.f32 %v942, %v2345
          %2347 = vdwg.mxu0
          %2348 = vmatprep.subr.bf16.mxu0 %v1816
          %2349 = vmatpush1.bf16.msra.mxu0 %v1815
          %2350 = vmatprep.subr.bf16.mxu0 %v1812
          %2351 = vmatpush1.bf16.msra.mxu0 %v1811
          %2352 = vmatprep.subr.bf16.mxu0 %v1808
          %2353 = vmatpush1.bf16.msra.mxu0 %v1807
          %2354 = vmatprep.subr.bf16.mxu0 %v1804
          %2355 = vmatpush1.bf16.msra.mxu0 %v1803
          %2356 = vmatprep.subr.bf16.mxu0 %v1800
          %2357 = vmatpush1.bf16.msra.mxu0 %v1799
          %2358 = vmatprep.subr.bf16.mxu0 %v1796
          %2359 = vmatpush1.bf16.msra.mxu0 %v1795
          %2360 = vmatprep.subr.bf16.mxu0 %v1792
          %2361 = vmatpush1.bf16.msra.mxu0 %v1791
          %2362 = vmatprep.subr.bf16.mxu0 %v1788
          %2363 = vmatpush1.bf16.msra.mxu0 %v1787
          %2364 = vmatprep.subr.bf16.mxu0 %v1848
          %2365 = vmatpush2.bf16.msra.mxu0 %v1847
          %2366 = vmatprep.subr.bf16.mxu0 %v1844
          %2367 = vmatpush2.bf16.msra.mxu0 %v1843
          %2368 = vmatprep.subr.bf16.mxu0 %v1840
          %2369 = vmatpush2.bf16.msra.mxu0 %v1839
          %2370 = vmatprep.subr.bf16.mxu0 %v1836
          %2371 = vmatpush2.bf16.msra.mxu0 %v1835
          %2372 = vmatprep.subr.bf16.mxu0 %v1832
          %2373 = vmatpush2.bf16.msra.mxu0 %v1831
          %2374 = vmatprep.subr.bf16.mxu0 %v1828
          %2375 = vmatpush2.bf16.msra.mxu0 %v1827
          %2376 = vmatprep.subr.bf16.mxu0 %v1824
          %2377 = vmatpush2.bf16.msra.mxu0 %v1823
          %2378 = vmatprep.subr.bf16.mxu0 %v1820
          %2379 = vmatpush2.bf16.msra.mxu0 %v1819
          %2380 = vmatprep.mubr.bf16.mxu0 %v616
          %2381 = vmatmul.mubr.bf16.gmra.mxu0 %v615
          %v2382 = vpop.f32.mrf.mxu0
          %v2383 = vadd.f32 %v2270, %v2382
          %v2384 = vpop.f32.mrf.mxu0
          %v2385 = vadd.f32 %v2272, %v2384
          %v2386 = vpop.f32.mrf.mxu0
          %v2387 = vadd.f32 %v2274, %v2386
          %v2388 = vpop.f32.mrf.mxu0
          %v2389 = vadd.f32 %v2276, %v2388
          %2390 = vmatprep.mubr.bf16.mxu0 %v624
          %2391 = vmatmul.mubr.bf16.gmra.mxu0 %v623
          %v2392 = vpop.f32.mrf.mxu0
          %v2393 = vadd.f32 %v2280, %v2392
          %v2394 = vpop.f32.mrf.mxu0
          %v2395 = vadd.f32 %v2282, %v2394
          %v2396 = vpop.f32.mrf.mxu0
          %v2397 = vadd.f32 %v2284, %v2396
          %v2398 = vpop.f32.mrf.mxu0
          %v2399 = vadd.f32 %v2286, %v2398
          %2400 = vmatprep.mubr.bf16.mxu0 %v632
          %2401 = vmatmul.mubr.bf16.gmra.mxu0 %v631
          %v2402 = vpop.f32.mrf.mxu0
          %v2403 = vadd.f32 %v2290, %v2402
          %v2404 = vpop.f32.mrf.mxu0
          %v2405 = vadd.f32 %v2292, %v2404
          %v2406 = vpop.f32.mrf.mxu0
          %v2407 = vadd.f32 %v2294, %v2406
          %v2408 = vpop.f32.mrf.mxu0
          %v2409 = vadd.f32 %v2296, %v2408
          %2410 = vmatprep.mubr.bf16.mxu0 %v640
          %2411 = vmatmul.mubr.bf16.gmra.mxu0 %v639
          %v2412 = vpop.f32.mrf.mxu0
          %v2413 = vadd.f32 %v2300, %v2412
          %v2414 = vpop.f32.mrf.mxu0
          %v2415 = vadd.f32 %v2302, %v2414
          %v2416 = vpop.f32.mrf.mxu0
          %v2417 = vadd.f32 %v2304, %v2416
          %v2418 = vpop.f32.mrf.mxu0
          %v2419 = vadd.f32 %v2306, %v2418
          %2420 = vmatprep.mubr.bf16.mxu0 %v648
          %2421 = vmatmul.mubr.bf16.gmra.mxu0 %v647
          %v2422 = vpop.f32.mrf.mxu0
          %v2423 = vadd.f32 %v2310, %v2422
          %v2424 = vpop.f32.mrf.mxu0
          %v2425 = vadd.f32 %v2312, %v2424
          %v2426 = vpop.f32.mrf.mxu0
          %v2427 = vadd.f32 %v2314, %v2426
          %v2428 = vpop.f32.mrf.mxu0
          %v2429 = vadd.f32 %v2316, %v2428
          %2430 = vmatprep.mubr.bf16.mxu0 %v656
          %2431 = vmatmul.mubr.bf16.gmra.mxu0 %v655
          %v2432 = vpop.f32.mrf.mxu0
          %v2433 = vadd.f32 %v2320, %v2432
          %v2434 = vpop.f32.mrf.mxu0
          %v2435 = vadd.f32 %v2322, %v2434
          %v2436 = vpop.f32.mrf.mxu0
          %v2437 = vadd.f32 %v2324, %v2436
          %v2438 = vpop.f32.mrf.mxu0
          %v2439 = vadd.f32 %v2326, %v2438
          %2440 = vmatprep.mubr.bf16.mxu0 %v664
          %2441 = vmatmul.mubr.bf16.gmra.mxu0 %v663
          %v2442 = vpop.f32.mrf.mxu0
          %v2443 = vadd.f32 %v2330, %v2442
          %v2444 = vpop.f32.mrf.mxu0
          %v2445 = vadd.f32 %v2332, %v2444
          %v2446 = vpop.f32.mrf.mxu0
          %v2447 = vadd.f32 %v2334, %v2446
          %v2448 = vpop.f32.mrf.mxu0
          %v2449 = vadd.f32 %v2336, %v2448
          %2450 = vmatprep.mubr.bf16.mxu0 %v672
          %2451 = vmatmul.mubr.bf16.gmra.mxu0 %v671
          %v2452 = vpop.f32.mrf.mxu0
          %v2453 = vadd.f32 %v2340, %v2452
          %v2454 = vpop.f32.mrf.mxu0
          %v2455 = vadd.f32 %v2342, %v2454
          %v2456 = vpop.f32.mrf.mxu0
          %v2457 = vadd.f32 %v2344, %v2456
          %v2458 = vpop.f32.mrf.mxu0
          %v2459 = vadd.f32 %v2346, %v2458
          %2460 = vdwg.mxu0
          %2461 = vmatprep.subr.bf16.mxu0 %v1880
          %2462 = vmatpush1.bf16.msra.mxu0 %v1879
          %2463 = vmatprep.subr.bf16.mxu0 %v1876
          %2464 = vmatpush1.bf16.msra.mxu0 %v1875
          %2465 = vmatprep.subr.bf16.mxu0 %v1872
          %2466 = vmatpush1.bf16.msra.mxu0 %v1871
          %2467 = vmatprep.subr.bf16.mxu0 %v1868
          %2468 = vmatpush1.bf16.msra.mxu0 %v1867
          %2469 = vmatprep.subr.bf16.mxu0 %v1864
          %2470 = vmatpush1.bf16.msra.mxu0 %v1863
          %2471 = vmatprep.subr.bf16.mxu0 %v1860
          %2472 = vmatpush1.bf16.msra.mxu0 %v1859
          %2473 = vmatprep.subr.bf16.mxu0 %v1856
          %2474 = vmatpush1.bf16.msra.mxu0 %v1855
          %2475 = vmatprep.subr.bf16.mxu0 %v1852
          %2476 = vmatpush1.bf16.msra.mxu0 %v1851
          %2477 = vmatprep.subr.bf16.mxu0 %v1912
          %2478 = vmatpush2.bf16.msra.mxu0 %v1911
          %2479 = vmatprep.subr.bf16.mxu0 %v1908
          %2480 = vmatpush2.bf16.msra.mxu0 %v1907
          %2481 = vmatprep.subr.bf16.mxu0 %v1904
          %2482 = vmatpush2.bf16.msra.mxu0 %v1903
          %2483 = vmatprep.subr.bf16.mxu0 %v1900
          %2484 = vmatpush2.bf16.msra.mxu0 %v1899
          %2485 = vmatprep.subr.bf16.mxu0 %v1896
          %2486 = vmatpush2.bf16.msra.mxu0 %v1895
          %2487 = vmatprep.subr.bf16.mxu0 %v1892
          %2488 = vmatpush2.bf16.msra.mxu0 %v1891
          %2489 = vmatprep.subr.bf16.mxu0 %v1888
          %2490 = vmatpush2.bf16.msra.mxu0 %v1887
          %2491 = vmatprep.subr.bf16.mxu0 %v1884
          %2492 = vmatpush2.bf16.msra.mxu0 %v1883
          %2493 = vmatprep.mubr.bf16.mxu0 %v618
          %2494 = vmatmul.mubr.bf16.gmra.mxu0 %v617
          %v2495 = vpop.f32.mrf.mxu0
          %v2496 = vadd.f32 %v2383, %v2495
          %v2497 = vpop.f32.mrf.mxu0
          %v2498 = vadd.f32 %v2385, %v2497
          %v2499 = vpop.f32.mrf.mxu0
          %v2500 = vadd.f32 %v2387, %v2499
          %v2501 = vpop.f32.mrf.mxu0
          %v2502 = vadd.f32 %v2389, %v2501
          %2503 = vmatprep.mubr.bf16.mxu0 %v626
          %2504 = vmatmul.mubr.bf16.gmra.mxu0 %v625
          %v2505 = vpop.f32.mrf.mxu0
          %v2506 = vadd.f32 %v2393, %v2505
          %v2507 = vpop.f32.mrf.mxu0
          %v2508 = vadd.f32 %v2395, %v2507
          %v2509 = vpop.f32.mrf.mxu0
          %v2510 = vadd.f32 %v2397, %v2509
          %v2511 = vpop.f32.mrf.mxu0
          %v2512 = vadd.f32 %v2399, %v2511
          %2513 = vmatprep.mubr.bf16.mxu0 %v634
          %2514 = vmatmul.mubr.bf16.gmra.mxu0 %v633
          %v2515 = vpop.f32.mrf.mxu0
          %v2516 = vadd.f32 %v2403, %v2515
          %v2517 = vpop.f32.mrf.mxu0
          %v2518 = vadd.f32 %v2405, %v2517
          %v2519 = vpop.f32.mrf.mxu0
          %v2520 = vadd.f32 %v2407, %v2519
          %v2521 = vpop.f32.mrf.mxu0
          %v2522 = vadd.f32 %v2409, %v2521
          %2523 = vmatprep.mubr.bf16.mxu0 %v642
          %2524 = vmatmul.mubr.bf16.gmra.mxu0 %v641
          %v2525 = vpop.f32.mrf.mxu0
          %v2526 = vadd.f32 %v2413, %v2525
          %v2527 = vpop.f32.mrf.mxu0
          %v2528 = vadd.f32 %v2415, %v2527
          %v2529 = vpop.f32.mrf.mxu0
          %v2530 = vadd.f32 %v2417, %v2529
          %v2531 = vpop.f32.mrf.mxu0
          %v2532 = vadd.f32 %v2419, %v2531
          %2533 = vmatprep.mubr.bf16.mxu0 %v650
          %2534 = vmatmul.mubr.bf16.gmra.mxu0 %v649
          %v2535 = vpop.f32.mrf.mxu0
          %v2536 = vadd.f32 %v2423, %v2535
          %v2537 = vpop.f32.mrf.mxu0
          %v2538 = vadd.f32 %v2425, %v2537
          %v2539 = vpop.f32.mrf.mxu0
          %v2540 = vadd.f32 %v2427, %v2539
          %v2541 = vpop.f32.mrf.mxu0
          %v2542 = vadd.f32 %v2429, %v2541
          %2543 = vmatprep.mubr.bf16.mxu0 %v658
          %2544 = vmatmul.mubr.bf16.gmra.mxu0 %v657
          %v2545 = vpop.f32.mrf.mxu0
          %v2546 = vadd.f32 %v2433, %v2545
          %v2547 = vpop.f32.mrf.mxu0
          %v2548 = vadd.f32 %v2435, %v2547
          %v2549 = vpop.f32.mrf.mxu0
          %v2550 = vadd.f32 %v2437, %v2549
          %v2551 = vpop.f32.mrf.mxu0
          %v2552 = vadd.f32 %v2439, %v2551
          %2553 = vmatprep.mubr.bf16.mxu0 %v666
          %2554 = vmatmul.mubr.bf16.gmra.mxu0 %v665
          %v2555 = vpop.f32.mrf.mxu0
          %v2556 = vadd.f32 %v2443, %v2555
          %v2557 = vpop.f32.mrf.mxu0
          %v2558 = vadd.f32 %v2445, %v2557
          %v2559 = vpop.f32.mrf.mxu0
          %v2560 = vadd.f32 %v2447, %v2559
          %v2561 = vpop.f32.mrf.mxu0
          %v2562 = vadd.f32 %v2449, %v2561
          %2563 = vmatprep.mubr.bf16.mxu0 %v674
          %2564 = vmatmul.mubr.bf16.gmra.mxu0 %v673
          %v2565 = vpop.f32.mrf.mxu0
          %v2566 = vadd.f32 %v2453, %v2565
          %v2567 = vpop.f32.mrf.mxu0
          %v2568 = vadd.f32 %v2455, %v2567
          %v2569 = vpop.f32.mrf.mxu0
          %v2570 = vadd.f32 %v2457, %v2569
          %v2571 = vpop.f32.mrf.mxu0
          %v2572 = vadd.f32 %v2459, %v2571
          %2573 = vdwg.mxu0
          %2574 = vmatprep.subr.bf16.mxu0 %v1944
          %2575 = vmatpush1.bf16.msra.mxu0 %v1943
          %2576 = vmatprep.subr.bf16.mxu0 %v1940
          %2577 = vmatpush1.bf16.msra.mxu0 %v1939
          %2578 = vmatprep.subr.bf16.mxu0 %v1936
          %2579 = vmatpush1.bf16.msra.mxu0 %v1935
          %2580 = vmatprep.subr.bf16.mxu0 %v1932
          %2581 = vmatpush1.bf16.msra.mxu0 %v1931
          %2582 = vmatprep.subr.bf16.mxu0 %v1928
          %2583 = vmatpush1.bf16.msra.mxu0 %v1927
          %2584 = vmatprep.subr.bf16.mxu0 %v1924
          %2585 = vmatpush1.bf16.msra.mxu0 %v1923
          %2586 = vmatprep.subr.bf16.mxu0 %v1920
          %2587 = vmatpush1.bf16.msra.mxu0 %v1919
          %2588 = vmatprep.subr.bf16.mxu0 %v1916
          %2589 = vmatpush1.bf16.msra.mxu0 %v1915
          %2590 = vmatprep.subr.bf16.mxu0 %v1976
          %2591 = vmatpush2.bf16.msra.mxu0 %v1975
          %2592 = vmatprep.subr.bf16.mxu0 %v1972
          %2593 = vmatpush2.bf16.msra.mxu0 %v1971
          %2594 = vmatprep.subr.bf16.mxu0 %v1968
          %2595 = vmatpush2.bf16.msra.mxu0 %v1967
          %2596 = vmatprep.subr.bf16.mxu0 %v1964
          %2597 = vmatpush2.bf16.msra.mxu0 %v1963
          %2598 = vmatprep.subr.bf16.mxu0 %v1960
          %2599 = vmatpush2.bf16.msra.mxu0 %v1959
          %2600 = vmatprep.subr.bf16.mxu0 %v1956
          %2601 = vmatpush2.bf16.msra.mxu0 %v1955
          %2602 = vmatprep.subr.bf16.mxu0 %v1952
          %2603 = vmatpush2.bf16.msra.mxu0 %v1951
          %2604 = vmatprep.subr.bf16.mxu0 %v1948
          %2605 = vmatpush2.bf16.msra.mxu0 %v1947
          %2606 = vmatprep.mubr.bf16.mxu0 %v620
          %2607 = vmatmul.mubr.bf16.gmra.mxu0 %v619
          %v2608 = vpop.f32.mrf.mxu0
          %v2609 = vadd.f32 %v2496, %v2608
          %v2610 = vpop.f32.mrf.mxu0
          %v2611 = vadd.f32 %v2498, %v2610
          %v2612 = vpop.f32.mrf.mxu0
          %v2613 = vadd.f32 %v2500, %v2612
          %v2614 = vpop.f32.mrf.mxu0
          %v2615 = vadd.f32 %v2502, %v2614
          %2616 = vmatprep.mubr.bf16.mxu0 %v628
          %2617 = vmatmul.mubr.bf16.gmra.mxu0 %v627
          %v2618 = vpop.f32.mrf.mxu0
          %v2619 = vadd.f32 %v2506, %v2618
          %v2620 = vpop.f32.mrf.mxu0
          %v2621 = vadd.f32 %v2508, %v2620
          %v2622 = vpop.f32.mrf.mxu0
          %v2623 = vadd.f32 %v2510, %v2622
          %v2624 = vpop.f32.mrf.mxu0
          %v2625 = vadd.f32 %v2512, %v2624
          %2626 = vmatprep.mubr.bf16.mxu0 %v636
          %2627 = vmatmul.mubr.bf16.gmra.mxu0 %v635
          %v2628 = vpop.f32.mrf.mxu0
          %v2629 = vadd.f32 %v2516, %v2628
          %v2630 = vpop.f32.mrf.mxu0
          %v2631 = vadd.f32 %v2518, %v2630
          %v2632 = vpop.f32.mrf.mxu0
          %v2633 = vadd.f32 %v2520, %v2632
          %v2634 = vpop.f32.mrf.mxu0
          %v2635 = vadd.f32 %v2522, %v2634
          %2636 = vmatprep.mubr.bf16.mxu0 %v644
          %2637 = vmatmul.mubr.bf16.gmra.mxu0 %v643
          %v2638 = vpop.f32.mrf.mxu0
          %v2639 = vadd.f32 %v2526, %v2638
          %v2640 = vpop.f32.mrf.mxu0
          %v2641 = vadd.f32 %v2528, %v2640
          %v2642 = vpop.f32.mrf.mxu0
          %v2643 = vadd.f32 %v2530, %v2642
          %v2644 = vpop.f32.mrf.mxu0
          %v2645 = vadd.f32 %v2532, %v2644
          %2646 = vmatprep.mubr.bf16.mxu0 %v652
          %2647 = vmatmul.mubr.bf16.gmra.mxu0 %v651
          %v2648 = vpop.f32.mrf.mxu0
          %v2649 = vadd.f32 %v2536, %v2648
          %v2650 = vpop.f32.mrf.mxu0
          %v2651 = vadd.f32 %v2538, %v2650
          %v2652 = vpop.f32.mrf.mxu0
          %v2653 = vadd.f32 %v2540, %v2652
          %v2654 = vpop.f32.mrf.mxu0
          %v2655 = vadd.f32 %v2542, %v2654
          %2656 = vmatprep.mubr.bf16.mxu0 %v660
          %2657 = vmatmul.mubr.bf16.gmra.mxu0 %v659
          %v2658 = vpop.f32.mrf.mxu0
          %v2659 = vadd.f32 %v2546, %v2658
          %v2660 = vpop.f32.mrf.mxu0
          %v2661 = vadd.f32 %v2548, %v2660
          %v2662 = vpop.f32.mrf.mxu0
          %v2663 = vadd.f32 %v2550, %v2662
          %v2664 = vpop.f32.mrf.mxu0
          %v2665 = vadd.f32 %v2552, %v2664
          %2666 = vmatprep.mubr.bf16.mxu0 %v668
          %2667 = vmatmul.mubr.bf16.gmra.mxu0 %v667
          %v2668 = vpop.f32.mrf.mxu0
          %v2669 = vadd.f32 %v2556, %v2668
          %v2670 = vpop.f32.mrf.mxu0
          %v2671 = vadd.f32 %v2558, %v2670
          %v2672 = vpop.f32.mrf.mxu0
          %v2673 = vadd.f32 %v2560, %v2672
          %v2674 = vpop.f32.mrf.mxu0
          %v2675 = vadd.f32 %v2562, %v2674
          %2676 = vmatprep.mubr.bf16.mxu0 %v676
          %2677 = vmatmul.mubr.bf16.gmra.mxu0 %v675
          %v2678 = vpop.f32.mrf.mxu0
          %v2679 = vadd.f32 %v2566, %v2678
          %v2680 = vpop.f32.mrf.mxu0
          %v2681 = vadd.f32 %v2568, %v2680
          %v2682 = vpop.f32.mrf.mxu0
          %v2683 = vadd.f32 %v2570, %v2682
          %v2684 = vpop.f32.mrf.mxu0
          %v2685 = vadd.f32 %v2572, %v2684
          %2686 = vdwg.mxu0
          %2687 = vmatprep.subr.bf16.mxu0 %v1754
          %2688 = vmatpush1.bf16.msra.mxu0 %v1753
          %2689 = vmatprep.subr.bf16.mxu0 %v1750
          %2690 = vmatpush1.bf16.msra.mxu0 %v1749
          %2691 = vmatprep.subr.bf16.mxu0 %v1746
          %2692 = vmatpush1.bf16.msra.mxu0 %v1745
          %2693 = vmatprep.subr.bf16.mxu0 %v1742
          %2694 = vmatpush1.bf16.msra.mxu0 %v1741
          %2695 = vmatprep.subr.bf16.mxu0 %v1738
          %2696 = vmatpush1.bf16.msra.mxu0 %v1737
          %2697 = vmatprep.subr.bf16.mxu0 %v1734
          %2698 = vmatpush1.bf16.msra.mxu0 %v1733
          %2699 = vmatprep.subr.bf16.mxu0 %v1730
          %2700 = vmatpush1.bf16.msra.mxu0 %v1729
          %2701 = vmatprep.subr.bf16.mxu0 %v1726
          %2702 = vmatpush1.bf16.msra.mxu0 %v1725
          %2703 = vmatprep.subr.bf16.mxu0 %v1786
          %2704 = vmatpush2.bf16.msra.mxu0 %v1785
          %2705 = vmatprep.subr.bf16.mxu0 %v1782
          %2706 = vmatpush2.bf16.msra.mxu0 %v1781
          %2707 = vmatprep.subr.bf16.mxu0 %v1778
          %2708 = vmatpush2.bf16.msra.mxu0 %v1777
          %2709 = vmatprep.subr.bf16.mxu0 %v1774
          %2710 = vmatpush2.bf16.msra.mxu0 %v1773
          %2711 = vmatprep.subr.bf16.mxu0 %v1770
          %2712 = vmatpush2.bf16.msra.mxu0 %v1769
          %2713 = vmatprep.subr.bf16.mxu0 %v1766
          %2714 = vmatpush2.bf16.msra.mxu0 %v1765
          %2715 = vmatprep.subr.bf16.mxu0 %v1762
          %2716 = vmatpush2.bf16.msra.mxu0 %v1761
          %2717 = vmatprep.subr.bf16.mxu0 %v1758
          %2718 = vmatpush2.bf16.msra.mxu0 %v1757
          %2719 = vmatprep.mubr.bf16.mxu0 %v614
          %2720 = vmatmul.mubr.bf16.gmra.mxu0 %v613
          %v2721 = vpop.f32.mrf.mxu0
          %v2722 = vadd.f32 %v946, %v2721
          %v2723 = vpop.f32.mrf.mxu0
          %v2724 = vadd.f32 %v950, %v2723
          %v2725 = vpop.f32.mrf.mxu0
          %v2726 = vadd.f32 %v946, %v2725
          %v2727 = vpop.f32.mrf.mxu0
          %v2728 = vadd.f32 %v950, %v2727
          %2729 = vmatprep.mubr.bf16.mxu0 %v622
          %2730 = vmatmul.mubr.bf16.gmra.mxu0 %v621
          %v2731 = vpop.f32.mrf.mxu0
          %v2732 = vadd.f32 %v946, %v2731
          %v2733 = vpop.f32.mrf.mxu0
          %v2734 = vadd.f32 %v950, %v2733
          %v2735 = vpop.f32.mrf.mxu0
          %v2736 = vadd.f32 %v946, %v2735
          %v2737 = vpop.f32.mrf.mxu0
          %v2738 = vadd.f32 %v950, %v2737
          %2739 = vmatprep.mubr.bf16.mxu0 %v630
          %2740 = vmatmul.mubr.bf16.gmra.mxu0 %v629
          %v2741 = vpop.f32.mrf.mxu0
          %v2742 = vadd.f32 %v946, %v2741
          %v2743 = vpop.f32.mrf.mxu0
          %v2744 = vadd.f32 %v950, %v2743
          %v2745 = vpop.f32.mrf.mxu0
          %v2746 = vadd.f32 %v946, %v2745
          %v2747 = vpop.f32.mrf.mxu0
          %v2748 = vadd.f32 %v950, %v2747
          %2749 = vmatprep.mubr.bf16.mxu0 %v638
          %2750 = vmatmul.mubr.bf16.gmra.mxu0 %v637
          %v2751 = vpop.f32.mrf.mxu0
          %v2752 = vadd.f32 %v946, %v2751
          %v2753 = vpop.f32.mrf.mxu0
          %v2754 = vadd.f32 %v950, %v2753
          %v2755 = vpop.f32.mrf.mxu0
          %v2756 = vadd.f32 %v946, %v2755
          %v2757 = vpop.f32.mrf.mxu0
          %v2758 = vadd.f32 %v950, %v2757
          %2759 = vmatprep.mubr.bf16.mxu0 %v646
          %2760 = vmatmul.mubr.bf16.gmra.mxu0 %v645
          %v2761 = vpop.f32.mrf.mxu0
          %v2762 = vadd.f32 %v946, %v2761
          %v2763 = vpop.f32.mrf.mxu0
          %v2764 = vadd.f32 %v950, %v2763
          %v2765 = vpop.f32.mrf.mxu0
          %v2766 = vadd.f32 %v946, %v2765
          %v2767 = vpop.f32.mrf.mxu0
          %v2768 = vadd.f32 %v950, %v2767
          %2769 = vmatprep.mubr.bf16.mxu0 %v654
          %2770 = vmatmul.mubr.bf16.gmra.mxu0 %v653
          %v2771 = vpop.f32.mrf.mxu0
          %v2772 = vadd.f32 %v946, %v2771
          %v2773 = vpop.f32.mrf.mxu0
          %v2774 = vadd.f32 %v950, %v2773
          %v2775 = vpop.f32.mrf.mxu0
          %v2776 = vadd.f32 %v946, %v2775
          %v2777 = vpop.f32.mrf.mxu0
          %v2778 = vadd.f32 %v950, %v2777
          %2779 = vmatprep.mubr.bf16.mxu0 %v662
          %2780 = vmatmul.mubr.bf16.gmra.mxu0 %v661
          %v2781 = vpop.f32.mrf.mxu0
          %v2782 = vadd.f32 %v946, %v2781
          %v2783 = vpop.f32.mrf.mxu0
          %v2784 = vadd.f32 %v950, %v2783
          %v2785 = vpop.f32.mrf.mxu0
          %v2786 = vadd.f32 %v946, %v2785
          %v2787 = vpop.f32.mrf.mxu0
          %v2788 = vadd.f32 %v950, %v2787
          %2789 = vmatprep.mubr.bf16.mxu0 %v670
          %2790 = vmatmul.mubr.bf16.gmra.mxu0 %v669
          %v2791 = vpop.f32.mrf.mxu0
          %v2792 = vadd.f32 %v946, %v2791
          %v2793 = vpop.f32.mrf.mxu0
          %v2794 = vadd.f32 %v950, %v2793
          %v2795 = vpop.f32.mrf.mxu0
          %v2796 = vadd.f32 %v946, %v2795
          %v2797 = vpop.f32.mrf.mxu0
          %v2798 = vadd.f32 %v950, %v2797
          %2799 = vdwg.mxu0
          %2800 = vmatprep.subr.bf16.mxu0 %v1818
          %2801 = vmatpush1.bf16.msra.mxu0 %v1817
          %2802 = vmatprep.subr.bf16.mxu0 %v1814
          %2803 = vmatpush1.bf16.msra.mxu0 %v1813
          %2804 = vmatprep.subr.bf16.mxu0 %v1810
          %2805 = vmatpush1.bf16.msra.mxu0 %v1809
          %2806 = vmatprep.subr.bf16.mxu0 %v1806
          %2807 = vmatpush1.bf16.msra.mxu0 %v1805
          %2808 = vmatprep.subr.bf16.mxu0 %v1802
          %2809 = vmatpush1.bf16.msra.mxu0 %v1801
          %2810 = vmatprep.subr.bf16.mxu0 %v1798
          %2811 = vmatpush1.bf16.msra.mxu0 %v1797
          %2812 = vmatprep.subr.bf16.mxu0 %v1794
          %2813 = vmatpush1.bf16.msra.mxu0 %v1793
          %2814 = vmatprep.subr.bf16.mxu0 %v1790
          %2815 = vmatpush1.bf16.msra.mxu0 %v1789
          %2816 = vmatprep.subr.bf16.mxu0 %v1850
          %2817 = vmatpush2.bf16.msra.mxu0 %v1849
          %2818 = vmatprep.subr.bf16.mxu0 %v1846
          %2819 = vmatpush2.bf16.msra.mxu0 %v1845
          %2820 = vmatprep.subr.bf16.mxu0 %v1842
          %2821 = vmatpush2.bf16.msra.mxu0 %v1841
          %2822 = vmatprep.subr.bf16.mxu0 %v1838
          %2823 = vmatpush2.bf16.msra.mxu0 %v1837
          %2824 = vmatprep.subr.bf16.mxu0 %v1834
          %2825 = vmatpush2.bf16.msra.mxu0 %v1833
          %2826 = vmatprep.subr.bf16.mxu0 %v1830
          %2827 = vmatpush2.bf16.msra.mxu0 %v1829
          %2828 = vmatprep.subr.bf16.mxu0 %v1826
          %2829 = vmatpush2.bf16.msra.mxu0 %v1825
          %2830 = vmatprep.subr.bf16.mxu0 %v1822
          %2831 = vmatpush2.bf16.msra.mxu0 %v1821
          %2832 = vmatprep.mubr.bf16.mxu0 %v616
          %2833 = vmatmul.mubr.bf16.gmra.mxu0 %v615
          %v2834 = vpop.f32.mrf.mxu0
          %v2835 = vadd.f32 %v2722, %v2834
          %v2836 = vpop.f32.mrf.mxu0
          %v2837 = vadd.f32 %v2724, %v2836
          %v2838 = vpop.f32.mrf.mxu0
          %v2839 = vadd.f32 %v2726, %v2838
          %v2840 = vpop.f32.mrf.mxu0
          %v2841 = vadd.f32 %v2728, %v2840
          %2842 = vmatprep.mubr.bf16.mxu0 %v624
          %2843 = vmatmul.mubr.bf16.gmra.mxu0 %v623
          %v2844 = vpop.f32.mrf.mxu0
          %v2845 = vadd.f32 %v2732, %v2844
          %v2846 = vpop.f32.mrf.mxu0
          %v2847 = vadd.f32 %v2734, %v2846
          %v2848 = vpop.f32.mrf.mxu0
          %v2849 = vadd.f32 %v2736, %v2848
          %v2850 = vpop.f32.mrf.mxu0
          %v2851 = vadd.f32 %v2738, %v2850
          %2852 = vmatprep.mubr.bf16.mxu0 %v632
          %2853 = vmatmul.mubr.bf16.gmra.mxu0 %v631
          %v2854 = vpop.f32.mrf.mxu0
          %v2855 = vadd.f32 %v2742, %v2854
          %v2856 = vpop.f32.mrf.mxu0
          %v2857 = vadd.f32 %v2744, %v2856
          %v2858 = vpop.f32.mrf.mxu0
          %v2859 = vadd.f32 %v2746, %v2858
          %v2860 = vpop.f32.mrf.mxu0
          %v2861 = vadd.f32 %v2748, %v2860
          %2862 = vmatprep.mubr.bf16.mxu0 %v640
          %2863 = vmatmul.mubr.bf16.gmra.mxu0 %v639
          %v2864 = vpop.f32.mrf.mxu0
          %v2865 = vadd.f32 %v2752, %v2864
          %v2866 = vpop.f32.mrf.mxu0
          %v2867 = vadd.f32 %v2754, %v2866
          %v2868 = vpop.f32.mrf.mxu0
          %v2869 = vadd.f32 %v2756, %v2868
          %v2870 = vpop.f32.mrf.mxu0
          %v2871 = vadd.f32 %v2758, %v2870
          %2872 = vmatprep.mubr.bf16.mxu0 %v648
          %2873 = vmatmul.mubr.bf16.gmra.mxu0 %v647
          %v2874 = vpop.f32.mrf.mxu0
          %v2875 = vadd.f32 %v2762, %v2874
          %v2876 = vpop.f32.mrf.mxu0
          %v2877 = vadd.f32 %v2764, %v2876
          %v2878 = vpop.f32.mrf.mxu0
          %v2879 = vadd.f32 %v2766, %v2878
          %v2880 = vpop.f32.mrf.mxu0
          %v2881 = vadd.f32 %v2768, %v2880
          %2882 = vmatprep.mubr.bf16.mxu0 %v656
          %2883 = vmatmul.mubr.bf16.gmra.mxu0 %v655
          %v2884 = vpop.f32.mrf.mxu0
          %v2885 = vadd.f32 %v2772, %v2884
          %v2886 = vpop.f32.mrf.mxu0
          %v2887 = vadd.f32 %v2774, %v2886
          %v2888 = vpop.f32.mrf.mxu0
          %v2889 = vadd.f32 %v2776, %v2888
          %v2890 = vpop.f32.mrf.mxu0
          %v2891 = vadd.f32 %v2778, %v2890
          %2892 = vmatprep.mubr.bf16.mxu0 %v664
          %2893 = vmatmul.mubr.bf16.gmra.mxu0 %v663
          %v2894 = vpop.f32.mrf.mxu0
          %v2895 = vadd.f32 %v2782, %v2894
          %v2896 = vpop.f32.mrf.mxu0
          %v2897 = vadd.f32 %v2784, %v2896
          %v2898 = vpop.f32.mrf.mxu0
          %v2899 = vadd.f32 %v2786, %v2898
          %v2900 = vpop.f32.mrf.mxu0
          %v2901 = vadd.f32 %v2788, %v2900
          %2902 = vmatprep.mubr.bf16.mxu0 %v672
          %2903 = vmatmul.mubr.bf16.gmra.mxu0 %v671
          %v2904 = vpop.f32.mrf.mxu0
          %v2905 = vadd.f32 %v2792, %v2904
          %v2906 = vpop.f32.mrf.mxu0
          %v2907 = vadd.f32 %v2794, %v2906
          %v2908 = vpop.f32.mrf.mxu0
          %v2909 = vadd.f32 %v2796, %v2908
          %v2910 = vpop.f32.mrf.mxu0
          %v2911 = vadd.f32 %v2798, %v2910
          %2912 = vdwg.mxu0
          %2913 = vmatprep.subr.bf16.mxu0 %v1882
          %2914 = vmatpush1.bf16.msra.mxu0 %v1881
          %2915 = vmatprep.subr.bf16.mxu0 %v1878
          %2916 = vmatpush1.bf16.msra.mxu0 %v1877
          %2917 = vmatprep.subr.bf16.mxu0 %v1874
          %2918 = vmatpush1.bf16.msra.mxu0 %v1873
          %2919 = vmatprep.subr.bf16.mxu0 %v1870
          %2920 = vmatpush1.bf16.msra.mxu0 %v1869
          %2921 = vmatprep.subr.bf16.mxu0 %v1866
          %2922 = vmatpush1.bf16.msra.mxu0 %v1865
          %2923 = vmatprep.subr.bf16.mxu0 %v1862
          %2924 = vmatpush1.bf16.msra.mxu0 %v1861
          %2925 = vmatprep.subr.bf16.mxu0 %v1858
          %2926 = vmatpush1.bf16.msra.mxu0 %v1857
          %2927 = vmatprep.subr.bf16.mxu0 %v1854
          %2928 = vmatpush1.bf16.msra.mxu0 %v1853
          %2929 = vmatprep.subr.bf16.mxu0 %v1914
          %2930 = vmatpush2.bf16.msra.mxu0 %v1913
          %2931 = vmatprep.subr.bf16.mxu0 %v1910
          %2932 = vmatpush2.bf16.msra.mxu0 %v1909
          %2933 = vmatprep.subr.bf16.mxu0 %v1906
          %2934 = vmatpush2.bf16.msra.mxu0 %v1905
          %2935 = vmatprep.subr.bf16.mxu0 %v1902
          %2936 = vmatpush2.bf16.msra.mxu0 %v1901
          %2937 = vmatprep.subr.bf16.mxu0 %v1898
          %2938 = vmatpush2.bf16.msra.mxu0 %v1897
          %2939 = vmatprep.subr.bf16.mxu0 %v1894
          %2940 = vmatpush2.bf16.msra.mxu0 %v1893
          %2941 = vmatprep.subr.bf16.mxu0 %v1890
          %2942 = vmatpush2.bf16.msra.mxu0 %v1889
          %2943 = vmatprep.subr.bf16.mxu0 %v1886
          %2944 = vmatpush2.bf16.msra.mxu0 %v1885
          %2945 = vmatprep.mubr.bf16.mxu0 %v618
          %2946 = vmatmul.mubr.bf16.gmra.mxu0 %v617
          %v2947 = vpop.f32.mrf.mxu0
          %v2948 = vadd.f32 %v2835, %v2947
          %v2949 = vpop.f32.mrf.mxu0
          %v2950 = vadd.f32 %v2837, %v2949
          %v2951 = vpop.f32.mrf.mxu0
          %v2952 = vadd.f32 %v2839, %v2951
          %v2953 = vpop.f32.mrf.mxu0
          %v2954 = vadd.f32 %v2841, %v2953
          %2955 = vmatprep.mubr.bf16.mxu0 %v626
          %2956 = vmatmul.mubr.bf16.gmra.mxu0 %v625
          %v2957 = vpop.f32.mrf.mxu0
          %v2958 = vadd.f32 %v2845, %v2957
          %v2959 = vpop.f32.mrf.mxu0
          %v2960 = vadd.f32 %v2847, %v2959
          %v2961 = vpop.f32.mrf.mxu0
          %v2962 = vadd.f32 %v2849, %v2961
          %v2963 = vpop.f32.mrf.mxu0
          %v2964 = vadd.f32 %v2851, %v2963
          %2965 = vmatprep.mubr.bf16.mxu0 %v634
          %2966 = vmatmul.mubr.bf16.gmra.mxu0 %v633
          %v2967 = vpop.f32.mrf.mxu0
          %v2968 = vadd.f32 %v2855, %v2967
          %v2969 = vpop.f32.mrf.mxu0
          %v2970 = vadd.f32 %v2857, %v2969
          %v2971 = vpop.f32.mrf.mxu0
          %v2972 = vadd.f32 %v2859, %v2971
          %v2973 = vpop.f32.mrf.mxu0
          %v2974 = vadd.f32 %v2861, %v2973
          %2975 = vmatprep.mubr.bf16.mxu0 %v642
          %2976 = vmatmul.mubr.bf16.gmra.mxu0 %v641
          %v2977 = vpop.f32.mrf.mxu0
          %v2978 = vadd.f32 %v2865, %v2977
          %v2979 = vpop.f32.mrf.mxu0
          %v2980 = vadd.f32 %v2867, %v2979
          %v2981 = vpop.f32.mrf.mxu0
          %v2982 = vadd.f32 %v2869, %v2981
          %v2983 = vpop.f32.mrf.mxu0
          %v2984 = vadd.f32 %v2871, %v2983
          %2985 = vmatprep.mubr.bf16.mxu0 %v650
          %2986 = vmatmul.mubr.bf16.gmra.mxu0 %v649
          %v2987 = vpop.f32.mrf.mxu0
          %v2988 = vadd.f32 %v2875, %v2987
          %v2989 = vpop.f32.mrf.mxu0
          %v2990 = vadd.f32 %v2877, %v2989
          %v2991 = vpop.f32.mrf.mxu0
          %v2992 = vadd.f32 %v2879, %v2991
          %v2993 = vpop.f32.mrf.mxu0
          %v2994 = vadd.f32 %v2881, %v2993
          %2995 = vmatprep.mubr.bf16.mxu0 %v658
          %2996 = vmatmul.mubr.bf16.gmra.mxu0 %v657
          %v2997 = vpop.f32.mrf.mxu0
          %v2998 = vadd.f32 %v2885, %v2997
          %v2999 = vpop.f32.mrf.mxu0
          %v3000 = vadd.f32 %v2887, %v2999
          %v3001 = vpop.f32.mrf.mxu0
          %v3002 = vadd.f32 %v2889, %v3001
          %v3003 = vpop.f32.mrf.mxu0
          %v3004 = vadd.f32 %v2891, %v3003
          %3005 = vmatprep.mubr.bf16.mxu0 %v666
          %3006 = vmatmul.mubr.bf16.gmra.mxu0 %v665
          %v3007 = vpop.f32.mrf.mxu0
          %v3008 = vadd.f32 %v2895, %v3007
          %v3009 = vpop.f32.mrf.mxu0
          %v3010 = vadd.f32 %v2897, %v3009
          %v3011 = vpop.f32.mrf.mxu0
          %v3012 = vadd.f32 %v2899, %v3011
          %v3013 = vpop.f32.mrf.mxu0
          %v3014 = vadd.f32 %v2901, %v3013
          %3015 = vmatprep.mubr.bf16.mxu0 %v674
          %3016 = vmatmul.mubr.bf16.gmra.mxu0 %v673
          %v3017 = vpop.f32.mrf.mxu0
          %v3018 = vadd.f32 %v2905, %v3017
          %v3019 = vpop.f32.mrf.mxu0
          %v3020 = vadd.f32 %v2907, %v3019
          %v3021 = vpop.f32.mrf.mxu0
          %v3022 = vadd.f32 %v2909, %v3021
          %v3023 = vpop.f32.mrf.mxu0
          %v3024 = vadd.f32 %v2911, %v3023
          %3025 = vdwg.mxu0
          %3026 = vmatprep.subr.bf16.mxu0 %v1946
          %3027 = vmatpush1.bf16.msra.mxu0 %v1945
          %3028 = vmatprep.subr.bf16.mxu0 %v1942
          %3029 = vmatpush1.bf16.msra.mxu0 %v1941
          %3030 = vmatprep.subr.bf16.mxu0 %v1938
          %3031 = vmatpush1.bf16.msra.mxu0 %v1937
          %3032 = vmatprep.subr.bf16.mxu0 %v1934
          %3033 = vmatpush1.bf16.msra.mxu0 %v1933
          %3034 = vmatprep.subr.bf16.mxu0 %v1930
          %3035 = vmatpush1.bf16.msra.mxu0 %v1929
          %3036 = vmatprep.subr.bf16.mxu0 %v1926
          %3037 = vmatpush1.bf16.msra.mxu0 %v1925
          %3038 = vmatprep.subr.bf16.mxu0 %v1922
          %3039 = vmatpush1.bf16.msra.mxu0 %v1921
          %3040 = vmatprep.subr.bf16.mxu0 %v1918
          %3041 = vmatpush1.bf16.msra.mxu0 %v1917
          %3042 = vmatprep.subr.bf16.mxu0 %v1978
          %3043 = vmatpush2.bf16.msra.mxu0 %v1977
          %3044 = vmatprep.subr.bf16.mxu0 %v1974
          %3045 = vmatpush2.bf16.msra.mxu0 %v1973
          %3046 = vmatprep.subr.bf16.mxu0 %v1970
          %3047 = vmatpush2.bf16.msra.mxu0 %v1969
          %3048 = vmatprep.subr.bf16.mxu0 %v1966
          %3049 = vmatpush2.bf16.msra.mxu0 %v1965
          %3050 = vmatprep.subr.bf16.mxu0 %v1962
          %3051 = vmatpush2.bf16.msra.mxu0 %v1961
          %3052 = vmatprep.subr.bf16.mxu0 %v1958
          %3053 = vmatpush2.bf16.msra.mxu0 %v1957
          %3054 = vmatprep.subr.bf16.mxu0 %v1954
          %3055 = vmatpush2.bf16.msra.mxu0 %v1953
          %3056 = vmatprep.subr.bf16.mxu0 %v1950
          %3057 = vmatpush2.bf16.msra.mxu0 %v1949
          %3058 = vmatprep.mubr.bf16.mxu0 %v620
          %3059 = vmatmul.mubr.bf16.gmra.mxu0 %v619
          %v3060 = vpop.f32.mrf.mxu0
          %v3061 = vadd.f32 %v2948, %v3060
          %v3062 = vpop.f32.mrf.mxu0
          %v3063 = vadd.f32 %v2950, %v3062
          %v3064 = vpop.f32.mrf.mxu0
          %v3065 = vadd.f32 %v2952, %v3064
          %v3066 = vpop.f32.mrf.mxu0
          %v3067 = vadd.f32 %v2954, %v3066
          %3068 = vmatprep.mubr.bf16.mxu0 %v628
          %3069 = vmatmul.mubr.bf16.gmra.mxu0 %v627
          %v3070 = vpop.f32.mrf.mxu0
          %v3071 = vadd.f32 %v2958, %v3070
          %v3072 = vpop.f32.mrf.mxu0
          %v3073 = vadd.f32 %v2960, %v3072
          %v3074 = vpop.f32.mrf.mxu0
          %v3075 = vadd.f32 %v2962, %v3074
          %v3076 = vpop.f32.mrf.mxu0
          %v3077 = vadd.f32 %v2964, %v3076
          %3078 = vmatprep.mubr.bf16.mxu0 %v636
          %3079 = vmatmul.mubr.bf16.gmra.mxu0 %v635
          %v3080 = vpop.f32.mrf.mxu0
          %v3081 = vadd.f32 %v2968, %v3080
          %v3082 = vpop.f32.mrf.mxu0
          %v3083 = vadd.f32 %v2970, %v3082
          %v3084 = vpop.f32.mrf.mxu0
          %v3085 = vadd.f32 %v2972, %v3084
          %v3086 = vpop.f32.mrf.mxu0
          %v3087 = vadd.f32 %v2974, %v3086
          %3088 = vmatprep.mubr.bf16.mxu0 %v644
          %3089 = vmatmul.mubr.bf16.gmra.mxu0 %v643
          %v3090 = vpop.f32.mrf.mxu0
          %v3091 = vadd.f32 %v2978, %v3090
          %v3092 = vpop.f32.mrf.mxu0
          %v3093 = vadd.f32 %v2980, %v3092
          %v3094 = vpop.f32.mrf.mxu0
          %v3095 = vadd.f32 %v2982, %v3094
          %v3096 = vpop.f32.mrf.mxu0
          %v3097 = vadd.f32 %v2984, %v3096
          %3098 = vmatprep.mubr.bf16.mxu0 %v652
          %3099 = vmatmul.mubr.bf16.gmra.mxu0 %v651
          %v3100 = vpop.f32.mrf.mxu0
          %v3101 = vadd.f32 %v2988, %v3100
          %v3102 = vpop.f32.mrf.mxu0
          %v3103 = vadd.f32 %v2990, %v3102
          %v3104 = vpop.f32.mrf.mxu0
          %v3105 = vadd.f32 %v2992, %v3104
          %v3106 = vpop.f32.mrf.mxu0
          %v3107 = vadd.f32 %v2994, %v3106
          %3108 = vmatprep.mubr.bf16.mxu0 %v660
          %3109 = vmatmul.mubr.bf16.gmra.mxu0 %v659
          %v3110 = vpop.f32.mrf.mxu0
          %v3111 = vadd.f32 %v2998, %v3110
          %v3112 = vpop.f32.mrf.mxu0
          %v3113 = vadd.f32 %v3000, %v3112
          %v3114 = vpop.f32.mrf.mxu0
          %v3115 = vadd.f32 %v3002, %v3114
          %v3116 = vpop.f32.mrf.mxu0
          %v3117 = vadd.f32 %v3004, %v3116
          %3118 = vmatprep.mubr.bf16.mxu0 %v668
          %3119 = vmatmul.mubr.bf16.gmra.mxu0 %v667
          %v3120 = vpop.f32.mrf.mxu0
          %v3121 = vadd.f32 %v3008, %v3120
          %v3122 = vpop.f32.mrf.mxu0
          %v3123 = vadd.f32 %v3010, %v3122
          %v3124 = vpop.f32.mrf.mxu0
          %v3125 = vadd.f32 %v3012, %v3124
          %v3126 = vpop.f32.mrf.mxu0
          %v3127 = vadd.f32 %v3014, %v3126
          %3128 = vmatprep.mubr.bf16.mxu0 %v676
          %3129 = vmatmul.mubr.bf16.gmra.mxu0 %v675
          %v3130 = vpop.f32.mrf.mxu0
          %v3131 = vadd.f32 %v3018, %v3130
          %v3132 = vpop.f32.mrf.mxu0
          %v3133 = vadd.f32 %v3020, %v3132
          %v3134 = vpop.f32.mrf.mxu0
          %v3135 = vadd.f32 %v3022, %v3134
          %v3136 = vpop.f32.mrf.mxu0
          %v3137 = vadd.f32 %v3024, %v3136
          %3138 = vdwg.mxu0
          %v3139 = vtanh.pop %v2609
          %v3140 = vtanh.pop %v2611
          %v3141 = vtanh.pop %v2613
          %v3142 = vtanh.pop %v2615
          %v3143 = vtanh.pop %v2619
          %v3144 = vtanh.pop %v2621
          %v3145 = vtanh.pop %v2623
          %v3146 = vtanh.pop %v2625
          %v3147 = vtanh.pop %v2629
          %v3148 = vtanh.pop %v2631
          %v3149 = vtanh.pop %v2633
          %v3150 = vtanh.pop %v2635
          %v3151 = vtanh.pop %v2639
          %v3152 = vtanh.pop %v2641
          %v3153 = vtanh.pop %v2643
          %v3154 = vtanh.pop %v2645
          %v3155 = vtanh.pop %v2649
          %v3156 = vtanh.pop %v2651
          %v3157 = vtanh.pop %v2653
          %v3158 = vtanh.pop %v2655
          %v3159 = vtanh.pop %v2659
          %v3160 = vtanh.pop %v2661
          %v3161 = vtanh.pop %v2663
          %v3162 = vtanh.pop %v2665
          %v3163 = vtanh.pop %v2669
          %v3164 = vtanh.pop %v2671
          %v3165 = vtanh.pop %v2673
          %v3166 = vtanh.pop %v2675
          %v3167 = vtanh.pop %v2679
          %v3168 = vtanh.pop %v2681
          %v3169 = vtanh.pop %v2683
          %v3170 = vtanh.pop %v2685
          %v3171 = vmul.f32 %v3061, 0.5
          %v3172 = vmul.f32 %v3063, 0.5
          %v3173 = vmul.f32 %v3065, 0.5
          %v3174 = vmul.f32 %v3067, 0.5
          %v3175 = vmul.f32 %v3071, 0.5
          %v3176 = vmul.f32 %v3073, 0.5
          %v3177 = vmul.f32 %v3075, 0.5
          %v3178 = vmul.f32 %v3077, 0.5
          %v3179 = vmul.f32 %v3081, 0.5
          %v3180 = vmul.f32 %v3083, 0.5
          %v3181 = vmul.f32 %v3085, 0.5
          %v3182 = vmul.f32 %v3087, 0.5
          %v3183 = vmul.f32 %v3091, 0.5
          %v3184 = vmul.f32 %v3093, 0.5
          %v3185 = vmul.f32 %v3095, 0.5
          %v3186 = vmul.f32 %v3097, 0.5
          %v3187 = vmul.f32 %v3101, 0.5
          %v3188 = vmul.f32 %v3103, 0.5
          %v3189 = vmul.f32 %v3105, 0.5
          %v3190 = vmul.f32 %v3107, 0.5
          %v3191 = vmul.f32 %v3111, 0.5
          %v3192 = vmul.f32 %v3113, 0.5
          %v3193 = vmul.f32 %v3115, 0.5
          %v3194 = vmul.f32 %v3117, 0.5
          %v3195 = vmul.f32 %v3121, 0.5
          %v3196 = vmul.f32 %v3123, 0.5
          %v3197 = vmul.f32 %v3125, 0.5
          %v3198 = vmul.f32 %v3127, 0.5
          %v3199 = vmul.f32 %v3131, 0.5
          %v3200 = vmul.f32 %v3133, 0.5
          %v3201 = vmul.f32 %v3135, 0.5
          %v3202 = vmul.f32 %v3137, 0.5
          %v3203 = vtanh.pop %v3171
          %v3204 = vtanh.pop %v3172
          %v3205 = vtanh.pop %v3173
          %v3206 = vtanh.pop %v3174
          %v3207 = vtanh.pop %v3175
          %v3208 = vtanh.pop %v3176
          %v3209 = vtanh.pop %v3177
          %v3210 = vtanh.pop %v3178
          %v3211 = vtanh.pop %v3179
          %v3212 = vtanh.pop %v3180
          %v3213 = vtanh.pop %v3181
          %v3214 = vtanh.pop %v3182
          %v3215 = vtanh.pop %v3183
          %v3216 = vtanh.pop %v3184
          %v3217 = vtanh.pop %v3185
          %v3218 = vtanh.pop %v3186
          %v3219 = vtanh.pop %v3187
          %v3220 = vtanh.pop %v3188
          %v3221 = vtanh.pop %v3189
          %v3222 = vtanh.pop %v3190
          %v3223 = vtanh.pop %v3191
          %v3224 = vtanh.pop %v3192
          %v3225 = vtanh.pop %v3193
          %v3226 = vtanh.pop %v3194
          %v3227 = vtanh.pop %v3195
          %v3228 = vtanh.pop %v3196
          %v3229 = vtanh.pop %v3197
          %v3230 = vtanh.pop %v3198
          %v3231 = vtanh.pop %v3199
          %v3232 = vtanh.pop %v3200
          %v3233 = vtanh.pop %v3201
          %v3234 = vtanh.pop %v3202
          %v3235 = vadd.f32 %v3203, 1.0
          %v3236 = vadd.f32 %v3204, 1.0
          %v3237 = vadd.f32 %v3205, 1.0
          %v3238 = vadd.f32 %v3206, 1.0
          %v3239 = vadd.f32 %v3207, 1.0
          %v3240 = vadd.f32 %v3208, 1.0
          %v3241 = vadd.f32 %v3209, 1.0
          %v3242 = vadd.f32 %v3210, 1.0
          %v3243 = vadd.f32 %v3211, 1.0
          %v3244 = vadd.f32 %v3212, 1.0
          %v3245 = vadd.f32 %v3213, 1.0
          %v3246 = vadd.f32 %v3214, 1.0
          %v3247 = vadd.f32 %v3215, 1.0
          %v3248 = vadd.f32 %v3216, 1.0
          %v3249 = vadd.f32 %v3217, 1.0
          %v3250 = vadd.f32 %v3218, 1.0
          %v3251 = vadd.f32 %v3219, 1.0
          %v3252 = vadd.f32 %v3220, 1.0
          %v3253 = vadd.f32 %v3221, 1.0
          %v3254 = vadd.f32 %v3222, 1.0
          %v3255 = vadd.f32 %v3223, 1.0
          %v3256 = vadd.f32 %v3224, 1.0
          %v3257 = vadd.f32 %v3225, 1.0
          %v3258 = vadd.f32 %v3226, 1.0
          %v3259 = vadd.f32 %v3227, 1.0
          %v3260 = vadd.f32 %v3228, 1.0
          %v3261 = vadd.f32 %v3229, 1.0
          %v3262 = vadd.f32 %v3230, 1.0
          %v3263 = vadd.f32 %v3231, 1.0
          %v3264 = vadd.f32 %v3232, 1.0
          %v3265 = vadd.f32 %v3233, 1.0
          %v3266 = vadd.f32 %v3234, 1.0
          %v3267 = vmul.f32 %v3235, 0.5
          %v3268 = vmul.f32 %v3236, 0.5
          %v3269 = vmul.f32 %v3237, 0.5
          %v3270 = vmul.f32 %v3238, 0.5
          %v3271 = vmul.f32 %v3239, 0.5
          %v3272 = vmul.f32 %v3240, 0.5
          %v3273 = vmul.f32 %v3241, 0.5
          %v3274 = vmul.f32 %v3242, 0.5
          %v3275 = vmul.f32 %v3243, 0.5
          %v3276 = vmul.f32 %v3244, 0.5
          %v3277 = vmul.f32 %v3245, 0.5
          %v3278 = vmul.f32 %v3246, 0.5
          %v3279 = vmul.f32 %v3247, 0.5
          %v3280 = vmul.f32 %v3248, 0.5
          %v3281 = vmul.f32 %v3249, 0.5
          %v3282 = vmul.f32 %v3250, 0.5
          %v3283 = vmul.f32 %v3251, 0.5
          %v3284 = vmul.f32 %v3252, 0.5
          %v3285 = vmul.f32 %v3253, 0.5
          %v3286 = vmul.f32 %v3254, 0.5
          %v3287 = vmul.f32 %v3255, 0.5
          %v3288 = vmul.f32 %v3256, 0.5
          %v3289 = vmul.f32 %v3257, 0.5
          %v3290 = vmul.f32 %v3258, 0.5
          %v3291 = vmul.f32 %v3259, 0.5
          %v3292 = vmul.f32 %v3260, 0.5
          %v3293 = vmul.f32 %v3261, 0.5
          %v3294 = vmul.f32 %v3262, 0.5
          %v3295 = vmul.f32 %v3263, 0.5
          %v3296 = vmul.f32 %v3264, 0.5
          %v3297 = vmul.f32 %v3265, 0.5
          %v3298 = vmul.f32 %v3266, 0.5
          %v3299 = vmul.f32 %v3139, %v3267
          %v3300 = vmul.f32 %v3140, %v3268
          %v3301 = vmul.f32 %v3141, %v3269
          %v3302 = vmul.f32 %v3142, %v3270
          %v3303 = vmul.f32 %v3143, %v3271
          %v3304 = vmul.f32 %v3144, %v3272
          %v3305 = vmul.f32 %v3145, %v3273
          %v3306 = vmul.f32 %v3146, %v3274
          %v3307 = vmul.f32 %v3147, %v3275
          %v3308 = vmul.f32 %v3148, %v3276
          %v3309 = vmul.f32 %v3149, %v3277
          %v3310 = vmul.f32 %v3150, %v3278
          %v3311 = vmul.f32 %v3151, %v3279
          %v3312 = vmul.f32 %v3152, %v3280
          %v3313 = vmul.f32 %v3153, %v3281
          %v3314 = vmul.f32 %v3154, %v3282
          %v3315 = vmul.f32 %v3155, %v3283
          %v3316 = vmul.f32 %v3156, %v3284
          %v3317 = vmul.f32 %v3157, %v3285
          %v3318 = vmul.f32 %v3158, %v3286
          %v3319 = vmul.f32 %v3159, %v3287
          %v3320 = vmul.f32 %v3160, %v3288
          %v3321 = vmul.f32 %v3161, %v3289
          %v3322 = vmul.f32 %v3162, %v3290
          %v3323 = vmul.f32 %v3163, %v3291
          %v3324 = vmul.f32 %v3164, %v3292
          %v3325 = vmul.f32 %v3165, %v3293
          %v3326 = vmul.f32 %v3166, %v3294
          %v3327 = vmul.f32 %v3167, %v3295
          %v3328 = vmul.f32 %v3168, %v3296
          %v3329 = vmul.f32 %v3169, %v3297
          %v3330 = vmul.f32 %v3170, %v3298
          %v3331 = vld [vmem:[%s458] sm:$0xff]
          %v3332 = vld [vmem:[%s458 + $0x8] sm:$0xff]
          %v3333 = vld [vmem:[%s458 + $0x10] sm:$0xff]
          %v3334 = vld [vmem:[%s458 + $0x18] sm:$0xff]
          %v3335 = vld [vmem:[%s458 + $0x20] sm:$0xff]
          %v3336 = vld [vmem:[%s458 + $0x28] sm:$0xff]
          %v3337 = vld [vmem:[%s458 + $0x30] sm:$0xff]
          %v3338 = vld [vmem:[%s458 + $0x38] sm:$0xff]
          %v3339 = vld [vmem:[%s458 + $0x40] sm:$0xff]
          %v3340 = vld [vmem:[%s458 + $0x48] sm:$0xff]
          %v3341 = vld [vmem:[%s458 + $0x50] sm:$0xff]
          %v3342 = vld [vmem:[%s458 + $0x58] sm:$0xff]
          %v3343 = vld [vmem:[%s458 + $0x60] sm:$0xff]
          %v3344 = vld [vmem:[%s458 + $0x68] sm:$0xff]
          %v3345 = vld [vmem:[%s458 + $0x70] sm:$0xff]
          %v3346 = vld [vmem:[%s458 + $0x78] sm:$0xff]
          %v3347 = vld [vmem:[%s458 + $0x80] sm:$0xff]
          %v3348 = vld [vmem:[%s458 + $0x88] sm:$0xff]
          %v3349 = vld [vmem:[%s458 + $0x90] sm:$0xff]
          %v3350 = vld [vmem:[%s458 + $0x98] sm:$0xff]
          %v3351 = vld [vmem:[%s458 + $0xa0] sm:$0xff]
          %v3352 = vld [vmem:[%s458 + $0xa8] sm:$0xff]
          %v3353 = vld [vmem:[%s458 + $0xb0] sm:$0xff]
          %v3354 = vld [vmem:[%s458 + $0xb8] sm:$0xff]
          %v3355 = vld [vmem:[%s458 + $0xc0] sm:$0xff]
          %v3356 = vld [vmem:[%s458 + $0xc8] sm:$0xff]
          %v3357 = vld [vmem:[%s458 + $0xd0] sm:$0xff]
          %v3358 = vld [vmem:[%s458 + $0xd8] sm:$0xff]
          %v3359 = vld [vmem:[%s458 + $0xe0] sm:$0xff]
          %v3360 = vld [vmem:[%s458 + $0xe8] sm:$0xff]
          %v3361 = vld [vmem:[%s458 + $0xf0] sm:$0xff]
          %v3362 = vld [vmem:[%s458 + $0xf8] sm:$0xff]
          %s3363 = smul.u32 %s25, 128
          %s3364 = sld [smem:[#allocation5 + %s3363]]
          %v3365 = vstv %s3364
          %3366 = vmatprep.subr.mxu0 0.0
          %3367 = vmatpush1.msra.mxu0 %v3346
          %3368 = vmatprep.subr.mxu0 0.0
          %3369 = vmatpush1.msra.mxu0 %v3345
          %3370 = vmatprep.subr.mxu0 0.0
          %3371 = vmatpush1.msra.mxu0 %v3344
          %3372 = vmatprep.subr.mxu0 0.0
          %3373 = vmatpush1.msra.mxu0 %v3343
          %3374 = vmatprep.subr.mxu0 0.0
          %3375 = vmatpush1.msra.mxu0 %v3342
          %3376 = vmatprep.subr.mxu0 0.0
          %3377 = vmatpush1.msra.mxu0 %v3341
          %3378 = vmatprep.subr.mxu0 0.0
          %3379 = vmatpush1.msra.mxu0 %v3340
          %3380 = vmatprep.subr.mxu0 0.0
          %3381 = vmatpush1.msra.mxu0 %v3339
          %3382 = vmatprep.subr.mxu0 0.0
          %3383 = vmatpush1.msra.mxu0 %v3338
          %3384 = vmatprep.subr.mxu0 0.0
          %3385 = vmatpush1.msra.mxu0 %v3337
          %3386 = vmatprep.subr.mxu0 0.0
          %3387 = vmatpush1.msra.mxu0 %v3336
          %3388 = vmatprep.subr.mxu0 0.0
          %3389 = vmatpush1.msra.mxu0 %v3335
          %3390 = vmatprep.subr.mxu0 0.0
          %3391 = vmatpush1.msra.mxu0 %v3334
          %3392 = vmatprep.subr.mxu0 0.0
          %3393 = vmatpush1.msra.mxu0 %v3333
          %3394 = vmatprep.subr.mxu0 0.0
          %3395 = vmatpush1.msra.mxu0 %v3332
          %3396 = vmatprep.subr.mxu0 0.0
          %3397 = vmatpush1.msra.mxu0 %v3331
          %3398 = vmatprep.subr.mxu0 0.0
          %3399 = vmatpush2.msra.mxu0 %v3362
          %3400 = vmatprep.subr.mxu0 0.0
          %3401 = vmatpush2.msra.mxu0 %v3361
          %3402 = vmatprep.subr.mxu0 0.0
          %3403 = vmatpush2.msra.mxu0 %v3360
          %3404 = vmatprep.subr.mxu0 0.0
          %3405 = vmatpush2.msra.mxu0 %v3359
          %3406 = vmatprep.subr.mxu0 0.0
          %3407 = vmatpush2.msra.mxu0 %v3358
          %3408 = vmatprep.subr.mxu0 0.0
          %3409 = vmatpush2.msra.mxu0 %v3357
          %3410 = vmatprep.subr.mxu0 0.0
          %3411 = vmatpush2.msra.mxu0 %v3356
          %3412 = vmatprep.subr.mxu0 0.0
          %3413 = vmatpush2.msra.mxu0 %v3355
          %3414 = vmatprep.subr.mxu0 0.0
          %3415 = vmatpush2.msra.mxu0 %v3354
          %3416 = vmatprep.subr.mxu0 0.0
          %3417 = vmatpush2.msra.mxu0 %v3353
          %3418 = vmatprep.subr.mxu0 0.0
          %3419 = vmatpush2.msra.mxu0 %v3352
          %3420 = vmatprep.subr.mxu0 0.0
          %3421 = vmatpush2.msra.mxu0 %v3351
          %3422 = vmatprep.subr.mxu0 0.0
          %3423 = vmatpush2.msra.mxu0 %v3350
          %3424 = vmatprep.subr.mxu0 0.0
          %3425 = vmatpush2.msra.mxu0 %v3349
          %3426 = vmatprep.subr.mxu0 0.0
          %3427 = vmatpush2.msra.mxu0 %v3348
          %3428 = vmatprep.subr.mxu0 0.0
          %3429 = vmatpush2.msra.mxu0 %v3347
          %3430 = vmatprep.mubr.f32.mxu0 %v3300
          %3431 = vmatmul.mubr.f32.gmra.mxu0 %v3299
          %v3432 = vpop.f32.mrf.mxu0
          %v3433 = vadd.f32 %v3365, %v3432
          %v3434 = vpop.f32.mrf.mxu0
          %3435 = vmatprep.mubr.f32.mxu0 %v3302
          %3436 = vmatmul.mubr.f32.gmra.mxu0 %v3301
          %v3437 = vpop.f32.mrf.mxu0
          %v3438 = vadd.f32 %v3365, %v3437
          %v3439 = vpop.f32.mrf.mxu0
          %3440 = vmatprep.mubr.f32.mxu0 %v3304
          %3441 = vmatmul.mubr.f32.gmra.mxu0 %v3303
          %v3442 = vpop.f32.mrf.mxu0
          %v3443 = vadd.f32 %v3365, %v3442
          %v3444 = vpop.f32.mrf.mxu0
          %3445 = vmatprep.mubr.f32.mxu0 %v3306
          %3446 = vmatmul.mubr.f32.gmra.mxu0 %v3305
          %v3447 = vpop.f32.mrf.mxu0
          %v3448 = vadd.f32 %v3365, %v3447
          %v3449 = vpop.f32.mrf.mxu0
          %3450 = vmatprep.mubr.f32.mxu0 %v3308
          %3451 = vmatmul.mubr.f32.gmra.mxu0 %v3307
          %v3452 = vpop.f32.mrf.mxu0
          %v3453 = vadd.f32 %v3365, %v3452
          %v3454 = vpop.f32.mrf.mxu0
          %3455 = vmatprep.mubr.f32.mxu0 %v3310
          %3456 = vmatmul.mubr.f32.gmra.mxu0 %v3309
          %v3457 = vpop.f32.mrf.mxu0
          %v3458 = vadd.f32 %v3365, %v3457
          %v3459 = vpop.f32.mrf.mxu0
          %3460 = vmatprep.mubr.f32.mxu0 %v3312
          %3461 = vmatmul.mubr.f32.gmra.mxu0 %v3311
          %v3462 = vpop.f32.mrf.mxu0
          %v3463 = vadd.f32 %v3365, %v3462
          %v3464 = vpop.f32.mrf.mxu0
          %3465 = vmatprep.mubr.f32.mxu0 %v3314
          %3466 = vmatmul.mubr.f32.gmra.mxu0 %v3313
          %v3467 = vpop.f32.mrf.mxu0
          %v3468 = vadd.f32 %v3365, %v3467
          %v3469 = vpop.f32.mrf.mxu0
          %3470 = vmatprep.mubr.f32.mxu0 %v3316
          %3471 = vmatmul.mubr.f32.gmra.mxu0 %v3315
          %v3472 = vpop.f32.mrf.mxu0
          %v3473 = vadd.f32 %v3365, %v3472
          %v3474 = vpop.f32.mrf.mxu0
          %3475 = vmatprep.mubr.f32.mxu0 %v3318
          %3476 = vmatmul.mubr.f32.gmra.mxu0 %v3317
          %v3477 = vpop.f32.mrf.mxu0
          %v3478 = vadd.f32 %v3365, %v3477
          %v3479 = vpop.f32.mrf.mxu0
          %3480 = vmatprep.mubr.f32.mxu0 %v3320
          %3481 = vmatmul.mubr.f32.gmra.mxu0 %v3319
          %v3482 = vpop.f32.mrf.mxu0
          %v3483 = vadd.f32 %v3365, %v3482
          %v3484 = vpop.f32.mrf.mxu0
          %3485 = vmatprep.mubr.f32.mxu0 %v3322
          %3486 = vmatmul.mubr.f32.gmra.mxu0 %v3321
          %v3487 = vpop.f32.mrf.mxu0
          %v3488 = vadd.f32 %v3365, %v3487
          %v3489 = vpop.f32.mrf.mxu0
          %3490 = vmatprep.mubr.f32.mxu0 %v3324
          %3491 = vmatmul.mubr.f32.gmra.mxu0 %v3323
          %v3492 = vpop.f32.mrf.mxu0
          %v3493 = vadd.f32 %v3365, %v3492
          %v3494 = vpop.f32.mrf.mxu0
          %3495 = vmatprep.mubr.f32.mxu0 %v3326
          %3496 = vmatmul.mubr.f32.gmra.mxu0 %v3325
          %v3497 = vpop.f32.mrf.mxu0
          %v3498 = vadd.f32 %v3365, %v3497
          %v3499 = vpop.f32.mrf.mxu0
          %3500 = vmatprep.mubr.f32.mxu0 %v3328
          %3501 = vmatmul.mubr.f32.gmra.mxu0 %v3327
          %v3502 = vpop.f32.mrf.mxu0
          %v3503 = vadd.f32 %v3365, %v3502
          %v3504 = vpop.f32.mrf.mxu0
          %3505 = vmatprep.mubr.f32.mxu0 %v3330
          %3506 = vmatmul.mubr.f32.gmra.mxu0 %v3329
          %v3507 = vpop.f32.mrf.mxu0
          %v3508 = vadd.f32 %v3365, %v3507
          %v3509 = vpop.f32.mrf.mxu0
          %3510 = vdwg.mxu0
          %3511 = vxpose.xlu0.b32.start [1/16] %v3433, 128
          %3512 = vxpose.xlu0.b32.cont [2/16] %v3438, 128
          %3513 = vxpose.xlu0.b32.cont [3/16] %v3443, 128
          %3514 = vxpose.xlu0.b32.cont [4/16] %v3448, 128
          %3515 = vxpose.xlu0.b32.cont [5/16] %v3453, 128
          %3516 = vxpose.xlu0.b32.cont [6/16] %v3458, 128
          %3517 = vxpose.xlu0.b32.cont [7/16] %v3463, 128
          %3518 = vxpose.xlu0.b32.cont [8/16] %v3468, 128
          %3519 = vxpose.xlu0.b32.cont [9/16] %v3473, 128
          %3520 = vxpose.xlu0.b32.cont [10/16] %v3478, 128
          %3521 = vxpose.xlu0.b32.cont [11/16] %v3483, 128
          %3522 = vxpose.xlu0.b32.cont [12/16] %v3488, 128
          %3523 = vxpose.xlu0.b32.cont [13/16] %v3493, 128
          %3524 = vxpose.xlu0.b32.cont [14/16] %v3498, 128
          %3525 = vxpose.xlu0.b32.cont [15/16] %v3503, 128
          %3526 = vxpose.xlu0.b32.end [16/16] %v3508, 128
          %v3527 = vpop.trf.xlu0
          %v3528 = vpop.trf.xlu0
          %v3529 = vpop.trf.xlu0
          %v3530 = vpop.trf.xlu0
          %v3531 = vpop.trf.xlu0
          %v3532 = vpop.trf.xlu0
          %v3533 = vpop.trf.xlu0
          %v3534 = vpop.trf.xlu0
          %v3535 = vpop.trf.xlu0
          %v3536 = vpop.trf.xlu0
          %v3537 = vpop.trf.xlu0
          %v3538 = vpop.trf.xlu0
          %v3539 = vpop.trf.xlu0
          %v3540 = vpop.trf.xlu0
          %v3541 = vpop.trf.xlu0
          %v3542 = vpop.trf.xlu0
          %3543 = vst [vmem:[%s469] sm:$0x1] %v3527
          %s3544 = smul.u32 %s26, 128
          %v3545 = vlaneseq
          %v3546 = vand.u32 %v3545, 127
          %v3547 = vstv %s3544
          %v3548 = vadd.s32 %v3547, %v3546
          %vm3549 = vcmp.lt.s32.totalorder %v3548, 8
          %v3550 = vsel %vm3549, %v3527, -1e+30
          %v3551 = vld [vmem:[#allocation2] sm:$0x1]
          %vm3552 = vcmask 1040384
          %v3553 = vsel %vm3552, %v3550, -inf
          %3554 = vmax.xlane.f32.xlu0 %v3553
          %v3555 = vpop.xlane.xlu0 %3554
          %v3556 = vmax.f32 %v3551, %v3555
          %v3557 = vsub.f32 %v3551, %v3556
          %v3558 = vmul.f32 %v3557, 1.442695
          %v3559 = vpow.pop %v3558
          %3561 = vset.pattern.permute.xlu0 0
          %3562 = vperm.xlu0 %3561, %v3556
          %v3563 = vpop.permute.xlu0 %3562
          %v3565 = vlaneseq
          %v3566 = vshrl.u32 %v3565, 7
          %v3567 = vsub.s32 0, %v3566
          %v3568 = vrot.slane %v3563, %v3567
          %v3569 = vsub.f32 %v3550, %v3568
          %v3570 = vmul.f32 %v3569, 1.442695
          %v3571 = vpow.pop %v3570
          %v3572 = vld [vmem:[#allocation3] sm:$0x1]
          %v3573 = vmul.f32 %v3559, %v3572
          %v3574 = vsel %vm3552, %v3571, 0.0
          %3575 = vadd.xlane.f32.xlu0 %v3574
          %v3576 = vpop.xlane.xlu0 %3575
          %v3577 = vadd.f32 %v3573, %v3576
          %vm3578 = vcmask 0
          %3579 = vst.msk [vmem:[#allocation3] sm:$0x1] %vm3578, %v3577
          %v3580 = vld [vmem:[#allocation4] sm:$0xff]
          %3582 = vset.pattern.permute.xlu0 0
          %3583 = vperm.xlu0 %3582, %v3559
          %v3584 = vpop.permute.xlu0 %3583
          %v3586 = vlaneseq
          %v3587 = vshrl.u32 %v3586, 7
          %v3588 = vsub.s32 0, %v3587
          %v3589 = vrot.slane %v3584, %v3588
          %v3590 = vmul.f32 %v3589, %v3580
          %3591 = vmatprep.subr.mxu0 %v606
          %3592 = vmatpush1.msra.mxu0 %v605
          %3593 = vmatprep.subr.mxu0 %v598
          %3594 = vmatpush1.msra.mxu0 %v597
          %3595 = vmatprep.subr.mxu0 %v590
          %3596 = vmatpush1.msra.mxu0 %v589
          %3597 = vmatprep.subr.mxu0 %v582
          %3598 = vmatpush1.msra.mxu0 %v581
          %3599 = vmatprep.subr.mxu0 %v574
          %3600 = vmatpush1.msra.mxu0 %v573
          %3601 = vmatprep.subr.mxu0 %v566
          %3602 = vmatpush1.msra.mxu0 %v565
          %3603 = vmatprep.subr.mxu0 %v558
          %3604 = vmatpush1.msra.mxu0 %v557
          %3605 = vmatprep.subr.mxu0 %v550
          %3606 = vmatpush1.msra.mxu0 %v549
          %3607 = vmatprep.subr.mxu0 %v542
          %3608 = vmatpush1.msra.mxu0 %v541
          %3609 = vmatprep.subr.mxu0 %v534
          %3610 = vmatpush1.msra.mxu0 %v533
          %3611 = vmatprep.subr.mxu0 %v526
          %3612 = vmatpush1.msra.mxu0 %v525
          %3613 = vmatprep.subr.mxu0 %v518
          %3614 = vmatpush1.msra.mxu0 %v517
          %3615 = vmatprep.subr.mxu0 %v510
          %3616 = vmatpush1.msra.mxu0 %v509
          %3617 = vmatprep.subr.mxu0 %v502
          %3618 = vmatpush1.msra.mxu0 %v501
          %3619 = vmatprep.subr.mxu0 %v494
          %3620 = vmatpush1.msra.mxu0 %v493
          %3621 = vmatprep.subr.mxu0 %v486
          %3622 = vmatpush1.msra.mxu0 %v485
          %3623 = vmatprep.subr.mxu0 0.0
          %3624 = vmatpush2.msra.mxu0 0.0
          %3625 = vmatprep.subr.mxu0 0.0
          %3626 = vmatpush2.msra.mxu0 0.0
          %3627 = vmatprep.subr.mxu0 0.0
          %3628 = vmatpush2.msra.mxu0 0.0
          %3629 = vmatprep.subr.mxu0 0.0
          %3630 = vmatpush2.msra.mxu0 0.0
          %3631 = vmatprep.subr.mxu0 0.0
          %3632 = vmatpush2.msra.mxu0 0.0
          %3633 = vmatprep.subr.mxu0 0.0
          %3634 = vmatpush2.msra.mxu0 0.0
          %3635 = vmatprep.subr.mxu0 0.0
          %3636 = vmatpush2.msra.mxu0 0.0
          %3637 = vmatprep.subr.mxu0 0.0
          %3638 = vmatpush2.msra.mxu0 0.0
          %3639 = vmatprep.subr.mxu0 0.0
          %3640 = vmatpush2.msra.mxu0 0.0
          %3641 = vmatprep.subr.mxu0 0.0
          %3642 = vmatpush2.msra.mxu0 0.0
          %3643 = vmatprep.subr.mxu0 0.0
          %3644 = vmatpush2.msra.mxu0 0.0
          %3645 = vmatprep.subr.mxu0 0.0
          %3646 = vmatpush2.msra.mxu0 0.0
          %3647 = vmatprep.subr.mxu0 0.0
          %3648 = vmatpush2.msra.mxu0 0.0
          %3649 = vmatprep.subr.mxu0 0.0
          %3650 = vmatpush2.msra.mxu0 0.0
          %3651 = vmatprep.subr.mxu0 0.0
          %3652 = vmatpush2.msra.mxu0 0.0
          %3653 = vmatprep.subr.mxu0 0.0
          %3654 = vmatpush2.msra.mxu0 0.0
          %3655 = vmatprep.mubr.f32.mxu0 0.0
          %3656 = vmatmul.mubr.f32.gmra.mxu0 %v3571
          %v3657 = vpop.f32.mrf.mxu0
          %v3658 = vadd.f32 0.0, %v3657
          %v3659 = vpop.f32.mrf.mxu0
          %v3660 = vadd.f32 0.0, %v3659
          %3661 = vdwg.mxu0
          %3662 = vmatprep.subr.mxu0 %v608
          %3663 = vmatpush1.msra.mxu0 %v607
          %3664 = vmatprep.subr.mxu0 %v600
          %3665 = vmatpush1.msra.mxu0 %v599
          %3666 = vmatprep.subr.mxu0 %v592
          %3667 = vmatpush1.msra.mxu0 %v591
          %3668 = vmatprep.subr.mxu0 %v584
          %3669 = vmatpush1.msra.mxu0 %v583
          %3670 = vmatprep.subr.mxu0 %v576
          %3671 = vmatpush1.msra.mxu0 %v575
          %3672 = vmatprep.subr.mxu0 %v568
          %3673 = vmatpush1.msra.mxu0 %v567
          %3674 = vmatprep.subr.mxu0 %v560
          %3675 = vmatpush1.msra.mxu0 %v559
          %3676 = vmatprep.subr.mxu0 %v552
          %3677 = vmatpush1.msra.mxu0 %v551
          %3678 = vmatprep.subr.mxu0 %v544
          %3679 = vmatpush1.msra.mxu0 %v543
          %3680 = vmatprep.subr.mxu0 %v536
          %3681 = vmatpush1.msra.mxu0 %v535
          %3682 = vmatprep.subr.mxu0 %v528
          %3683 = vmatpush1.msra.mxu0 %v527
          %3684 = vmatprep.subr.mxu0 %v520
          %3685 = vmatpush1.msra.mxu0 %v519
          %3686 = vmatprep.subr.mxu0 %v512
          %3687 = vmatpush1.msra.mxu0 %v511
          %3688 = vmatprep.subr.mxu0 %v504
          %3689 = vmatpush1.msra.mxu0 %v503
          %3690 = vmatprep.subr.mxu0 %v496
          %3691 = vmatpush1.msra.mxu0 %v495
          %3692 = vmatprep.subr.mxu0 %v488
          %3693 = vmatpush1.msra.mxu0 %v487
          %3694 = vmatprep.subr.mxu0 0.0
          %3695 = vmatpush2.msra.mxu0 0.0
          %3696 = vmatprep.subr.mxu0 0.0
          %3697 = vmatpush2.msra.mxu0 0.0
          %3698 = vmatprep.subr.mxu0 0.0
          %3699 = vmatpush2.msra.mxu0 0.0
          %3700 = vmatprep.subr.mxu0 0.0
          %3701 = vmatpush2.msra.mxu0 0.0
          %3702 = vmatprep.subr.mxu0 0.0
          %3703 = vmatpush2.msra.mxu0 0.0
          %3704 = vmatprep.subr.mxu0 0.0
          %3705 = vmatpush2.msra.mxu0 0.0
          %3706 = vmatprep.subr.mxu0 0.0
          %3707 = vmatpush2.msra.mxu0 0.0
          %3708 = vmatprep.subr.mxu0 0.0
          %3709 = vmatpush2.msra.mxu0 0.0
          %3710 = vmatprep.subr.mxu0 0.0
          %3711 = vmatpush2.msra.mxu0 0.0
          %3712 = vmatprep.subr.mxu0 0.0
          %3713 = vmatpush2.msra.mxu0 0.0
          %3714 = vmatprep.subr.mxu0 0.0
          %3715 = vmatpush2.msra.mxu0 0.0
          %3716 = vmatprep.subr.mxu0 0.0
          %3717 = vmatpush2.msra.mxu0 0.0
          %3718 = vmatprep.subr.mxu0 0.0
          %3719 = vmatpush2.msra.mxu0 0.0
          %3720 = vmatprep.subr.mxu0 0.0
          %3721 = vmatpush2.msra.mxu0 0.0
          %3722 = vmatprep.subr.mxu0 0.0
          %3723 = vmatpush2.msra.mxu0 0.0
          %3724 = vmatprep.subr.mxu0 0.0
          %3725 = vmatpush2.msra.mxu0 0.0
          %3726 = vmatprep.mubr.f32.mxu0 0.0
          %3727 = vmatmul.mubr.f32.gmra.mxu0 %v3571
          %v3728 = vpop.f32.mrf.mxu0
          %v3729 = vadd.f32 0.0, %v3728
          %v3730 = vpop.f32.mrf.mxu0
          %v3731 = vadd.f32 0.0, %v3730
          %3732 = vdwg.mxu0
          %3733 = vmatprep.subr.mxu0 %v610
          %3734 = vmatpush1.msra.mxu0 %v609
          %3735 = vmatprep.subr.mxu0 %v602
          %3736 = vmatpush1.msra.mxu0 %v601
          %3737 = vmatprep.subr.mxu0 %v594
          %3738 = vmatpush1.msra.mxu0 %v593
          %3739 = vmatprep.subr.mxu0 %v586
          %3740 = vmatpush1.msra.mxu0 %v585
          %3741 = vmatprep.subr.mxu0 %v578
          %3742 = vmatpush1.msra.mxu0 %v577
          %3743 = vmatprep.subr.mxu0 %v570
          %3744 = vmatpush1.msra.mxu0 %v569
          %3745 = vmatprep.subr.mxu0 %v562
          %3746 = vmatpush1.msra.mxu0 %v561
          %3747 = vmatprep.subr.mxu0 %v554
          %3748 = vmatpush1.msra.mxu0 %v553
          %3749 = vmatprep.subr.mxu0 %v546
          %3750 = vmatpush1.msra.mxu0 %v545
          %3751 = vmatprep.subr.mxu0 %v538
          %3752 = vmatpush1.msra.mxu0 %v537
          %3753 = vmatprep.subr.mxu0 %v530
          %3754 = vmatpush1.msra.mxu0 %v529
          %3755 = vmatprep.subr.mxu0 %v522
          %3756 = vmatpush1.msra.mxu0 %v521
          %3757 = vmatprep.subr.mxu0 %v514
          %3758 = vmatpush1.msra.mxu0 %v513
          %3759 = vmatprep.subr.mxu0 %v506
          %3760 = vmatpush1.msra.mxu0 %v505
          %3761 = vmatprep.subr.mxu0 %v498
          %3762 = vmatpush1.msra.mxu0 %v497
          %3763 = vmatprep.subr.mxu0 %v490
          %3764 = vmatpush1.msra.mxu0 %v489
          %3765 = vmatprep.subr.mxu0 0.0
          %3766 = vmatpush2.msra.mxu0 0.0
          %3767 = vmatprep.subr.mxu0 0.0
          %3768 = vmatpush2.msra.mxu0 0.0
          %3769 = vmatprep.subr.mxu0 0.0
          %3770 = vmatpush2.msra.mxu0 0.0
          %3771 = vmatprep.subr.mxu0 0.0
          %3772 = vmatpush2.msra.mxu0 0.0
          %3773 = vmatprep.subr.mxu0 0.0
          %3774 = vmatpush2.msra.mxu0 0.0
          %3775 = vmatprep.subr.mxu0 0.0
          %3776 = vmatpush2.msra.mxu0 0.0
          %3777 = vmatprep.subr.mxu0 0.0
          %3778 = vmatpush2.msra.mxu0 0.0
          %3779 = vmatprep.subr.mxu0 0.0
          %3780 = vmatpush2.msra.mxu0 0.0
          %3781 = vmatprep.subr.mxu0 0.0
          %3782 = vmatpush2.msra.mxu0 0.0
          %3783 = vmatprep.subr.mxu0 0.0
          %3784 = vmatpush2.msra.mxu0 0.0
          %3785 = vmatprep.subr.mxu0 0.0
          %3786 = vmatpush2.msra.mxu0 0.0
          %3787 = vmatprep.subr.mxu0 0.0
          %3788 = vmatpush2.msra.mxu0 0.0
          %3789 = vmatprep.subr.mxu0 0.0
          %3790 = vmatpush2.msra.mxu0 0.0
          %3791 = vmatprep.subr.mxu0 0.0
          %3792 = vmatpush2.msra.mxu0 0.0
          %3793 = vmatprep.subr.mxu0 0.0
          %3794 = vmatpush2.msra.mxu0 0.0
          %3795 = vmatprep.subr.mxu0 0.0
          %3796 = vmatpush2.msra.mxu0 0.0
          %3797 = vmatprep.mubr.f32.mxu0 0.0
          %3798 = vmatmul.mubr.f32.gmra.mxu0 %v3571
          %v3799 = vpop.f32.mrf.mxu0
          %v3800 = vadd.f32 0.0, %v3799
          %v3801 = vpop.f32.mrf.mxu0
          %v3802 = vadd.f32 0.0, %v3801
          %3803 = vdwg.mxu0
          %3804 = vmatprep.subr.mxu0 %v612
          %3805 = vmatpush1.msra.mxu0 %v611
          %3806 = vmatprep.subr.mxu0 %v604
          %3807 = vmatpush1.msra.mxu0 %v603
          %3808 = vmatprep.subr.mxu0 %v596
          %3809 = vmatpush1.msra.mxu0 %v595
          %3810 = vmatprep.subr.mxu0 %v588
          %3811 = vmatpush1.msra.mxu0 %v587
          %3812 = vmatprep.subr.mxu0 %v580
          %3813 = vmatpush1.msra.mxu0 %v579
          %3814 = vmatprep.subr.mxu0 %v572
          %3815 = vmatpush1.msra.mxu0 %v571
          %3816 = vmatprep.subr.mxu0 %v564
          %3817 = vmatpush1.msra.mxu0 %v563
          %3818 = vmatprep.subr.mxu0 %v556
          %3819 = vmatpush1.msra.mxu0 %v555
          %3820 = vmatprep.subr.mxu0 %v548
          %3821 = vmatpush1.msra.mxu0 %v547
          %3822 = vmatprep.subr.mxu0 %v540
          %3823 = vmatpush1.msra.mxu0 %v539
          %3824 = vmatprep.subr.mxu0 %v532
          %3825 = vmatpush1.msra.mxu0 %v531
          %3826 = vmatprep.subr.mxu0 %v524
          %3827 = vmatpush1.msra.mxu0 %v523
          %3828 = vmatprep.subr.mxu0 %v516
          %3829 = vmatpush1.msra.mxu0 %v515
          %3830 = vmatprep.subr.mxu0 %v508
          %3831 = vmatpush1.msra.mxu0 %v507
          %3832 = vmatprep.subr.mxu0 %v500
          %3833 = vmatpush1.msra.mxu0 %v499
          %3834 = vmatprep.subr.mxu0 %v492
          %3835 = vmatpush1.msra.mxu0 %v491
          %3836 = vmatprep.subr.mxu0 0.0
          %3837 = vmatpush2.msra.mxu0 0.0
          %3838 = vmatprep.subr.mxu0 0.0
          %3839 = vmatpush2.msra.mxu0 0.0
          %3840 = vmatprep.subr.mxu0 0.0
          %3841 = vmatpush2.msra.mxu0 0.0
          %3842 = vmatprep.subr.mxu0 0.0
          %3843 = vmatpush2.msra.mxu0 0.0
          %3844 = vmatprep.subr.mxu0 0.0
          %3845 = vmatpush2.msra.mxu0 0.0
          %3846 = vmatprep.subr.mxu0 0.0
          %3847 = vmatpush2.msra.mxu0 0.0
          %3848 = vmatprep.subr.mxu0 0.0
          %3849 = vmatpush2.msra.mxu0 0.0
          %3850 = vmatprep.subr.mxu0 0.0
          %3851 = vmatpush2.msra.mxu0 0.0
          %3852 = vmatprep.subr.mxu0 0.0
          %3853 = vmatpush2.msra.mxu0 0.0
          %3854 = vmatprep.subr.mxu0 0.0
          %3855 = vmatpush2.msra.mxu0 0.0
          %3856 = vmatprep.subr.mxu0 0.0
          %3857 = vmatpush2.msra.mxu0 0.0
          %3858 = vmatprep.subr.mxu0 0.0
          %3859 = vmatpush2.msra.mxu0 0.0
          %3860 = vmatprep.subr.mxu0 0.0
          %3861 = vmatpush2.msra.mxu0 0.0
          %3862 = vmatprep.subr.mxu0 0.0
          %3863 = vmatpush2.msra.mxu0 0.0
          %3864 = vmatprep.subr.mxu0 0.0
          %3865 = vmatpush2.msra.mxu0 0.0
          %3866 = vmatprep.subr.mxu0 0.0
          %3867 = vmatpush2.msra.mxu0 0.0
          %3868 = vmatprep.mubr.f32.mxu0 0.0
          %3869 = vmatmul.mubr.f32.gmra.mxu0 %v3571
          %v3870 = vpop.f32.mrf.mxu0
          %v3871 = vadd.f32 0.0, %v3870
          %v3872 = vpop.f32.mrf.mxu0
          %v3873 = vadd.f32 0.0, %v3872
          %3874 = vdwg.mxu0
          %v3883 = vcombine.low %v3658, %v3660
          %v3884 = vcombine.low %v3729, %v3731
          %v3885 = vcombine.low %v3800, %v3802
          %v3886 = vcombine.low %v3871, %v3873
          %v3888 = vunpack.c.l.s4 1966171168
          %v3889 = vunpack.c.0.s8 %v3888
          %v3890 = vlaneseq
          %v3891 = vshrl.u32 %v3890, 7
          %v3892 = vsub.s32 %v3889, %v3891
          %v3893 = vrot.slane %v3883, %v3892
          %v3895 = vunpack.c.l.s4 1966171168
          %v3896 = vunpack.c.0.s8 %v3895
          %v3897 = vlaneseq
          %v3898 = vshrl.u32 %v3897, 7
          %v3899 = vsub.s32 %v3896, %v3898
          %v3900 = vrot.slane %v3884, %v3899
          %v3902 = vunpack.c.l.s4 1966171168
          %v3903 = vunpack.c.0.s8 %v3902
          %v3904 = vlaneseq
          %v3905 = vshrl.u32 %v3904, 7
          %v3906 = vsub.s32 %v3903, %v3905
          %v3907 = vrot.slane %v3885, %v3906
          %v3909 = vunpack.c.l.s4 1966171168
          %v3910 = vunpack.c.0.s8 %v3909
          %v3911 = vlaneseq
          %v3912 = vshrl.u32 %v3911, 7
          %v3913 = vsub.s32 %v3910, %v3912
          %v3914 = vrot.slane %v3886, %v3913
          %v3915 = vcombine.low %v3893, %v3900
          %v3916 = vcombine.low %v3907, %v3914
          %v3918 = vunpack.c.l.s4 1966171168
          %v3919 = vunpack.c.0.s8 %v3918
          %v3920 = vlaneseq
          %v3921 = vshrl.u32 %v3920, 7
          %v3922 = vsub.s32 %v3919, %v3921
          %v3923 = vrot.slane %v3915, %v3922
          %v3925 = vunpack.c.l.s4 1966171168
          %v3926 = vunpack.c.0.s8 %v3925
          %v3927 = vlaneseq
          %v3928 = vshrl.u32 %v3927, 7
          %v3929 = vsub.s32 %v3926, %v3928
          %v3930 = vrot.slane %v3916, %v3929
          %v3931 = vcombine.low %v3923, %v3930
          %v3933 = vadd.f32 %v3590, %v3931
          %3934 = vst [vmem:[#allocation4] sm:$0xff] %v3933
          %3935 = vst.msk [vmem:[#allocation2] sm:$0x1] %vm3578, %v3556
        $region60: #{joint_abmil_forward.1} parent=47 // pred_fallthru
          _
        %p3936 = scmp.eq.s32.totalorder %s25, 1
        // Predicated region
        $region61: #{joint_abmil_forward.1} parent=47 // pred_check
          %p3937 = pneg %p3936
        $region62: #{joint_abmil_forward.1} parent=47 // pred_check_branch
          %3939 = sbr.rel (%p3937) target = $region64
        $region63: #{joint_abmil_forward.1} parent=47 // pred_region
          %v3940 = vld [vmem:[%s442] sm:$0xff]
          %v3941 = vld [vmem:[%s442 + $0x8] sm:$0xff]
          %v3942 = vld [vmem:[%s442 + $0x10] sm:$0xff]
          %v3943 = vld [vmem:[%s442 + $0x18] sm:$0xff]
          %v3944 = vld [vmem:[%s442 + $0x20] sm:$0xff]
          %v3945 = vld [vmem:[%s442 + $0x28] sm:$0xff]
          %v3946 = vld [vmem:[%s442 + $0x30] sm:$0xff]
          %v3947 = vld [vmem:[%s442 + $0x38] sm:$0xff]
          %v3948 = vld [vmem:[%s442 + $0x40] sm:$0xff]
          %v3949 = vld [vmem:[%s442 + $0x48] sm:$0xff]
          %v3950 = vld [vmem:[%s442 + $0x50] sm:$0xff]
          %v3951 = vld [vmem:[%s442 + $0x58] sm:$0xff]
          %v3952 = vld [vmem:[%s442 + $0x60] sm:$0xff]
          %v3953 = vld [vmem:[%s442 + $0x68] sm:$0xff]
          %v3954 = vld [vmem:[%s442 + $0x70] sm:$0xff]
          %v3955 = vld [vmem:[%s442 + $0x78] sm:$0xff]
          %v3956 = vld [vmem:[%s442 + $0x80] sm:$0xff]
          %v3957 = vld [vmem:[%s442 + $0x88] sm:$0xff]
          %v3958 = vld [vmem:[%s442 + $0x90] sm:$0xff]
          %v3959 = vld [vmem:[%s442 + $0x98] sm:$0xff]
          %v3960 = vld [vmem:[%s442 + $0xa0] sm:$0xff]
          %v3961 = vld [vmem:[%s442 + $0xa8] sm:$0xff]
          %v3962 = vld [vmem:[%s442 + $0xb0] sm:$0xff]
          %v3963 = vld [vmem:[%s442 + $0xb8] sm:$0xff]
          %v3964 = vld [vmem:[%s442 + $0xc0] sm:$0xff]
          %v3965 = vld [vmem:[%s442 + $0xc8] sm:$0xff]
          %v3966 = vld [vmem:[%s442 + $0xd0] sm:$0xff]
          %v3967 = vld [vmem:[%s442 + $0xd8] sm:$0xff]
          %v3968 = vld [vmem:[%s442 + $0xe0] sm:$0xff]
          %v3969 = vld [vmem:[%s442 + $0xe8] sm:$0xff]
          %v3970 = vld [vmem:[%s442 + $0xf0] sm:$0xff]
          %v3971 = vld [vmem:[%s442 + $0xf8] sm:$0xff]
          %v3972 = vld [vmem:[%s442 + $0x100] sm:$0xff]
          %v3973 = vld [vmem:[%s442 + $0x108] sm:$0xff]
          %v3974 = vld [vmem:[%s442 + $0x110] sm:$0xff]
          %v3975 = vld [vmem:[%s442 + $0x118] sm:$0xff]
          %v3976 = vld [vmem:[%s442 + $0x120] sm:$0xff]
          %v3977 = vld [vmem:[%s442 + $0x128] sm:$0xff]
          %v3978 = vld [vmem:[%s442 + $0x130] sm:$0xff]
          %v3979 = vld [vmem:[%s442 + $0x138] sm:$0xff]
          %v3980 = vld [vmem:[%s442 + $0x140] sm:$0xff]
          %v3981 = vld [vmem:[%s442 + $0x148] sm:$0xff]
          %v3982 = vld [vmem:[%s442 + $0x150] sm:$0xff]
          %v3983 = vld [vmem:[%s442 + $0x158] sm:$0xff]
          %v3984 = vld [vmem:[%s442 + $0x160] sm:$0xff]
          %v3985 = vld [vmem:[%s442 + $0x168] sm:$0xff]
          %v3986 = vld [vmem:[%s442 + $0x170] sm:$0xff]
          %v3987 = vld [vmem:[%s442 + $0x178] sm:$0xff]
          %v3988 = vld [vmem:[%s442 + $0x180] sm:$0xff]
          %v3989 = vld [vmem:[%s442 + $0x188] sm:$0xff]
          %v3990 = vld [vmem:[%s442 + $0x190] sm:$0xff]
          %v3991 = vld [vmem:[%s442 + $0x198] sm:$0xff]
          %v3992 = vld [vmem:[%s442 + $0x1a0] sm:$0xff]
          %v3993 = vld [vmem:[%s442 + $0x1a8] sm:$0xff]
          %v3994 = vld [vmem:[%s442 + $0x1b0] sm:$0xff]
          %v3995 = vld [vmem:[%s442 + $0x1b8] sm:$0xff]
          %v3996 = vld [vmem:[%s442 + $0x1c0] sm:$0xff]
          %v3997 = vld [vmem:[%s442 + $0x1c8] sm:$0xff]
          %v3998 = vld [vmem:[%s442 + $0x1d0] sm:$0xff]
          %v3999 = vld [vmem:[%s442 + $0x1d8] sm:$0xff]
          %v4000 = vld [vmem:[%s442 + $0x1e0] sm:$0xff]
          %v4001 = vld [vmem:[%s442 + $0x1e8] sm:$0xff]
          %v4002 = vld [vmem:[%s442 + $0x1f0] sm:$0xff]
          %v4003 = vld [vmem:[%s442 + $0x1f8] sm:$0xff]
          %v4004 = vld [vmem:[%s442 + $0x200] sm:$0xff]
          %v4005 = vld [vmem:[%s442 + $0x208] sm:$0xff]
          %v4006 = vld [vmem:[%s442 + $0x210] sm:$0xff]
          %v4007 = vld [vmem:[%s442 + $0x218] sm:$0xff]
          %v4008 = vld [vmem:[%s442 + $0x220] sm:$0xff]
          %v4009 = vld [vmem:[%s442 + $0x228] sm:$0xff]
          %v4010 = vld [vmem:[%s442 + $0x230] sm:$0xff]
          %v4011 = vld [vmem:[%s442 + $0x238] sm:$0xff]
          %v4012 = vld [vmem:[%s442 + $0x240] sm:$0xff]
          %v4013 = vld [vmem:[%s442 + $0x248] sm:$0xff]
          %v4014 = vld [vmem:[%s442 + $0x250] sm:$0xff]
          %v4015 = vld [vmem:[%s442 + $0x258] sm:$0xff]
          %v4016 = vld [vmem:[%s442 + $0x260] sm:$0xff]
          %v4017 = vld [vmem:[%s442 + $0x268] sm:$0xff]
          %v4018 = vld [vmem:[%s442 + $0x270] sm:$0xff]
          %v4019 = vld [vmem:[%s442 + $0x278] sm:$0xff]
          %v4020 = vld [vmem:[%s442 + $0x280] sm:$0xff]
          %v4021 = vld [vmem:[%s442 + $0x288] sm:$0xff]
          %v4022 = vld [vmem:[%s442 + $0x290] sm:$0xff]
          %v4023 = vld [vmem:[%s442 + $0x298] sm:$0xff]
          %v4024 = vld [vmem:[%s442 + $0x2a0] sm:$0xff]
          %v4025 = vld [vmem:[%s442 + $0x2a8] sm:$0xff]
          %v4026 = vld [vmem:[%s442 + $0x2b0] sm:$0xff]
          %v4027 = vld [vmem:[%s442 + $0x2b8] sm:$0xff]
          %v4028 = vld [vmem:[%s442 + $0x2c0] sm:$0xff]
          %v4029 = vld [vmem:[%s442 + $0x2c8] sm:$0xff]
          %v4030 = vld [vmem:[%s442 + $0x2d0] sm:$0xff]
          %v4031 = vld [vmem:[%s442 + $0x2d8] sm:$0xff]
          %v4032 = vld [vmem:[%s442 + $0x2e0] sm:$0xff]
          %v4033 = vld [vmem:[%s442 + $0x2e8] sm:$0xff]
          %v4034 = vld [vmem:[%s442 + $0x2f0] sm:$0xff]
          %v4035 = vld [vmem:[%s442 + $0x2f8] sm:$0xff]
          %v4036 = vld [vmem:[%s442 + $0x300] sm:$0xff]
          %v4037 = vld [vmem:[%s442 + $0x308] sm:$0xff]
          %v4038 = vld [vmem:[%s442 + $0x310] sm:$0xff]
          %v4039 = vld [vmem:[%s442 + $0x318] sm:$0xff]
          %v4040 = vld [vmem:[%s442 + $0x320] sm:$0xff]
          %v4041 = vld [vmem:[%s442 + $0x328] sm:$0xff]
          %v4042 = vld [vmem:[%s442 + $0x330] sm:$0xff]
          %v4043 = vld [vmem:[%s442 + $0x338] sm:$0xff]
          %v4044 = vld [vmem:[%s442 + $0x340] sm:$0xff]
          %v4045 = vld [vmem:[%s442 + $0x348] sm:$0xff]
          %v4046 = vld [vmem:[%s442 + $0x350] sm:$0xff]
          %v4047 = vld [vmem:[%s442 + $0x358] sm:$0xff]
          %v4048 = vld [vmem:[%s442 + $0x360] sm:$0xff]
          %v4049 = vld [vmem:[%s442 + $0x368] sm:$0xff]
          %v4050 = vld [vmem:[%s442 + $0x370] sm:$0xff]
          %v4051 = vld [vmem:[%s442 + $0x378] sm:$0xff]
          %v4052 = vld [vmem:[%s442 + $0x380] sm:$0xff]
          %v4053 = vld [vmem:[%s442 + $0x388] sm:$0xff]
          %v4054 = vld [vmem:[%s442 + $0x390] sm:$0xff]
          %v4055 = vld [vmem:[%s442 + $0x398] sm:$0xff]
          %v4056 = vld [vmem:[%s442 + $0x3a0] sm:$0xff]
          %v4057 = vld [vmem:[%s442 + $0x3a8] sm:$0xff]
          %v4058 = vld [vmem:[%s442 + $0x3b0] sm:$0xff]
          %v4059 = vld [vmem:[%s442 + $0x3b8] sm:$0xff]
          %v4060 = vld [vmem:[%s442 + $0x3c0] sm:$0xff]
          %v4061 = vld [vmem:[%s442 + $0x3c8] sm:$0xff]
          %v4062 = vld [vmem:[%s442 + $0x3d0] sm:$0xff]
          %v4063 = vld [vmem:[%s442 + $0x3d8] sm:$0xff]
          %v4064 = vld [vmem:[%s442 + $0x3e0] sm:$0xff]
          %v4065 = vld [vmem:[%s442 + $0x3e8] sm:$0xff]
          %v4066 = vld [vmem:[%s442 + $0x3f0] sm:$0xff]
          %v4067 = vld [vmem:[%s442 + $0x3f8] sm:$0xff]
          %v4068 = vpack.c.bf16 %v3948, %v3940
          %v4069 = vpack.c.bf16 %v3949, %v3941
          %v4070 = vpack.c.bf16 %v3950, %v3942
          %v4071 = vpack.c.bf16 %v3951, %v3943
          %v4072 = vpack.c.bf16 %v3952, %v3944
          %v4073 = vpack.c.bf16 %v3953, %v3945
          %v4074 = vpack.c.bf16 %v3954, %v3946
          %v4075 = vpack.c.bf16 %v3955, %v3947
          %v4076 = vpack.c.bf16 %v3964, %v3956
          %v4077 = vpack.c.bf16 %v3965, %v3957
          %v4078 = vpack.c.bf16 %v3966, %v3958
          %v4079 = vpack.c.bf16 %v3967, %v3959
          %v4080 = vpack.c.bf16 %v3968, %v3960
          %v4081 = vpack.c.bf16 %v3969, %v3961
          %v4082 = vpack.c.bf16 %v3970, %v3962
          %v4083 = vpack.c.bf16 %v3971, %v3963
          %v4084 = vpack.c.bf16 %v3980, %v3972
          %v4085 = vpack.c.bf16 %v3981, %v3973
          %v4086 = vpack.c.bf16 %v3982, %v3974
          %v4087 = vpack.c.bf16 %v3983, %v3975
          %v4088 = vpack.c.bf16 %v3984, %v3976
          %v4089 = vpack.c.bf16 %v3985, %v3977
          %v4090 = vpack.c.bf16 %v3986, %v3978
          %v4091 = vpack.c.bf16 %v3987, %v3979
          %v4092 = vpack.c.bf16 %v3996, %v3988
          %v4093 = vpack.c.bf16 %v3997, %v3989
          %v4094 = vpack.c.bf16 %v3998, %v3990
          %v4095 = vpack.c.bf16 %v3999, %v3991
          %v4096 = vpack.c.bf16 %v4000, %v3992
          %v4097 = vpack.c.bf16 %v4001, %v3993
          %v4098 = vpack.c.bf16 %v4002, %v3994
          %v4099 = vpack.c.bf16 %v4003, %v3995
          %v4100 = vpack.c.bf16 %v4012, %v4004
          %v4101 = vpack.c.bf16 %v4013, %v4005
          %v4102 = vpack.c.bf16 %v4014, %v4006
          %v4103 = vpack.c.bf16 %v4015, %v4007
          %v4104 = vpack.c.bf16 %v4016, %v4008
          %v4105 = vpack.c.bf16 %v4017, %v4009
          %v4106 = vpack.c.bf16 %v4018, %v4010
          %v4107 = vpack.c.bf16 %v4019, %v4011
          %v4108 = vpack.c.bf16 %v4028, %v4020
          %v4109 = vpack.c.bf16 %v4029, %v4021
          %v4110 = vpack.c.bf16 %v4030, %v4022
          %v4111 = vpack.c.bf16 %v4031, %v4023
          %v4112 = vpack.c.bf16 %v4032, %v4024
          %v4113 = vpack.c.bf16 %v4033, %v4025
          %v4114 = vpack.c.bf16 %v4034, %v4026
          %v4115 = vpack.c.bf16 %v4035, %v4027
          %v4116 = vpack.c.bf16 %v4044, %v4036
          %v4117 = vpack.c.bf16 %v4045, %v4037
          %v4118 = vpack.c.bf16 %v4046, %v4038
          %v4119 = vpack.c.bf16 %v4047, %v4039
          %v4120 = vpack.c.bf16 %v4048, %v4040
          %v4121 = vpack.c.bf16 %v4049, %v4041
          %v4122 = vpack.c.bf16 %v4050, %v4042
          %v4123 = vpack.c.bf16 %v4051, %v4043
          %v4124 = vpack.c.bf16 %v4060, %v4052
          %v4125 = vpack.c.bf16 %v4061, %v4053
          %v4126 = vpack.c.bf16 %v4062, %v4054
          %v4127 = vpack.c.bf16 %v4063, %v4055
          %v4128 = vpack.c.bf16 %v4064, %v4056
          %v4129 = vpack.c.bf16 %v4065, %v4057
          %v4130 = vpack.c.bf16 %v4066, %v4058
          %v4131 = vpack.c.bf16 %v4067, %v4059
          %v4132 = vld [vmem:[%s449] sm:$0xff]
          %v4133 = vld [vmem:[%s449 + $0x8] sm:$0xff]
          %v4134 = vld [vmem:[%s449 + $0x10] sm:$0xff]
          %v4135 = vld [vmem:[%s449 + $0x18] sm:$0xff]
          %v4136 = vld [vmem:[%s449 + $0x20] sm:$0xff]
          %v4137 = vld [vmem:[%s449 + $0x28] sm:$0xff]
          %v4138 = vld [vmem:[%s449 + $0x30] sm:$0xff]
          %v4139 = vld [vmem:[%s449 + $0x38] sm:$0xff]
          %v4140 = vld [vmem:[%s449 + $0x40] sm:$0xff]
          %v4141 = vld [vmem:[%s449 + $0x48] sm:$0xff]
          %v4142 = vld [vmem:[%s449 + $0x50] sm:$0xff]
          %v4143 = vld [vmem:[%s449 + $0x58] sm:$0xff]
          %v4144 = vld [vmem:[%s449 + $0x60] sm:$0xff]
          %v4145 = vld [vmem:[%s449 + $0x68] sm:$0xff]
          %v4146 = vld [vmem:[%s449 + $0x70] sm:$0xff]
          %v4147 = vld [vmem:[%s449 + $0x78] sm:$0xff]
          %v4148 = vld [vmem:[%s449 + $0x80] sm:$0xff]
          %v4149 = vld [vmem:[%s449 + $0x88] sm:$0xff]
          %v4150 = vld [vmem:[%s449 + $0x90] sm:$0xff]
          %v4151 = vld [vmem:[%s449 + $0x98] sm:$0xff]
          %v4152 = vld [vmem:[%s449 + $0xa0] sm:$0xff]
          %v4153 = vld [vmem:[%s449 + $0xa8] sm:$0xff]
          %v4154 = vld [vmem:[%s449 + $0xb0] sm:$0xff]
          %v4155 = vld [vmem:[%s449 + $0xb8] sm:$0xff]
          %v4156 = vld [vmem:[%s449 + $0xc0] sm:$0xff]
          %v4157 = vld [vmem:[%s449 + $0xc8] sm:$0xff]
          %v4158 = vld [vmem:[%s449 + $0xd0] sm:$0xff]
          %v4159 = vld [vmem:[%s449 + $0xd8] sm:$0xff]
          %v4160 = vld [vmem:[%s449 + $0xe0] sm:$0xff]
          %v4161 = vld [vmem:[%s449 + $0xe8] sm:$0xff]
          %v4162 = vld [vmem:[%s449 + $0xf0] sm:$0xff]
          %v4163 = vld [vmem:[%s449 + $0xf8] sm:$0xff]
          %v4164 = vld [vmem:[%s449 + $0x100] sm:$0xff]
          %v4165 = vld [vmem:[%s449 + $0x108] sm:$0xff]
          %v4166 = vld [vmem:[%s449 + $0x110] sm:$0xff]
          %v4167 = vld [vmem:[%s449 + $0x118] sm:$0xff]
          %v4168 = vld [vmem:[%s449 + $0x120] sm:$0xff]
          %v4169 = vld [vmem:[%s449 + $0x128] sm:$0xff]
          %v4170 = vld [vmem:[%s449 + $0x130] sm:$0xff]
          %v4171 = vld [vmem:[%s449 + $0x138] sm:$0xff]
          %v4172 = vld [vmem:[%s449 + $0x140] sm:$0xff]
          %v4173 = vld [vmem:[%s449 + $0x148] sm:$0xff]
          %v4174 = vld [vmem:[%s449 + $0x150] sm:$0xff]
          %v4175 = vld [vmem:[%s449 + $0x158] sm:$0xff]
          %v4176 = vld [vmem:[%s449 + $0x160] sm:$0xff]
          %v4177 = vld [vmem:[%s449 + $0x168] sm:$0xff]
          %v4178 = vld [vmem:[%s449 + $0x170] sm:$0xff]
          %v4179 = vld [vmem:[%s449 + $0x178] sm:$0xff]
          %v4180 = vld [vmem:[%s449 + $0x180] sm:$0xff]
          %v4181 = vld [vmem:[%s449 + $0x188] sm:$0xff]
          %v4182 = vld [vmem:[%s449 + $0x190] sm:$0xff]
          %v4183 = vld [vmem:[%s449 + $0x198] sm:$0xff]
          %v4184 = vld [vmem:[%s449 + $0x1a0] sm:$0xff]
          %v4185 = vld [vmem:[%s449 + $0x1a8] sm:$0xff]
          %v4186 = vld [vmem:[%s449 + $0x1b0] sm:$0xff]
          %v4187 = vld [vmem:[%s449 + $0x1b8] sm:$0xff]
          %v4188 = vld [vmem:[%s449 + $0x1c0] sm:$0xff]
          %v4189 = vld [vmem:[%s449 + $0x1c8] sm:$0xff]
          %v4190 = vld [vmem:[%s449 + $0x1d0] sm:$0xff]
          %v4191 = vld [vmem:[%s449 + $0x1d8] sm:$0xff]
          %v4192 = vld [vmem:[%s449 + $0x1e0] sm:$0xff]
          %v4193 = vld [vmem:[%s449 + $0x1e8] sm:$0xff]
          %v4194 = vld [vmem:[%s449 + $0x1f0] sm:$0xff]
          %v4195 = vld [vmem:[%s449 + $0x1f8] sm:$0xff]
          %v4196 = vld [vmem:[%s449 + $0x200] sm:$0xff]
          %v4197 = vld [vmem:[%s449 + $0x208] sm:$0xff]
          %v4198 = vld [vmem:[%s449 + $0x210] sm:$0xff]
          %v4199 = vld [vmem:[%s449 + $0x218] sm:$0xff]
          %v4200 = vld [vmem:[%s449 + $0x220] sm:$0xff]
          %v4201 = vld [vmem:[%s449 + $0x228] sm:$0xff]
          %v4202 = vld [vmem:[%s449 + $0x230] sm:$0xff]
          %v4203 = vld [vmem:[%s449 + $0x238] sm:$0xff]
          %v4204 = vld [vmem:[%s449 + $0x240] sm:$0xff]
          %v4205 = vld [vmem:[%s449 + $0x248] sm:$0xff]
          %v4206 = vld [vmem:[%s449 + $0x250] sm:$0xff]
          %v4207 = vld [vmem:[%s449 + $0x258] sm:$0xff]
          %v4208 = vld [vmem:[%s449 + $0x260] sm:$0xff]
          %v4209 = vld [vmem:[%s449 + $0x268] sm:$0xff]
          %v4210 = vld [vmem:[%s449 + $0x270] sm:$0xff]
          %v4211 = vld [vmem:[%s449 + $0x278] sm:$0xff]
          %v4212 = vld [vmem:[%s449 + $0x280] sm:$0xff]
          %v4213 = vld [vmem:[%s449 + $0x288] sm:$0xff]
          %v4214 = vld [vmem:[%s449 + $0x290] sm:$0xff]
          %v4215 = vld [vmem:[%s449 + $0x298] sm:$0xff]
          %v4216 = vld [vmem:[%s449 + $0x2a0] sm:$0xff]
          %v4217 = vld [vmem:[%s449 + $0x2a8] sm:$0xff]
          %v4218 = vld [vmem:[%s449 + $0x2b0] sm:$0xff]
          %v4219 = vld [vmem:[%s449 + $0x2b8] sm:$0xff]
          %v4220 = vld [vmem:[%s449 + $0x2c0] sm:$0xff]
          %v4221 = vld [vmem:[%s449 + $0x2c8] sm:$0xff]
          %v4222 = vld [vmem:[%s449 + $0x2d0] sm:$0xff]
          %v4223 = vld [vmem:[%s449 + $0x2d8] sm:$0xff]
          %v4224 = vld [vmem:[%s449 + $0x2e0] sm:$0xff]
          %v4225 = vld [vmem:[%s449 + $0x2e8] sm:$0xff]
          %v4226 = vld [vmem:[%s449 + $0x2f0] sm:$0xff]
          %v4227 = vld [vmem:[%s449 + $0x2f8] sm:$0xff]
          %v4228 = vld [vmem:[%s449 + $0x300] sm:$0xff]
          %v4229 = vld [vmem:[%s449 + $0x308] sm:$0xff]
          %v4230 = vld [vmem:[%s449 + $0x310] sm:$0xff]
          %v4231 = vld [vmem:[%s449 + $0x318] sm:$0xff]
          %v4232 = vld [vmem:[%s449 + $0x320] sm:$0xff]
          %v4233 = vld [vmem:[%s449 + $0x328] sm:$0xff]
          %v4234 = vld [vmem:[%s449 + $0x330] sm:$0xff]
          %v4235 = vld [vmem:[%s449 + $0x338] sm:$0xff]
          %v4236 = vld [vmem:[%s449 + $0x340] sm:$0xff]
          %v4237 = vld [vmem:[%s449 + $0x348] sm:$0xff]
          %v4238 = vld [vmem:[%s449 + $0x350] sm:$0xff]
          %v4239 = vld [vmem:[%s449 + $0x358] sm:$0xff]
          %v4240 = vld [vmem:[%s449 + $0x360] sm:$0xff]
          %v4241 = vld [vmem:[%s449 + $0x368] sm:$0xff]
          %v4242 = vld [vmem:[%s449 + $0x370] sm:$0xff]
          %v4243 = vld [vmem:[%s449 + $0x378] sm:$0xff]
          %v4244 = vld [vmem:[%s449 + $0x380] sm:$0xff]
          %v4245 = vld [vmem:[%s449 + $0x388] sm:$0xff]
          %v4246 = vld [vmem:[%s449 + $0x390] sm:$0xff]
          %v4247 = vld [vmem:[%s449 + $0x398] sm:$0xff]
          %v4248 = vld [vmem:[%s449 + $0x3a0] sm:$0xff]
          %v4249 = vld [vmem:[%s449 + $0x3a8] sm:$0xff]
          %v4250 = vld [vmem:[%s449 + $0x3b0] sm:$0xff]
          %v4251 = vld [vmem:[%s449 + $0x3b8] sm:$0xff]
          %v4252 = vld [vmem:[%s449 + $0x3c0] sm:$0xff]
          %v4253 = vld [vmem:[%s449 + $0x3c8] sm:$0xff]
          %v4254 = vld [vmem:[%s449 + $0x3d0] sm:$0xff]
          %v4255 = vld [vmem:[%s449 + $0x3d8] sm:$0xff]
          %v4256 = vld [vmem:[%s449 + $0x3e0] sm:$0xff]
          %v4257 = vld [vmem:[%s449 + $0x3e8] sm:$0xff]
          %v4258 = vld [vmem:[%s449 + $0x3f0] sm:$0xff]
          %v4259 = vld [vmem:[%s449 + $0x3f8] sm:$0xff]
          %v4260 = vld [vmem:[%s449 + $0x400] sm:$0xff]
          %v4261 = vld [vmem:[%s449 + $0x408] sm:$0xff]
          %v4262 = vld [vmem:[%s449 + $0x410] sm:$0xff]
          %v4263 = vld [vmem:[%s449 + $0x418] sm:$0xff]
          %v4264 = vld [vmem:[%s449 + $0x420] sm:$0xff]
          %v4265 = vld [vmem:[%s449 + $0x428] sm:$0xff]
          %v4266 = vld [vmem:[%s449 + $0x430] sm:$0xff]
          %v4267 = vld [vmem:[%s449 + $0x438] sm:$0xff]
          %v4268 = vld [vmem:[%s449 + $0x440] sm:$0xff]
          %v4269 = vld [vmem:[%s449 + $0x448] sm:$0xff]
          %v4270 = vld [vmem:[%s449 + $0x450] sm:$0xff]
          %v4271 = vld [vmem:[%s449 + $0x458] sm:$0xff]
          %v4272 = vld [vmem:[%s449 + $0x460] sm:$0xff]
          %v4273 = vld [vmem:[%s449 + $0x468] sm:$0xff]
          %v4274 = vld [vmem:[%s449 + $0x470] sm:$0xff]
          %v4275 = vld [vmem:[%s449 + $0x478] sm:$0xff]
          %v4276 = vld [vmem:[%s449 + $0x480] sm:$0xff]
          %v4277 = vld [vmem:[%s449 + $0x488] sm:$0xff]
          %v4278 = vld [vmem:[%s449 + $0x490] sm:$0xff]
          %v4279 = vld [vmem:[%s449 + $0x498] sm:$0xff]
          %v4280 = vld [vmem:[%s449 + $0x4a0] sm:$0xff]
          %v4281 = vld [vmem:[%s449 + $0x4a8] sm:$0xff]
          %v4282 = vld [vmem:[%s449 + $0x4b0] sm:$0xff]
          %v4283 = vld [vmem:[%s449 + $0x4b8] sm:$0xff]
          %v4284 = vld [vmem:[%s449 + $0x4c0] sm:$0xff]
          %v4285 = vld [vmem:[%s449 + $0x4c8] sm:$0xff]
          %v4286 = vld [vmem:[%s449 + $0x4d0] sm:$0xff]
          %v4287 = vld [vmem:[%s449 + $0x4d8] sm:$0xff]
          %v4288 = vld [vmem:[%s449 + $0x4e0] sm:$0xff]
          %v4289 = vld [vmem:[%s449 + $0x4e8] sm:$0xff]
          %v4290 = vld [vmem:[%s449 + $0x4f0] sm:$0xff]
          %v4291 = vld [vmem:[%s449 + $0x4f8] sm:$0xff]
          %v4292 = vld [vmem:[%s449 + $0x500] sm:$0xff]
          %v4293 = vld [vmem:[%s449 + $0x508] sm:$0xff]
          %v4294 = vld [vmem:[%s449 + $0x510] sm:$0xff]
          %v4295 = vld [vmem:[%s449 + $0x518] sm:$0xff]
          %v4296 = vld [vmem:[%s449 + $0x520] sm:$0xff]
          %v4297 = vld [vmem:[%s449 + $0x528] sm:$0xff]
          %v4298 = vld [vmem:[%s449 + $0x530] sm:$0xff]
          %v4299 = vld [vmem:[%s449 + $0x538] sm:$0xff]
          %v4300 = vld [vmem:[%s449 + $0x540] sm:$0xff]
          %v4301 = vld [vmem:[%s449 + $0x548] sm:$0xff]
          %v4302 = vld [vmem:[%s449 + $0x550] sm:$0xff]
          %v4303 = vld [vmem:[%s449 + $0x558] sm:$0xff]
          %v4304 = vld [vmem:[%s449 + $0x560] sm:$0xff]
          %v4305 = vld [vmem:[%s449 + $0x568] sm:$0xff]
          %v4306 = vld [vmem:[%s449 + $0x570] sm:$0xff]
          %v4307 = vld [vmem:[%s449 + $0x578] sm:$0xff]
          %v4308 = vld [vmem:[%s449 + $0x580] sm:$0xff]
          %v4309 = vld [vmem:[%s449 + $0x588] sm:$0xff]
          %v4310 = vld [vmem:[%s449 + $0x590] sm:$0xff]
          %v4311 = vld [vmem:[%s449 + $0x598] sm:$0xff]
          %v4312 = vld [vmem:[%s449 + $0x5a0] sm:$0xff]
          %v4313 = vld [vmem:[%s449 + $0x5a8] sm:$0xff]
          %v4314 = vld [vmem:[%s449 + $0x5b0] sm:$0xff]
          %v4315 = vld [vmem:[%s449 + $0x5b8] sm:$0xff]
          %v4316 = vld [vmem:[%s449 + $0x5c0] sm:$0xff]
          %v4317 = vld [vmem:[%s449 + $0x5c8] sm:$0xff]
          %v4318 = vld [vmem:[%s449 + $0x5d0] sm:$0xff]
          %v4319 = vld [vmem:[%s449 + $0x5d8] sm:$0xff]
          %v4320 = vld [vmem:[%s449 + $0x5e0] sm:$0xff]
          %v4321 = vld [vmem:[%s449 + $0x5e8] sm:$0xff]
          %v4322 = vld [vmem:[%s449 + $0x5f0] sm:$0xff]
          %v4323 = vld [vmem:[%s449 + $0x5f8] sm:$0xff]
          %v4324 = vld [vmem:[%s449 + $0x600] sm:$0xff]
          %v4325 = vld [vmem:[%s449 + $0x608] sm:$0xff]
          %v4326 = vld [vmem:[%s449 + $0x610] sm:$0xff]
          %v4327 = vld [vmem:[%s449 + $0x618] sm:$0xff]
          %v4328 = vld [vmem:[%s449 + $0x620] sm:$0xff]
          %v4329 = vld [vmem:[%s449 + $0x628] sm:$0xff]
          %v4330 = vld [vmem:[%s449 + $0x630] sm:$0xff]
          %v4331 = vld [vmem:[%s449 + $0x638] sm:$0xff]
          %v4332 = vld [vmem:[%s449 + $0x640] sm:$0xff]
          %v4333 = vld [vmem:[%s449 + $0x648] sm:$0xff]
          %v4334 = vld [vmem:[%s449 + $0x650] sm:$0xff]
          %v4335 = vld [vmem:[%s449 + $0x658] sm:$0xff]
          %v4336 = vld [vmem:[%s449 + $0x660] sm:$0xff]
          %v4337 = vld [vmem:[%s449 + $0x668] sm:$0xff]
          %v4338 = vld [vmem:[%s449 + $0x670] sm:$0xff]
          %v4339 = vld [vmem:[%s449 + $0x678] sm:$0xff]
          %v4340 = vld [vmem:[%s449 + $0x680] sm:$0xff]
          %v4341 = vld [vmem:[%s449 + $0x688] sm:$0xff]
          %v4342 = vld [vmem:[%s449 + $0x690] sm:$0xff]
          %v4343 = vld [vmem:[%s449 + $0x698] sm:$0xff]
          %v4344 = vld [vmem:[%s449 + $0x6a0] sm:$0xff]
          %v4345 = vld [vmem:[%s449 + $0x6a8] sm:$0xff]
          %v4346 = vld [vmem:[%s449 + $0x6b0] sm:$0xff]
          %v4347 = vld [vmem:[%s449 + $0x6b8] sm:$0xff]
          %v4348 = vld [vmem:[%s449 + $0x6c0] sm:$0xff]
          %v4349 = vld [vmem:[%s449 + $0x6c8] sm:$0xff]
          %v4350 = vld [vmem:[%s449 + $0x6d0] sm:$0xff]
          %v4351 = vld [vmem:[%s449 + $0x6d8] sm:$0xff]
          %v4352 = vld [vmem:[%s449 + $0x6e0] sm:$0xff]
          %v4353 = vld [vmem:[%s449 + $0x6e8] sm:$0xff]
          %v4354 = vld [vmem:[%s449 + $0x6f0] sm:$0xff]
          %v4355 = vld [vmem:[%s449 + $0x6f8] sm:$0xff]
          %v4356 = vld [vmem:[%s449 + $0x700] sm:$0xff]
          %v4357 = vld [vmem:[%s449 + $0x708] sm:$0xff]
          %v4358 = vld [vmem:[%s449 + $0x710] sm:$0xff]
          %v4359 = vld [vmem:[%s449 + $0x718] sm:$0xff]
          %v4360 = vld [vmem:[%s449 + $0x720] sm:$0xff]
          %v4361 = vld [vmem:[%s449 + $0x728] sm:$0xff]
          %v4362 = vld [vmem:[%s449 + $0x730] sm:$0xff]
          %v4363 = vld [vmem:[%s449 + $0x738] sm:$0xff]
          %v4364 = vld [vmem:[%s449 + $0x740] sm:$0xff]
          %v4365 = vld [vmem:[%s449 + $0x748] sm:$0xff]
          %v4366 = vld [vmem:[%s449 + $0x750] sm:$0xff]
          %v4367 = vld [vmem:[%s449 + $0x758] sm:$0xff]
          %v4368 = vld [vmem:[%s449 + $0x760] sm:$0xff]
          %v4369 = vld [vmem:[%s449 + $0x768] sm:$0xff]
          %v4370 = vld [vmem:[%s449 + $0x770] sm:$0xff]
          %v4371 = vld [vmem:[%s449 + $0x778] sm:$0xff]
          %v4372 = vld [vmem:[%s449 + $0x780] sm:$0xff]
          %v4373 = vld [vmem:[%s449 + $0x788] sm:$0xff]
          %v4374 = vld [vmem:[%s449 + $0x790] sm:$0xff]
          %v4375 = vld [vmem:[%s449 + $0x798] sm:$0xff]
          %v4376 = vld [vmem:[%s449 + $0x7a0] sm:$0xff]
          %v4377 = vld [vmem:[%s449 + $0x7a8] sm:$0xff]
          %v4378 = vld [vmem:[%s449 + $0x7b0] sm:$0xff]
          %v4379 = vld [vmem:[%s449 + $0x7b8] sm:$0xff]
          %v4380 = vld [vmem:[%s449 + $0x7c0] sm:$0xff]
          %v4381 = vld [vmem:[%s449 + $0x7c8] sm:$0xff]
          %v4382 = vld [vmem:[%s449 + $0x7d0] sm:$0xff]
          %v4383 = vld [vmem:[%s449 + $0x7d8] sm:$0xff]
          %v4384 = vld [vmem:[%s449 + $0x7e0] sm:$0xff]
          %v4385 = vld [vmem:[%s449 + $0x7e8] sm:$0xff]
          %v4386 = vld [vmem:[%s449 + $0x7f0] sm:$0xff]
          %v4387 = vld [vmem:[%s449 + $0x7f8] sm:$0xff]
          %v4388 = vld [vmem:[%s453] sm:$0xf]
          %v4390 = vlaneseq
          %v4391 = vshrl.u32 %v4390, 7
          %v4392 = vsub.s32 0, %v4391
          %v4393 = vrot.slane %v4388, %v4392
          %v4394 = vlaneseq
          %v4395 = vshrl.u32 %v4394, 7
          %v4396 = vsub.s32 1, %v4395
          %v4397 = vrot.slane %v4388, %v4396
          %v4398 = vlaneseq
          %v4399 = vshrl.u32 %v4398, 7
          %v4400 = vsub.s32 2, %v4399
          %v4401 = vrot.slane %v4388, %v4400
          %v4402 = vlaneseq
          %v4403 = vshrl.u32 %v4402, 7
          %v4404 = vsub.s32 3, %v4403
          %v4405 = vrot.slane %v4388, %v4404
          %v4666 = vunpack.c.l.b16 %v4132
          %v4667 = vunpack.c.h.b16 %v4132
          %v4668 = vunpack.c.l.b16 %v4133
          %v4669 = vunpack.c.h.b16 %v4133
          %v4670 = vunpack.c.l.b16 %v4134
          %v4671 = vunpack.c.h.b16 %v4134
          %v4672 = vunpack.c.l.b16 %v4135
          %v4673 = vunpack.c.h.b16 %v4135
          %v4674 = vunpack.c.l.b16 %v4136
          %v4675 = vunpack.c.h.b16 %v4136
          %v4676 = vunpack.c.l.b16 %v4137
          %v4677 = vunpack.c.h.b16 %v4137
          %v4678 = vunpack.c.l.b16 %v4138
          %v4679 = vunpack.c.h.b16 %v4138
          %v4680 = vunpack.c.l.b16 %v4139
          %v4681 = vunpack.c.h.b16 %v4139
          %v4682 = vunpack.c.l.b16 %v4140
          %v4683 = vunpack.c.h.b16 %v4140
          %v4684 = vunpack.c.l.b16 %v4141
          %v4685 = vunpack.c.h.b16 %v4141
          %v4686 = vunpack.c.l.b16 %v4142
          %v4687 = vunpack.c.h.b16 %v4142
          %v4688 = vunpack.c.l.b16 %v4143
          %v4689 = vunpack.c.h.b16 %v4143
          %v4690 = vunpack.c.l.b16 %v4144
          %v4691 = vunpack.c.h.b16 %v4144
          %v4692 = vunpack.c.l.b16 %v4145
          %v4693 = vunpack.c.h.b16 %v4145
          %v4694 = vunpack.c.l.b16 %v4146
          %v4695 = vunpack.c.h.b16 %v4146
          %v4696 = vunpack.c.l.b16 %v4147
          %v4697 = vunpack.c.h.b16 %v4147
          %v4698 = vunpack.c.l.b16 %v4148
          %v4699 = vunpack.c.h.b16 %v4148
          %v4700 = vunpack.c.l.b16 %v4149
          %v4701 = vunpack.c.h.b16 %v4149
          %v4702 = vunpack.c.l.b16 %v4150
          %v4703 = vunpack.c.h.b16 %v4150
          %v4704 = vunpack.c.l.b16 %v4151
          %v4705 = vunpack.c.h.b16 %v4151
          %v4706 = vunpack.c.l.b16 %v4152
          %v4707 = vunpack.c.h.b16 %v4152
          %v4708 = vunpack.c.l.b16 %v4153
          %v4709 = vunpack.c.h.b16 %v4153
          %v4710 = vunpack.c.l.b16 %v4154
          %v4711 = vunpack.c.h.b16 %v4154
          %v4712 = vunpack.c.l.b16 %v4155
          %v4713 = vunpack.c.h.b16 %v4155
          %v4714 = vunpack.c.l.b16 %v4156
          %v4715 = vunpack.c.h.b16 %v4156
          %v4716 = vunpack.c.l.b16 %v4157
          %v4717 = vunpack.c.h.b16 %v4157
          %v4718 = vunpack.c.l.b16 %v4158
          %v4719 = vunpack.c.h.b16 %v4158
          %v4720 = vunpack.c.l.b16 %v4159
          %v4721 = vunpack.c.h.b16 %v4159
          %v4722 = vunpack.c.l.b16 %v4160
          %v4723 = vunpack.c.h.b16 %v4160
          %v4724 = vunpack.c.l.b16 %v4161
          %v4725 = vunpack.c.h.b16 %v4161
          %v4726 = vunpack.c.l.b16 %v4162
          %v4727 = vunpack.c.h.b16 %v4162
          %v4728 = vunpack.c.l.b16 %v4163
          %v4729 = vunpack.c.h.b16 %v4163
          %v4730 = vunpack.c.l.b16 %v4164
          %v4731 = vunpack.c.h.b16 %v4164
          %v4732 = vunpack.c.l.b16 %v4165
          %v4733 = vunpack.c.h.b16 %v4165
          %v4734 = vunpack.c.l.b16 %v4166
          %v4735 = vunpack.c.h.b16 %v4166
          %v4736 = vunpack.c.l.b16 %v4167
          %v4737 = vunpack.c.h.b16 %v4167
          %v4738 = vunpack.c.l.b16 %v4168
          %v4739 = vunpack.c.h.b16 %v4168
          %v4740 = vunpack.c.l.b16 %v4169
          %v4741 = vunpack.c.h.b16 %v4169
          %v4742 = vunpack.c.l.b16 %v4170
          %v4743 = vunpack.c.h.b16 %v4170
          %v4744 = vunpack.c.l.b16 %v4171
          %v4745 = vunpack.c.h.b16 %v4171
          %v4746 = vunpack.c.l.b16 %v4172
          %v4747 = vunpack.c.h.b16 %v4172
          %v4748 = vunpack.c.l.b16 %v4173
          %v4749 = vunpack.c.h.b16 %v4173
          %v4750 = vunpack.c.l.b16 %v4174
          %v4751 = vunpack.c.h.b16 %v4174
          %v4752 = vunpack.c.l.b16 %v4175
          %v4753 = vunpack.c.h.b16 %v4175
          %v4754 = vunpack.c.l.b16 %v4176
          %v4755 = vunpack.c.h.b16 %v4176
          %v4756 = vunpack.c.l.b16 %v4177
          %v4757 = vunpack.c.h.b16 %v4177
          %v4758 = vunpack.c.l.b16 %v4178
          %v4759 = vunpack.c.h.b16 %v4178
          %v4760 = vunpack.c.l.b16 %v4179
          %v4761 = vunpack.c.h.b16 %v4179
          %v4762 = vunpack.c.l.b16 %v4180
          %v4763 = vunpack.c.h.b16 %v4180
          %v4764 = vunpack.c.l.b16 %v4181
          %v4765 = vunpack.c.h.b16 %v4181
          %v4766 = vunpack.c.l.b16 %v4182
          %v4767 = vunpack.c.h.b16 %v4182
          %v4768 = vunpack.c.l.b16 %v4183
          %v4769 = vunpack.c.h.b16 %v4183
          %v4770 = vunpack.c.l.b16 %v4184
          %v4771 = vunpack.c.h.b16 %v4184
          %v4772 = vunpack.c.l.b16 %v4185
          %v4773 = vunpack.c.h.b16 %v4185
          %v4774 = vunpack.c.l.b16 %v4186
          %v4775 = vunpack.c.h.b16 %v4186
          %v4776 = vunpack.c.l.b16 %v4187
          %v4777 = vunpack.c.h.b16 %v4187
          %v4778 = vunpack.c.l.b16 %v4188
          %v4779 = vunpack.c.h.b16 %v4188
          %v4780 = vunpack.c.l.b16 %v4189
          %v4781 = vunpack.c.h.b16 %v4189
          %v4782 = vunpack.c.l.b16 %v4190
          %v4783 = vunpack.c.h.b16 %v4190
          %v4784 = vunpack.c.l.b16 %v4191
          %v4785 = vunpack.c.h.b16 %v4191
          %v4786 = vunpack.c.l.b16 %v4192
          %v4787 = vunpack.c.h.b16 %v4192
          %v4788 = vunpack.c.l.b16 %v4193
          %v4789 = vunpack.c.h.b16 %v4193
          %v4790 = vunpack.c.l.b16 %v4194
          %v4791 = vunpack.c.h.b16 %v4194
          %v4792 = vunpack.c.l.b16 %v4195
          %v4793 = vunpack.c.h.b16 %v4195
          %v4794 = vunpack.c.l.b16 %v4196
          %v4795 = vunpack.c.h.b16 %v4196
          %v4796 = vunpack.c.l.b16 %v4197
          %v4797 = vunpack.c.h.b16 %v4197
          %v4798 = vunpack.c.l.b16 %v4198
          %v4799 = vunpack.c.h.b16 %v4198
          %v4800 = vunpack.c.l.b16 %v4199
          %v4801 = vunpack.c.h.b16 %v4199
          %v4802 = vunpack.c.l.b16 %v4200
          %v4803 = vunpack.c.h.b16 %v4200
          %v4804 = vunpack.c.l.b16 %v4201
          %v4805 = vunpack.c.h.b16 %v4201
          %v4806 = vunpack.c.l.b16 %v4202
          %v4807 = vunpack.c.h.b16 %v4202
          %v4808 = vunpack.c.l.b16 %v4203
          %v4809 = vunpack.c.h.b16 %v4203
          %v4810 = vunpack.c.l.b16 %v4204
          %v4811 = vunpack.c.h.b16 %v4204
          %v4812 = vunpack.c.l.b16 %v4205
          %v4813 = vunpack.c.h.b16 %v4205
          %v4814 = vunpack.c.l.b16 %v4206
          %v4815 = vunpack.c.h.b16 %v4206
          %v4816 = vunpack.c.l.b16 %v4207
          %v4817 = vunpack.c.h.b16 %v4207
          %v4818 = vunpack.c.l.b16 %v4208
          %v4819 = vunpack.c.h.b16 %v4208
          %v4820 = vunpack.c.l.b16 %v4209
          %v4821 = vunpack.c.h.b16 %v4209
          %v4822 = vunpack.c.l.b16 %v4210
          %v4823 = vunpack.c.h.b16 %v4210
          %v4824 = vunpack.c.l.b16 %v4211
          %v4825 = vunpack.c.h.b16 %v4211
          %v4826 = vunpack.c.l.b16 %v4212
          %v4827 = vunpack.c.h.b16 %v4212
          %v4828 = vunpack.c.l.b16 %v4213
          %v4829 = vunpack.c.h.b16 %v4213
          %v4830 = vunpack.c.l.b16 %v4214
          %v4831 = vunpack.c.h.b16 %v4214
          %v4832 = vunpack.c.l.b16 %v4215
          %v4833 = vunpack.c.h.b16 %v4215
          %v4834 = vunpack.c.l.b16 %v4216
          %v4835 = vunpack.c.h.b16 %v4216
          %v4836 = vunpack.c.l.b16 %v4217
          %v4837 = vunpack.c.h.b16 %v4217
          %v4838 = vunpack.c.l.b16 %v4218
          %v4839 = vunpack.c.h.b16 %v4218
          %v4840 = vunpack.c.l.b16 %v4219
          %v4841 = vunpack.c.h.b16 %v4219
          %v4842 = vunpack.c.l.b16 %v4220
          %v4843 = vunpack.c.h.b16 %v4220
          %v4844 = vunpack.c.l.b16 %v4221
          %v4845 = vunpack.c.h.b16 %v4221
          %v4846 = vunpack.c.l.b16 %v4222
          %v4847 = vunpack.c.h.b16 %v4222
          %v4848 = vunpack.c.l.b16 %v4223
          %v4849 = vunpack.c.h.b16 %v4223
          %v4850 = vunpack.c.l.b16 %v4224
          %v4851 = vunpack.c.h.b16 %v4224
          %v4852 = vunpack.c.l.b16 %v4225
          %v4853 = vunpack.c.h.b16 %v4225
          %v4854 = vunpack.c.l.b16 %v4226
          %v4855 = vunpack.c.h.b16 %v4226
          %v4856 = vunpack.c.l.b16 %v4227
          %v4857 = vunpack.c.h.b16 %v4227
          %v4858 = vunpack.c.l.b16 %v4228
          %v4859 = vunpack.c.h.b16 %v4228
          %v4860 = vunpack.c.l.b16 %v4229
          %v4861 = vunpack.c.h.b16 %v4229
          %v4862 = vunpack.c.l.b16 %v4230
          %v4863 = vunpack.c.h.b16 %v4230
          %v4864 = vunpack.c.l.b16 %v4231
          %v4865 = vunpack.c.h.b16 %v4231
          %v4866 = vunpack.c.l.b16 %v4232
          %v4867 = vunpack.c.h.b16 %v4232
          %v4868 = vunpack.c.l.b16 %v4233
          %v4869 = vunpack.c.h.b16 %v4233
          %v4870 = vunpack.c.l.b16 %v4234
          %v4871 = vunpack.c.h.b16 %v4234
          %v4872 = vunpack.c.l.b16 %v4235
          %v4873 = vunpack.c.h.b16 %v4235
          %v4874 = vunpack.c.l.b16 %v4236
          %v4875 = vunpack.c.h.b16 %v4236
          %v4876 = vunpack.c.l.b16 %v4237
          %v4877 = vunpack.c.h.b16 %v4237
          %v4878 = vunpack.c.l.b16 %v4238
          %v4879 = vunpack.c.h.b16 %v4238
          %v4880 = vunpack.c.l.b16 %v4239
          %v4881 = vunpack.c.h.b16 %v4239
          %v4882 = vunpack.c.l.b16 %v4240
          %v4883 = vunpack.c.h.b16 %v4240
          %v4884 = vunpack.c.l.b16 %v4241
          %v4885 = vunpack.c.h.b16 %v4241
          %v4886 = vunpack.c.l.b16 %v4242
          %v4887 = vunpack.c.h.b16 %v4242
          %v4888 = vunpack.c.l.b16 %v4243
          %v4889 = vunpack.c.h.b16 %v4243
          %v4890 = vunpack.c.l.b16 %v4244
          %v4891 = vunpack.c.h.b16 %v4244
          %v4892 = vunpack.c.l.b16 %v4245
          %v4893 = vunpack.c.h.b16 %v4245
          %v4894 = vunpack.c.l.b16 %v4246
          %v4895 = vunpack.c.h.b16 %v4246
          %v4896 = vunpack.c.l.b16 %v4247
          %v4897 = vunpack.c.h.b16 %v4247
          %v4898 = vunpack.c.l.b16 %v4248
          %v4899 = vunpack.c.h.b16 %v4248
          %v4900 = vunpack.c.l.b16 %v4249
          %v4901 = vunpack.c.h.b16 %v4249
          %v4902 = vunpack.c.l.b16 %v4250
          %v4903 = vunpack.c.h.b16 %v4250
          %v4904 = vunpack.c.l.b16 %v4251
          %v4905 = vunpack.c.h.b16 %v4251
          %v4906 = vunpack.c.l.b16 %v4252
          %v4907 = vunpack.c.h.b16 %v4252
          %v4908 = vunpack.c.l.b16 %v4253
          %v4909 = vunpack.c.h.b16 %v4253
          %v4910 = vunpack.c.l.b16 %v4254
          %v4911 = vunpack.c.h.b16 %v4254
          %v4912 = vunpack.c.l.b16 %v4255
          %v4913 = vunpack.c.h.b16 %v4255
          %v4914 = vunpack.c.l.b16 %v4256
          %v4915 = vunpack.c.h.b16 %v4256
          %v4916 = vunpack.c.l.b16 %v4257
          %v4917 = vunpack.c.h.b16 %v4257
          %v4918 = vunpack.c.l.b16 %v4258
          %v4919 = vunpack.c.h.b16 %v4258
          %v4920 = vunpack.c.l.b16 %v4259
          %v4921 = vunpack.c.h.b16 %v4259
          %v4922 = vunpack.c.l.b16 %v4260
          %v4923 = vunpack.c.h.b16 %v4260
          %v4924 = vunpack.c.l.b16 %v4261
          %v4925 = vunpack.c.h.b16 %v4261
          %v4926 = vunpack.c.l.b16 %v4262
          %v4927 = vunpack.c.h.b16 %v4262
          %v4928 = vunpack.c.l.b16 %v4263
          %v4929 = vunpack.c.h.b16 %v4263
          %v4930 = vunpack.c.l.b16 %v4264
          %v4931 = vunpack.c.h.b16 %v4264
          %v4932 = vunpack.c.l.b16 %v4265
          %v4933 = vunpack.c.h.b16 %v4265
          %v4934 = vunpack.c.l.b16 %v4266
          %v4935 = vunpack.c.h.b16 %v4266
          %v4936 = vunpack.c.l.b16 %v4267
          %v4937 = vunpack.c.h.b16 %v4267
          %v4938 = vunpack.c.l.b16 %v4268
          %v4939 = vunpack.c.h.b16 %v4268
          %v4940 = vunpack.c.l.b16 %v4269
          %v4941 = vunpack.c.h.b16 %v4269
          %v4942 = vunpack.c.l.b16 %v4270
          %v4943 = vunpack.c.h.b16 %v4270
          %v4944 = vunpack.c.l.b16 %v4271
          %v4945 = vunpack.c.h.b16 %v4271
          %v4946 = vunpack.c.l.b16 %v4272
          %v4947 = vunpack.c.h.b16 %v4272
          %v4948 = vunpack.c.l.b16 %v4273
          %v4949 = vunpack.c.h.b16 %v4273
          %v4950 = vunpack.c.l.b16 %v4274
          %v4951 = vunpack.c.h.b16 %v4274
          %v4952 = vunpack.c.l.b16 %v4275
          %v4953 = vunpack.c.h.b16 %v4275
          %v4954 = vunpack.c.l.b16 %v4276
          %v4955 = vunpack.c.h.b16 %v4276
          %v4956 = vunpack.c.l.b16 %v4277
          %v4957 = vunpack.c.h.b16 %v4277
          %v4958 = vunpack.c.l.b16 %v4278
          %v4959 = vunpack.c.h.b16 %v4278
          %v4960 = vunpack.c.l.b16 %v4279
          %v4961 = vunpack.c.h.b16 %v4279
          %v4962 = vunpack.c.l.b16 %v4280
          %v4963 = vunpack.c.h.b16 %v4280
          %v4964 = vunpack.c.l.b16 %v4281
          %v4965 = vunpack.c.h.b16 %v4281
          %v4966 = vunpack.c.l.b16 %v4282
          %v4967 = vunpack.c.h.b16 %v4282
          %v4968 = vunpack.c.l.b16 %v4283
          %v4969 = vunpack.c.h.b16 %v4283
          %v4970 = vunpack.c.l.b16 %v4284
          %v4971 = vunpack.c.h.b16 %v4284
          %v4972 = vunpack.c.l.b16 %v4285
          %v4973 = vunpack.c.h.b16 %v4285
          %v4974 = vunpack.c.l.b16 %v4286
          %v4975 = vunpack.c.h.b16 %v4286
          %v4976 = vunpack.c.l.b16 %v4287
          %v4977 = vunpack.c.h.b16 %v4287
          %v4978 = vunpack.c.l.b16 %v4288
          %v4979 = vunpack.c.h.b16 %v4288
          %v4980 = vunpack.c.l.b16 %v4289
          %v4981 = vunpack.c.h.b16 %v4289
          %v4982 = vunpack.c.l.b16 %v4290
          %v4983 = vunpack.c.h.b16 %v4290
          %v4984 = vunpack.c.l.b16 %v4291
          %v4985 = vunpack.c.h.b16 %v4291
          %v4986 = vunpack.c.l.b16 %v4292
          %v4987 = vunpack.c.h.b16 %v4292
          %v4988 = vunpack.c.l.b16 %v4293
          %v4989 = vunpack.c.h.b16 %v4293
          %v4990 = vunpack.c.l.b16 %v4294
          %v4991 = vunpack.c.h.b16 %v4294
          %v4992 = vunpack.c.l.b16 %v4295
          %v4993 = vunpack.c.h.b16 %v4295
          %v4994 = vunpack.c.l.b16 %v4296
          %v4995 = vunpack.c.h.b16 %v4296
          %v4996 = vunpack.c.l.b16 %v4297
          %v4997 = vunpack.c.h.b16 %v4297
          %v4998 = vunpack.c.l.b16 %v4298
          %v4999 = vunpack.c.h.b16 %v4298
          %v5000 = vunpack.c.l.b16 %v4299
          %v5001 = vunpack.c.h.b16 %v4299
          %v5002 = vunpack.c.l.b16 %v4300
          %v5003 = vunpack.c.h.b16 %v4300
          %v5004 = vunpack.c.l.b16 %v4301
          %v5005 = vunpack.c.h.b16 %v4301
          %v5006 = vunpack.c.l.b16 %v4302
          %v5007 = vunpack.c.h.b16 %v4302
          %v5008 = vunpack.c.l.b16 %v4303
          %v5009 = vunpack.c.h.b16 %v4303
          %v5010 = vunpack.c.l.b16 %v4304
          %v5011 = vunpack.c.h.b16 %v4304
          %v5012 = vunpack.c.l.b16 %v4305
          %v5013 = vunpack.c.h.b16 %v4305
          %v5014 = vunpack.c.l.b16 %v4306
          %v5015 = vunpack.c.h.b16 %v4306
          %v5016 = vunpack.c.l.b16 %v4307
          %v5017 = vunpack.c.h.b16 %v4307
          %v5018 = vunpack.c.l.b16 %v4308
          %v5019 = vunpack.c.h.b16 %v4308
          %v5020 = vunpack.c.l.b16 %v4309
          %v5021 = vunpack.c.h.b16 %v4309
          %v5022 = vunpack.c.l.b16 %v4310
          %v5023 = vunpack.c.h.b16 %v4310
          %v5024 = vunpack.c.l.b16 %v4311
          %v5025 = vunpack.c.h.b16 %v4311
          %v5026 = vunpack.c.l.b16 %v4312
          %v5027 = vunpack.c.h.b16 %v4312
          %v5028 = vunpack.c.l.b16 %v4313
          %v5029 = vunpack.c.h.b16 %v4313
          %v5030 = vunpack.c.l.b16 %v4314
          %v5031 = vunpack.c.h.b16 %v4314
          %v5032 = vunpack.c.l.b16 %v4315
          %v5033 = vunpack.c.h.b16 %v4315
          %v5034 = vunpack.c.l.b16 %v4316
          %v5035 = vunpack.c.h.b16 %v4316
          %v5036 = vunpack.c.l.b16 %v4317
          %v5037 = vunpack.c.h.b16 %v4317
          %v5038 = vunpack.c.l.b16 %v4318
          %v5039 = vunpack.c.h.b16 %v4318
          %v5040 = vunpack.c.l.b16 %v4319
          %v5041 = vunpack.c.h.b16 %v4319
          %v5042 = vunpack.c.l.b16 %v4320
          %v5043 = vunpack.c.h.b16 %v4320
          %v5044 = vunpack.c.l.b16 %v4321
          %v5045 = vunpack.c.h.b16 %v4321
          %v5046 = vunpack.c.l.b16 %v4322
          %v5047 = vunpack.c.h.b16 %v4322
          %v5048 = vunpack.c.l.b16 %v4323
          %v5049 = vunpack.c.h.b16 %v4323
          %v5050 = vunpack.c.l.b16 %v4324
          %v5051 = vunpack.c.h.b16 %v4324
          %v5052 = vunpack.c.l.b16 %v4325
          %v5053 = vunpack.c.h.b16 %v4325
          %v5054 = vunpack.c.l.b16 %v4326
          %v5055 = vunpack.c.h.b16 %v4326
          %v5056 = vunpack.c.l.b16 %v4327
          %v5057 = vunpack.c.h.b16 %v4327
          %v5058 = vunpack.c.l.b16 %v4328
          %v5059 = vunpack.c.h.b16 %v4328
          %v5060 = vunpack.c.l.b16 %v4329
          %v5061 = vunpack.c.h.b16 %v4329
          %v5062 = vunpack.c.l.b16 %v4330
          %v5063 = vunpack.c.h.b16 %v4330
          %v5064 = vunpack.c.l.b16 %v4331
          %v5065 = vunpack.c.h.b16 %v4331
          %v5066 = vunpack.c.l.b16 %v4332
          %v5067 = vunpack.c.h.b16 %v4332
          %v5068 = vunpack.c.l.b16 %v4333
          %v5069 = vunpack.c.h.b16 %v4333
          %v5070 = vunpack.c.l.b16 %v4334
          %v5071 = vunpack.c.h.b16 %v4334
          %v5072 = vunpack.c.l.b16 %v4335
          %v5073 = vunpack.c.h.b16 %v4335
          %v5074 = vunpack.c.l.b16 %v4336
          %v5075 = vunpack.c.h.b16 %v4336
          %v5076 = vunpack.c.l.b16 %v4337
          %v5077 = vunpack.c.h.b16 %v4337
          %v5078 = vunpack.c.l.b16 %v4338
          %v5079 = vunpack.c.h.b16 %v4338
          %v5080 = vunpack.c.l.b16 %v4339
          %v5081 = vunpack.c.h.b16 %v4339
          %v5082 = vunpack.c.l.b16 %v4340
          %v5083 = vunpack.c.h.b16 %v4340
          %v5084 = vunpack.c.l.b16 %v4341
          %v5085 = vunpack.c.h.b16 %v4341
          %v5086 = vunpack.c.l.b16 %v4342
          %v5087 = vunpack.c.h.b16 %v4342
          %v5088 = vunpack.c.l.b16 %v4343
          %v5089 = vunpack.c.h.b16 %v4343
          %v5090 = vunpack.c.l.b16 %v4344
          %v5091 = vunpack.c.h.b16 %v4344
          %v5092 = vunpack.c.l.b16 %v4345
          %v5093 = vunpack.c.h.b16 %v4345
          %v5094 = vunpack.c.l.b16 %v4346
          %v5095 = vunpack.c.h.b16 %v4346
          %v5096 = vunpack.c.l.b16 %v4347
          %v5097 = vunpack.c.h.b16 %v4347
          %v5098 = vunpack.c.l.b16 %v4348
          %v5099 = vunpack.c.h.b16 %v4348
          %v5100 = vunpack.c.l.b16 %v4349
          %v5101 = vunpack.c.h.b16 %v4349
          %v5102 = vunpack.c.l.b16 %v4350
          %v5103 = vunpack.c.h.b16 %v4350
          %v5104 = vunpack.c.l.b16 %v4351
          %v5105 = vunpack.c.h.b16 %v4351
          %v5106 = vunpack.c.l.b16 %v4352
          %v5107 = vunpack.c.h.b16 %v4352
          %v5108 = vunpack.c.l.b16 %v4353
          %v5109 = vunpack.c.h.b16 %v4353
          %v5110 = vunpack.c.l.b16 %v4354
          %v5111 = vunpack.c.h.b16 %v4354
          %v5112 = vunpack.c.l.b16 %v4355
          %v5113 = vunpack.c.h.b16 %v4355
          %v5114 = vunpack.c.l.b16 %v4356
          %v5115 = vunpack.c.h.b16 %v4356
          %v5116 = vunpack.c.l.b16 %v4357
          %v5117 = vunpack.c.h.b16 %v4357
          %v5118 = vunpack.c.l.b16 %v4358
          %v5119 = vunpack.c.h.b16 %v4358
          %v5120 = vunpack.c.l.b16 %v4359
          %v5121 = vunpack.c.h.b16 %v4359
          %v5122 = vunpack.c.l.b16 %v4360
          %v5123 = vunpack.c.h.b16 %v4360
          %v5124 = vunpack.c.l.b16 %v4361
          %v5125 = vunpack.c.h.b16 %v4361
          %v5126 = vunpack.c.l.b16 %v4362
          %v5127 = vunpack.c.h.b16 %v4362
          %v5128 = vunpack.c.l.b16 %v4363
          %v5129 = vunpack.c.h.b16 %v4363
          %v5130 = vunpack.c.l.b16 %v4364
          %v5131 = vunpack.c.h.b16 %v4364
          %v5132 = vunpack.c.l.b16 %v4365
          %v5133 = vunpack.c.h.b16 %v4365
          %v5134 = vunpack.c.l.b16 %v4366
          %v5135 = vunpack.c.h.b16 %v4366
          %v5136 = vunpack.c.l.b16 %v4367
          %v5137 = vunpack.c.h.b16 %v4367
          %v5138 = vunpack.c.l.b16 %v4368
          %v5139 = vunpack.c.h.b16 %v4368
          %v5140 = vunpack.c.l.b16 %v4369
          %v5141 = vunpack.c.h.b16 %v4369
          %v5142 = vunpack.c.l.b16 %v4370
          %v5143 = vunpack.c.h.b16 %v4370
          %v5144 = vunpack.c.l.b16 %v4371
          %v5145 = vunpack.c.h.b16 %v4371
          %v5146 = vunpack.c.l.b16 %v4372
          %v5147 = vunpack.c.h.b16 %v4372
          %v5148 = vunpack.c.l.b16 %v4373
          %v5149 = vunpack.c.h.b16 %v4373
          %v5150 = vunpack.c.l.b16 %v4374
          %v5151 = vunpack.c.h.b16 %v4374
          %v5152 = vunpack.c.l.b16 %v4375
          %v5153 = vunpack.c.h.b16 %v4375
          %v5154 = vunpack.c.l.b16 %v4376
          %v5155 = vunpack.c.h.b16 %v4376
          %v5156 = vunpack.c.l.b16 %v4377
          %v5157 = vunpack.c.h.b16 %v4377
          %v5158 = vunpack.c.l.b16 %v4378
          %v5159 = vunpack.c.h.b16 %v4378
          %v5160 = vunpack.c.l.b16 %v4379
          %v5161 = vunpack.c.h.b16 %v4379
          %v5162 = vunpack.c.l.b16 %v4380
          %v5163 = vunpack.c.h.b16 %v4380
          %v5164 = vunpack.c.l.b16 %v4381
          %v5165 = vunpack.c.h.b16 %v4381
          %v5166 = vunpack.c.l.b16 %v4382
          %v5167 = vunpack.c.h.b16 %v4382
          %v5168 = vunpack.c.l.b16 %v4383
          %v5169 = vunpack.c.h.b16 %v4383
          %v5170 = vunpack.c.l.b16 %v4384
          %v5171 = vunpack.c.h.b16 %v4384
          %v5172 = vunpack.c.l.b16 %v4385
          %v5173 = vunpack.c.h.b16 %v4385
          %v5174 = vunpack.c.l.b16 %v4386
          %v5175 = vunpack.c.h.b16 %v4386
          %v5176 = vunpack.c.l.b16 %v4387
          %v5177 = vunpack.c.h.b16 %v4387
          %v5178 = vpack.c.b16 %v4670, %v4666
          %v5179 = vpack.c.b16 %v4671, %v4667
          %v5180 = vpack.c.b16 %v4672, %v4668
          %v5181 = vpack.c.b16 %v4673, %v4669
          %v5182 = vpack.c.b16 %v4678, %v4674
          %v5183 = vpack.c.b16 %v4679, %v4675
          %v5184 = vpack.c.b16 %v4680, %v4676
          %v5185 = vpack.c.b16 %v4681, %v4677
          %v5186 = vpack.c.b16 %v4686, %v4682
          %v5187 = vpack.c.b16 %v4687, %v4683
          %v5188 = vpack.c.b16 %v4688, %v4684
          %v5189 = vpack.c.b16 %v4689, %v4685
          %v5190 = vpack.c.b16 %v4694, %v4690
          %v5191 = vpack.c.b16 %v4695, %v4691
          %v5192 = vpack.c.b16 %v4696, %v4692
          %v5193 = vpack.c.b16 %v4697, %v4693
          %v5194 = vpack.c.b16 %v4702, %v4698
          %v5195 = vpack.c.b16 %v4703, %v4699
          %v5196 = vpack.c.b16 %v4704, %v4700
          %v5197 = vpack.c.b16 %v4705, %v4701
          %v5198 = vpack.c.b16 %v4710, %v4706
          %v5199 = vpack.c.b16 %v4711, %v4707
          %v5200 = vpack.c.b16 %v4712, %v4708
          %v5201 = vpack.c.b16 %v4713, %v4709
          %v5202 = vpack.c.b16 %v4718, %v4714
          %v5203 = vpack.c.b16 %v4719, %v4715
          %v5204 = vpack.c.b16 %v4720, %v4716
          %v5205 = vpack.c.b16 %v4721, %v4717
          %v5206 = vpack.c.b16 %v4726, %v4722
          %v5207 = vpack.c.b16 %v4727, %v4723
          %v5208 = vpack.c.b16 %v4728, %v4724
          %v5209 = vpack.c.b16 %v4729, %v4725
          %v5210 = vpack.c.b16 %v4734, %v4730
          %v5211 = vpack.c.b16 %v4735, %v4731
          %v5212 = vpack.c.b16 %v4736, %v4732
          %v5213 = vpack.c.b16 %v4737, %v4733
          %v5214 = vpack.c.b16 %v4742, %v4738
          %v5215 = vpack.c.b16 %v4743, %v4739
          %v5216 = vpack.c.b16 %v4744, %v4740
          %v5217 = vpack.c.b16 %v4745, %v4741
          %v5218 = vpack.c.b16 %v4750, %v4746
          %v5219 = vpack.c.b16 %v4751, %v4747
          %v5220 = vpack.c.b16 %v4752, %v4748
          %v5221 = vpack.c.b16 %v4753, %v4749
          %v5222 = vpack.c.b16 %v4758, %v4754
          %v5223 = vpack.c.b16 %v4759, %v4755
          %v5224 = vpack.c.b16 %v4760, %v4756
          %v5225 = vpack.c.b16 %v4761, %v4757
          %v5226 = vpack.c.b16 %v4766, %v4762
          %v5227 = vpack.c.b16 %v4767, %v4763
          %v5228 = vpack.c.b16 %v4768, %v4764
          %v5229 = vpack.c.b16 %v4769, %v4765
          %v5230 = vpack.c.b16 %v4774, %v4770
          %v5231 = vpack.c.b16 %v4775, %v4771
          %v5232 = vpack.c.b16 %v4776, %v4772
          %v5233 = vpack.c.b16 %v4777, %v4773
          %v5234 = vpack.c.b16 %v4782, %v4778
          %v5235 = vpack.c.b16 %v4783, %v4779
          %v5236 = vpack.c.b16 %v4784, %v4780
          %v5237 = vpack.c.b16 %v4785, %v4781
          %v5238 = vpack.c.b16 %v4790, %v4786
          %v5239 = vpack.c.b16 %v4791, %v4787
          %v5240 = vpack.c.b16 %v4792, %v4788
          %v5241 = vpack.c.b16 %v4793, %v4789
          %v5242 = vpack.c.b16 %v4798, %v4794
          %v5243 = vpack.c.b16 %v4799, %v4795
          %v5244 = vpack.c.b16 %v4800, %v4796
          %v5245 = vpack.c.b16 %v4801, %v4797
          %v5246 = vpack.c.b16 %v4806, %v4802
          %v5247 = vpack.c.b16 %v4807, %v4803
          %v5248 = vpack.c.b16 %v4808, %v4804
          %v5249 = vpack.c.b16 %v4809, %v4805
          %v5250 = vpack.c.b16 %v4814, %v4810
          %v5251 = vpack.c.b16 %v4815, %v4811
          %v5252 = vpack.c.b16 %v4816, %v4812
          %v5253 = vpack.c.b16 %v4817, %v4813
          %v5254 = vpack.c.b16 %v4822, %v4818
          %v5255 = vpack.c.b16 %v4823, %v4819
          %v5256 = vpack.c.b16 %v4824, %v4820
          %v5257 = vpack.c.b16 %v4825, %v4821
          %v5258 = vpack.c.b16 %v4830, %v4826
          %v5259 = vpack.c.b16 %v4831, %v4827
          %v5260 = vpack.c.b16 %v4832, %v4828
          %v5261 = vpack.c.b16 %v4833, %v4829
          %v5262 = vpack.c.b16 %v4838, %v4834
          %v5263 = vpack.c.b16 %v4839, %v4835
          %v5264 = vpack.c.b16 %v4840, %v4836
          %v5265 = vpack.c.b16 %v4841, %v4837
          %v5266 = vpack.c.b16 %v4846, %v4842
          %v5267 = vpack.c.b16 %v4847, %v4843
          %v5268 = vpack.c.b16 %v4848, %v4844
          %v5269 = vpack.c.b16 %v4849, %v4845
          %v5270 = vpack.c.b16 %v4854, %v4850
          %v5271 = vpack.c.b16 %v4855, %v4851
          %v5272 = vpack.c.b16 %v4856, %v4852
          %v5273 = vpack.c.b16 %v4857, %v4853
          %v5274 = vpack.c.b16 %v4862, %v4858
          %v5275 = vpack.c.b16 %v4863, %v4859
          %v5276 = vpack.c.b16 %v4864, %v4860
          %v5277 = vpack.c.b16 %v4865, %v4861
          %v5278 = vpack.c.b16 %v4870, %v4866
          %v5279 = vpack.c.b16 %v4871, %v4867
          %v5280 = vpack.c.b16 %v4872, %v4868
          %v5281 = vpack.c.b16 %v4873, %v4869
          %v5282 = vpack.c.b16 %v4878, %v4874
          %v5283 = vpack.c.b16 %v4879, %v4875
          %v5284 = vpack.c.b16 %v4880, %v4876
          %v5285 = vpack.c.b16 %v4881, %v4877
          %v5286 = vpack.c.b16 %v4886, %v4882
          %v5287 = vpack.c.b16 %v4887, %v4883
          %v5288 = vpack.c.b16 %v4888, %v4884
          %v5289 = vpack.c.b16 %v4889, %v4885
          %v5290 = vpack.c.b16 %v4894, %v4890
          %v5291 = vpack.c.b16 %v4895, %v4891
          %v5292 = vpack.c.b16 %v4896, %v4892
          %v5293 = vpack.c.b16 %v4897, %v4893
          %v5294 = vpack.c.b16 %v4902, %v4898
          %v5295 = vpack.c.b16 %v4903, %v4899
          %v5296 = vpack.c.b16 %v4904, %v4900
          %v5297 = vpack.c.b16 %v4905, %v4901
          %v5298 = vpack.c.b16 %v4910, %v4906
          %v5299 = vpack.c.b16 %v4911, %v4907
          %v5300 = vpack.c.b16 %v4912, %v4908
          %v5301 = vpack.c.b16 %v4913, %v4909
          %v5302 = vpack.c.b16 %v4918, %v4914
          %v5303 = vpack.c.b16 %v4919, %v4915
          %v5304 = vpack.c.b16 %v4920, %v4916
          %v5305 = vpack.c.b16 %v4921, %v4917
          %v5306 = vpack.c.b16 %v4926, %v4922
          %v5307 = vpack.c.b16 %v4927, %v4923
          %v5308 = vpack.c.b16 %v4928, %v4924
          %v5309 = vpack.c.b16 %v4929, %v4925
          %v5310 = vpack.c.b16 %v4934, %v4930
          %v5311 = vpack.c.b16 %v4935, %v4931
          %v5312 = vpack.c.b16 %v4936, %v4932
          %v5313 = vpack.c.b16 %v4937, %v4933
          %v5314 = vpack.c.b16 %v4942, %v4938
          %v5315 = vpack.c.b16 %v4943, %v4939
          %v5316 = vpack.c.b16 %v4944, %v4940
          %v5317 = vpack.c.b16 %v4945, %v4941
          %v5318 = vpack.c.b16 %v4950, %v4946
          %v5319 = vpack.c.b16 %v4951, %v4947
          %v5320 = vpack.c.b16 %v4952, %v4948
          %v5321 = vpack.c.b16 %v4953, %v4949
          %v5322 = vpack.c.b16 %v4958, %v4954
          %v5323 = vpack.c.b16 %v4959, %v4955
          %v5324 = vpack.c.b16 %v4960, %v4956
          %v5325 = vpack.c.b16 %v4961, %v4957
          %v5326 = vpack.c.b16 %v4966, %v4962
          %v5327 = vpack.c.b16 %v4967, %v4963
          %v5328 = vpack.c.b16 %v4968, %v4964
          %v5329 = vpack.c.b16 %v4969, %v4965
          %v5330 = vpack.c.b16 %v4974, %v4970
          %v5331 = vpack.c.b16 %v4975, %v4971
          %v5332 = vpack.c.b16 %v4976, %v4972
          %v5333 = vpack.c.b16 %v4977, %v4973
          %v5334 = vpack.c.b16 %v4982, %v4978
          %v5335 = vpack.c.b16 %v4983, %v4979
          %v5336 = vpack.c.b16 %v4984, %v4980
          %v5337 = vpack.c.b16 %v4985, %v4981
          %v5338 = vpack.c.b16 %v4990, %v4986
          %v5339 = vpack.c.b16 %v4991, %v4987
          %v5340 = vpack.c.b16 %v4992, %v4988
          %v5341 = vpack.c.b16 %v4993, %v4989
          %v5342 = vpack.c.b16 %v4998, %v4994
          %v5343 = vpack.c.b16 %v4999, %v4995
          %v5344 = vpack.c.b16 %v5000, %v4996
          %v5345 = vpack.c.b16 %v5001, %v4997
          %v5346 = vpack.c.b16 %v5006, %v5002
          %v5347 = vpack.c.b16 %v5007, %v5003
          %v5348 = vpack.c.b16 %v5008, %v5004
          %v5349 = vpack.c.b16 %v5009, %v5005
          %v5350 = vpack.c.b16 %v5014, %v5010
          %v5351 = vpack.c.b16 %v5015, %v5011
          %v5352 = vpack.c.b16 %v5016, %v5012
          %v5353 = vpack.c.b16 %v5017, %v5013
          %v5354 = vpack.c.b16 %v5022, %v5018
          %v5355 = vpack.c.b16 %v5023, %v5019
          %v5356 = vpack.c.b16 %v5024, %v5020
          %v5357 = vpack.c.b16 %v5025, %v5021
          %v5358 = vpack.c.b16 %v5030, %v5026
          %v5359 = vpack.c.b16 %v5031, %v5027
          %v5360 = vpack.c.b16 %v5032, %v5028
          %v5361 = vpack.c.b16 %v5033, %v5029
          %v5362 = vpack.c.b16 %v5038, %v5034
          %v5363 = vpack.c.b16 %v5039, %v5035
          %v5364 = vpack.c.b16 %v5040, %v5036
          %v5365 = vpack.c.b16 %v5041, %v5037
          %v5366 = vpack.c.b16 %v5046, %v5042
          %v5367 = vpack.c.b16 %v5047, %v5043
          %v5368 = vpack.c.b16 %v5048, %v5044
          %v5369 = vpack.c.b16 %v5049, %v5045
          %v5370 = vpack.c.b16 %v5054, %v5050
          %v5371 = vpack.c.b16 %v5055, %v5051
          %v5372 = vpack.c.b16 %v5056, %v5052
          %v5373 = vpack.c.b16 %v5057, %v5053
          %v5374 = vpack.c.b16 %v5062, %v5058
          %v5375 = vpack.c.b16 %v5063, %v5059
          %v5376 = vpack.c.b16 %v5064, %v5060
          %v5377 = vpack.c.b16 %v5065, %v5061
          %v5378 = vpack.c.b16 %v5070, %v5066
          %v5379 = vpack.c.b16 %v5071, %v5067
          %v5380 = vpack.c.b16 %v5072, %v5068
          %v5381 = vpack.c.b16 %v5073, %v5069
          %v5382 = vpack.c.b16 %v5078, %v5074
          %v5383 = vpack.c.b16 %v5079, %v5075
          %v5384 = vpack.c.b16 %v5080, %v5076
          %v5385 = vpack.c.b16 %v5081, %v5077
          %v5386 = vpack.c.b16 %v5086, %v5082
          %v5387 = vpack.c.b16 %v5087, %v5083
          %v5388 = vpack.c.b16 %v5088, %v5084
          %v5389 = vpack.c.b16 %v5089, %v5085
          %v5390 = vpack.c.b16 %v5094, %v5090
          %v5391 = vpack.c.b16 %v5095, %v5091
          %v5392 = vpack.c.b16 %v5096, %v5092
          %v5393 = vpack.c.b16 %v5097, %v5093
          %v5394 = vpack.c.b16 %v5102, %v5098
          %v5395 = vpack.c.b16 %v5103, %v5099
          %v5396 = vpack.c.b16 %v5104, %v5100
          %v5397 = vpack.c.b16 %v5105, %v5101
          %v5398 = vpack.c.b16 %v5110, %v5106
          %v5399 = vpack.c.b16 %v5111, %v5107
          %v5400 = vpack.c.b16 %v5112, %v5108
          %v5401 = vpack.c.b16 %v5113, %v5109
          %v5402 = vpack.c.b16 %v5118, %v5114
          %v5403 = vpack.c.b16 %v5119, %v5115
          %v5404 = vpack.c.b16 %v5120, %v5116
          %v5405 = vpack.c.b16 %v5121, %v5117
          %v5406 = vpack.c.b16 %v5126, %v5122
          %v5407 = vpack.c.b16 %v5127, %v5123
          %v5408 = vpack.c.b16 %v5128, %v5124
          %v5409 = vpack.c.b16 %v5129, %v5125
          %v5410 = vpack.c.b16 %v5134, %v5130
          %v5411 = vpack.c.b16 %v5135, %v5131
          %v5412 = vpack.c.b16 %v5136, %v5132
          %v5413 = vpack.c.b16 %v5137, %v5133
          %v5414 = vpack.c.b16 %v5142, %v5138
          %v5415 = vpack.c.b16 %v5143, %v5139
          %v5416 = vpack.c.b16 %v5144, %v5140
          %v5417 = vpack.c.b16 %v5145, %v5141
          %v5418 = vpack.c.b16 %v5150, %v5146
          %v5419 = vpack.c.b16 %v5151, %v5147
          %v5420 = vpack.c.b16 %v5152, %v5148
          %v5421 = vpack.c.b16 %v5153, %v5149
          %v5422 = vpack.c.b16 %v5158, %v5154
          %v5423 = vpack.c.b16 %v5159, %v5155
          %v5424 = vpack.c.b16 %v5160, %v5156
          %v5425 = vpack.c.b16 %v5161, %v5157
          %v5426 = vpack.c.b16 %v5166, %v5162
          %v5427 = vpack.c.b16 %v5167, %v5163
          %v5428 = vpack.c.b16 %v5168, %v5164
          %v5429 = vpack.c.b16 %v5169, %v5165
          %v5430 = vpack.c.b16 %v5174, %v5170
          %v5431 = vpack.c.b16 %v5175, %v5171
          %v5432 = vpack.c.b16 %v5176, %v5172
          %v5433 = vpack.c.b16 %v5177, %v5173
          %5690 = vmatprep.subr.bf16.mxu0 %v5207
          %5691 = vmatpush1.bf16.msra.mxu0 %v5206
          %5692 = vmatprep.subr.bf16.mxu0 %v5203
          %5693 = vmatpush1.bf16.msra.mxu0 %v5202
          %5694 = vmatprep.subr.bf16.mxu0 %v5199
          %5695 = vmatpush1.bf16.msra.mxu0 %v5198
          %5696 = vmatprep.subr.bf16.mxu0 %v5195
          %5697 = vmatpush1.bf16.msra.mxu0 %v5194
          %5698 = vmatprep.subr.bf16.mxu0 %v5191
          %5699 = vmatpush1.bf16.msra.mxu0 %v5190
          %5700 = vmatprep.subr.bf16.mxu0 %v5187
          %5701 = vmatpush1.bf16.msra.mxu0 %v5186
          %5702 = vmatprep.subr.bf16.mxu0 %v5183
          %5703 = vmatpush1.bf16.msra.mxu0 %v5182
          %5704 = vmatprep.subr.bf16.mxu0 %v5179
          %5705 = vmatpush1.bf16.msra.mxu0 %v5178
          %5706 = vmatprep.subr.bf16.mxu0 %v5239
          %5707 = vmatpush2.bf16.msra.mxu0 %v5238
          %5708 = vmatprep.subr.bf16.mxu0 %v5235
          %5709 = vmatpush2.bf16.msra.mxu0 %v5234
          %5710 = vmatprep.subr.bf16.mxu0 %v5231
          %5711 = vmatpush2.bf16.msra.mxu0 %v5230
          %5712 = vmatprep.subr.bf16.mxu0 %v5227
          %5713 = vmatpush2.bf16.msra.mxu0 %v5226
          %5714 = vmatprep.subr.bf16.mxu0 %v5223
          %5715 = vmatpush2.bf16.msra.mxu0 %v5222
          %5716 = vmatprep.subr.bf16.mxu0 %v5219
          %5717 = vmatpush2.bf16.msra.mxu0 %v5218
          %5718 = vmatprep.subr.bf16.mxu0 %v5215
          %5719 = vmatpush2.bf16.msra.mxu0 %v5214
          %5720 = vmatprep.subr.bf16.mxu0 %v5211
          %5721 = vmatpush2.bf16.msra.mxu0 %v5210
          %5722 = vmatprep.mubr.bf16.mxu0 %v4069
          %5723 = vmatmul.mubr.bf16.gmra.mxu0 %v4068
          %v5724 = vpop.f32.mrf.mxu0
          %v5725 = vadd.f32 %v4393, %v5724
          %v5726 = vpop.f32.mrf.mxu0
          %v5727 = vadd.f32 %v4397, %v5726
          %v5728 = vpop.f32.mrf.mxu0
          %v5729 = vadd.f32 %v4393, %v5728
          %v5730 = vpop.f32.mrf.mxu0
          %v5731 = vadd.f32 %v4397, %v5730
          %5732 = vmatprep.mubr.bf16.mxu0 %v4077
          %5733 = vmatmul.mubr.bf16.gmra.mxu0 %v4076
          %v5734 = vpop.f32.mrf.mxu0
          %v5735 = vadd.f32 %v4393, %v5734
          %v5736 = vpop.f32.mrf.mxu0
          %v5737 = vadd.f32 %v4397, %v5736
          %v5738 = vpop.f32.mrf.mxu0
          %v5739 = vadd.f32 %v4393, %v5738
          %v5740 = vpop.f32.mrf.mxu0
          %v5741 = vadd.f32 %v4397, %v5740
          %5742 = vmatprep.mubr.bf16.mxu0 %v4085
          %5743 = vmatmul.mubr.bf16.gmra.mxu0 %v4084
          %v5744 = vpop.f32.mrf.mxu0
          %v5745 = vadd.f32 %v4393, %v5744
          %v5746 = vpop.f32.mrf.mxu0
          %v5747 = vadd.f32 %v4397, %v5746
          %v5748 = vpop.f32.mrf.mxu0
          %v5749 = vadd.f32 %v4393, %v5748
          %v5750 = vpop.f32.mrf.mxu0
          %v5751 = vadd.f32 %v4397, %v5750
          %5752 = vmatprep.mubr.bf16.mxu0 %v4093
          %5753 = vmatmul.mubr.bf16.gmra.mxu0 %v4092
          %v5754 = vpop.f32.mrf.mxu0
          %v5755 = vadd.f32 %v4393, %v5754
          %v5756 = vpop.f32.mrf.mxu0
          %v5757 = vadd.f32 %v4397, %v5756
          %v5758 = vpop.f32.mrf.mxu0
          %v5759 = vadd.f32 %v4393, %v5758
          %v5760 = vpop.f32.mrf.mxu0
          %v5761 = vadd.f32 %v4397, %v5760
          %5762 = vmatprep.mubr.bf16.mxu0 %v4101
          %5763 = vmatmul.mubr.bf16.gmra.mxu0 %v4100
          %v5764 = vpop.f32.mrf.mxu0
          %v5765 = vadd.f32 %v4393, %v5764
          %v5766 = vpop.f32.mrf.mxu0
          %v5767 = vadd.f32 %v4397, %v5766
          %v5768 = vpop.f32.mrf.mxu0
          %v5769 = vadd.f32 %v4393, %v5768
          %v5770 = vpop.f32.mrf.mxu0
          %v5771 = vadd.f32 %v4397, %v5770
          %5772 = vmatprep.mubr.bf16.mxu0 %v4109
          %5773 = vmatmul.mubr.bf16.gmra.mxu0 %v4108
          %v5774 = vpop.f32.mrf.mxu0
          %v5775 = vadd.f32 %v4393, %v5774
          %v5776 = vpop.f32.mrf.mxu0
          %v5777 = vadd.f32 %v4397, %v5776
          %v5778 = vpop.f32.mrf.mxu0
          %v5779 = vadd.f32 %v4393, %v5778
          %v5780 = vpop.f32.mrf.mxu0
          %v5781 = vadd.f32 %v4397, %v5780
          %5782 = vmatprep.mubr.bf16.mxu0 %v4117
          %5783 = vmatmul.mubr.bf16.gmra.mxu0 %v4116
          %v5784 = vpop.f32.mrf.mxu0
          %v5785 = vadd.f32 %v4393, %v5784
          %v5786 = vpop.f32.mrf.mxu0
          %v5787 = vadd.f32 %v4397, %v5786
          %v5788 = vpop.f32.mrf.mxu0
          %v5789 = vadd.f32 %v4393, %v5788
          %v5790 = vpop.f32.mrf.mxu0
          %v5791 = vadd.f32 %v4397, %v5790
          %5792 = vmatprep.mubr.bf16.mxu0 %v4125
          %5793 = vmatmul.mubr.bf16.gmra.mxu0 %v4124
          %v5794 = vpop.f32.mrf.mxu0
          %v5795 = vadd.f32 %v4393, %v5794
          %v5796 = vpop.f32.mrf.mxu0
          %v5797 = vadd.f32 %v4397, %v5796
          %v5798 = vpop.f32.mrf.mxu0
          %v5799 = vadd.f32 %v4393, %v5798
          %v5800 = vpop.f32.mrf.mxu0
          %v5801 = vadd.f32 %v4397, %v5800
          %5802 = vdwg.mxu0
          %5803 = vmatprep.subr.bf16.mxu0 %v5271
          %5804 = vmatpush1.bf16.msra.mxu0 %v5270
          %5805 = vmatprep.subr.bf16.mxu0 %v5267
          %5806 = vmatpush1.bf16.msra.mxu0 %v5266
          %5807 = vmatprep.subr.bf16.mxu0 %v5263
          %5808 = vmatpush1.bf16.msra.mxu0 %v5262
          %5809 = vmatprep.subr.bf16.mxu0 %v5259
          %5810 = vmatpush1.bf16.msra.mxu0 %v5258
          %5811 = vmatprep.subr.bf16.mxu0 %v5255
          %5812 = vmatpush1.bf16.msra.mxu0 %v5254
          %5813 = vmatprep.subr.bf16.mxu0 %v5251
          %5814 = vmatpush1.bf16.msra.mxu0 %v5250
          %5815 = vmatprep.subr.bf16.mxu0 %v5247
          %5816 = vmatpush1.bf16.msra.mxu0 %v5246
          %5817 = vmatprep.subr.bf16.mxu0 %v5243
          %5818 = vmatpush1.bf16.msra.mxu0 %v5242
          %5819 = vmatprep.subr.bf16.mxu0 %v5303
          %5820 = vmatpush2.bf16.msra.mxu0 %v5302
          %5821 = vmatprep.subr.bf16.mxu0 %v5299
          %5822 = vmatpush2.bf16.msra.mxu0 %v5298
          %5823 = vmatprep.subr.bf16.mxu0 %v5295
          %5824 = vmatpush2.bf16.msra.mxu0 %v5294
          %5825 = vmatprep.subr.bf16.mxu0 %v5291
          %5826 = vmatpush2.bf16.msra.mxu0 %v5290
          %5827 = vmatprep.subr.bf16.mxu0 %v5287
          %5828 = vmatpush2.bf16.msra.mxu0 %v5286
          %5829 = vmatprep.subr.bf16.mxu0 %v5283
          %5830 = vmatpush2.bf16.msra.mxu0 %v5282
          %5831 = vmatprep.subr.bf16.mxu0 %v5279
          %5832 = vmatpush2.bf16.msra.mxu0 %v5278
          %5833 = vmatprep.subr.bf16.mxu0 %v5275
          %5834 = vmatpush2.bf16.msra.mxu0 %v5274
          %5835 = vmatprep.mubr.bf16.mxu0 %v4071
          %5836 = vmatmul.mubr.bf16.gmra.mxu0 %v4070
          %v5837 = vpop.f32.mrf.mxu0
          %v5838 = vadd.f32 %v5725, %v5837
          %v5839 = vpop.f32.mrf.mxu0
          %v5840 = vadd.f32 %v5727, %v5839
          %v5841 = vpop.f32.mrf.mxu0
          %v5842 = vadd.f32 %v5729, %v5841
          %v5843 = vpop.f32.mrf.mxu0
          %v5844 = vadd.f32 %v5731, %v5843
          %5845 = vmatprep.mubr.bf16.mxu0 %v4079
          %5846 = vmatmul.mubr.bf16.gmra.mxu0 %v4078
          %v5847 = vpop.f32.mrf.mxu0
          %v5848 = vadd.f32 %v5735, %v5847
          %v5849 = vpop.f32.mrf.mxu0
          %v5850 = vadd.f32 %v5737, %v5849
          %v5851 = vpop.f32.mrf.mxu0
          %v5852 = vadd.f32 %v5739, %v5851
          %v5853 = vpop.f32.mrf.mxu0
          %v5854 = vadd.f32 %v5741, %v5853
          %5855 = vmatprep.mubr.bf16.mxu0 %v4087
          %5856 = vmatmul.mubr.bf16.gmra.mxu0 %v4086
          %v5857 = vpop.f32.mrf.mxu0
          %v5858 = vadd.f32 %v5745, %v5857
          %v5859 = vpop.f32.mrf.mxu0
          %v5860 = vadd.f32 %v5747, %v5859
          %v5861 = vpop.f32.mrf.mxu0
          %v5862 = vadd.f32 %v5749, %v5861
          %v5863 = vpop.f32.mrf.mxu0
          %v5864 = vadd.f32 %v5751, %v5863
          %5865 = vmatprep.mubr.bf16.mxu0 %v4095
          %5866 = vmatmul.mubr.bf16.gmra.mxu0 %v4094
          %v5867 = vpop.f32.mrf.mxu0
          %v5868 = vadd.f32 %v5755, %v5867
          %v5869 = vpop.f32.mrf.mxu0
          %v5870 = vadd.f32 %v5757, %v5869
          %v5871 = vpop.f32.mrf.mxu0
          %v5872 = vadd.f32 %v5759, %v5871
          %v5873 = vpop.f32.mrf.mxu0
          %v5874 = vadd.f32 %v5761, %v5873
          %5875 = vmatprep.mubr.bf16.mxu0 %v4103
          %5876 = vmatmul.mubr.bf16.gmra.mxu0 %v4102
          %v5877 = vpop.f32.mrf.mxu0
          %v5878 = vadd.f32 %v5765, %v5877
          %v5879 = vpop.f32.mrf.mxu0
          %v5880 = vadd.f32 %v5767, %v5879
          %v5881 = vpop.f32.mrf.mxu0
          %v5882 = vadd.f32 %v5769, %v5881
          %v5883 = vpop.f32.mrf.mxu0
          %v5884 = vadd.f32 %v5771, %v5883
          %5885 = vmatprep.mubr.bf16.mxu0 %v4111
          %5886 = vmatmul.mubr.bf16.gmra.mxu0 %v4110
          %v5887 = vpop.f32.mrf.mxu0
          %v5888 = vadd.f32 %v5775, %v5887
          %v5889 = vpop.f32.mrf.mxu0
          %v5890 = vadd.f32 %v5777, %v5889
          %v5891 = vpop.f32.mrf.mxu0
          %v5892 = vadd.f32 %v5779, %v5891
          %v5893 = vpop.f32.mrf.mxu0
          %v5894 = vadd.f32 %v5781, %v5893
          %5895 = vmatprep.mubr.bf16.mxu0 %v4119
          %5896 = vmatmul.mubr.bf16.gmra.mxu0 %v4118
          %v5897 = vpop.f32.mrf.mxu0
          %v5898 = vadd.f32 %v5785, %v5897
          %v5899 = vpop.f32.mrf.mxu0
          %v5900 = vadd.f32 %v5787, %v5899
          %v5901 = vpop.f32.mrf.mxu0
          %v5902 = vadd.f32 %v5789, %v5901
          %v5903 = vpop.f32.mrf.mxu0
          %v5904 = vadd.f32 %v5791, %v5903
          %5905 = vmatprep.mubr.bf16.mxu0 %v4127
          %5906 = vmatmul.mubr.bf16.gmra.mxu0 %v4126
          %v5907 = vpop.f32.mrf.mxu0
          %v5908 = vadd.f32 %v5795, %v5907
          %v5909 = vpop.f32.mrf.mxu0
          %v5910 = vadd.f32 %v5797, %v5909
          %v5911 = vpop.f32.mrf.mxu0
          %v5912 = vadd.f32 %v5799, %v5911
          %v5913 = vpop.f32.mrf.mxu0
          %v5914 = vadd.f32 %v5801, %v5913
          %5915 = vdwg.mxu0
          %5916 = vmatprep.subr.bf16.mxu0 %v5335
          %5917 = vmatpush1.bf16.msra.mxu0 %v5334
          %5918 = vmatprep.subr.bf16.mxu0 %v5331
          %5919 = vmatpush1.bf16.msra.mxu0 %v5330
          %5920 = vmatprep.subr.bf16.mxu0 %v5327
          %5921 = vmatpush1.bf16.msra.mxu0 %v5326
          %5922 = vmatprep.subr.bf16.mxu0 %v5323
          %5923 = vmatpush1.bf16.msra.mxu0 %v5322
          %5924 = vmatprep.subr.bf16.mxu0 %v5319
          %5925 = vmatpush1.bf16.msra.mxu0 %v5318
          %5926 = vmatprep.subr.bf16.mxu0 %v5315
          %5927 = vmatpush1.bf16.msra.mxu0 %v5314
          %5928 = vmatprep.subr.bf16.mxu0 %v5311
          %5929 = vmatpush1.bf16.msra.mxu0 %v5310
          %5930 = vmatprep.subr.bf16.mxu0 %v5307
          %5931 = vmatpush1.bf16.msra.mxu0 %v5306
          %5932 = vmatprep.subr.bf16.mxu0 %v5367
          %5933 = vmatpush2.bf16.msra.mxu0 %v5366
          %5934 = vmatprep.subr.bf16.mxu0 %v5363
          %5935 = vmatpush2.bf16.msra.mxu0 %v5362
          %5936 = vmatprep.subr.bf16.mxu0 %v5359
          %5937 = vmatpush2.bf16.msra.mxu0 %v5358
          %5938 = vmatprep.subr.bf16.mxu0 %v5355
          %5939 = vmatpush2.bf16.msra.mxu0 %v5354
          %5940 = vmatprep.subr.bf16.mxu0 %v5351
          %5941 = vmatpush2.bf16.msra.mxu0 %v5350
          %5942 = vmatprep.subr.bf16.mxu0 %v5347
          %5943 = vmatpush2.bf16.msra.mxu0 %v5346
          %5944 = vmatprep.subr.bf16.mxu0 %v5343
          %5945 = vmatpush2.bf16.msra.mxu0 %v5342
          %5946 = vmatprep.subr.bf16.mxu0 %v5339
          %5947 = vmatpush2.bf16.msra.mxu0 %v5338
          %5948 = vmatprep.mubr.bf16.mxu0 %v4073
          %5949 = vmatmul.mubr.bf16.gmra.mxu0 %v4072
          %v5950 = vpop.f32.mrf.mxu0
          %v5951 = vadd.f32 %v5838, %v5950
          %v5952 = vpop.f32.mrf.mxu0
          %v5953 = vadd.f32 %v5840, %v5952
          %v5954 = vpop.f32.mrf.mxu0
          %v5955 = vadd.f32 %v5842, %v5954
          %v5956 = vpop.f32.mrf.mxu0
          %v5957 = vadd.f32 %v5844, %v5956
          %5958 = vmatprep.mubr.bf16.mxu0 %v4081
          %5959 = vmatmul.mubr.bf16.gmra.mxu0 %v4080
          %v5960 = vpop.f32.mrf.mxu0
          %v5961 = vadd.f32 %v5848, %v5960
          %v5962 = vpop.f32.mrf.mxu0
          %v5963 = vadd.f32 %v5850, %v5962
          %v5964 = vpop.f32.mrf.mxu0
          %v5965 = vadd.f32 %v5852, %v5964
          %v5966 = vpop.f32.mrf.mxu0
          %v5967 = vadd.f32 %v5854, %v5966
          %5968 = vmatprep.mubr.bf16.mxu0 %v4089
          %5969 = vmatmul.mubr.bf16.gmra.mxu0 %v4088
          %v5970 = vpop.f32.mrf.mxu0
          %v5971 = vadd.f32 %v5858, %v5970
          %v5972 = vpop.f32.mrf.mxu0
          %v5973 = vadd.f32 %v5860, %v5972
          %v5974 = vpop.f32.mrf.mxu0
          %v5975 = vadd.f32 %v5862, %v5974
          %v5976 = vpop.f32.mrf.mxu0
          %v5977 = vadd.f32 %v5864, %v5976
          %5978 = vmatprep.mubr.bf16.mxu0 %v4097
          %5979 = vmatmul.mubr.bf16.gmra.mxu0 %v4096
          %v5980 = vpop.f32.mrf.mxu0
          %v5981 = vadd.f32 %v5868, %v5980
          %v5982 = vpop.f32.mrf.mxu0
          %v5983 = vadd.f32 %v5870, %v5982
          %v5984 = vpop.f32.mrf.mxu0
          %v5985 = vadd.f32 %v5872, %v5984
          %v5986 = vpop.f32.mrf.mxu0
          %v5987 = vadd.f32 %v5874, %v5986
          %5988 = vmatprep.mubr.bf16.mxu0 %v4105
          %5989 = vmatmul.mubr.bf16.gmra.mxu0 %v4104
          %v5990 = vpop.f32.mrf.mxu0
          %v5991 = vadd.f32 %v5878, %v5990
          %v5992 = vpop.f32.mrf.mxu0
          %v5993 = vadd.f32 %v5880, %v5992
          %v5994 = vpop.f32.mrf.mxu0
          %v5995 = vadd.f32 %v5882, %v5994
          %v5996 = vpop.f32.mrf.mxu0
          %v5997 = vadd.f32 %v5884, %v5996
          %5998 = vmatprep.mubr.bf16.mxu0 %v4113
          %5999 = vmatmul.mubr.bf16.gmra.mxu0 %v4112
          %v6000 = vpop.f32.mrf.mxu0
          %v6001 = vadd.f32 %v5888, %v6000
          %v6002 = vpop.f32.mrf.mxu0
          %v6003 = vadd.f32 %v5890, %v6002
          %v6004 = vpop.f32.mrf.mxu0
          %v6005 = vadd.f32 %v5892, %v6004
          %v6006 = vpop.f32.mrf.mxu0
          %v6007 = vadd.f32 %v5894, %v6006
          %6008 = vmatprep.mubr.bf16.mxu0 %v4121
          %6009 = vmatmul.mubr.bf16.gmra.mxu0 %v4120
          %v6010 = vpop.f32.mrf.mxu0
          %v6011 = vadd.f32 %v5898, %v6010
          %v6012 = vpop.f32.mrf.mxu0
          %v6013 = vadd.f32 %v5900, %v6012
          %v6014 = vpop.f32.mrf.mxu0
          %v6015 = vadd.f32 %v5902, %v6014
          %v6016 = vpop.f32.mrf.mxu0
          %v6017 = vadd.f32 %v5904, %v6016
          %6018 = vmatprep.mubr.bf16.mxu0 %v4129
          %6019 = vmatmul.mubr.bf16.gmra.mxu0 %v4128
          %v6020 = vpop.f32.mrf.mxu0
          %v6021 = vadd.f32 %v5908, %v6020
          %v6022 = vpop.f32.mrf.mxu0
          %v6023 = vadd.f32 %v5910, %v6022
          %v6024 = vpop.f32.mrf.mxu0
          %v6025 = vadd.f32 %v5912, %v6024
          %v6026 = vpop.f32.mrf.mxu0
          %v6027 = vadd.f32 %v5914, %v6026
          %6028 = vdwg.mxu0
          %6029 = vmatprep.subr.bf16.mxu0 %v5399
          %6030 = vmatpush1.bf16.msra.mxu0 %v5398
          %6031 = vmatprep.subr.bf16.mxu0 %v5395
          %6032 = vmatpush1.bf16.msra.mxu0 %v5394
          %6033 = vmatprep.subr.bf16.mxu0 %v5391
          %6034 = vmatpush1.bf16.msra.mxu0 %v5390
          %6035 = vmatprep.subr.bf16.mxu0 %v5387
          %6036 = vmatpush1.bf16.msra.mxu0 %v5386
          %6037 = vmatprep.subr.bf16.mxu0 %v5383
          %6038 = vmatpush1.bf16.msra.mxu0 %v5382
          %6039 = vmatprep.subr.bf16.mxu0 %v5379
          %6040 = vmatpush1.bf16.msra.mxu0 %v5378
          %6041 = vmatprep.subr.bf16.mxu0 %v5375
          %6042 = vmatpush1.bf16.msra.mxu0 %v5374
          %6043 = vmatprep.subr.bf16.mxu0 %v5371
          %6044 = vmatpush1.bf16.msra.mxu0 %v5370
          %6045 = vmatprep.subr.bf16.mxu0 %v5431
          %6046 = vmatpush2.bf16.msra.mxu0 %v5430
          %6047 = vmatprep.subr.bf16.mxu0 %v5427
          %6048 = vmatpush2.bf16.msra.mxu0 %v5426
          %6049 = vmatprep.subr.bf16.mxu0 %v5423
          %6050 = vmatpush2.bf16.msra.mxu0 %v5422
          %6051 = vmatprep.subr.bf16.mxu0 %v5419
          %6052 = vmatpush2.bf16.msra.mxu0 %v5418
          %6053 = vmatprep.subr.bf16.mxu0 %v5415
          %6054 = vmatpush2.bf16.msra.mxu0 %v5414
          %6055 = vmatprep.subr.bf16.mxu0 %v5411
          %6056 = vmatpush2.bf16.msra.mxu0 %v5410
          %6057 = vmatprep.subr.bf16.mxu0 %v5407
          %6058 = vmatpush2.bf16.msra.mxu0 %v5406
          %6059 = vmatprep.subr.bf16.mxu0 %v5403
          %6060 = vmatpush2.bf16.msra.mxu0 %v5402
          %6061 = vmatprep.mubr.bf16.mxu0 %v4075
          %6062 = vmatmul.mubr.bf16.gmra.mxu0 %v4074
          %v6063 = vpop.f32.mrf.mxu0
          %v6064 = vadd.f32 %v5951, %v6063
          %v6065 = vpop.f32.mrf.mxu0
          %v6066 = vadd.f32 %v5953, %v6065
          %v6067 = vpop.f32.mrf.mxu0
          %v6068 = vadd.f32 %v5955, %v6067
          %v6069 = vpop.f32.mrf.mxu0
          %v6070 = vadd.f32 %v5957, %v6069
          %6071 = vmatprep.mubr.bf16.mxu0 %v4083
          %6072 = vmatmul.mubr.bf16.gmra.mxu0 %v4082
          %v6073 = vpop.f32.mrf.mxu0
          %v6074 = vadd.f32 %v5961, %v6073
          %v6075 = vpop.f32.mrf.mxu0
          %v6076 = vadd.f32 %v5963, %v6075
          %v6077 = vpop.f32.mrf.mxu0
          %v6078 = vadd.f32 %v5965, %v6077
          %v6079 = vpop.f32.mrf.mxu0
          %v6080 = vadd.f32 %v5967, %v6079
          %6081 = vmatprep.mubr.bf16.mxu0 %v4091
          %6082 = vmatmul.mubr.bf16.gmra.mxu0 %v4090
          %v6083 = vpop.f32.mrf.mxu0
          %v6084 = vadd.f32 %v5971, %v6083
          %v6085 = vpop.f32.mrf.mxu0
          %v6086 = vadd.f32 %v5973, %v6085
          %v6087 = vpop.f32.mrf.mxu0
          %v6088 = vadd.f32 %v5975, %v6087
          %v6089 = vpop.f32.mrf.mxu0
          %v6090 = vadd.f32 %v5977, %v6089
          %6091 = vmatprep.mubr.bf16.mxu0 %v4099
          %6092 = vmatmul.mubr.bf16.gmra.mxu0 %v4098
          %v6093 = vpop.f32.mrf.mxu0
          %v6094 = vadd.f32 %v5981, %v6093
          %v6095 = vpop.f32.mrf.mxu0
          %v6096 = vadd.f32 %v5983, %v6095
          %v6097 = vpop.f32.mrf.mxu0
          %v6098 = vadd.f32 %v5985, %v6097
          %v6099 = vpop.f32.mrf.mxu0
          %v6100 = vadd.f32 %v5987, %v6099
          %6101 = vmatprep.mubr.bf16.mxu0 %v4107
          %6102 = vmatmul.mubr.bf16.gmra.mxu0 %v4106
          %v6103 = vpop.f32.mrf.mxu0
          %v6104 = vadd.f32 %v5991, %v6103
          %v6105 = vpop.f32.mrf.mxu0
          %v6106 = vadd.f32 %v5993, %v6105
          %v6107 = vpop.f32.mrf.mxu0
          %v6108 = vadd.f32 %v5995, %v6107
          %v6109 = vpop.f32.mrf.mxu0
          %v6110 = vadd.f32 %v5997, %v6109
          %6111 = vmatprep.mubr.bf16.mxu0 %v4115
          %6112 = vmatmul.mubr.bf16.gmra.mxu0 %v4114
          %v6113 = vpop.f32.mrf.mxu0
          %v6114 = vadd.f32 %v6001, %v6113
          %v6115 = vpop.f32.mrf.mxu0
          %v6116 = vadd.f32 %v6003, %v6115
          %v6117 = vpop.f32.mrf.mxu0
          %v6118 = vadd.f32 %v6005, %v6117
          %v6119 = vpop.f32.mrf.mxu0
          %v6120 = vadd.f32 %v6007, %v6119
          %6121 = vmatprep.mubr.bf16.mxu0 %v4123
          %6122 = vmatmul.mubr.bf16.gmra.mxu0 %v4122
          %v6123 = vpop.f32.mrf.mxu0
          %v6124 = vadd.f32 %v6011, %v6123
          %v6125 = vpop.f32.mrf.mxu0
          %v6126 = vadd.f32 %v6013, %v6125
          %v6127 = vpop.f32.mrf.mxu0
          %v6128 = vadd.f32 %v6015, %v6127
          %v6129 = vpop.f32.mrf.mxu0
          %v6130 = vadd.f32 %v6017, %v6129
          %6131 = vmatprep.mubr.bf16.mxu0 %v4131
          %6132 = vmatmul.mubr.bf16.gmra.mxu0 %v4130
          %v6133 = vpop.f32.mrf.mxu0
          %v6134 = vadd.f32 %v6021, %v6133
          %v6135 = vpop.f32.mrf.mxu0
          %v6136 = vadd.f32 %v6023, %v6135
          %v6137 = vpop.f32.mrf.mxu0
          %v6138 = vadd.f32 %v6025, %v6137
          %v6139 = vpop.f32.mrf.mxu0
          %v6140 = vadd.f32 %v6027, %v6139
          %6141 = vdwg.mxu0
          %6142 = vmatprep.subr.bf16.mxu0 %v5209
          %6143 = vmatpush1.bf16.msra.mxu0 %v5208
          %6144 = vmatprep.subr.bf16.mxu0 %v5205
          %6145 = vmatpush1.bf16.msra.mxu0 %v5204
          %6146 = vmatprep.subr.bf16.mxu0 %v5201
          %6147 = vmatpush1.bf16.msra.mxu0 %v5200
          %6148 = vmatprep.subr.bf16.mxu0 %v5197
          %6149 = vmatpush1.bf16.msra.mxu0 %v5196
          %6150 = vmatprep.subr.bf16.mxu0 %v5193
          %6151 = vmatpush1.bf16.msra.mxu0 %v5192
          %6152 = vmatprep.subr.bf16.mxu0 %v5189
          %6153 = vmatpush1.bf16.msra.mxu0 %v5188
          %6154 = vmatprep.subr.bf16.mxu0 %v5185
          %6155 = vmatpush1.bf16.msra.mxu0 %v5184
          %6156 = vmatprep.subr.bf16.mxu0 %v5181
          %6157 = vmatpush1.bf16.msra.mxu0 %v5180
          %6158 = vmatprep.subr.bf16.mxu0 %v5241
          %6159 = vmatpush2.bf16.msra.mxu0 %v5240
          %6160 = vmatprep.subr.bf16.mxu0 %v5237
          %6161 = vmatpush2.bf16.msra.mxu0 %v5236
          %6162 = vmatprep.subr.bf16.mxu0 %v5233
          %6163 = vmatpush2.bf16.msra.mxu0 %v5232
          %6164 = vmatprep.subr.bf16.mxu0 %v5229
          %6165 = vmatpush2.bf16.msra.mxu0 %v5228
          %6166 = vmatprep.subr.bf16.mxu0 %v5225
          %6167 = vmatpush2.bf16.msra.mxu0 %v5224
          %6168 = vmatprep.subr.bf16.mxu0 %v5221
          %6169 = vmatpush2.bf16.msra.mxu0 %v5220
          %6170 = vmatprep.subr.bf16.mxu0 %v5217
          %6171 = vmatpush2.bf16.msra.mxu0 %v5216
          %6172 = vmatprep.subr.bf16.mxu0 %v5213
          %6173 = vmatpush2.bf16.msra.mxu0 %v5212
          %6174 = vmatprep.mubr.bf16.mxu0 %v4069
          %6175 = vmatmul.mubr.bf16.gmra.mxu0 %v4068
          %v6176 = vpop.f32.mrf.mxu0
          %v6177 = vadd.f32 %v4401, %v6176
          %v6178 = vpop.f32.mrf.mxu0
          %v6179 = vadd.f32 %v4405, %v6178
          %v6180 = vpop.f32.mrf.mxu0
          %v6181 = vadd.f32 %v4401, %v6180
          %v6182 = vpop.f32.mrf.mxu0
          %v6183 = vadd.f32 %v4405, %v6182
          %6184 = vmatprep.mubr.bf16.mxu0 %v4077
          %6185 = vmatmul.mubr.bf16.gmra.mxu0 %v4076
          %v6186 = vpop.f32.mrf.mxu0
          %v6187 = vadd.f32 %v4401, %v6186
          %v6188 = vpop.f32.mrf.mxu0
          %v6189 = vadd.f32 %v4405, %v6188
          %v6190 = vpop.f32.mrf.mxu0
          %v6191 = vadd.f32 %v4401, %v6190
          %v6192 = vpop.f32.mrf.mxu0
          %v6193 = vadd.f32 %v4405, %v6192
          %6194 = vmatprep.mubr.bf16.mxu0 %v4085
          %6195 = vmatmul.mubr.bf16.gmra.mxu0 %v4084
          %v6196 = vpop.f32.mrf.mxu0
          %v6197 = vadd.f32 %v4401, %v6196
          %v6198 = vpop.f32.mrf.mxu0
          %v6199 = vadd.f32 %v4405, %v6198
          %v6200 = vpop.f32.mrf.mxu0
          %v6201 = vadd.f32 %v4401, %v6200
          %v6202 = vpop.f32.mrf.mxu0
          %v6203 = vadd.f32 %v4405, %v6202
          %6204 = vmatprep.mubr.bf16.mxu0 %v4093
          %6205 = vmatmul.mubr.bf16.gmra.mxu0 %v4092
          %v6206 = vpop.f32.mrf.mxu0
          %v6207 = vadd.f32 %v4401, %v6206
          %v6208 = vpop.f32.mrf.mxu0
          %v6209 = vadd.f32 %v4405, %v6208
          %v6210 = vpop.f32.mrf.mxu0
          %v6211 = vadd.f32 %v4401, %v6210
          %v6212 = vpop.f32.mrf.mxu0
          %v6213 = vadd.f32 %v4405, %v6212
          %6214 = vmatprep.mubr.bf16.mxu0 %v4101
          %6215 = vmatmul.mubr.bf16.gmra.mxu0 %v4100
          %v6216 = vpop.f32.mrf.mxu0
          %v6217 = vadd.f32 %v4401, %v6216
          %v6218 = vpop.f32.mrf.mxu0
          %v6219 = vadd.f32 %v4405, %v6218
          %v6220 = vpop.f32.mrf.mxu0
          %v6221 = vadd.f32 %v4401, %v6220
          %v6222 = vpop.f32.mrf.mxu0
          %v6223 = vadd.f32 %v4405, %v6222
          %6224 = vmatprep.mubr.bf16.mxu0 %v4109
          %6225 = vmatmul.mubr.bf16.gmra.mxu0 %v4108
          %v6226 = vpop.f32.mrf.mxu0
          %v6227 = vadd.f32 %v4401, %v6226
          %v6228 = vpop.f32.mrf.mxu0
          %v6229 = vadd.f32 %v4405, %v6228
          %v6230 = vpop.f32.mrf.mxu0
          %v6231 = vadd.f32 %v4401, %v6230
          %v6232 = vpop.f32.mrf.mxu0
          %v6233 = vadd.f32 %v4405, %v6232
          %6234 = vmatprep.mubr.bf16.mxu0 %v4117
          %6235 = vmatmul.mubr.bf16.gmra.mxu0 %v4116
          %v6236 = vpop.f32.mrf.mxu0
          %v6237 = vadd.f32 %v4401, %v6236
          %v6238 = vpop.f32.mrf.mxu0
          %v6239 = vadd.f32 %v4405, %v6238
          %v6240 = vpop.f32.mrf.mxu0
          %v6241 = vadd.f32 %v4401, %v6240
          %v6242 = vpop.f32.mrf.mxu0
          %v6243 = vadd.f32 %v4405, %v6242
          %6244 = vmatprep.mubr.bf16.mxu0 %v4125
          %6245 = vmatmul.mubr.bf16.gmra.mxu0 %v4124
          %v6246 = vpop.f32.mrf.mxu0
          %v6247 = vadd.f32 %v4401, %v6246
          %v6248 = vpop.f32.mrf.mxu0
          %v6249 = vadd.f32 %v4405, %v6248
          %v6250 = vpop.f32.mrf.mxu0
          %v6251 = vadd.f32 %v4401, %v6250
          %v6252 = vpop.f32.mrf.mxu0
          %v6253 = vadd.f32 %v4405, %v6252
          %6254 = vdwg.mxu0
          %6255 = vmatprep.subr.bf16.mxu0 %v5273
          %6256 = vmatpush1.bf16.msra.mxu0 %v5272
          %6257 = vmatprep.subr.bf16.mxu0 %v5269
          %6258 = vmatpush1.bf16.msra.mxu0 %v5268
          %6259 = vmatprep.subr.bf16.mxu0 %v5265
          %6260 = vmatpush1.bf16.msra.mxu0 %v5264
          %6261 = vmatprep.subr.bf16.mxu0 %v5261
          %6262 = vmatpush1.bf16.msra.mxu0 %v5260
          %6263 = vmatprep.subr.bf16.mxu0 %v5257
          %6264 = vmatpush1.bf16.msra.mxu0 %v5256
          %6265 = vmatprep.subr.bf16.mxu0 %v5253
          %6266 = vmatpush1.bf16.msra.mxu0 %v5252
          %6267 = vmatprep.subr.bf16.mxu0 %v5249
          %6268 = vmatpush1.bf16.msra.mxu0 %v5248
          %6269 = vmatprep.subr.bf16.mxu0 %v5245
          %6270 = vmatpush1.bf16.msra.mxu0 %v5244
          %6271 = vmatprep.subr.bf16.mxu0 %v5305
          %6272 = vmatpush2.bf16.msra.mxu0 %v5304
          %6273 = vmatprep.subr.bf16.mxu0 %v5301
          %6274 = vmatpush2.bf16.msra.mxu0 %v5300
          %6275 = vmatprep.subr.bf16.mxu0 %v5297
          %6276 = vmatpush2.bf16.msra.mxu0 %v5296
          %6277 = vmatprep.subr.bf16.mxu0 %v5293
          %6278 = vmatpush2.bf16.msra.mxu0 %v5292
          %6279 = vmatprep.subr.bf16.mxu0 %v5289
          %6280 = vmatpush2.bf16.msra.mxu0 %v5288
          %6281 = vmatprep.subr.bf16.mxu0 %v5285
          %6282 = vmatpush2.bf16.msra.mxu0 %v5284
          %6283 = vmatprep.subr.bf16.mxu0 %v5281
          %6284 = vmatpush2.bf16.msra.mxu0 %v5280
          %6285 = vmatprep.subr.bf16.mxu0 %v5277
          %6286 = vmatpush2.bf16.msra.mxu0 %v5276
          %6287 = vmatprep.mubr.bf16.mxu0 %v4071
          %6288 = vmatmul.mubr.bf16.gmra.mxu0 %v4070
          %v6289 = vpop.f32.mrf.mxu0
          %v6290 = vadd.f32 %v6177, %v6289
          %v6291 = vpop.f32.mrf.mxu0
          %v6292 = vadd.f32 %v6179, %v6291
          %v6293 = vpop.f32.mrf.mxu0
          %v6294 = vadd.f32 %v6181, %v6293
          %v6295 = vpop.f32.mrf.mxu0
          %v6296 = vadd.f32 %v6183, %v6295
          %6297 = vmatprep.mubr.bf16.mxu0 %v4079
          %6298 = vmatmul.mubr.bf16.gmra.mxu0 %v4078
          %v6299 = vpop.f32.mrf.mxu0
          %v6300 = vadd.f32 %v6187, %v6299
          %v6301 = vpop.f32.mrf.mxu0
          %v6302 = vadd.f32 %v6189, %v6301
          %v6303 = vpop.f32.mrf.mxu0
          %v6304 = vadd.f32 %v6191, %v6303
          %v6305 = vpop.f32.mrf.mxu0
          %v6306 = vadd.f32 %v6193, %v6305
          %6307 = vmatprep.mubr.bf16.mxu0 %v4087
          %6308 = vmatmul.mubr.bf16.gmra.mxu0 %v4086
          %v6309 = vpop.f32.mrf.mxu0
          %v6310 = vadd.f32 %v6197, %v6309
          %v6311 = vpop.f32.mrf.mxu0
          %v6312 = vadd.f32 %v6199, %v6311
          %v6313 = vpop.f32.mrf.mxu0
          %v6314 = vadd.f32 %v6201, %v6313
          %v6315 = vpop.f32.mrf.mxu0
          %v6316 = vadd.f32 %v6203, %v6315
          %6317 = vmatprep.mubr.bf16.mxu0 %v4095
          %6318 = vmatmul.mubr.bf16.gmra.mxu0 %v4094
          %v6319 = vpop.f32.mrf.mxu0
          %v6320 = vadd.f32 %v6207, %v6319
          %v6321 = vpop.f32.mrf.mxu0
          %v6322 = vadd.f32 %v6209, %v6321
          %v6323 = vpop.f32.mrf.mxu0
          %v6324 = vadd.f32 %v6211, %v6323
          %v6325 = vpop.f32.mrf.mxu0
          %v6326 = vadd.f32 %v6213, %v6325
          %6327 = vmatprep.mubr.bf16.mxu0 %v4103
          %6328 = vmatmul.mubr.bf16.gmra.mxu0 %v4102
          %v6329 = vpop.f32.mrf.mxu0
          %v6330 = vadd.f32 %v6217, %v6329
          %v6331 = vpop.f32.mrf.mxu0
          %v6332 = vadd.f32 %v6219, %v6331
          %v6333 = vpop.f32.mrf.mxu0
          %v6334 = vadd.f32 %v6221, %v6333
          %v6335 = vpop.f32.mrf.mxu0
          %v6336 = vadd.f32 %v6223, %v6335
          %6337 = vmatprep.mubr.bf16.mxu0 %v4111
          %6338 = vmatmul.mubr.bf16.gmra.mxu0 %v4110
          %v6339 = vpop.f32.mrf.mxu0
          %v6340 = vadd.f32 %v6227, %v6339
          %v6341 = vpop.f32.mrf.mxu0
          %v6342 = vadd.f32 %v6229, %v6341
          %v6343 = vpop.f32.mrf.mxu0
          %v6344 = vadd.f32 %v6231, %v6343
          %v6345 = vpop.f32.mrf.mxu0
          %v6346 = vadd.f32 %v6233, %v6345
          %6347 = vmatprep.mubr.bf16.mxu0 %v4119
          %6348 = vmatmul.mubr.bf16.gmra.mxu0 %v4118
          %v6349 = vpop.f32.mrf.mxu0
          %v6350 = vadd.f32 %v6237, %v6349
          %v6351 = vpop.f32.mrf.mxu0
          %v6352 = vadd.f32 %v6239, %v6351
          %v6353 = vpop.f32.mrf.mxu0
          %v6354 = vadd.f32 %v6241, %v6353
          %v6355 = vpop.f32.mrf.mxu0
          %v6356 = vadd.f32 %v6243, %v6355
          %6357 = vmatprep.mubr.bf16.mxu0 %v4127
          %6358 = vmatmul.mubr.bf16.gmra.mxu0 %v4126
          %v6359 = vpop.f32.mrf.mxu0
          %v6360 = vadd.f32 %v6247, %v6359
          %v6361 = vpop.f32.mrf.mxu0
          %v6362 = vadd.f32 %v6249, %v6361
          %v6363 = vpop.f32.mrf.mxu0
          %v6364 = vadd.f32 %v6251, %v6363
          %v6365 = vpop.f32.mrf.mxu0
          %v6366 = vadd.f32 %v6253, %v6365
          %6367 = vdwg.mxu0
          %6368 = vmatprep.subr.bf16.mxu0 %v5337
          %6369 = vmatpush1.bf16.msra.mxu0 %v5336
          %6370 = vmatprep.subr.bf16.mxu0 %v5333
          %6371 = vmatpush1.bf16.msra.mxu0 %v5332
          %6372 = vmatprep.subr.bf16.mxu0 %v5329
          %6373 = vmatpush1.bf16.msra.mxu0 %v5328
          %6374 = vmatprep.subr.bf16.mxu0 %v5325
          %6375 = vmatpush1.bf16.msra.mxu0 %v5324
          %6376 = vmatprep.subr.bf16.mxu0 %v5321
          %6377 = vmatpush1.bf16.msra.mxu0 %v5320
          %6378 = vmatprep.subr.bf16.mxu0 %v5317
          %6379 = vmatpush1.bf16.msra.mxu0 %v5316
          %6380 = vmatprep.subr.bf16.mxu0 %v5313
          %6381 = vmatpush1.bf16.msra.mxu0 %v5312
          %6382 = vmatprep.subr.bf16.mxu0 %v5309
          %6383 = vmatpush1.bf16.msra.mxu0 %v5308
          %6384 = vmatprep.subr.bf16.mxu0 %v5369
          %6385 = vmatpush2.bf16.msra.mxu0 %v5368
          %6386 = vmatprep.subr.bf16.mxu0 %v5365
          %6387 = vmatpush2.bf16.msra.mxu0 %v5364
          %6388 = vmatprep.subr.bf16.mxu0 %v5361
          %6389 = vmatpush2.bf16.msra.mxu0 %v5360
          %6390 = vmatprep.subr.bf16.mxu0 %v5357
          %6391 = vmatpush2.bf16.msra.mxu0 %v5356
          %6392 = vmatprep.subr.bf16.mxu0 %v5353
          %6393 = vmatpush2.bf16.msra.mxu0 %v5352
          %6394 = vmatprep.subr.bf16.mxu0 %v5349
          %6395 = vmatpush2.bf16.msra.mxu0 %v5348
          %6396 = vmatprep.subr.bf16.mxu0 %v5345
          %6397 = vmatpush2.bf16.msra.mxu0 %v5344
          %6398 = vmatprep.subr.bf16.mxu0 %v5341
          %6399 = vmatpush2.bf16.msra.mxu0 %v5340
          %6400 = vmatprep.mubr.bf16.mxu0 %v4073
          %6401 = vmatmul.mubr.bf16.gmra.mxu0 %v4072
          %v6402 = vpop.f32.mrf.mxu0
          %v6403 = vadd.f32 %v6290, %v6402
          %v6404 = vpop.f32.mrf.mxu0
          %v6405 = vadd.f32 %v6292, %v6404
          %v6406 = vpop.f32.mrf.mxu0
          %v6407 = vadd.f32 %v6294, %v6406
          %v6408 = vpop.f32.mrf.mxu0
          %v6409 = vadd.f32 %v6296, %v6408
          %6410 = vmatprep.mubr.bf16.mxu0 %v4081
          %6411 = vmatmul.mubr.bf16.gmra.mxu0 %v4080
          %v6412 = vpop.f32.mrf.mxu0
          %v6413 = vadd.f32 %v6300, %v6412
          %v6414 = vpop.f32.mrf.mxu0
          %v6415 = vadd.f32 %v6302, %v6414
          %v6416 = vpop.f32.mrf.mxu0
          %v6417 = vadd.f32 %v6304, %v6416
          %v6418 = vpop.f32.mrf.mxu0
          %v6419 = vadd.f32 %v6306, %v6418
          %6420 = vmatprep.mubr.bf16.mxu0 %v4089
          %6421 = vmatmul.mubr.bf16.gmra.mxu0 %v4088
          %v6422 = vpop.f32.mrf.mxu0
          %v6423 = vadd.f32 %v6310, %v6422
          %v6424 = vpop.f32.mrf.mxu0
          %v6425 = vadd.f32 %v6312, %v6424
          %v6426 = vpop.f32.mrf.mxu0
          %v6427 = vadd.f32 %v6314, %v6426
          %v6428 = vpop.f32.mrf.mxu0
          %v6429 = vadd.f32 %v6316, %v6428
          %6430 = vmatprep.mubr.bf16.mxu0 %v4097
          %6431 = vmatmul.mubr.bf16.gmra.mxu0 %v4096
          %v6432 = vpop.f32.mrf.mxu0
          %v6433 = vadd.f32 %v6320, %v6432
          %v6434 = vpop.f32.mrf.mxu0
          %v6435 = vadd.f32 %v6322, %v6434
          %v6436 = vpop.f32.mrf.mxu0
          %v6437 = vadd.f32 %v6324, %v6436
          %v6438 = vpop.f32.mrf.mxu0
          %v6439 = vadd.f32 %v6326, %v6438
          %6440 = vmatprep.mubr.bf16.mxu0 %v4105
          %6441 = vmatmul.mubr.bf16.gmra.mxu0 %v4104
          %v6442 = vpop.f32.mrf.mxu0
          %v6443 = vadd.f32 %v6330, %v6442
          %v6444 = vpop.f32.mrf.mxu0
          %v6445 = vadd.f32 %v6332, %v6444
          %v6446 = vpop.f32.mrf.mxu0
          %v6447 = vadd.f32 %v6334, %v6446
          %v6448 = vpop.f32.mrf.mxu0
          %v6449 = vadd.f32 %v6336, %v6448
          %6450 = vmatprep.mubr.bf16.mxu0 %v4113
          %6451 = vmatmul.mubr.bf16.gmra.mxu0 %v4112
          %v6452 = vpop.f32.mrf.mxu0
          %v6453 = vadd.f32 %v6340, %v6452
          %v6454 = vpop.f32.mrf.mxu0
          %v6455 = vadd.f32 %v6342, %v6454
          %v6456 = vpop.f32.mrf.mxu0
          %v6457 = vadd.f32 %v6344, %v6456
          %v6458 = vpop.f32.mrf.mxu0
          %v6459 = vadd.f32 %v6346, %v6458
          %6460 = vmatprep.mubr.bf16.mxu0 %v4121
          %6461 = vmatmul.mubr.bf16.gmra.mxu0 %v4120
          %v6462 = vpop.f32.mrf.mxu0
          %v6463 = vadd.f32 %v6350, %v6462
          %v6464 = vpop.f32.mrf.mxu0
          %v6465 = vadd.f32 %v6352, %v6464
          %v6466 = vpop.f32.mrf.mxu0
          %v6467 = vadd.f32 %v6354, %v6466
          %v6468 = vpop.f32.mrf.mxu0
          %v6469 = vadd.f32 %v6356, %v6468
          %6470 = vmatprep.mubr.bf16.mxu0 %v4129
          %6471 = vmatmul.mubr.bf16.gmra.mxu0 %v4128
          %v6472 = vpop.f32.mrf.mxu0
          %v6473 = vadd.f32 %v6360, %v6472
          %v6474 = vpop.f32.mrf.mxu0
          %v6475 = vadd.f32 %v6362, %v6474
          %v6476 = vpop.f32.mrf.mxu0
          %v6477 = vadd.f32 %v6364, %v6476
          %v6478 = vpop.f32.mrf.mxu0
          %v6479 = vadd.f32 %v6366, %v6478
          %6480 = vdwg.mxu0
          %6481 = vmatprep.subr.bf16.mxu0 %v5401
          %6482 = vmatpush1.bf16.msra.mxu0 %v5400
          %6483 = vmatprep.subr.bf16.mxu0 %v5397
          %6484 = vmatpush1.bf16.msra.mxu0 %v5396
          %6485 = vmatprep.subr.bf16.mxu0 %v5393
          %6486 = vmatpush1.bf16.msra.mxu0 %v5392
          %6487 = vmatprep.subr.bf16.mxu0 %v5389
          %6488 = vmatpush1.bf16.msra.mxu0 %v5388
          %6489 = vmatprep.subr.bf16.mxu0 %v5385
          %6490 = vmatpush1.bf16.msra.mxu0 %v5384
          %6491 = vmatprep.subr.bf16.mxu0 %v5381
          %6492 = vmatpush1.bf16.msra.mxu0 %v5380
          %6493 = vmatprep.subr.bf16.mxu0 %v5377
          %6494 = vmatpush1.bf16.msra.mxu0 %v5376
          %6495 = vmatprep.subr.bf16.mxu0 %v5373
          %6496 = vmatpush1.bf16.msra.mxu0 %v5372
          %6497 = vmatprep.subr.bf16.mxu0 %v5433
          %6498 = vmatpush2.bf16.msra.mxu0 %v5432
          %6499 = vmatprep.subr.bf16.mxu0 %v5429
          %6500 = vmatpush2.bf16.msra.mxu0 %v5428
          %6501 = vmatprep.subr.bf16.mxu0 %v5425
          %6502 = vmatpush2.bf16.msra.mxu0 %v5424
          %6503 = vmatprep.subr.bf16.mxu0 %v5421
          %6504 = vmatpush2.bf16.msra.mxu0 %v5420
          %6505 = vmatprep.subr.bf16.mxu0 %v5417
          %6506 = vmatpush2.bf16.msra.mxu0 %v5416
          %6507 = vmatprep.subr.bf16.mxu0 %v5413
          %6508 = vmatpush2.bf16.msra.mxu0 %v5412
          %6509 = vmatprep.subr.bf16.mxu0 %v5409
          %6510 = vmatpush2.bf16.msra.mxu0 %v5408
          %6511 = vmatprep.subr.bf16.mxu0 %v5405
          %6512 = vmatpush2.bf16.msra.mxu0 %v5404
          %6513 = vmatprep.mubr.bf16.mxu0 %v4075
          %6514 = vmatmul.mubr.bf16.gmra.mxu0 %v4074
          %v6515 = vpop.f32.mrf.mxu0
          %v6516 = vadd.f32 %v6403, %v6515
          %v6517 = vpop.f32.mrf.mxu0
          %v6518 = vadd.f32 %v6405, %v6517
          %v6519 = vpop.f32.mrf.mxu0
          %v6520 = vadd.f32 %v6407, %v6519
          %v6521 = vpop.f32.mrf.mxu0
          %v6522 = vadd.f32 %v6409, %v6521
          %6523 = vmatprep.mubr.bf16.mxu0 %v4083
          %6524 = vmatmul.mubr.bf16.gmra.mxu0 %v4082
          %v6525 = vpop.f32.mrf.mxu0
          %v6526 = vadd.f32 %v6413, %v6525
          %v6527 = vpop.f32.mrf.mxu0
          %v6528 = vadd.f32 %v6415, %v6527
          %v6529 = vpop.f32.mrf.mxu0
          %v6530 = vadd.f32 %v6417, %v6529
          %v6531 = vpop.f32.mrf.mxu0
          %v6532 = vadd.f32 %v6419, %v6531
          %6533 = vmatprep.mubr.bf16.mxu0 %v4091
          %6534 = vmatmul.mubr.bf16.gmra.mxu0 %v4090
          %v6535 = vpop.f32.mrf.mxu0
          %v6536 = vadd.f32 %v6423, %v6535
          %v6537 = vpop.f32.mrf.mxu0
          %v6538 = vadd.f32 %v6425, %v6537
          %v6539 = vpop.f32.mrf.mxu0
          %v6540 = vadd.f32 %v6427, %v6539
          %v6541 = vpop.f32.mrf.mxu0
          %v6542 = vadd.f32 %v6429, %v6541
          %6543 = vmatprep.mubr.bf16.mxu0 %v4099
          %6544 = vmatmul.mubr.bf16.gmra.mxu0 %v4098
          %v6545 = vpop.f32.mrf.mxu0
          %v6546 = vadd.f32 %v6433, %v6545
          %v6547 = vpop.f32.mrf.mxu0
          %v6548 = vadd.f32 %v6435, %v6547
          %v6549 = vpop.f32.mrf.mxu0
          %v6550 = vadd.f32 %v6437, %v6549
          %v6551 = vpop.f32.mrf.mxu0
          %v6552 = vadd.f32 %v6439, %v6551
          %6553 = vmatprep.mubr.bf16.mxu0 %v4107
          %6554 = vmatmul.mubr.bf16.gmra.mxu0 %v4106
          %v6555 = vpop.f32.mrf.mxu0
          %v6556 = vadd.f32 %v6443, %v6555
          %v6557 = vpop.f32.mrf.mxu0
          %v6558 = vadd.f32 %v6445, %v6557
          %v6559 = vpop.f32.mrf.mxu0
          %v6560 = vadd.f32 %v6447, %v6559
          %v6561 = vpop.f32.mrf.mxu0
          %v6562 = vadd.f32 %v6449, %v6561
          %6563 = vmatprep.mubr.bf16.mxu0 %v4115
          %6564 = vmatmul.mubr.bf16.gmra.mxu0 %v4114
          %v6565 = vpop.f32.mrf.mxu0
          %v6566 = vadd.f32 %v6453, %v6565
          %v6567 = vpop.f32.mrf.mxu0
          %v6568 = vadd.f32 %v6455, %v6567
          %v6569 = vpop.f32.mrf.mxu0
          %v6570 = vadd.f32 %v6457, %v6569
          %v6571 = vpop.f32.mrf.mxu0
          %v6572 = vadd.f32 %v6459, %v6571
          %6573 = vmatprep.mubr.bf16.mxu0 %v4123
          %6574 = vmatmul.mubr.bf16.gmra.mxu0 %v4122
          %v6575 = vpop.f32.mrf.mxu0
          %v6576 = vadd.f32 %v6463, %v6575
          %v6577 = vpop.f32.mrf.mxu0
          %v6578 = vadd.f32 %v6465, %v6577
          %v6579 = vpop.f32.mrf.mxu0
          %v6580 = vadd.f32 %v6467, %v6579
          %v6581 = vpop.f32.mrf.mxu0
          %v6582 = vadd.f32 %v6469, %v6581
          %6583 = vmatprep.mubr.bf16.mxu0 %v4131
          %6584 = vmatmul.mubr.bf16.gmra.mxu0 %v4130
          %v6585 = vpop.f32.mrf.mxu0
          %v6586 = vadd.f32 %v6473, %v6585
          %v6587 = vpop.f32.mrf.mxu0
          %v6588 = vadd.f32 %v6475, %v6587
          %v6589 = vpop.f32.mrf.mxu0
          %v6590 = vadd.f32 %v6477, %v6589
          %v6591 = vpop.f32.mrf.mxu0
          %v6592 = vadd.f32 %v6479, %v6591
          %6593 = vdwg.mxu0
          %v6594 = vtanh.pop %v6064
          %v6595 = vtanh.pop %v6066
          %v6596 = vtanh.pop %v6068
          %v6597 = vtanh.pop %v6070
          %v6598 = vtanh.pop %v6074
          %v6599 = vtanh.pop %v6076
          %v6600 = vtanh.pop %v6078
          %v6601 = vtanh.pop %v6080
          %v6602 = vtanh.pop %v6084
          %v6603 = vtanh.pop %v6086
          %v6604 = vtanh.pop %v6088
          %v6605 = vtanh.pop %v6090
          %v6606 = vtanh.pop %v6094
          %v6607 = vtanh.pop %v6096
          %v6608 = vtanh.pop %v6098
          %v6609 = vtanh.pop %v6100
          %v6610 = vtanh.pop %v6104
          %v6611 = vtanh.pop %v6106
          %v6612 = vtanh.pop %v6108
          %v6613 = vtanh.pop %v6110
          %v6614 = vtanh.pop %v6114
          %v6615 = vtanh.pop %v6116
          %v6616 = vtanh.pop %v6118
          %v6617 = vtanh.pop %v6120
          %v6618 = vtanh.pop %v6124
          %v6619 = vtanh.pop %v6126
          %v6620 = vtanh.pop %v6128
          %v6621 = vtanh.pop %v6130
          %v6622 = vtanh.pop %v6134
          %v6623 = vtanh.pop %v6136
          %v6624 = vtanh.pop %v6138
          %v6625 = vtanh.pop %v6140
          %v6626 = vmul.f32 %v6516, 0.5
          %v6627 = vmul.f32 %v6518, 0.5
          %v6628 = vmul.f32 %v6520, 0.5
          %v6629 = vmul.f32 %v6522, 0.5
          %v6630 = vmul.f32 %v6526, 0.5
          %v6631 = vmul.f32 %v6528, 0.5
          %v6632 = vmul.f32 %v6530, 0.5
          %v6633 = vmul.f32 %v6532, 0.5
          %v6634 = vmul.f32 %v6536, 0.5
          %v6635 = vmul.f32 %v6538, 0.5
          %v6636 = vmul.f32 %v6540, 0.5
          %v6637 = vmul.f32 %v6542, 0.5
          %v6638 = vmul.f32 %v6546, 0.5
          %v6639 = vmul.f32 %v6548, 0.5
          %v6640 = vmul.f32 %v6550, 0.5
          %v6641 = vmul.f32 %v6552, 0.5
          %v6642 = vmul.f32 %v6556, 0.5
          %v6643 = vmul.f32 %v6558, 0.5
          %v6644 = vmul.f32 %v6560, 0.5
          %v6645 = vmul.f32 %v6562, 0.5
          %v6646 = vmul.f32 %v6566, 0.5
          %v6647 = vmul.f32 %v6568, 0.5
          %v6648 = vmul.f32 %v6570, 0.5
          %v6649 = vmul.f32 %v6572, 0.5
          %v6650 = vmul.f32 %v6576, 0.5
          %v6651 = vmul.f32 %v6578, 0.5
          %v6652 = vmul.f32 %v6580, 0.5
          %v6653 = vmul.f32 %v6582, 0.5
          %v6654 = vmul.f32 %v6586, 0.5
          %v6655 = vmul.f32 %v6588, 0.5
          %v6656 = vmul.f32 %v6590, 0.5
          %v6657 = vmul.f32 %v6592, 0.5
          %v6658 = vtanh.pop %v6626
          %v6659 = vtanh.pop %v6627
          %v6660 = vtanh.pop %v6628
          %v6661 = vtanh.pop %v6629
          %v6662 = vtanh.pop %v6630
          %v6663 = vtanh.pop %v6631
          %v6664 = vtanh.pop %v6632
          %v6665 = vtanh.pop %v6633
          %v6666 = vtanh.pop %v6634
          %v6667 = vtanh.pop %v6635
          %v6668 = vtanh.pop %v6636
          %v6669 = vtanh.pop %v6637
          %v6670 = vtanh.pop %v6638
          %v6671 = vtanh.pop %v6639
          %v6672 = vtanh.pop %v6640
          %v6673 = vtanh.pop %v6641
          %v6674 = vtanh.pop %v6642
          %v6675 = vtanh.pop %v6643
          %v6676 = vtanh.pop %v6644
          %v6677 = vtanh.pop %v6645
          %v6678 = vtanh.pop %v6646
          %v6679 = vtanh.pop %v6647
          %v6680 = vtanh.pop %v6648
          %v6681 = vtanh.pop %v6649
          %v6682 = vtanh.pop %v6650
          %v6683 = vtanh.pop %v6651
          %v6684 = vtanh.pop %v6652
          %v6685 = vtanh.pop %v6653
          %v6686 = vtanh.pop %v6654
          %v6687 = vtanh.pop %v6655
          %v6688 = vtanh.pop %v6656
          %v6689 = vtanh.pop %v6657
          %v6690 = vadd.f32 %v6658, 1.0
          %v6691 = vadd.f32 %v6659, 1.0
          %v6692 = vadd.f32 %v6660, 1.0
          %v6693 = vadd.f32 %v6661, 1.0
          %v6694 = vadd.f32 %v6662, 1.0
          %v6695 = vadd.f32 %v6663, 1.0
          %v6696 = vadd.f32 %v6664, 1.0
          %v6697 = vadd.f32 %v6665, 1.0
          %v6698 = vadd.f32 %v6666, 1.0
          %v6699 = vadd.f32 %v6667, 1.0
          %v6700 = vadd.f32 %v6668, 1.0
          %v6701 = vadd.f32 %v6669, 1.0
          %v6702 = vadd.f32 %v6670, 1.0
          %v6703 = vadd.f32 %v6671, 1.0
          %v6704 = vadd.f32 %v6672, 1.0
          %v6705 = vadd.f32 %v6673, 1.0
          %v6706 = vadd.f32 %v6674, 1.0
          %v6707 = vadd.f32 %v6675, 1.0
          %v6708 = vadd.f32 %v6676, 1.0
          %v6709 = vadd.f32 %v6677, 1.0
          %v6710 = vadd.f32 %v6678, 1.0
          %v6711 = vadd.f32 %v6679, 1.0
          %v6712 = vadd.f32 %v6680, 1.0
          %v6713 = vadd.f32 %v6681, 1.0
          %v6714 = vadd.f32 %v6682, 1.0
          %v6715 = vadd.f32 %v6683, 1.0
          %v6716 = vadd.f32 %v6684, 1.0
          %v6717 = vadd.f32 %v6685, 1.0
          %v6718 = vadd.f32 %v6686, 1.0
          %v6719 = vadd.f32 %v6687, 1.0
          %v6720 = vadd.f32 %v6688, 1.0
          %v6721 = vadd.f32 %v6689, 1.0
          %v6722 = vmul.f32 %v6690, 0.5
          %v6723 = vmul.f32 %v6691, 0.5
          %v6724 = vmul.f32 %v6692, 0.5
          %v6725 = vmul.f32 %v6693, 0.5
          %v6726 = vmul.f32 %v6694, 0.5
          %v6727 = vmul.f32 %v6695, 0.5
          %v6728 = vmul.f32 %v6696, 0.5
          %v6729 = vmul.f32 %v6697, 0.5
          %v6730 = vmul.f32 %v6698, 0.5
          %v6731 = vmul.f32 %v6699, 0.5
          %v6732 = vmul.f32 %v6700, 0.5
          %v6733 = vmul.f32 %v6701, 0.5
          %v6734 = vmul.f32 %v6702, 0.5
          %v6735 = vmul.f32 %v6703, 0.5
          %v6736 = vmul.f32 %v6704, 0.5
          %v6737 = vmul.f32 %v6705, 0.5
          %v6738 = vmul.f32 %v6706, 0.5
          %v6739 = vmul.f32 %v6707, 0.5
          %v6740 = vmul.f32 %v6708, 0.5
          %v6741 = vmul.f32 %v6709, 0.5
          %v6742 = vmul.f32 %v6710, 0.5
          %v6743 = vmul.f32 %v6711, 0.5
          %v6744 = vmul.f32 %v6712, 0.5
          %v6745 = vmul.f32 %v6713, 0.5
          %v6746 = vmul.f32 %v6714, 0.5
          %v6747 = vmul.f32 %v6715, 0.5
          %v6748 = vmul.f32 %v6716, 0.5
          %v6749 = vmul.f32 %v6717, 0.5
          %v6750 = vmul.f32 %v6718, 0.5
          %v6751 = vmul.f32 %v6719, 0.5
          %v6752 = vmul.f32 %v6720, 0.5
          %v6753 = vmul.f32 %v6721, 0.5
          %v6754 = vmul.f32 %v6594, %v6722
          %v6755 = vmul.f32 %v6595, %v6723
          %v6756 = vmul.f32 %v6596, %v6724
          %v6757 = vmul.f32 %v6597, %v6725
          %v6758 = vmul.f32 %v6598, %v6726
          %v6759 = vmul.f32 %v6599, %v6727
          %v6760 = vmul.f32 %v6600, %v6728
          %v6761 = vmul.f32 %v6601, %v6729
          %v6762 = vmul.f32 %v6602, %v6730
          %v6763 = vmul.f32 %v6603, %v6731
          %v6764 = vmul.f32 %v6604, %v6732
          %v6765 = vmul.f32 %v6605, %v6733
          %v6766 = vmul.f32 %v6606, %v6734
          %v6767 = vmul.f32 %v6607, %v6735
          %v6768 = vmul.f32 %v6608, %v6736
          %v6769 = vmul.f32 %v6609, %v6737
          %v6770 = vmul.f32 %v6610, %v6738
          %v6771 = vmul.f32 %v6611, %v6739
          %v6772 = vmul.f32 %v6612, %v6740
          %v6773 = vmul.f32 %v6613, %v6741
          %v6774 = vmul.f32 %v6614, %v6742
          %v6775 = vmul.f32 %v6615, %v6743
          %v6776 = vmul.f32 %v6616, %v6744
          %v6777 = vmul.f32 %v6617, %v6745
          %v6778 = vmul.f32 %v6618, %v6746
          %v6779 = vmul.f32 %v6619, %v6747
          %v6780 = vmul.f32 %v6620, %v6748
          %v6781 = vmul.f32 %v6621, %v6749
          %v6782 = vmul.f32 %v6622, %v6750
          %v6783 = vmul.f32 %v6623, %v6751
          %v6784 = vmul.f32 %v6624, %v6752
          %v6785 = vmul.f32 %v6625, %v6753
          %v6786 = vld [vmem:[%s458] sm:$0xff]
          %v6787 = vld [vmem:[%s458 + $0x8] sm:$0xff]
          %v6788 = vld [vmem:[%s458 + $0x10] sm:$0xff]
          %v6789 = vld [vmem:[%s458 + $0x18] sm:$0xff]
          %v6790 = vld [vmem:[%s458 + $0x20] sm:$0xff]
          %v6791 = vld [vmem:[%s458 + $0x28] sm:$0xff]
          %v6792 = vld [vmem:[%s458 + $0x30] sm:$0xff]
          %v6793 = vld [vmem:[%s458 + $0x38] sm:$0xff]
          %v6794 = vld [vmem:[%s458 + $0x40] sm:$0xff]
          %v6795 = vld [vmem:[%s458 + $0x48] sm:$0xff]
          %v6796 = vld [vmem:[%s458 + $0x50] sm:$0xff]
          %v6797 = vld [vmem:[%s458 + $0x58] sm:$0xff]
          %v6798 = vld [vmem:[%s458 + $0x60] sm:$0xff]
          %v6799 = vld [vmem:[%s458 + $0x68] sm:$0xff]
          %v6800 = vld [vmem:[%s458 + $0x70] sm:$0xff]
          %v6801 = vld [vmem:[%s458 + $0x78] sm:$0xff]
          %v6802 = vld [vmem:[%s458 + $0x80] sm:$0xff]
          %v6803 = vld [vmem:[%s458 + $0x88] sm:$0xff]
          %v6804 = vld [vmem:[%s458 + $0x90] sm:$0xff]
          %v6805 = vld [vmem:[%s458 + $0x98] sm:$0xff]
          %v6806 = vld [vmem:[%s458 + $0xa0] sm:$0xff]
          %v6807 = vld [vmem:[%s458 + $0xa8] sm:$0xff]
          %v6808 = vld [vmem:[%s458 + $0xb0] sm:$0xff]
          %v6809 = vld [vmem:[%s458 + $0xb8] sm:$0xff]
          %v6810 = vld [vmem:[%s458 + $0xc0] sm:$0xff]
          %v6811 = vld [vmem:[%s458 + $0xc8] sm:$0xff]
          %v6812 = vld [vmem:[%s458 + $0xd0] sm:$0xff]
          %v6813 = vld [vmem:[%s458 + $0xd8] sm:$0xff]
          %v6814 = vld [vmem:[%s458 + $0xe0] sm:$0xff]
          %v6815 = vld [vmem:[%s458 + $0xe8] sm:$0xff]
          %v6816 = vld [vmem:[%s458 + $0xf0] sm:$0xff]
          %v6817 = vld [vmem:[%s458 + $0xf8] sm:$0xff]
          %s6818 = smul.u32 %s25, 128
          %s6819 = sld [smem:[#allocation5 + %s6818]]
          %v6820 = vstv %s6819
          %6821 = vmatprep.subr.mxu0 0.0
          %6822 = vmatpush1.msra.mxu0 %v6801
          %6823 = vmatprep.subr.mxu0 0.0
          %6824 = vmatpush1.msra.mxu0 %v6800
          %6825 = vmatprep.subr.mxu0 0.0
          %6826 = vmatpush1.msra.mxu0 %v6799
          %6827 = vmatprep.subr.mxu0 0.0
          %6828 = vmatpush1.msra.mxu0 %v6798
          %6829 = vmatprep.subr.mxu0 0.0
          %6830 = vmatpush1.msra.mxu0 %v6797
          %6831 = vmatprep.subr.mxu0 0.0
          %6832 = vmatpush1.msra.mxu0 %v6796
          %6833 = vmatprep.subr.mxu0 0.0
          %6834 = vmatpush1.msra.mxu0 %v6795
          %6835 = vmatprep.subr.mxu0 0.0
          %6836 = vmatpush1.msra.mxu0 %v6794
          %6837 = vmatprep.subr.mxu0 0.0
          %6838 = vmatpush1.msra.mxu0 %v6793
          %6839 = vmatprep.subr.mxu0 0.0
          %6840 = vmatpush1.msra.mxu0 %v6792
          %6841 = vmatprep.subr.mxu0 0.0
          %6842 = vmatpush1.msra.mxu0 %v6791
          %6843 = vmatprep.subr.mxu0 0.0
          %6844 = vmatpush1.msra.mxu0 %v6790
          %6845 = vmatprep.subr.mxu0 0.0
          %6846 = vmatpush1.msra.mxu0 %v6789
          %6847 = vmatprep.subr.mxu0 0.0
          %6848 = vmatpush1.msra.mxu0 %v6788
          %6849 = vmatprep.subr.mxu0 0.0
          %6850 = vmatpush1.msra.mxu0 %v6787
          %6851 = vmatprep.subr.mxu0 0.0
          %6852 = vmatpush1.msra.mxu0 %v6786
          %6853 = vmatprep.subr.mxu0 0.0
          %6854 = vmatpush2.msra.mxu0 %v6817
          %6855 = vmatprep.subr.mxu0 0.0
          %6856 = vmatpush2.msra.mxu0 %v6816
          %6857 = vmatprep.subr.mxu0 0.0
          %6858 = vmatpush2.msra.mxu0 %v6815
          %6859 = vmatprep.subr.mxu0 0.0
          %6860 = vmatpush2.msra.mxu0 %v6814
          %6861 = vmatprep.subr.mxu0 0.0
          %6862 = vmatpush2.msra.mxu0 %v6813
          %6863 = vmatprep.subr.mxu0 0.0
          %6864 = vmatpush2.msra.mxu0 %v6812
          %6865 = vmatprep.subr.mxu0 0.0
          %6866 = vmatpush2.msra.mxu0 %v6811
          %6867 = vmatprep.subr.mxu0 0.0
          %6868 = vmatpush2.msra.mxu0 %v6810
          %6869 = vmatprep.subr.mxu0 0.0
          %6870 = vmatpush2.msra.mxu0 %v6809
          %6871 = vmatprep.subr.mxu0 0.0
          %6872 = vmatpush2.msra.mxu0 %v6808
          %6873 = vmatprep.subr.mxu0 0.0
          %6874 = vmatpush2.msra.mxu0 %v6807
          %6875 = vmatprep.subr.mxu0 0.0
          %6876 = vmatpush2.msra.mxu0 %v6806
          %6877 = vmatprep.subr.mxu0 0.0
          %6878 = vmatpush2.msra.mxu0 %v6805
          %6879 = vmatprep.subr.mxu0 0.0
          %6880 = vmatpush2.msra.mxu0 %v6804
          %6881 = vmatprep.subr.mxu0 0.0
          %6882 = vmatpush2.msra.mxu0 %v6803
          %6883 = vmatprep.subr.mxu0 0.0
          %6884 = vmatpush2.msra.mxu0 %v6802
          %6885 = vmatprep.mubr.f32.mxu0 %v6755
          %6886 = vmatmul.mubr.f32.gmra.mxu0 %v6754
          %v6887 = vpop.f32.mrf.mxu0
          %v6888 = vadd.f32 %v6820, %v6887
          %v6889 = vpop.f32.mrf.mxu0
          %6890 = vmatprep.mubr.f32.mxu0 %v6757
          %6891 = vmatmul.mubr.f32.gmra.mxu0 %v6756
          %v6892 = vpop.f32.mrf.mxu0
          %v6893 = vadd.f32 %v6820, %v6892
          %v6894 = vpop.f32.mrf.mxu0
          %6895 = vmatprep.mubr.f32.mxu0 %v6759
          %6896 = vmatmul.mubr.f32.gmra.mxu0 %v6758
          %v6897 = vpop.f32.mrf.mxu0
          %v6898 = vadd.f32 %v6820, %v6897
          %v6899 = vpop.f32.mrf.mxu0
          %6900 = vmatprep.mubr.f32.mxu0 %v6761
          %6901 = vmatmul.mubr.f32.gmra.mxu0 %v6760
          %v6902 = vpop.f32.mrf.mxu0
          %v6903 = vadd.f32 %v6820, %v6902
          %v6904 = vpop.f32.mrf.mxu0
          %6905 = vmatprep.mubr.f32.mxu0 %v6763
          %6906 = vmatmul.mubr.f32.gmra.mxu0 %v6762
          %v6907 = vpop.f32.mrf.mxu0
          %v6908 = vadd.f32 %v6820, %v6907
          %v6909 = vpop.f32.mrf.mxu0
          %6910 = vmatprep.mubr.f32.mxu0 %v6765
          %6911 = vmatmul.mubr.f32.gmra.mxu0 %v6764
          %v6912 = vpop.f32.mrf.mxu0
          %v6913 = vadd.f32 %v6820, %v6912
          %v6914 = vpop.f32.mrf.mxu0
          %6915 = vmatprep.mubr.f32.mxu0 %v6767
          %6916 = vmatmul.mubr.f32.gmra.mxu0 %v6766
          %v6917 = vpop.f32.mrf.mxu0
          %v6918 = vadd.f32 %v6820, %v6917
          %v6919 = vpop.f32.mrf.mxu0
          %6920 = vmatprep.mubr.f32.mxu0 %v6769
          %6921 = vmatmul.mubr.f32.gmra.mxu0 %v6768
          %v6922 = vpop.f32.mrf.mxu0
          %v6923 = vadd.f32 %v6820, %v6922
          %v6924 = vpop.f32.mrf.mxu0
          %6925 = vmatprep.mubr.f32.mxu0 %v6771
          %6926 = vmatmul.mubr.f32.gmra.mxu0 %v6770
          %v6927 = vpop.f32.mrf.mxu0
          %v6928 = vadd.f32 %v6820, %v6927
          %v6929 = vpop.f32.mrf.mxu0
          %6930 = vmatprep.mubr.f32.mxu0 %v6773
          %6931 = vmatmul.mubr.f32.gmra.mxu0 %v6772
          %v6932 = vpop.f32.mrf.mxu0
          %v6933 = vadd.f32 %v6820, %v6932
          %v6934 = vpop.f32.mrf.mxu0
          %6935 = vmatprep.mubr.f32.mxu0 %v6775
          %6936 = vmatmul.mubr.f32.gmra.mxu0 %v6774
          %v6937 = vpop.f32.mrf.mxu0
          %v6938 = vadd.f32 %v6820, %v6937
          %v6939 = vpop.f32.mrf.mxu0
          %6940 = vmatprep.mubr.f32.mxu0 %v6777
          %6941 = vmatmul.mubr.f32.gmra.mxu0 %v6776
          %v6942 = vpop.f32.mrf.mxu0
          %v6943 = vadd.f32 %v6820, %v6942
          %v6944 = vpop.f32.mrf.mxu0
          %6945 = vmatprep.mubr.f32.mxu0 %v6779
          %6946 = vmatmul.mubr.f32.gmra.mxu0 %v6778
          %v6947 = vpop.f32.mrf.mxu0
          %v6948 = vadd.f32 %v6820, %v6947
          %v6949 = vpop.f32.mrf.mxu0
          %6950 = vmatprep.mubr.f32.mxu0 %v6781
          %6951 = vmatmul.mubr.f32.gmra.mxu0 %v6780
          %v6952 = vpop.f32.mrf.mxu0
          %v6953 = vadd.f32 %v6820, %v6952
          %v6954 = vpop.f32.mrf.mxu0
          %6955 = vmatprep.mubr.f32.mxu0 %v6783
          %6956 = vmatmul.mubr.f32.gmra.mxu0 %v6782
          %v6957 = vpop.f32.mrf.mxu0
          %v6958 = vadd.f32 %v6820, %v6957
          %v6959 = vpop.f32.mrf.mxu0
          %6960 = vmatprep.mubr.f32.mxu0 %v6785
          %6961 = vmatmul.mubr.f32.gmra.mxu0 %v6784
          %v6962 = vpop.f32.mrf.mxu0
          %v6963 = vadd.f32 %v6820, %v6962
          %v6964 = vpop.f32.mrf.mxu0
          %6965 = vdwg.mxu0
          %6966 = vxpose.xlu0.b32.start [1/16] %v6888, 128
          %6967 = vxpose.xlu0.b32.cont [2/16] %v6893, 128
          %6968 = vxpose.xlu0.b32.cont [3/16] %v6898, 128
          %6969 = vxpose.xlu0.b32.cont [4/16] %v6903, 128
          %6970 = vxpose.xlu0.b32.cont [5/16] %v6908, 128
          %6971 = vxpose.xlu0.b32.cont [6/16] %v6913, 128
          %6972 = vxpose.xlu0.b32.cont [7/16] %v6918, 128
          %6973 = vxpose.xlu0.b32.cont [8/16] %v6923, 128
          %6974 = vxpose.xlu0.b32.cont [9/16] %v6928, 128
          %6975 = vxpose.xlu0.b32.cont [10/16] %v6933, 128
          %6976 = vxpose.xlu0.b32.cont [11/16] %v6938, 128
          %6977 = vxpose.xlu0.b32.cont [12/16] %v6943, 128
          %6978 = vxpose.xlu0.b32.cont [13/16] %v6948, 128
          %6979 = vxpose.xlu0.b32.cont [14/16] %v6953, 128
          %6980 = vxpose.xlu0.b32.cont [15/16] %v6958, 128
          %6981 = vxpose.xlu0.b32.end [16/16] %v6963, 128
          %v6982 = vpop.trf.xlu0
          %v6983 = vpop.trf.xlu0
          %v6984 = vpop.trf.xlu0
          %v6985 = vpop.trf.xlu0
          %v6986 = vpop.trf.xlu0
          %v6987 = vpop.trf.xlu0
          %v6988 = vpop.trf.xlu0
          %v6989 = vpop.trf.xlu0
          %v6990 = vpop.trf.xlu0
          %v6991 = vpop.trf.xlu0
          %v6992 = vpop.trf.xlu0
          %v6993 = vpop.trf.xlu0
          %v6994 = vpop.trf.xlu0
          %v6995 = vpop.trf.xlu0
          %v6996 = vpop.trf.xlu0
          %v6997 = vpop.trf.xlu0
          %6998 = vst [vmem:[%s469] sm:$0x1] %v6982
          %s6999 = smul.u32 %s26, 128
          %v7000 = vlaneseq
          %v7001 = vand.u32 %v7000, 127
          %v7002 = vstv %s6999
          %v7003 = vadd.s32 %v7002, %v7001
          %vm7004 = vcmp.lt.s32.totalorder %v7003, 8
          %v7005 = vsel %vm7004, %v6982, -1e+30
          %v7006 = vld [vmem:[#allocation2] sm:$0x1]
          %vm7007 = vcmask 1040384
          %v7008 = vsel %vm7007, %v7005, -inf
          %7009 = vmax.xlane.f32.xlu0 %v7008
          %v7010 = vpop.xlane.xlu0 %7009
          %v7011 = vmax.f32 %v7006, %v7010
          %v7012 = vsub.f32 %v7006, %v7011
          %v7013 = vmul.f32 %v7012, 1.442695
          %v7014 = vpow.pop %v7013
          %7016 = vset.pattern.permute.xlu0 0
          %7017 = vperm.xlu0 %7016, %v7011
          %v7018 = vpop.permute.xlu0 %7017
          %v7020 = vlaneseq
          %v7021 = vshrl.u32 %v7020, 7
          %v7022 = vsub.s32 0, %v7021
          %v7023 = vrot.slane %v7018, %v7022
          %v7024 = vsub.f32 %v7005, %v7023
          %v7025 = vmul.f32 %v7024, 1.442695
          %v7026 = vpow.pop %v7025
          %v7027 = vld [vmem:[#allocation3] sm:$0x1]
          %v7028 = vmul.f32 %v7014, %v7027
          %v7029 = vsel %vm7007, %v7026, 0.0
          %7030 = vadd.xlane.f32.xlu0 %v7029
          %v7031 = vpop.xlane.xlu0 %7030
          %v7032 = vadd.f32 %v7028, %v7031
          %vm7033 = vcmask 0
          %7034 = vst.msk [vmem:[#allocation3] sm:$0x1] %vm7033, %v7032
          %v7035 = vld [vmem:[#allocation4] sm:$0xff]
          %7037 = vset.pattern.permute.xlu0 0
          %7038 = vperm.xlu0 %7037, %v7014
          %v7039 = vpop.permute.xlu0 %7038
          %v7041 = vlaneseq
          %v7042 = vshrl.u32 %v7041, 7
          %v7043 = vsub.s32 0, %v7042
          %v7044 = vrot.slane %v7039, %v7043
          %v7045 = vmul.f32 %v7044, %v7035
          %7046 = vmatprep.subr.mxu0 %v4061
          %7047 = vmatpush1.msra.mxu0 %v4060
          %7048 = vmatprep.subr.mxu0 %v4053
          %7049 = vmatpush1.msra.mxu0 %v4052
          %7050 = vmatprep.subr.mxu0 %v4045
          %7051 = vmatpush1.msra.mxu0 %v4044
          %7052 = vmatprep.subr.mxu0 %v4037
          %7053 = vmatpush1.msra.mxu0 %v4036
          %7054 = vmatprep.subr.mxu0 %v4029
          %7055 = vmatpush1.msra.mxu0 %v4028
          %7056 = vmatprep.subr.mxu0 %v4021
          %7057 = vmatpush1.msra.mxu0 %v4020
          %7058 = vmatprep.subr.mxu0 %v4013
          %7059 = vmatpush1.msra.mxu0 %v4012
          %7060 = vmatprep.subr.mxu0 %v4005
          %7061 = vmatpush1.msra.mxu0 %v4004
          %7062 = vmatprep.subr.mxu0 %v3997
          %7063 = vmatpush1.msra.mxu0 %v3996
          %7064 = vmatprep.subr.mxu0 %v3989
          %7065 = vmatpush1.msra.mxu0 %v3988
          %7066 = vmatprep.subr.mxu0 %v3981
          %7067 = vmatpush1.msra.mxu0 %v3980
          %7068 = vmatprep.subr.mxu0 %v3973
          %7069 = vmatpush1.msra.mxu0 %v3972
          %7070 = vmatprep.subr.mxu0 %v3965
          %7071 = vmatpush1.msra.mxu0 %v3964
          %7072 = vmatprep.subr.mxu0 %v3957
          %7073 = vmatpush1.msra.mxu0 %v3956
          %7074 = vmatprep.subr.mxu0 %v3949
          %7075 = vmatpush1.msra.mxu0 %v3948
          %7076 = vmatprep.subr.mxu0 %v3941
          %7077 = vmatpush1.msra.mxu0 %v3940
          %7078 = vmatprep.subr.mxu0 0.0
          %7079 = vmatpush2.msra.mxu0 0.0
          %7080 = vmatprep.subr.mxu0 0.0
          %7081 = vmatpush2.msra.mxu0 0.0
          %7082 = vmatprep.subr.mxu0 0.0
          %7083 = vmatpush2.msra.mxu0 0.0
          %7084 = vmatprep.subr.mxu0 0.0
          %7085 = vmatpush2.msra.mxu0 0.0
          %7086 = vmatprep.subr.mxu0 0.0
          %7087 = vmatpush2.msra.mxu0 0.0
          %7088 = vmatprep.subr.mxu0 0.0
          %7089 = vmatpush2.msra.mxu0 0.0
          %7090 = vmatprep.subr.mxu0 0.0
          %7091 = vmatpush2.msra.mxu0 0.0
          %7092 = vmatprep.subr.mxu0 0.0
          %7093 = vmatpush2.msra.mxu0 0.0
          %7094 = vmatprep.subr.mxu0 0.0
          %7095 = vmatpush2.msra.mxu0 0.0
          %7096 = vmatprep.subr.mxu0 0.0
          %7097 = vmatpush2.msra.mxu0 0.0
          %7098 = vmatprep.subr.mxu0 0.0
          %7099 = vmatpush2.msra.mxu0 0.0
          %7100 = vmatprep.subr.mxu0 0.0
          %7101 = vmatpush2.msra.mxu0 0.0
          %7102 = vmatprep.subr.mxu0 0.0
          %7103 = vmatpush2.msra.mxu0 0.0
          %7104 = vmatprep.subr.mxu0 0.0
          %7105 = vmatpush2.msra.mxu0 0.0
          %7106 = vmatprep.subr.mxu0 0.0
          %7107 = vmatpush2.msra.mxu0 0.0
          %7108 = vmatprep.subr.mxu0 0.0
          %7109 = vmatpush2.msra.mxu0 0.0
          %7110 = vmatprep.mubr.f32.mxu0 0.0
          %7111 = vmatmul.mubr.f32.gmra.mxu0 %v7026
          %v7112 = vpop.f32.mrf.mxu0
          %v7113 = vadd.f32 0.0, %v7112
          %v7114 = vpop.f32.mrf.mxu0
          %v7115 = vadd.f32 0.0, %v7114
          %7116 = vdwg.mxu0
          %7117 = vmatprep.subr.mxu0 %v4063
          %7118 = vmatpush1.msra.mxu0 %v4062
          %7119 = vmatprep.subr.mxu0 %v4055
          %7120 = vmatpush1.msra.mxu0 %v4054
          %7121 = vmatprep.subr.mxu0 %v4047
          %7122 = vmatpush1.msra.mxu0 %v4046
          %7123 = vmatprep.subr.mxu0 %v4039
          %7124 = vmatpush1.msra.mxu0 %v4038
          %7125 = vmatprep.subr.mxu0 %v4031
          %7126 = vmatpush1.msra.mxu0 %v4030
          %7127 = vmatprep.subr.mxu0 %v4023
          %7128 = vmatpush1.msra.mxu0 %v4022
          %7129 = vmatprep.subr.mxu0 %v4015
          %7130 = vmatpush1.msra.mxu0 %v4014
          %7131 = vmatprep.subr.mxu0 %v4007
          %7132 = vmatpush1.msra.mxu0 %v4006
          %7133 = vmatprep.subr.mxu0 %v3999
          %7134 = vmatpush1.msra.mxu0 %v3998
          %7135 = vmatprep.subr.mxu0 %v3991
          %7136 = vmatpush1.msra.mxu0 %v3990
          %7137 = vmatprep.subr.mxu0 %v3983
          %7138 = vmatpush1.msra.mxu0 %v3982
          %7139 = vmatprep.subr.mxu0 %v3975
          %7140 = vmatpush1.msra.mxu0 %v3974
          %7141 = vmatprep.subr.mxu0 %v3967
          %7142 = vmatpush1.msra.mxu0 %v3966
          %7143 = vmatprep.subr.mxu0 %v3959
          %7144 = vmatpush1.msra.mxu0 %v3958
          %7145 = vmatprep.subr.mxu0 %v3951
          %7146 = vmatpush1.msra.mxu0 %v3950
          %7147 = vmatprep.subr.mxu0 %v3943
          %7148 = vmatpush1.msra.mxu0 %v3942
          %7149 = vmatprep.subr.mxu0 0.0
          %7150 = vmatpush2.msra.mxu0 0.0
          %7151 = vmatprep.subr.mxu0 0.0
          %7152 = vmatpush2.msra.mxu0 0.0
          %7153 = vmatprep.subr.mxu0 0.0
          %7154 = vmatpush2.msra.mxu0 0.0
          %7155 = vmatprep.subr.mxu0 0.0
          %7156 = vmatpush2.msra.mxu0 0.0
          %7157 = vmatprep.subr.mxu0 0.0
          %7158 = vmatpush2.msra.mxu0 0.0
          %7159 = vmatprep.subr.mxu0 0.0
          %7160 = vmatpush2.msra.mxu0 0.0
          %7161 = vmatprep.subr.mxu0 0.0
          %7162 = vmatpush2.msra.mxu0 0.0
          %7163 = vmatprep.subr.mxu0 0.0
          %7164 = vmatpush2.msra.mxu0 0.0
          %7165 = vmatprep.subr.mxu0 0.0
          %7166 = vmatpush2.msra.mxu0 0.0
          %7167 = vmatprep.subr.mxu0 0.0
          %7168 = vmatpush2.msra.mxu0 0.0
          %7169 = vmatprep.subr.mxu0 0.0
          %7170 = vmatpush2.msra.mxu0 0.0
          %7171 = vmatprep.subr.mxu0 0.0
          %7172 = vmatpush2.msra.mxu0 0.0
          %7173 = vmatprep.subr.mxu0 0.0
          %7174 = vmatpush2.msra.mxu0 0.0
          %7175 = vmatprep.subr.mxu0 0.0
          %7176 = vmatpush2.msra.mxu0 0.0
          %7177 = vmatprep.subr.mxu0 0.0
          %7178 = vmatpush2.msra.mxu0 0.0
          %7179 = vmatprep.subr.mxu0 0.0
          %7180 = vmatpush2.msra.mxu0 0.0
          %7181 = vmatprep.mubr.f32.mxu0 0.0
          %7182 = vmatmul.mubr.f32.gmra.mxu0 %v7026
          %v7183 = vpop.f32.mrf.mxu0
          %v7184 = vadd.f32 0.0, %v7183
          %v7185 = vpop.f32.mrf.mxu0
          %v7186 = vadd.f32 0.0, %v7185
          %7187 = vdwg.mxu0
          %7188 = vmatprep.subr.mxu0 %v4065
          %7189 = vmatpush1.msra.mxu0 %v4064
          %7190 = vmatprep.subr.mxu0 %v4057
          %7191 = vmatpush1.msra.mxu0 %v4056
          %7192 = vmatprep.subr.mxu0 %v4049
          %7193 = vmatpush1.msra.mxu0 %v4048
          %7194 = vmatprep.subr.mxu0 %v4041
          %7195 = vmatpush1.msra.mxu0 %v4040
          %7196 = vmatprep.subr.mxu0 %v4033
          %7197 = vmatpush1.msra.mxu0 %v4032
          %7198 = vmatprep.subr.mxu0 %v4025
          %7199 = vmatpush1.msra.mxu0 %v4024
          %7200 = vmatprep.subr.mxu0 %v4017
          %7201 = vmatpush1.msra.mxu0 %v4016
          %7202 = vmatprep.subr.mxu0 %v4009
          %7203 = vmatpush1.msra.mxu0 %v4008
          %7204 = vmatprep.subr.mxu0 %v4001
          %7205 = vmatpush1.msra.mxu0 %v4000
          %7206 = vmatprep.subr.mxu0 %v3993
          %7207 = vmatpush1.msra.mxu0 %v3992
          %7208 = vmatprep.subr.mxu0 %v3985
          %7209 = vmatpush1.msra.mxu0 %v3984
          %7210 = vmatprep.subr.mxu0 %v3977
          %7211 = vmatpush1.msra.mxu0 %v3976
          %7212 = vmatprep.subr.mxu0 %v3969
          %7213 = vmatpush1.msra.mxu0 %v3968
          %7214 = vmatprep.subr.mxu0 %v3961
          %7215 = vmatpush1.msra.mxu0 %v3960
          %7216 = vmatprep.subr.mxu0 %v3953
          %7217 = vmatpush1.msra.mxu0 %v3952
          %7218 = vmatprep.subr.mxu0 %v3945
          %7219 = vmatpush1.msra.mxu0 %v3944
          %7220 = vmatprep.subr.mxu0 0.0
          %7221 = vmatpush2.msra.mxu0 0.0
          %7222 = vmatprep.subr.mxu0 0.0
          %7223 = vmatpush2.msra.mxu0 0.0
          %7224 = vmatprep.subr.mxu0 0.0
          %7225 = vmatpush2.msra.mxu0 0.0
          %7226 = vmatprep.subr.mxu0 0.0
          %7227 = vmatpush2.msra.mxu0 0.0
          %7228 = vmatprep.subr.mxu0 0.0
          %7229 = vmatpush2.msra.mxu0 0.0
          %7230 = vmatprep.subr.mxu0 0.0
          %7231 = vmatpush2.msra.mxu0 0.0
          %7232 = vmatprep.subr.mxu0 0.0
          %7233 = vmatpush2.msra.mxu0 0.0
          %7234 = vmatprep.subr.mxu0 0.0
          %7235 = vmatpush2.msra.mxu0 0.0
          %7236 = vmatprep.subr.mxu0 0.0
          %7237 = vmatpush2.msra.mxu0 0.0
          %7238 = vmatprep.subr.mxu0 0.0
          %7239 = vmatpush2.msra.mxu0 0.0
          %7240 = vmatprep.subr.mxu0 0.0
          %7241 = vmatpush2.msra.mxu0 0.0
          %7242 = vmatprep.subr.mxu0 0.0
          %7243 = vmatpush2.msra.mxu0 0.0
          %7244 = vmatprep.subr.mxu0 0.0
          %7245 = vmatpush2.msra.mxu0 0.0
          %7246 = vmatprep.subr.mxu0 0.0
          %7247 = vmatpush2.msra.mxu0 0.0
          %7248 = vmatprep.subr.mxu0 0.0
          %7249 = vmatpush2.msra.mxu0 0.0
          %7250 = vmatprep.subr.mxu0 0.0
          %7251 = vmatpush2.msra.mxu0 0.0
          %7252 = vmatprep.mubr.f32.mxu0 0.0
          %7253 = vmatmul.mubr.f32.gmra.mxu0 %v7026
          %v7254 = vpop.f32.mrf.mxu0
          %v7255 = vadd.f32 0.0, %v7254
          %v7256 = vpop.f32.mrf.mxu0
          %v7257 = vadd.f32 0.0, %v7256
          %7258 = vdwg.mxu0
          %7259 = vmatprep.subr.mxu0 %v4067
          %7260 = vmatpush1.msra.mxu0 %v4066
          %7261 = vmatprep.subr.mxu0 %v4059
          %7262 = vmatpush1.msra.mxu0 %v4058
          %7263 = vmatprep.subr.mxu0 %v4051
          %7264 = vmatpush1.msra.mxu0 %v4050
          %7265 = vmatprep.subr.mxu0 %v4043
          %7266 = vmatpush1.msra.mxu0 %v4042
          %7267 = vmatprep.subr.mxu0 %v4035
          %7268 = vmatpush1.msra.mxu0 %v4034
          %7269 = vmatprep.subr.mxu0 %v4027
          %7270 = vmatpush1.msra.mxu0 %v4026
          %7271 = vmatprep.subr.mxu0 %v4019
          %7272 = vmatpush1.msra.mxu0 %v4018
          %7273 = vmatprep.subr.mxu0 %v4011
          %7274 = vmatpush1.msra.mxu0 %v4010
          %7275 = vmatprep.subr.mxu0 %v4003
          %7276 = vmatpush1.msra.mxu0 %v4002
          %7277 = vmatprep.subr.mxu0 %v3995
          %7278 = vmatpush1.msra.mxu0 %v3994
          %7279 = vmatprep.subr.mxu0 %v3987
          %7280 = vmatpush1.msra.mxu0 %v3986
          %7281 = vmatprep.subr.mxu0 %v3979
          %7282 = vmatpush1.msra.mxu0 %v3978
          %7283 = vmatprep.subr.mxu0 %v3971
          %7284 = vmatpush1.msra.mxu0 %v3970
          %7285 = vmatprep.subr.mxu0 %v3963
          %7286 = vmatpush1.msra.mxu0 %v3962
          %7287 = vmatprep.subr.mxu0 %v3955
          %7288 = vmatpush1.msra.mxu0 %v3954
          %7289 = vmatprep.subr.mxu0 %v3947
          %7290 = vmatpush1.msra.mxu0 %v3946
          %7291 = vmatprep.subr.mxu0 0.0
          %7292 = vmatpush2.msra.mxu0 0.0
          %7293 = vmatprep.subr.mxu0 0.0
          %7294 = vmatpush2.msra.mxu0 0.0
          %7295 = vmatprep.subr.mxu0 0.0
          %7296 = vmatpush2.msra.mxu0 0.0
          %7297 = vmatprep.subr.mxu0 0.0
          %7298 = vmatpush2.msra.mxu0 0.0
          %7299 = vmatprep.subr.mxu0 0.0
          %7300 = vmatpush2.msra.mxu0 0.0
          %7301 = vmatprep.subr.mxu0 0.0
          %7302 = vmatpush2.msra.mxu0 0.0
          %7303 = vmatprep.subr.mxu0 0.0
          %7304 = vmatpush2.msra.mxu0 0.0
          %7305 = vmatprep.subr.mxu0 0.0
          %7306 = vmatpush2.msra.mxu0 0.0
          %7307 = vmatprep.subr.mxu0 0.0
          %7308 = vmatpush2.msra.mxu0 0.0
          %7309 = vmatprep.subr.mxu0 0.0
          %7310 = vmatpush2.msra.mxu0 0.0
          %7311 = vmatprep.subr.mxu0 0.0
          %7312 = vmatpush2.msra.mxu0 0.0
          %7313 = vmatprep.subr.mxu0 0.0
          %7314 = vmatpush2.msra.mxu0 0.0
          %7315 = vmatprep.subr.mxu0 0.0
          %7316 = vmatpush2.msra.mxu0 0.0
          %7317 = vmatprep.subr.mxu0 0.0
          %7318 = vmatpush2.msra.mxu0 0.0
          %7319 = vmatprep.subr.mxu0 0.0
          %7320 = vmatpush2.msra.mxu0 0.0
          %7321 = vmatprep.subr.mxu0 0.0
          %7322 = vmatpush2.msra.mxu0 0.0
          %7323 = vmatprep.mubr.f32.mxu0 0.0
          %7324 = vmatmul.mubr.f32.gmra.mxu0 %v7026
          %v7325 = vpop.f32.mrf.mxu0
          %v7326 = vadd.f32 0.0, %v7325
          %v7327 = vpop.f32.mrf.mxu0
          %v7328 = vadd.f32 0.0, %v7327
          %7329 = vdwg.mxu0
          %v7338 = vcombine.low %v7113, %v7115
          %v7339 = vcombine.low %v7184, %v7186
          %v7340 = vcombine.low %v7255, %v7257
          %v7341 = vcombine.low %v7326, %v7328
          %v7343 = vunpack.c.l.s4 1966171168
          %v7344 = vunpack.c.0.s8 %v7343
          %v7345 = vlaneseq
          %v7346 = vshrl.u32 %v7345, 7
          %v7347 = vsub.s32 %v7344, %v7346
          %v7348 = vrot.slane %v7338, %v7347
          %v7350 = vunpack.c.l.s4 1966171168
          %v7351 = vunpack.c.0.s8 %v7350
          %v7352 = vlaneseq
          %v7353 = vshrl.u32 %v7352, 7
          %v7354 = vsub.s32 %v7351, %v7353
          %v7355 = vrot.slane %v7339, %v7354
          %v7357 = vunpack.c.l.s4 1966171168
          %v7358 = vunpack.c.0.s8 %v7357
          %v7359 = vlaneseq
          %v7360 = vshrl.u32 %v7359, 7
          %v7361 = vsub.s32 %v7358, %v7360
          %v7362 = vrot.slane %v7340, %v7361
          %v7364 = vunpack.c.l.s4 1966171168
          %v7365 = vunpack.c.0.s8 %v7364
          %v7366 = vlaneseq
          %v7367 = vshrl.u32 %v7366, 7
          %v7368 = vsub.s32 %v7365, %v7367
          %v7369 = vrot.slane %v7341, %v7368
          %v7370 = vcombine.low %v7348, %v7355
          %v7371 = vcombine.low %v7362, %v7369
          %v7373 = vunpack.c.l.s4 1966171168
          %v7374 = vunpack.c.0.s8 %v7373
          %v7375 = vlaneseq
          %v7376 = vshrl.u32 %v7375, 7
          %v7377 = vsub.s32 %v7374, %v7376
          %v7378 = vrot.slane %v7370, %v7377
          %v7380 = vunpack.c.l.s4 1966171168
          %v7381 = vunpack.c.0.s8 %v7380
          %v7382 = vlaneseq
          %v7383 = vshrl.u32 %v7382, 7
          %v7384 = vsub.s32 %v7381, %v7383
          %v7385 = vrot.slane %v7371, %v7384
          %v7386 = vcombine.low %v7378, %v7385
          %v7388 = vadd.f32 %v7045, %v7386
          %7389 = vst [vmem:[#allocation4] sm:$0xff] %v7388
          %7390 = vst.msk [vmem:[#allocation2] sm:$0x1] %vm7033, %v7011
        $region64: #{joint_abmil_forward.1} parent=47 // pred_fallthru
          _
        // Predicated region
        $region65: #{joint_abmil_forward.1} parent=47 // pred_check
          %p7391 = pneg %p473
        $region66: #{joint_abmil_forward.1} parent=47 // pred_check_branch
          %7393 = sbr.rel (%p7391) target = $region68
        $region67: #{joint_abmil_forward.1} parent=47 // pred_region
          %v7394 = vld [vmem:[#allocation4] sm:$0xff]
          %v7395 = vld [vmem:[#allocation3] sm:$0x1]
          %7397 = vset.pattern.permute.xlu0 0
          %7398 = vperm.xlu0 %7397, %v7395
          %v7399 = vpop.permute.xlu0 %7398
          %v7401 = vlaneseq
          %v7402 = vshrl.u32 %v7401, 7
          %v7403 = vsub.s32 0, %v7402
          %v7404 = vrot.slane %v7399, %v7403
          %v7405 = vrcp.pop %v7404
          %v7406 = vmul.f32 %v7394, %v7405
          %v7407 = vld [vmem:[%s463] sm:$0xff]
          %v7408 = vld [vmem:[%s463 + $0x8] sm:$0xff]
          %v7409 = vld [vmem:[%s463 + $0x10] sm:$0xff]
          %v7410 = vld [vmem:[%s463 + $0x18] sm:$0xff]
          %v7411 = vld [vmem:[%s463 + $0x20] sm:$0xff]
          %v7412 = vld [vmem:[%s463 + $0x28] sm:$0xff]
          %v7413 = vld [vmem:[%s463 + $0x30] sm:$0xff]
          %v7414 = vld [vmem:[%s463 + $0x38] sm:$0xff]
          %v7415 = vld [vmem:[%s463 + $0x40] sm:$0xff]
          %v7416 = vld [vmem:[%s463 + $0x48] sm:$0xff]
          %v7417 = vld [vmem:[%s463 + $0x50] sm:$0xff]
          %v7418 = vld [vmem:[%s463 + $0x58] sm:$0xff]
          %v7419 = vld [vmem:[%s463 + $0x60] sm:$0xff]
          %v7420 = vld [vmem:[%s463 + $0x68] sm:$0xff]
          %v7421 = vld [vmem:[%s463 + $0x70] sm:$0xff]
          %v7422 = vld [vmem:[%s463 + $0x78] sm:$0xff]
          %v7423 = vld [vmem:[%s463 + $0x80] sm:$0xff]
          %v7424 = vld [vmem:[%s463 + $0x88] sm:$0xff]
          %v7425 = vld [vmem:[%s463 + $0x90] sm:$0xff]
          %v7426 = vld [vmem:[%s463 + $0x98] sm:$0xff]
          %v7427 = vld [vmem:[%s463 + $0xa0] sm:$0xff]
          %v7428 = vld [vmem:[%s463 + $0xa8] sm:$0xff]
          %v7429 = vld [vmem:[%s463 + $0xb0] sm:$0xff]
          %v7430 = vld [vmem:[%s463 + $0xb8] sm:$0xff]
          %v7431 = vld [vmem:[%s463 + $0xc0] sm:$0xff]
          %v7432 = vld [vmem:[%s463 + $0xc8] sm:$0xff]
          %v7433 = vld [vmem:[%s463 + $0xd0] sm:$0xff]
          %v7434 = vld [vmem:[%s463 + $0xd8] sm:$0xff]
          %v7435 = vld [vmem:[%s463 + $0xe0] sm:$0xff]
          %v7436 = vld [vmem:[%s463 + $0xe8] sm:$0xff]
          %v7437 = vld [vmem:[%s463 + $0xf0] sm:$0xff]
          %v7438 = vld [vmem:[%s463 + $0xf8] sm:$0xff]
          %v7439 = vld [vmem:[%s463 + $0x100] sm:$0xff]
          %v7440 = vld [vmem:[%s463 + $0x108] sm:$0xff]
          %v7441 = vld [vmem:[%s463 + $0x110] sm:$0xff]
          %v7442 = vld [vmem:[%s463 + $0x118] sm:$0xff]
          %v7443 = vld [vmem:[%s463 + $0x120] sm:$0xff]
          %v7444 = vld [vmem:[%s463 + $0x128] sm:$0xff]
          %v7445 = vld [vmem:[%s463 + $0x130] sm:$0xff]
          %v7446 = vld [vmem:[%s463 + $0x138] sm:$0xff]
          %v7447 = vld [vmem:[%s463 + $0x140] sm:$0xff]
          %v7448 = vld [vmem:[%s463 + $0x148] sm:$0xff]
          %v7449 = vld [vmem:[%s463 + $0x150] sm:$0xff]
          %v7450 = vld [vmem:[%s463 + $0x158] sm:$0xff]
          %v7451 = vld [vmem:[%s463 + $0x160] sm:$0xff]
          %v7452 = vld [vmem:[%s463 + $0x168] sm:$0xff]
          %v7453 = vld [vmem:[%s463 + $0x170] sm:$0xff]
          %v7454 = vld [vmem:[%s463 + $0x178] sm:$0xff]
          %v7455 = vld [vmem:[%s463 + $0x180] sm:$0xff]
          %v7456 = vld [vmem:[%s463 + $0x188] sm:$0xff]
          %v7457 = vld [vmem:[%s463 + $0x190] sm:$0xff]
          %v7458 = vld [vmem:[%s463 + $0x198] sm:$0xff]
          %v7459 = vld [vmem:[%s463 + $0x1a0] sm:$0xff]
          %v7460 = vld [vmem:[%s463 + $0x1a8] sm:$0xff]
          %v7461 = vld [vmem:[%s463 + $0x1b0] sm:$0xff]
          %v7462 = vld [vmem:[%s463 + $0x1b8] sm:$0xff]
          %v7463 = vld [vmem:[%s463 + $0x1c0] sm:$0xff]
          %v7464 = vld [vmem:[%s463 + $0x1c8] sm:$0xff]
          %v7465 = vld [vmem:[%s463 + $0x1d0] sm:$0xff]
          %v7466 = vld [vmem:[%s463 + $0x1d8] sm:$0xff]
          %v7467 = vld [vmem:[%s463 + $0x1e0] sm:$0xff]
          %v7468 = vld [vmem:[%s463 + $0x1e8] sm:$0xff]
          %v7469 = vld [vmem:[%s463 + $0x1f0] sm:$0xff]
          %v7470 = vld [vmem:[%s463 + $0x1f8] sm:$0xff]
          %v7471 = vld [vmem:[%s463 + $0x200] sm:$0xff]
          %v7472 = vld [vmem:[%s463 + $0x208] sm:$0xff]
          %v7473 = vld [vmem:[%s463 + $0x210] sm:$0xff]
          %v7474 = vld [vmem:[%s463 + $0x218] sm:$0xff]
          %v7475 = vld [vmem:[%s463 + $0x220] sm:$0xff]
          %v7476 = vld [vmem:[%s463 + $0x228] sm:$0xff]
          %v7477 = vld [vmem:[%s463 + $0x230] sm:$0xff]
          %v7478 = vld [vmem:[%s463 + $0x238] sm:$0xff]
          %v7479 = vld [vmem:[%s463 + $0x240] sm:$0xff]
          %v7480 = vld [vmem:[%s463 + $0x248] sm:$0xff]
          %v7481 = vld [vmem:[%s463 + $0x250] sm:$0xff]
          %v7482 = vld [vmem:[%s463 + $0x258] sm:$0xff]
          %v7483 = vld [vmem:[%s463 + $0x260] sm:$0xff]
          %v7484 = vld [vmem:[%s463 + $0x268] sm:$0xff]
          %v7485 = vld [vmem:[%s463 + $0x270] sm:$0xff]
          %v7486 = vld [vmem:[%s463 + $0x278] sm:$0xff]
          %v7487 = vld [vmem:[%s463 + $0x280] sm:$0xff]
          %v7488 = vld [vmem:[%s463 + $0x288] sm:$0xff]
          %v7489 = vld [vmem:[%s463 + $0x290] sm:$0xff]
          %v7490 = vld [vmem:[%s463 + $0x298] sm:$0xff]
          %v7491 = vld [vmem:[%s463 + $0x2a0] sm:$0xff]
          %v7492 = vld [vmem:[%s463 + $0x2a8] sm:$0xff]
          %v7493 = vld [vmem:[%s463 + $0x2b0] sm:$0xff]
          %v7494 = vld [vmem:[%s463 + $0x2b8] sm:$0xff]
          %v7495 = vld [vmem:[%s463 + $0x2c0] sm:$0xff]
          %v7496 = vld [vmem:[%s463 + $0x2c8] sm:$0xff]
          %v7497 = vld [vmem:[%s463 + $0x2d0] sm:$0xff]
          %v7498 = vld [vmem:[%s463 + $0x2d8] sm:$0xff]
          %v7499 = vld [vmem:[%s463 + $0x2e0] sm:$0xff]
          %v7500 = vld [vmem:[%s463 + $0x2e8] sm:$0xff]
          %v7501 = vld [vmem:[%s463 + $0x2f0] sm:$0xff]
          %v7502 = vld [vmem:[%s463 + $0x2f8] sm:$0xff]
          %v7503 = vld [vmem:[%s463 + $0x300] sm:$0xff]
          %v7504 = vld [vmem:[%s463 + $0x308] sm:$0xff]
          %v7505 = vld [vmem:[%s463 + $0x310] sm:$0xff]
          %v7506 = vld [vmem:[%s463 + $0x318] sm:$0xff]
          %v7507 = vld [vmem:[%s463 + $0x320] sm:$0xff]
          %v7508 = vld [vmem:[%s463 + $0x328] sm:$0xff]
          %v7509 = vld [vmem:[%s463 + $0x330] sm:$0xff]
          %v7510 = vld [vmem:[%s463 + $0x338] sm:$0xff]
          %v7511 = vld [vmem:[%s463 + $0x340] sm:$0xff]
          %v7512 = vld [vmem:[%s463 + $0x348] sm:$0xff]
          %v7513 = vld [vmem:[%s463 + $0x350] sm:$0xff]
          %v7514 = vld [vmem:[%s463 + $0x358] sm:$0xff]
          %v7515 = vld [vmem:[%s463 + $0x360] sm:$0xff]
          %v7516 = vld [vmem:[%s463 + $0x368] sm:$0xff]
          %v7517 = vld [vmem:[%s463 + $0x370] sm:$0xff]
          %v7518 = vld [vmem:[%s463 + $0x378] sm:$0xff]
          %v7519 = vld [vmem:[%s463 + $0x380] sm:$0xff]
          %v7520 = vld [vmem:[%s463 + $0x388] sm:$0xff]
          %v7521 = vld [vmem:[%s463 + $0x390] sm:$0xff]
          %v7522 = vld [vmem:[%s463 + $0x398] sm:$0xff]
          %v7523 = vld [vmem:[%s463 + $0x3a0] sm:$0xff]
          %v7524 = vld [vmem:[%s463 + $0x3a8] sm:$0xff]
          %v7525 = vld [vmem:[%s463 + $0x3b0] sm:$0xff]
          %v7526 = vld [vmem:[%s463 + $0x3b8] sm:$0xff]
          %v7527 = vld [vmem:[%s463 + $0x3c0] sm:$0xff]
          %v7528 = vld [vmem:[%s463 + $0x3c8] sm:$0xff]
          %v7529 = vld [vmem:[%s463 + $0x3d0] sm:$0xff]
          %v7530 = vld [vmem:[%s463 + $0x3d8] sm:$0xff]
          %v7531 = vld [vmem:[%s463 + $0x3e0] sm:$0xff]
          %v7532 = vld [vmem:[%s463 + $0x3e8] sm:$0xff]
          %v7533 = vld [vmem:[%s463 + $0x3f0] sm:$0xff]
          %v7534 = vld [vmem:[%s463 + $0x3f8] sm:$0xff]
          %v7536 = vlaneseq
          %v7537 = vshrl.u32 %v7536, 7
          %v7538 = vsub.s32 0, %v7537
          %v7539 = vrot.slane %v7406, %v7538
          %v7540 = vlaneseq
          %v7541 = vshrl.u32 %v7540, 7
          %v7542 = vsub.s32 1, %v7541
          %v7543 = vrot.slane %v7406, %v7542
          %v7544 = vlaneseq
          %v7545 = vshrl.u32 %v7544, 7
          %v7546 = vsub.s32 2, %v7545
          %v7547 = vrot.slane %v7406, %v7546
          %v7548 = vlaneseq
          %v7549 = vshrl.u32 %v7548, 7
          %v7550 = vsub.s32 3, %v7549
          %v7551 = vrot.slane %v7406, %v7550
          %v7552 = vlaneseq
          %v7553 = vshrl.u32 %v7552, 7
          %v7554 = vsub.s32 4, %v7553
          %v7555 = vrot.slane %v7406, %v7554
          %v7556 = vlaneseq
          %v7557 = vshrl.u32 %v7556, 7
          %v7558 = vsub.s32 5, %v7557
          %v7559 = vrot.slane %v7406, %v7558
          %v7560 = vlaneseq
          %v7561 = vshrl.u32 %v7560, 7
          %v7562 = vsub.s32 6, %v7561
          %v7563 = vrot.slane %v7406, %v7562
          %v7564 = vlaneseq
          %v7565 = vshrl.u32 %v7564, 7
          %v7566 = vsub.s32 7, %v7565
          %v7567 = vrot.slane %v7406, %v7566
          %7576 = vmatprep.subr.mxu0 0.0
          %7577 = vmatpush1.msra.mxu0 %v7422
          %7578 = vmatprep.subr.mxu0 0.0
          %7579 = vmatpush1.msra.mxu0 %v7421
          %7580 = vmatprep.subr.mxu0 0.0
          %7581 = vmatpush1.msra.mxu0 %v7420
          %7582 = vmatprep.subr.mxu0 0.0
          %7583 = vmatpush1.msra.mxu0 %v7419
          %7584 = vmatprep.subr.mxu0 0.0
          %7585 = vmatpush1.msra.mxu0 %v7418
          %7586 = vmatprep.subr.mxu0 0.0
          %7587 = vmatpush1.msra.mxu0 %v7417
          %7588 = vmatprep.subr.mxu0 0.0
          %7589 = vmatpush1.msra.mxu0 %v7416
          %7590 = vmatprep.subr.mxu0 0.0
          %7591 = vmatpush1.msra.mxu0 %v7415
          %7592 = vmatprep.subr.mxu0 0.0
          %7593 = vmatpush1.msra.mxu0 %v7414
          %7594 = vmatprep.subr.mxu0 0.0
          %7595 = vmatpush1.msra.mxu0 %v7413
          %7596 = vmatprep.subr.mxu0 0.0
          %7597 = vmatpush1.msra.mxu0 %v7412
          %7598 = vmatprep.subr.mxu0 0.0
          %7599 = vmatpush1.msra.mxu0 %v7411
          %7600 = vmatprep.subr.mxu0 0.0
          %7601 = vmatpush1.msra.mxu0 %v7410
          %7602 = vmatprep.subr.mxu0 0.0
          %7603 = vmatpush1.msra.mxu0 %v7409
          %7604 = vmatprep.subr.mxu0 0.0
          %7605 = vmatpush1.msra.mxu0 %v7408
          %7606 = vmatprep.subr.mxu0 0.0
          %7607 = vmatpush1.msra.mxu0 %v7407
          %7608 = vmatprep.subr.mxu0 0.0
          %7609 = vmatpush2.msra.mxu0 %v7438
          %7610 = vmatprep.subr.mxu0 0.0
          %7611 = vmatpush2.msra.mxu0 %v7437
          %7612 = vmatprep.subr.mxu0 0.0
          %7613 = vmatpush2.msra.mxu0 %v7436
          %7614 = vmatprep.subr.mxu0 0.0
          %7615 = vmatpush2.msra.mxu0 %v7435
          %7616 = vmatprep.subr.mxu0 0.0
          %7617 = vmatpush2.msra.mxu0 %v7434
          %7618 = vmatprep.subr.mxu0 0.0
          %7619 = vmatpush2.msra.mxu0 %v7433
          %7620 = vmatprep.subr.mxu0 0.0
          %7621 = vmatpush2.msra.mxu0 %v7432
          %7622 = vmatprep.subr.mxu0 0.0
          %7623 = vmatpush2.msra.mxu0 %v7431
          %7624 = vmatprep.subr.mxu0 0.0
          %7625 = vmatpush2.msra.mxu0 %v7430
          %7626 = vmatprep.subr.mxu0 0.0
          %7627 = vmatpush2.msra.mxu0 %v7429
          %7628 = vmatprep.subr.mxu0 0.0
          %7629 = vmatpush2.msra.mxu0 %v7428
          %7630 = vmatprep.subr.mxu0 0.0
          %7631 = vmatpush2.msra.mxu0 %v7427
          %7632 = vmatprep.subr.mxu0 0.0
          %7633 = vmatpush2.msra.mxu0 %v7426
          %7634 = vmatprep.subr.mxu0 0.0
          %7635 = vmatpush2.msra.mxu0 %v7425
          %7636 = vmatprep.subr.mxu0 0.0
          %7637 = vmatpush2.msra.mxu0 %v7424
          %7638 = vmatprep.subr.mxu0 0.0
          %7639 = vmatpush2.msra.mxu0 %v7423
          %7640 = vmatprep.mubr.f32.mxu0 %v7543
          %7641 = vmatmul.mubr.f32.gmra.mxu0 %v7539
          %v7642 = vpop.f32.mrf.mxu0
          %v7643 = vadd.f32 0.0, %v7642
          %v7644 = vpop.f32.mrf.mxu0
          %7645 = vdwg.mxu0
          %7646 = vmatprep.subr.mxu0 0.0
          %7647 = vmatpush1.msra.mxu0 %v7454
          %7648 = vmatprep.subr.mxu0 0.0
          %7649 = vmatpush1.msra.mxu0 %v7453
          %7650 = vmatprep.subr.mxu0 0.0
          %7651 = vmatpush1.msra.mxu0 %v7452
          %7652 = vmatprep.subr.mxu0 0.0
          %7653 = vmatpush1.msra.mxu0 %v7451
          %7654 = vmatprep.subr.mxu0 0.0
          %7655 = vmatpush1.msra.mxu0 %v7450
          %7656 = vmatprep.subr.mxu0 0.0
          %7657 = vmatpush1.msra.mxu0 %v7449
          %7658 = vmatprep.subr.mxu0 0.0
          %7659 = vmatpush1.msra.mxu0 %v7448
          %7660 = vmatprep.subr.mxu0 0.0
          %7661 = vmatpush1.msra.mxu0 %v7447
          %7662 = vmatprep.subr.mxu0 0.0
          %7663 = vmatpush1.msra.mxu0 %v7446
          %7664 = vmatprep.subr.mxu0 0.0
          %7665 = vmatpush1.msra.mxu0 %v7445
          %7666 = vmatprep.subr.mxu0 0.0
          %7667 = vmatpush1.msra.mxu0 %v7444
          %7668 = vmatprep.subr.mxu0 0.0
          %7669 = vmatpush1.msra.mxu0 %v7443
          %7670 = vmatprep.subr.mxu0 0.0
          %7671 = vmatpush1.msra.mxu0 %v7442
          %7672 = vmatprep.subr.mxu0 0.0
          %7673 = vmatpush1.msra.mxu0 %v7441
          %7674 = vmatprep.subr.mxu0 0.0
          %7675 = vmatpush1.msra.mxu0 %v7440
          %7676 = vmatprep.subr.mxu0 0.0
          %7677 = vmatpush1.msra.mxu0 %v7439
          %7678 = vmatprep.subr.mxu0 0.0
          %7679 = vmatpush2.msra.mxu0 %v7470
          %7680 = vmatprep.subr.mxu0 0.0
          %7681 = vmatpush2.msra.mxu0 %v7469
          %7682 = vmatprep.subr.mxu0 0.0
          %7683 = vmatpush2.msra.mxu0 %v7468
          %7684 = vmatprep.subr.mxu0 0.0
          %7685 = vmatpush2.msra.mxu0 %v7467
          %7686 = vmatprep.subr.mxu0 0.0
          %7687 = vmatpush2.msra.mxu0 %v7466
          %7688 = vmatprep.subr.mxu0 0.0
          %7689 = vmatpush2.msra.mxu0 %v7465
          %7690 = vmatprep.subr.mxu0 0.0
          %7691 = vmatpush2.msra.mxu0 %v7464
          %7692 = vmatprep.subr.mxu0 0.0
          %7693 = vmatpush2.msra.mxu0 %v7463
          %7694 = vmatprep.subr.mxu0 0.0
          %7695 = vmatpush2.msra.mxu0 %v7462
          %7696 = vmatprep.subr.mxu0 0.0
          %7697 = vmatpush2.msra.mxu0 %v7461
          %7698 = vmatprep.subr.mxu0 0.0
          %7699 = vmatpush2.msra.mxu0 %v7460
          %7700 = vmatprep.subr.mxu0 0.0
          %7701 = vmatpush2.msra.mxu0 %v7459
          %7702 = vmatprep.subr.mxu0 0.0
          %7703 = vmatpush2.msra.mxu0 %v7458
          %7704 = vmatprep.subr.mxu0 0.0
          %7705 = vmatpush2.msra.mxu0 %v7457
          %7706 = vmatprep.subr.mxu0 0.0
          %7707 = vmatpush2.msra.mxu0 %v7456
          %7708 = vmatprep.subr.mxu0 0.0
          %7709 = vmatpush2.msra.mxu0 %v7455
          %7710 = vmatprep.mubr.f32.mxu0 %v7551
          %7711 = vmatmul.mubr.f32.gmra.mxu0 %v7547
          %v7712 = vpop.f32.mrf.mxu0
          %v7713 = vadd.f32 %v7643, %v7712
          %v7714 = vpop.f32.mrf.mxu0
          %7715 = vdwg.mxu0
          %7716 = vmatprep.subr.mxu0 0.0
          %7717 = vmatpush1.msra.mxu0 %v7486
          %7718 = vmatprep.subr.mxu0 0.0
          %7719 = vmatpush1.msra.mxu0 %v7485
          %7720 = vmatprep.subr.mxu0 0.0
          %7721 = vmatpush1.msra.mxu0 %v7484
          %7722 = vmatprep.subr.mxu0 0.0
          %7723 = vmatpush1.msra.mxu0 %v7483
          %7724 = vmatprep.subr.mxu0 0.0
          %7725 = vmatpush1.msra.mxu0 %v7482
          %7726 = vmatprep.subr.mxu0 0.0
          %7727 = vmatpush1.msra.mxu0 %v7481
          %7728 = vmatprep.subr.mxu0 0.0
          %7729 = vmatpush1.msra.mxu0 %v7480
          %7730 = vmatprep.subr.mxu0 0.0
          %7731 = vmatpush1.msra.mxu0 %v7479
          %7732 = vmatprep.subr.mxu0 0.0
          %7733 = vmatpush1.msra.mxu0 %v7478
          %7734 = vmatprep.subr.mxu0 0.0
          %7735 = vmatpush1.msra.mxu0 %v7477
          %7736 = vmatprep.subr.mxu0 0.0
          %7737 = vmatpush1.msra.mxu0 %v7476
          %7738 = vmatprep.subr.mxu0 0.0
          %7739 = vmatpush1.msra.mxu0 %v7475
          %7740 = vmatprep.subr.mxu0 0.0
          %7741 = vmatpush1.msra.mxu0 %v7474
          %7742 = vmatprep.subr.mxu0 0.0
          %7743 = vmatpush1.msra.mxu0 %v7473
          %7744 = vmatprep.subr.mxu0 0.0
          %7745 = vmatpush1.msra.mxu0 %v7472
          %7746 = vmatprep.subr.mxu0 0.0
          %7747 = vmatpush1.msra.mxu0 %v7471
          %7748 = vmatprep.subr.mxu0 0.0
          %7749 = vmatpush2.msra.mxu0 %v7502
          %7750 = vmatprep.subr.mxu0 0.0
          %7751 = vmatpush2.msra.mxu0 %v7501
          %7752 = vmatprep.subr.mxu0 0.0
          %7753 = vmatpush2.msra.mxu0 %v7500
          %7754 = vmatprep.subr.mxu0 0.0
          %7755 = vmatpush2.msra.mxu0 %v7499
          %7756 = vmatprep.subr.mxu0 0.0
          %7757 = vmatpush2.msra.mxu0 %v7498
          %7758 = vmatprep.subr.mxu0 0.0
          %7759 = vmatpush2.msra.mxu0 %v7497
          %7760 = vmatprep.subr.mxu0 0.0
          %7761 = vmatpush2.msra.mxu0 %v7496
          %7762 = vmatprep.subr.mxu0 0.0
          %7763 = vmatpush2.msra.mxu0 %v7495
          %7764 = vmatprep.subr.mxu0 0.0
          %7765 = vmatpush2.msra.mxu0 %v7494
          %7766 = vmatprep.subr.mxu0 0.0
          %7767 = vmatpush2.msra.mxu0 %v7493
          %7768 = vmatprep.subr.mxu0 0.0
          %7769 = vmatpush2.msra.mxu0 %v7492
          %7770 = vmatprep.subr.mxu0 0.0
          %7771 = vmatpush2.msra.mxu0 %v7491
          %7772 = vmatprep.subr.mxu0 0.0
          %7773 = vmatpush2.msra.mxu0 %v7490
          %7774 = vmatprep.subr.mxu0 0.0
          %7775 = vmatpush2.msra.mxu0 %v7489
          %7776 = vmatprep.subr.mxu0 0.0
          %7777 = vmatpush2.msra.mxu0 %v7488
          %7778 = vmatprep.subr.mxu0 0.0
          %7779 = vmatpush2.msra.mxu0 %v7487
          %7780 = vmatprep.mubr.f32.mxu0 %v7559
          %7781 = vmatmul.mubr.f32.gmra.mxu0 %v7555
          %v7782 = vpop.f32.mrf.mxu0
          %v7783 = vadd.f32 %v7713, %v7782
          %v7784 = vpop.f32.mrf.mxu0
          %7785 = vdwg.mxu0
          %7786 = vmatprep.subr.mxu0 0.0
          %7787 = vmatpush1.msra.mxu0 %v7518
          %7788 = vmatprep.subr.mxu0 0.0
          %7789 = vmatpush1.msra.mxu0 %v7517
          %7790 = vmatprep.subr.mxu0 0.0
          %7791 = vmatpush1.msra.mxu0 %v7516
          %7792 = vmatprep.subr.mxu0 0.0
          %7793 = vmatpush1.msra.mxu0 %v7515
          %7794 = vmatprep.subr.mxu0 0.0
          %7795 = vmatpush1.msra.mxu0 %v7514
          %7796 = vmatprep.subr.mxu0 0.0
          %7797 = vmatpush1.msra.mxu0 %v7513
          %7798 = vmatprep.subr.mxu0 0.0
          %7799 = vmatpush1.msra.mxu0 %v7512
          %7800 = vmatprep.subr.mxu0 0.0
          %7801 = vmatpush1.msra.mxu0 %v7511
          %7802 = vmatprep.subr.mxu0 0.0
          %7803 = vmatpush1.msra.mxu0 %v7510
          %7804 = vmatprep.subr.mxu0 0.0
          %7805 = vmatpush1.msra.mxu0 %v7509
          %7806 = vmatprep.subr.mxu0 0.0
          %7807 = vmatpush1.msra.mxu0 %v7508
          %7808 = vmatprep.subr.mxu0 0.0
          %7809 = vmatpush1.msra.mxu0 %v7507
          %7810 = vmatprep.subr.mxu0 0.0
          %7811 = vmatpush1.msra.mxu0 %v7506
          %7812 = vmatprep.subr.mxu0 0.0
          %7813 = vmatpush1.msra.mxu0 %v7505
          %7814 = vmatprep.subr.mxu0 0.0
          %7815 = vmatpush1.msra.mxu0 %v7504
          %7816 = vmatprep.subr.mxu0 0.0
          %7817 = vmatpush1.msra.mxu0 %v7503
          %7818 = vmatprep.subr.mxu0 0.0
          %7819 = vmatpush2.msra.mxu0 %v7534
          %7820 = vmatprep.subr.mxu0 0.0
          %7821 = vmatpush2.msra.mxu0 %v7533
          %7822 = vmatprep.subr.mxu0 0.0
          %7823 = vmatpush2.msra.mxu0 %v7532
          %7824 = vmatprep.subr.mxu0 0.0
          %7825 = vmatpush2.msra.mxu0 %v7531
          %7826 = vmatprep.subr.mxu0 0.0
          %7827 = vmatpush2.msra.mxu0 %v7530
          %7828 = vmatprep.subr.mxu0 0.0
          %7829 = vmatpush2.msra.mxu0 %v7529
          %7830 = vmatprep.subr.mxu0 0.0
          %7831 = vmatpush2.msra.mxu0 %v7528
          %7832 = vmatprep.subr.mxu0 0.0
          %7833 = vmatpush2.msra.mxu0 %v7527
          %7834 = vmatprep.subr.mxu0 0.0
          %7835 = vmatpush2.msra.mxu0 %v7526
          %7836 = vmatprep.subr.mxu0 0.0
          %7837 = vmatpush2.msra.mxu0 %v7525
          %7838 = vmatprep.subr.mxu0 0.0
          %7839 = vmatpush2.msra.mxu0 %v7524
          %7840 = vmatprep.subr.mxu0 0.0
          %7841 = vmatpush2.msra.mxu0 %v7523
          %7842 = vmatprep.subr.mxu0 0.0
          %7843 = vmatpush2.msra.mxu0 %v7522
          %7844 = vmatprep.subr.mxu0 0.0
          %7845 = vmatpush2.msra.mxu0 %v7521
          %7846 = vmatprep.subr.mxu0 0.0
          %7847 = vmatpush2.msra.mxu0 %v7520
          %7848 = vmatprep.subr.mxu0 0.0
          %7849 = vmatpush2.msra.mxu0 %v7519
          %7850 = vmatprep.mubr.f32.mxu0 %v7567
          %7851 = vmatmul.mubr.f32.gmra.mxu0 %v7563
          %v7852 = vpop.f32.mrf.mxu0
          %v7853 = vadd.f32 %v7783, %v7852
          %v7854 = vpop.f32.mrf.mxu0
          %7855 = vdwg.mxu0
          %vm7856 = vcmask 8192
          %7857 = vst.msk [vmem:[%s472] sm:$0x1] %vm7856, %v7853
        $region68: #{joint_abmil_forward.1} parent=47 // pred_fallthru
          _
        %p7858 = scmp.lt.s32.totalorder %s25, 1
        %s7859 = scalar_select %p7858, %s25, 1
        %p7860 = scmp.lt.s32.totalorder %s26, 0
        %s7861 = scalar_select %p7860, %s26, 0
        %s7862 = sadd.s32 %s7861, %s7859
        %s7863 = scalar_lea.vmem %s7, %s7862
        %p7864 = scmp.lt.s32.totalorder %s25, 1
        %s7865 = scalar_select %p7864, %s25, 1
        %s7866 = scalar_lea.vmem %s8, %s7865
        // Predicated region
        $region69: #{joint_abmil_forward.1} parent=47 // pred_check
          %p7867 = pneg %p236
        $region70: #{joint_abmil_forward.1} parent=47 // pred_check_branch
          %7869 = sbr.rel (%p7867) target = $region72
        $region71: #{joint_abmil_forward.1} parent=47 // pred_region
          _
        $region72: #{joint_abmil_forward.1} parent=47 // pred_fallthru
          _
        // Predicated region
        $region73: #{joint_abmil_forward.1} parent=47 // pred_check
          %p7870 = pneg %p262
        $region74: #{joint_abmil_forward.1} parent=47 // pred_check_branch
          %7872 = sbr.rel (%p7870) target = $region76
        $region75: #{joint_abmil_forward.1} parent=47 // pred_region
          _
        $region76: #{joint_abmil_forward.1} parent=47 // pred_fallthru
          _
      $region48: #{joint_abmil_forward.1} parent=5 // pred_fallthru
        _
      %p7873 = scmp.le.s32.totalorder 2, %s16
      // Predicated region
      $region77: #{joint_abmil_forward.1} parent=5 // pred_check
        %p7874 = pneg %p7873
      $region78: #{joint_abmil_forward.1} parent=5 // pred_check_branch
        %7876 = sbr.rel (%p7874) target = $region80
      $region79: #{joint_abmil_forward.1} parent=5 // pred_region
        %s7877 = ssub.s32 %s16, 2
        // Predicated region
        $region81: #{joint_abmil_forward.1} parent=79 // pred_check
          %p7878 = pneg %p242
        $region82: #{joint_abmil_forward.1} parent=79 // pred_check_branch
          %7880 = sbr.rel (%p7878) target = $region84
        $region83: #{joint_abmil_forward.1} parent=79 // pred_region
          %p7881 = scmp.lt.s32.totalorder %s27, 1
          %s7882 = scalar_select %p7881, %s27, 1
          %p7883 = scmp.lt.s32.totalorder %s28, 0
          %s7884 = scalar_select %p7883, %s28, 0
          %s7885 = sadd.s32 %s7884, %s7882
          %s7886 = scalar_lea.vmem %s7, %s7885
        $region84: #{joint_abmil_forward.1} parent=79 // pred_fallthru
          _
        // Predicated region
        $region85: #{joint_abmil_forward.1} parent=79 // pred_check
          %p7887 = pneg %p268
        $region86: #{joint_abmil_forward.1} parent=79 // pred_check_branch
          %7889 = sbr.rel (%p7887) target = $region88
        $region87: #{joint_abmil_forward.1} parent=79 // pred_region
          %p7890 = scmp.lt.s32.totalorder %s27, 1
          %s7891 = scalar_select %p7890, %s27, 1
          %s7892 = scalar_lea.vmem %s8, %s7891
        $region88: #{joint_abmil_forward.1} parent=79 // pred_fallthru
          _
      $region80: #{joint_abmil_forward.1} parent=5 // pred_fallthru
        _
    $region6: #{joint_abmil_forward.1} parent=1 // loop_footer
      %s20 = sadd.s32 1, %s16
    $region7: #{joint_abmil_forward.1} parent=1 // loop_footer_branch
      %15 = sbr.rel target = $region3
    $region8: #{joint_abmil_forward.1} parent=1 // loop_exit
      _
    %7893 = vsyncpa [#allocation6], 1
    %s7894 = scalar_lea.sflag [#allocation6], 1
    %7895 = vsyncpa %s7894, 1

</llo_original>
